<compile_context>
chip_gen: v7x
topology: tpu7x:2x2x1
jax: 0.10.0
libtpu: 0.0.40
codegen_flags: <defaults>
</compile_context>

<pallas_src>
import functools
import math

import jax
import jax.numpy as jnp
from jax.experimental import pallas as pl
from jax.experimental.pallas import tpu as pltpu


# ----------------------------- in-kernel helpers ---------------------------- #

def _bf16_matmul(x, w_bf16):
    """MXU matmul: bf16 x bf16 inputs, f32 accumulation."""
    return jnp.dot(x.astype(jnp.bfloat16), w_bf16, preferred_element_type=jnp.float32)


def _layernorm(z, g, b, eps):
    mean = jnp.mean(z, axis=-1, keepdims=True)
    var = jnp.mean(jnp.square(z - mean), axis=-1, keepdims=True)
    return (z - mean) * jax.lax.rsqrt(var + eps) * g + b


def _mha_core(q, k, v, out_w_bf, nhead, hd):
    """Multi-head attention for one batch element.

    q: [Lq, D] (already scaled by 1/sqrt(hd) -- folded into the projection
    weights), k/v: [Lk, D], out_w_bf: [D, D] bf16.  Returns the
    output-projected attention [Lq, D] in f32 (output bias NOT added).  Heads
    are handled with static lane slices; each head's contribution is
    accumulated directly through the output projection so no head concat /
    transpose is needed.
    """
    lq, d = q.shape
    acc = jnp.zeros((lq, d), jnp.float32)
    for h in range(nhead):
        sl = slice(h * hd, (h + 1) * hd)
        qh = q[:, sl]
        kh = k[:, sl]
        vh = v[:, sl]
        # scores: contract last dims (no explicit K transpose), f32 for accuracy
        s = jax.lax.dot_general(qh, kh, (((1,), (1,)), ((), ())),
                                preferred_element_type=jnp.float32)     # [Lq, Lk]
        s = s - jnp.max(s, axis=-1, keepdims=True)
        p = jnp.exp(s)
        p = p * pl.reciprocal(jnp.sum(p, axis=-1, keepdims=True), approx=True)
        oh = jnp.dot(p, vh, preferred_element_type=jnp.float32)          # [Lq, hd]
        acc = acc + _bf16_matmul(oh, out_w_bf[sl, :])                    # [Lq, D]
    return acc


# ------------------------------- fused kernel ------------------------------- #

def _transformer_kernel(x_ref, *refs, nhead, eps, n_enc, n_dec):
    """Full encoder+decoder stack for one batch element.

    x_ref : [S, D] (src + pos_embed, batch dim squeezed by BlockSpec)
    o_ref : [n_dec, Q, D] (per-layer decoder outputs)
    """
    o_ref = refs[-1]
    # Read every weight ref exactly once; reused by all (unrolled) layers.
    (e_in_w, e_in_b, e_out_w, e_out_b, e_ln1_g, e_ln1_b,
     e_l1_w, e_l1_b, e_l2_w, e_l2_b, e_ln2_g, e_ln2_b,
     sa_in_w, sa_in_b, sa_out_w, sa_out_b, d_ln1_g, d_ln1_b,
     ca_in_w, ca_in_b, ca_out_w, ca_out_b, d_ln2_g, d_ln2_b,
     d_l1_w, d_l1_b, d_l2_w, d_l2_b, d_ln3_g, d_ln3_b) = [r[...] for r in refs[:-1]]

    x = x_ref[...].astype(jnp.float32)                       # [S, D]
    d = x.shape[-1]
    hd = d // nhead
    q_len = o_ref.shape[1]

    # ---------------- encoder (weights shared across layers) ---------------- #
    mem = x
    for _ in range(n_enc):
        # fused QKV projection (one MXU matmul)
        qkv = _bf16_matmul(mem, e_in_w) + e_in_b
        attn = _mha_core(qkv[:, :d], qkv[:, d:2 * d], qkv[:, 2 * d:],
                         e_out_w, nhead, hd)
        mem = _layernorm(mem + attn + e_out_b, e_ln1_g, e_ln1_b, eps)
        # FFN (the [S, dim_ff] intermediate never leaves VMEM)
        ff = jnp.maximum(_bf16_matmul(mem, e_l1_w) + e_l1_b, 0.0)
        ff = _bf16_matmul(ff, e_l2_w) + e_l2_b
        mem = _layernorm(mem + ff, e_ln2_g, e_ln2_b, eps)

    # ---------------- decoder (weights shared across layers) ---------------- #
    # memory and cross-attn weights are layer-invariant -> project K/V once.
    kv_mem = _bf16_matmul(mem, ca_in_w[:, d:]) + ca_in_b[:, d:]          # [S, 2D]
    k_mem = kv_mem[:, :d]
    v_mem = kv_mem[:, d:]

    out = jnp.zeros((q_len, d), jnp.float32)                 # tgt = zeros_like(query_embed)
    for layer in range(n_dec):
        # self-attention (fused QKV projection)
        qkv = _bf16_matmul(out, sa_in_w) + sa_in_b
        sa = _mha_core(qkv[:, :d], qkv[:, d:2 * d], qkv[:, 2 * d:],
                       sa_out_w, nhead, hd)
        out = _layernorm(out + sa + sa_out_b, d_ln1_g, d_ln1_b, eps)

        # cross-attention (q from tgt; k/v of memory hoisted above)
        qc = _bf16_matmul(out, ca_in_w[:, :d]) + ca_in_b[:, :d]
        ca = _mha_core(qc, k_mem, v_mem, ca_out_w, nhead, hd)
        out = _layernorm(out + ca + ca_out_b, d_ln2_g, d_ln2_b, eps)

        # FFN
        ff = jnp.maximum(_bf16_matmul(out, d_l1_w) + d_l1_b, 0.0)
        ff = _bf16_matmul(ff, d_l2_w) + d_l2_b
        out = _layernorm(out + ff, d_ln3_g, d_ln3_b, eps)

        o_ref[layer] = out.astype(o_ref.dtype)               # "stack(intermediate)"


# ------------------------------- full forward ------------------------------- #

def _rep_spec(shape):
    """Replicated (weight) block: one full-array block, same for every grid step."""
    nd = len(shape)
    return pl.BlockSpec(shape, lambda *_, nd=nd: (0,) * nd)


def _fold_qk_scale(mha_p, d_model, nhead):
    """Fold the 1/sqrt(head_dim) softmax scale into the Q projection weights/bias."""
    scale = 1.0 / math.sqrt(d_model // nhead)
    return {
        **mha_p,
        "in_w": mha_p["in_w"].at[:, :d_model].multiply(scale),
        "in_b": mha_p["in_b"].at[:d_model].multiply(scale),
    }


def transformer_forward(src, query_embed, pos_embed, enc_p, dec_p,
                        num_encoder_layers, num_decoder_layers, nhead):
    s, b, d = src.shape
    q = query_embed.shape[0]
    ff = enc_p["lin1_w"].shape[1]

    # fold softmax scaling into q-projection weights (done once; weights shared)
    enc_p = {**enc_p, "sa": _fold_qk_scale(enc_p["sa"], d, nhead)}
    dec_p = {**dec_p,
             "sa": _fold_qk_scale(dec_p["sa"], d, nhead),
             "ca": _fold_qk_scale(dec_p["ca"], d, nhead)}

    def w(a):   # MXU matmul weights: pre-cast to bf16 (halves DMA, no in-kernel cast)
        return a.astype(jnp.bfloat16)

    def v(a):   # biases / LayerNorm params stay f32, shaped (1, N)
        return a.reshape(1, -1).astype(jnp.float32)

    weights = (
        w(enc_p["sa"]["in_w"]), v(enc_p["sa"]["in_b"]),
        w(enc_p["sa"]["out_w"]), v(enc_p["sa"]["out_b"]),
        v(enc_p["ln1_g"]), v(enc_p["ln1_b"]),
        w(enc_p["lin1_w"]), v(enc_p["lin1_b"]),
        w(enc_p["lin2_w"]), v(enc_p["lin2_b"]),
        v(enc_p["ln2_g"]), v(enc_p["ln2_b"]),
        w(dec_p["sa"]["in_w"]), v(dec_p["sa"]["in_b"]),
        w(dec_p["sa"]["out_w"]), v(dec_p["sa"]["out_b"]),
        v(dec_p["ln1_g"]), v(dec_p["ln1_b"]),
        w(dec_p["ca"]["in_w"]), v(dec_p["ca"]["in_b"]),
        w(dec_p["ca"]["out_w"]), v(dec_p["ca"]["out_b"]),
        v(dec_p["ln2_g"]), v(dec_p["ln2_b"]),
        w(dec_p["lin1_w"]), v(dec_p["lin1_b"]),
        w(dec_p["lin2_w"]), v(dec_p["lin2_b"]),
        v(dec_p["ln3_g"]), v(dec_p["ln3_b"]),
    )

    # batch-major layout for the per-batch fused kernel
    x = jnp.transpose(src + pos_embed, (1, 0, 2))             # [B, S, D]

    in_specs = ([pl.BlockSpec((None, s, d), lambda i: (i, 0, 0))]
                + [_rep_spec(a.shape) for a in weights])

    out = pl.pallas_call(
        functools.partial(_transformer_kernel, nhead=nhead, eps=1e-5,
                          n_enc=num_encoder_layers, n_dec=num_decoder_layers),
        out_shape=jax.ShapeDtypeStruct((b, num_decoder_layers, q, d), src.dtype),
        grid=(b,),
        in_specs=in_specs,
        out_specs=pl.BlockSpec((None, num_decoder_layers, q, d),
                               lambda i: (i, 0, 0, 0)),
        compiler_params=pltpu.CompilerParams(dimension_semantics=("parallel",)),
    )(x, *weights)                                            # [B, L, Q, D]

    return jnp.transpose(out, (1, 2, 0, 3))                   # [L, Q, B, D]


# ------------------------------- param init --------------------------------- #

def xavier_uniform(key, shape):
    fan_in, fan_out = shape[0], shape[1]
    limit = math.sqrt(6.0 / (fan_in + fan_out))
    return jax.random.uniform(key, shape, jnp.float32, -limit, limit)


def init_mha_params(key, d_model):
    k1, k2 = jax.random.split(key)
    return {
        "in_w": xavier_uniform(k1, (d_model, 3 * d_model)),
        "in_b": jnp.zeros((3 * d_model,), jnp.float32),
        "out_w": xavier_uniform(k2, (d_model, d_model)),
        "out_b": jnp.zeros((d_model,), jnp.float32),
    }


def init_encoder_params(key, d_model, dim_ff):
    ks = jax.random.split(key, 3)
    return {
        "sa": init_mha_params(ks[0], d_model),
        "lin1_w": xavier_uniform(ks[1], (d_model, dim_ff)),
        "lin1_b": jnp.zeros((dim_ff,), jnp.float32),
        "lin2_w": xavier_uniform(ks[2], (dim_ff, d_model)),
        "lin2_b": jnp.zeros((d_model,), jnp.float32),
        "ln1_g": jnp.ones((d_model,), jnp.float32),
        "ln1_b": jnp.zeros((d_model,), jnp.float32),
        "ln2_g": jnp.ones((d_model,), jnp.float32),
        "ln2_b": jnp.zeros((d_model,), jnp.float32),
    }


def init_decoder_params(key, d_model, dim_ff):
    ks = jax.random.split(key, 4)
    return {
        "sa": init_mha_params(ks[0], d_model),
        "ca": init_mha_params(ks[1], d_model),
        "lin1_w": xavier_uniform(ks[2], (d_model, dim_ff)),
        "lin1_b": jnp.zeros((dim_ff,), jnp.float32),
        "lin2_w": xavier_uniform(ks[3], (dim_ff, d_model)),
        "lin2_b": jnp.zeros((d_model,), jnp.float32),
        "ln1_g": jnp.ones((d_model,), jnp.float32),
        "ln1_b": jnp.zeros((d_model,), jnp.float32),
        "ln2_g": jnp.ones((d_model,), jnp.float32),
        "ln2_b": jnp.zeros((d_model,), jnp.float32),
        "ln3_g": jnp.ones((d_model,), jnp.float32),
        "ln3_b": jnp.zeros((d_model,), jnp.float32),
    }


# ---------------------------------- main ------------------------------------ #

if __name__ == "__main__":
    d_model = 32
    nhead = 4
    dim_feedforward = 64
    num_encoder_layers = 2
    num_decoder_layers = 2
    S, Q, B = 16, 8, 2

    key = jax.random.PRNGKey(0)
    k_src, k_query, k_pos, k_enc, k_dec = jax.random.split(key, 5)

    src = jax.random.normal(k_src, (S, B, d_model), jnp.float32)
    query_embed = jax.random.normal(k_query, (Q, B, d_model), jnp.float32)
    pos_embed = jax.random.normal(k_pos, (S, B, d_model), jnp.float32)

    enc_params = init_encoder_params(k_enc, d_model, dim_feedforward)
    dec_params = init_decoder_params(k_dec, d_model, dim_feedforward)

    fwd = jax.jit(functools.partial(
        transformer_forward,
        num_encoder_layers=num_encoder_layers,
        num_decoder_layers=num_decoder_layers,
        nhead=nhead,
    ))

    out = fwd(src, query_embed, pos_embed, enc_params, dec_params)
    out = jax.block_until_ready(out)

    assert out.shape == (num_decoder_layers, Q, B, d_model), out.shape
    assert jnp.all(jnp.isfinite(out))
    print("KERNEL_OK")
</pallas_src>

<mosaic_0001>
module attributes {stable_mosaic.version = 11 : i64} {
  func.func @_transformer_kernel(%arg0: i32, %arg1: memref<1x16x32xf32, #tpu.memory_space<vmem>>, %arg2: memref<32x96xbf16, #tpu.memory_space<vmem>>, %arg3: memref<1x96xf32, #tpu.memory_space<vmem>>, %arg4: memref<32x32xbf16, #tpu.memory_space<vmem>>, %arg5: memref<1x32xf32, #tpu.memory_space<vmem>>, %arg6: memref<1x32xf32, #tpu.memory_space<vmem>>, %arg7: memref<1x32xf32, #tpu.memory_space<vmem>>, %arg8: memref<32x64xbf16, #tpu.memory_space<vmem>>, %arg9: memref<1x64xf32, #tpu.memory_space<vmem>>, %arg10: memref<64x32xbf16, #tpu.memory_space<vmem>>, %arg11: memref<1x32xf32, #tpu.memory_space<vmem>>, %arg12: memref<1x32xf32, #tpu.memory_space<vmem>>, %arg13: memref<1x32xf32, #tpu.memory_space<vmem>>, %arg14: memref<32x96xbf16, #tpu.memory_space<vmem>>, %arg15: memref<1x96xf32, #tpu.memory_space<vmem>>, %arg16: memref<32x32xbf16, #tpu.memory_space<vmem>>, %arg17: memref<1x32xf32, #tpu.memory_space<vmem>>, %arg18: memref<1x32xf32, #tpu.memory_space<vmem>>, %arg19: memref<1x32xf32, #tpu.memory_space<vmem>>, %arg20: memref<32x96xbf16, #tpu.memory_space<vmem>>, %arg21: memref<1x96xf32, #tpu.memory_space<vmem>>, %arg22: memref<32x32xbf16, #tpu.memory_space<vmem>>, %arg23: memref<1x32xf32, #tpu.memory_space<vmem>>, %arg24: memref<1x32xf32, #tpu.memory_space<vmem>>, %arg25: memref<1x32xf32, #tpu.memory_space<vmem>>, %arg26: memref<32x64xbf16, #tpu.memory_space<vmem>>, %arg27: memref<1x64xf32, #tpu.memory_space<vmem>>, %arg28: memref<64x32xbf16, #tpu.memory_space<vmem>>, %arg29: memref<1x32xf32, #tpu.memory_space<vmem>>, %arg30: memref<1x32xf32, #tpu.memory_space<vmem>>, %arg31: memref<1x32xf32, #tpu.memory_space<vmem>>, %arg32: memref<1x2x8x32xf32, #tpu.memory_space<vmem>>) attributes {dimension_semantics = [#tpu.dimension_semantics<parallel>], iteration_bounds = array<i64: 2>, scalar_prefetch = 0 : i64, scratch_operands = 0 : i64, tpu.core_type = #tpu.core_type<tc>, window_params = [{transform_indices = @transform_0, window_bounds = array<i64: 1, 16, 32>}, {pipeline_mode = #tpu.pipeline_mode<synchronous>, transform_indices = @transform_1, window_bounds = array<i64: 32, 96>}, {pipeline_mode = #tpu.pipeline_mode<synchronous>, transform_indices = @transform_2, window_bounds = array<i64: 1, 96>}, {pipeline_mode = #tpu.pipeline_mode<synchronous>, transform_indices = @transform_3, window_bounds = array<i64: 32, 32>}, {pipeline_mode = #tpu.pipeline_mode<synchronous>, transform_indices = @transform_4, window_bounds = array<i64: 1, 32>}, {pipeline_mode = #tpu.pipeline_mode<synchronous>, transform_indices = @transform_5, window_bounds = array<i64: 1, 32>}, {pipeline_mode = #tpu.pipeline_mode<synchronous>, transform_indices = @transform_6, window_bounds = array<i64: 1, 32>}, {pipeline_mode = #tpu.pipeline_mode<synchronous>, transform_indices = @transform_7, window_bounds = array<i64: 32, 64>}, {pipeline_mode = #tpu.pipeline_mode<synchronous>, transform_indices = @transform_8, window_bounds = array<i64: 1, 64>}, {pipeline_mode = #tpu.pipeline_mode<synchronous>, transform_indices = @transform_9, window_bounds = array<i64: 64, 32>}, {pipeline_mode = #tpu.pipeline_mode<synchronous>, transform_indices = @transform_10, window_bounds = array<i64: 1, 32>}, {pipeline_mode = #tpu.pipeline_mode<synchronous>, transform_indices = @transform_11, window_bounds = array<i64: 1, 32>}, {pipeline_mode = #tpu.pipeline_mode<synchronous>, transform_indices = @transform_12, window_bounds = array<i64: 1, 32>}, {pipeline_mode = #tpu.pipeline_mode<synchronous>, transform_indices = @transform_13, window_bounds = array<i64: 32, 96>}, {pipeline_mode = #tpu.pipeline_mode<synchronous>, transform_indices = @transform_14, window_bounds = array<i64: 1, 96>}, {pipeline_mode = #tpu.pipeline_mode<synchronous>, transform_indices = @transform_15, window_bounds = array<i64: 32, 32>}, {pipeline_mode = #tpu.pipeline_mode<synchronous>, transform_indices = @transform_16, window_bounds = array<i64: 1, 32>}, {pipeline_mode = #tpu.pipeline_mode<synchronous>, transform_indices = @transform_17, window_bounds = array<i64: 1, 32>}, {pipeline_mode = #tpu.pipeline_mode<synchronous>, transform_indices = @transform_18, window_bounds = array<i64: 1, 32>}, {pipeline_mode = #tpu.pipeline_mode<synchronous>, transform_indices = @transform_19, window_bounds = array<i64: 32, 96>}, {pipeline_mode = #tpu.pipeline_mode<synchronous>, transform_indices = @transform_20, window_bounds = array<i64: 1, 96>}, {pipeline_mode = #tpu.pipeline_mode<synchronous>, transform_indices = @transform_21, window_bounds = array<i64: 32, 32>}, {pipeline_mode = #tpu.pipeline_mode<synchronous>, transform_indices = @transform_22, window_bounds = array<i64: 1, 32>}, {pipeline_mode = #tpu.pipeline_mode<synchronous>, transform_indices = @transform_23, window_bounds = array<i64: 1, 32>}, {pipeline_mode = #tpu.pipeline_mode<synchronous>, transform_indices = @transform_24, window_bounds = array<i64: 1, 32>}, {pipeline_mode = #tpu.pipeline_mode<synchronous>, transform_indices = @transform_25, window_bounds = array<i64: 32, 64>}, {pipeline_mode = #tpu.pipeline_mode<synchronous>, transform_indices = @transform_26, window_bounds = array<i64: 1, 64>}, {pipeline_mode = #tpu.pipeline_mode<synchronous>, transform_indices = @transform_27, window_bounds = array<i64: 64, 32>}, {pipeline_mode = #tpu.pipeline_mode<synchronous>, transform_indices = @transform_28, window_bounds = array<i64: 1, 32>}, {pipeline_mode = #tpu.pipeline_mode<synchronous>, transform_indices = @transform_29, window_bounds = array<i64: 1, 32>}, {pipeline_mode = #tpu.pipeline_mode<synchronous>, transform_indices = @transform_30, window_bounds = array<i64: 1, 32>}, {transform_indices = @transform_31, window_bounds = array<i64: 1, 2, 8, 32>}]} {
    %c0 = arith.constant 0 : index
    %c0_0 = arith.constant 0 : index
    %0 = vector.load %arg2[%c0, %c0_0] : memref<32x96xbf16, #tpu.memory_space<vmem>>, vector<32x96xbf16>
    %c0_1 = arith.constant 0 : index
    %c0_2 = arith.constant 0 : index
    %1 = vector.load %arg3[%c0_1, %c0_2] : memref<1x96xf32, #tpu.memory_space<vmem>>, vector<1x96xf32>
    %c0_3 = arith.constant 0 : index
    %c0_4 = arith.constant 0 : index
    %2 = vector.load %arg4[%c0_3, %c0_4] : memref<32x32xbf16, #tpu.memory_space<vmem>>, vector<32x32xbf16>
    %c0_5 = arith.constant 0 : index
    %c0_6 = arith.constant 0 : index
    %3 = vector.load %arg5[%c0_5, %c0_6] : memref<1x32xf32, #tpu.memory_space<vmem>>, vector<1x32xf32>
    %c0_7 = arith.constant 0 : index
    %c0_8 = arith.constant 0 : index
    %4 = vector.load %arg6[%c0_7, %c0_8] : memref<1x32xf32, #tpu.memory_space<vmem>>, vector<1x32xf32>
    %c0_9 = arith.constant 0 : index
    %c0_10 = arith.constant 0 : index
    %5 = vector.load %arg7[%c0_9, %c0_10] : memref<1x32xf32, #tpu.memory_space<vmem>>, vector<1x32xf32>
    %c0_11 = arith.constant 0 : index
    %c0_12 = arith.constant 0 : index
    %6 = vector.load %arg8[%c0_11, %c0_12] : memref<32x64xbf16, #tpu.memory_space<vmem>>, vector<32x64xbf16>
    %c0_13 = arith.constant 0 : index
    %c0_14 = arith.constant 0 : index
    %7 = vector.load %arg9[%c0_13, %c0_14] : memref<1x64xf32, #tpu.memory_space<vmem>>, vector<1x64xf32>
    %c0_15 = arith.constant 0 : index
    %c0_16 = arith.constant 0 : index
    %8 = vector.load %arg10[%c0_15, %c0_16] : memref<64x32xbf16, #tpu.memory_space<vmem>>, vector<64x32xbf16>
    %c0_17 = arith.constant 0 : index
    %c0_18 = arith.constant 0 : index
    %9 = vector.load %arg11[%c0_17, %c0_18] : memref<1x32xf32, #tpu.memory_space<vmem>>, vector<1x32xf32>
    %c0_19 = arith.constant 0 : index
    %c0_20 = arith.constant 0 : index
    %10 = vector.load %arg12[%c0_19, %c0_20] : memref<1x32xf32, #tpu.memory_space<vmem>>, vector<1x32xf32>
    %c0_21 = arith.constant 0 : index
    %c0_22 = arith.constant 0 : index
    %11 = vector.load %arg13[%c0_21, %c0_22] : memref<1x32xf32, #tpu.memory_space<vmem>>, vector<1x32xf32>
    %c0_23 = arith.constant 0 : index
    %c0_24 = arith.constant 0 : index
    %12 = vector.load %arg14[%c0_23, %c0_24] : memref<32x96xbf16, #tpu.memory_space<vmem>>, vector<32x96xbf16>
    %c0_25 = arith.constant 0 : index
    %c0_26 = arith.constant 0 : index
    %13 = vector.load %arg15[%c0_25, %c0_26] : memref<1x96xf32, #tpu.memory_space<vmem>>, vector<1x96xf32>
    %c0_27 = arith.constant 0 : index
    %c0_28 = arith.constant 0 : index
    %14 = vector.load %arg16[%c0_27, %c0_28] : memref<32x32xbf16, #tpu.memory_space<vmem>>, vector<32x32xbf16>
    %c0_29 = arith.constant 0 : index
    %c0_30 = arith.constant 0 : index
    %15 = vector.load %arg17[%c0_29, %c0_30] : memref<1x32xf32, #tpu.memory_space<vmem>>, vector<1x32xf32>
    %c0_31 = arith.constant 0 : index
    %c0_32 = arith.constant 0 : index
    %16 = vector.load %arg18[%c0_31, %c0_32] : memref<1x32xf32, #tpu.memory_space<vmem>>, vector<1x32xf32>
    %c0_33 = arith.constant 0 : index
    %c0_34 = arith.constant 0 : index
    %17 = vector.load %arg19[%c0_33, %c0_34] : memref<1x32xf32, #tpu.memory_space<vmem>>, vector<1x32xf32>
    %c0_35 = arith.constant 0 : index
    %c0_36 = arith.constant 0 : index
    %18 = vector.load %arg20[%c0_35, %c0_36] : memref<32x96xbf16, #tpu.memory_space<vmem>>, vector<32x96xbf16>
    %c0_37 = arith.constant 0 : index
    %c0_38 = arith.constant 0 : index
    %19 = vector.load %arg21[%c0_37, %c0_38] : memref<1x96xf32, #tpu.memory_space<vmem>>, vector<1x96xf32>
    %c0_39 = arith.constant 0 : index
    %c0_40 = arith.constant 0 : index
    %20 = vector.load %arg22[%c0_39, %c0_40] : memref<32x32xbf16, #tpu.memory_space<vmem>>, vector<32x32xbf16>
    %c0_41 = arith.constant 0 : index
    %c0_42 = arith.constant 0 : index
    %21 = vector.load %arg23[%c0_41, %c0_42] : memref<1x32xf32, #tpu.memory_space<vmem>>, vector<1x32xf32>
    %c0_43 = arith.constant 0 : index
    %c0_44 = arith.constant 0 : index
    %22 = vector.load %arg24[%c0_43, %c0_44] : memref<1x32xf32, #tpu.memory_space<vmem>>, vector<1x32xf32>
    %c0_45 = arith.constant 0 : index
    %c0_46 = arith.constant 0 : index
    %23 = vector.load %arg25[%c0_45, %c0_46] : memref<1x32xf32, #tpu.memory_space<vmem>>, vector<1x32xf32>
    %c0_47 = arith.constant 0 : index
    %c0_48 = arith.constant 0 : index
    %24 = vector.load %arg26[%c0_47, %c0_48] : memref<32x64xbf16, #tpu.memory_space<vmem>>, vector<32x64xbf16>
    %c0_49 = arith.constant 0 : index
    %c0_50 = arith.constant 0 : index
    %25 = vector.load %arg27[%c0_49, %c0_50] : memref<1x64xf32, #tpu.memory_space<vmem>>, vector<1x64xf32>
    %c0_51 = arith.constant 0 : index
    %c0_52 = arith.constant 0 : index
    %26 = vector.load %arg28[%c0_51, %c0_52] : memref<64x32xbf16, #tpu.memory_space<vmem>>, vector<64x32xbf16>
    %c0_53 = arith.constant 0 : index
    %c0_54 = arith.constant 0 : index
    %27 = vector.load %arg29[%c0_53, %c0_54] : memref<1x32xf32, #tpu.memory_space<vmem>>, vector<1x32xf32>
    %c0_55 = arith.constant 0 : index
    %c0_56 = arith.constant 0 : index
    %28 = vector.load %arg30[%c0_55, %c0_56] : memref<1x32xf32, #tpu.memory_space<vmem>>, vector<1x32xf32>
    %c0_57 = arith.constant 0 : index
    %c0_58 = arith.constant 0 : index
    %29 = vector.load %arg31[%c0_57, %c0_58] : memref<1x32xf32, #tpu.memory_space<vmem>>, vector<1x32xf32>
    %c0_59 = arith.constant 0 : index
    %c0_60 = arith.constant 0 : index
    %c0_61 = arith.constant 0 : index
    %30 = vector.load %arg1[%c0_59, %c0_60, %c0_61] : memref<1x16x32xf32, #tpu.memory_space<vmem>>, vector<1x16x32xf32>
    %31 = vector.shape_cast %30 : vector<1x16x32xf32> to vector<16x32xf32>
    %32 = arith.truncf %31 : vector<16x32xf32> to vector<16x32xbf16>
    %cst = arith.constant dense<0.000000e+00> : vector<16x96xf32>
    %33 = tpu.matmul %32, %0, %cst {dimension_numbers = #tpu.dot_dimension_numbers<[1], [0], [0], [1], [0, 0, 1, 1], [], []>} : vector<16x32xbf16>, vector<32x96xbf16>, vector<16x96xf32> -> vector<16x96xf32>
    %34 = vector.broadcast %1 : vector<1x96xf32> to vector<16x96xf32>
    %35 = arith.addf %33, %34 : vector<16x96xf32>
    %36 = vector.extract_strided_slice %35 {offsets = [0, 0], sizes = [16, 32], strides = [1, 1]} : vector<16x96xf32> to vector<16x32xf32>
    %37 = vector.extract_strided_slice %35 {offsets = [0, 32], sizes = [16, 32], strides = [1, 1]} : vector<16x96xf32> to vector<16x32xf32>
    %38 = vector.extract_strided_slice %35 {offsets = [0, 64], sizes = [16, 32], strides = [1, 1]} : vector<16x96xf32> to vector<16x32xf32>
    %cst_62 = arith.constant 0.000000e+00 : f32
    %39 = vector.broadcast %cst_62 : f32 to vector<16x32xf32>
    %40 = vector.extract_strided_slice %36 {offsets = [0, 0], sizes = [16, 8], strides = [1, 1]} : vector<16x32xf32> to vector<16x8xf32>
    %41 = vector.extract_strided_slice %37 {offsets = [0, 0], sizes = [16, 8], strides = [1, 1]} : vector<16x32xf32> to vector<16x8xf32>
    %42 = vector.extract_strided_slice %38 {offsets = [0, 0], sizes = [16, 8], strides = [1, 1]} : vector<16x32xf32> to vector<16x8xf32>
    %cst_63 = arith.constant dense<0.000000e+00> : vector<16x16xf32>
    %43 = tpu.matmul %40, %41, %cst_63 {dimension_numbers = #tpu.dot_dimension_numbers<[1], [1], [0], [0], [0, 0, 1, 0], [], []>} : vector<16x8xf32>, vector<16x8xf32>, vector<16x16xf32> -> vector<16x16xf32>
    %cst_64 = arith.constant dense<0xFF800000> : vector<16xf32>
    %44 = vector.multi_reduction <maximumf>, %43, %cst_64 [1] : vector<16x16xf32> to vector<16xf32>
    %45 = vector.shape_cast %44 : vector<16xf32> to vector<16x1xf32>
    %46 = vector.broadcast %45 : vector<16x1xf32> to vector<16x16xf32>
    %47 = arith.subf %43, %46 : vector<16x16xf32>
    %48 = math.exp %47 : vector<16x16xf32>
    %cst_65 = arith.constant dense<0.000000e+00> : vector<16xf32>
    %49 = vector.multi_reduction <add>, %48, %cst_65 [1] : vector<16x16xf32> to vector<16xf32>
    %50 = vector.shape_cast %49 : vector<16xf32> to vector<16x1xf32>
    %51 = tpu.reciprocal %50 {approx = true} : vector<16x1xf32> -> vector<16x1xf32>
    %52 = vector.broadcast %51 : vector<16x1xf32> to vector<16x16xf32>
    %53 = arith.mulf %48, %52 : vector<16x16xf32>
    %cst_66 = arith.constant dense<0.000000e+00> : vector<16x8xf32>
    %54 = tpu.matmul %53, %42, %cst_66 {dimension_numbers = #tpu.dot_dimension_numbers<[1], [0], [0], [1], [0, 0, 1, 1], [], []>} : vector<16x16xf32>, vector<16x8xf32>, vector<16x8xf32> -> vector<16x8xf32>
    %55 = vector.extract_strided_slice %2 {offsets = [0, 0], sizes = [8, 32], strides = [1, 1]} : vector<32x32xbf16> to vector<8x32xbf16>
    %56 = arith.truncf %54 : vector<16x8xf32> to vector<16x8xbf16>
    %cst_67 = arith.constant dense<0.000000e+00> : vector<16x32xf32>
    %57 = tpu.matmul %56, %55, %cst_67 {dimension_numbers = #tpu.dot_dimension_numbers<[1], [0], [0], [1], [0, 0, 1, 1], [], []>} : vector<16x8xbf16>, vector<8x32xbf16>, vector<16x32xf32> -> vector<16x32xf32>
    %58 = arith.addf %39, %57 : vector<16x32xf32>
    %59 = vector.extract_strided_slice %36 {offsets = [0, 8], sizes = [16, 8], strides = [1, 1]} : vector<16x32xf32> to vector<16x8xf32>
    %60 = vector.extract_strided_slice %37 {offsets = [0, 8], sizes = [16, 8], strides = [1, 1]} : vector<16x32xf32> to vector<16x8xf32>
    %61 = vector.extract_strided_slice %38 {offsets = [0, 8], sizes = [16, 8], strides = [1, 1]} : vector<16x32xf32> to vector<16x8xf32>
    %cst_68 = arith.constant dense<0.000000e+00> : vector<16x16xf32>
    %62 = tpu.matmul %59, %60, %cst_68 {dimension_numbers = #tpu.dot_dimension_numbers<[1], [1], [0], [0], [0, 0, 1, 0], [], []>} : vector<16x8xf32>, vector<16x8xf32>, vector<16x16xf32> -> vector<16x16xf32>
    %cst_69 = arith.constant dense<0xFF800000> : vector<16xf32>
    %63 = vector.multi_reduction <maximumf>, %62, %cst_69 [1] : vector<16x16xf32> to vector<16xf32>
    %64 = vector.shape_cast %63 : vector<16xf32> to vector<16x1xf32>
    %65 = vector.broadcast %64 : vector<16x1xf32> to vector<16x16xf32>
    %66 = arith.subf %62, %65 : vector<16x16xf32>
    %67 = math.exp %66 : vector<16x16xf32>
    %cst_70 = arith.constant dense<0.000000e+00> : vector<16xf32>
    %68 = vector.multi_reduction <add>, %67, %cst_70 [1] : vector<16x16xf32> to vector<16xf32>
    %69 = vector.shape_cast %68 : vector<16xf32> to vector<16x1xf32>
    %70 = tpu.reciprocal %69 {approx = true} : vector<16x1xf32> -> vector<16x1xf32>
    %71 = vector.broadcast %70 : vector<16x1xf32> to vector<16x16xf32>
    %72 = arith.mulf %67, %71 : vector<16x16xf32>
    %cst_71 = arith.constant dense<0.000000e+00> : vector<16x8xf32>
    %73 = tpu.matmul %72, %61, %cst_71 {dimension_numbers = #tpu.dot_dimension_numbers<[1], [0], [0], [1], [0, 0, 1, 1], [], []>} : vector<16x16xf32>, vector<16x8xf32>, vector<16x8xf32> -> vector<16x8xf32>
    %74 = vector.extract_strided_slice %2 {offsets = [8, 0], sizes = [8, 32], strides = [1, 1]} : vector<32x32xbf16> to vector<8x32xbf16>
    %75 = arith.truncf %73 : vector<16x8xf32> to vector<16x8xbf16>
    %cst_72 = arith.constant dense<0.000000e+00> : vector<16x32xf32>
    %76 = tpu.matmul %75, %74, %cst_72 {dimension_numbers = #tpu.dot_dimension_numbers<[1], [0], [0], [1], [0, 0, 1, 1], [], []>} : vector<16x8xbf16>, vector<8x32xbf16>, vector<16x32xf32> -> vector<16x32xf32>
    %77 = arith.addf %58, %76 : vector<16x32xf32>
    %78 = vector.extract_strided_slice %36 {offsets = [0, 16], sizes = [16, 8], strides = [1, 1]} : vector<16x32xf32> to vector<16x8xf32>
    %79 = vector.extract_strided_slice %37 {offsets = [0, 16], sizes = [16, 8], strides = [1, 1]} : vector<16x32xf32> to vector<16x8xf32>
    %80 = vector.extract_strided_slice %38 {offsets = [0, 16], sizes = [16, 8], strides = [1, 1]} : vector<16x32xf32> to vector<16x8xf32>
    %cst_73 = arith.constant dense<0.000000e+00> : vector<16x16xf32>
    %81 = tpu.matmul %78, %79, %cst_73 {dimension_numbers = #tpu.dot_dimension_numbers<[1], [1], [0], [0], [0, 0, 1, 0], [], []>} : vector<16x8xf32>, vector<16x8xf32>, vector<16x16xf32> -> vector<16x16xf32>
    %cst_74 = arith.constant dense<0xFF800000> : vector<16xf32>
    %82 = vector.multi_reduction <maximumf>, %81, %cst_74 [1] : vector<16x16xf32> to vector<16xf32>
    %83 = vector.shape_cast %82 : vector<16xf32> to vector<16x1xf32>
    %84 = vector.broadcast %83 : vector<16x1xf32> to vector<16x16xf32>
    %85 = arith.subf %81, %84 : vector<16x16xf32>
    %86 = math.exp %85 : vector<16x16xf32>
    %cst_75 = arith.constant dense<0.000000e+00> : vector<16xf32>
    %87 = vector.multi_reduction <add>, %86, %cst_75 [1] : vector<16x16xf32> to vector<16xf32>
    %88 = vector.shape_cast %87 : vector<16xf32> to vector<16x1xf32>
    %89 = tpu.reciprocal %88 {approx = true} : vector<16x1xf32> -> vector<16x1xf32>
    %90 = vector.broadcast %89 : vector<16x1xf32> to vector<16x16xf32>
    %91 = arith.mulf %86, %90 : vector<16x16xf32>
    %cst_76 = arith.constant dense<0.000000e+00> : vector<16x8xf32>
    %92 = tpu.matmul %91, %80, %cst_76 {dimension_numbers = #tpu.dot_dimension_numbers<[1], [0], [0], [1], [0, 0, 1, 1], [], []>} : vector<16x16xf32>, vector<16x8xf32>, vector<16x8xf32> -> vector<16x8xf32>
    %93 = vector.extract_strided_slice %2 {offsets = [16, 0], sizes = [8, 32], strides = [1, 1]} : vector<32x32xbf16> to vector<8x32xbf16>
    %94 = arith.truncf %92 : vector<16x8xf32> to vector<16x8xbf16>
    %cst_77 = arith.constant dense<0.000000e+00> : vector<16x32xf32>
    %95 = tpu.matmul %94, %93, %cst_77 {dimension_numbers = #tpu.dot_dimension_numbers<[1], [0], [0], [1], [0, 0, 1, 1], [], []>} : vector<16x8xbf16>, vector<8x32xbf16>, vector<16x32xf32> -> vector<16x32xf32>
    %96 = arith.addf %77, %95 : vector<16x32xf32>
    %97 = vector.extract_strided_slice %36 {offsets = [0, 24], sizes = [16, 8], strides = [1, 1]} : vector<16x32xf32> to vector<16x8xf32>
    %98 = vector.extract_strided_slice %37 {offsets = [0, 24], sizes = [16, 8], strides = [1, 1]} : vector<16x32xf32> to vector<16x8xf32>
    %99 = vector.extract_strided_slice %38 {offsets = [0, 24], sizes = [16, 8], strides = [1, 1]} : vector<16x32xf32> to vector<16x8xf32>
    %cst_78 = arith.constant dense<0.000000e+00> : vector<16x16xf32>
    %100 = tpu.matmul %97, %98, %cst_78 {dimension_numbers = #tpu.dot_dimension_numbers<[1], [1], [0], [0], [0, 0, 1, 0], [], []>} : vector<16x8xf32>, vector<16x8xf32>, vector<16x16xf32> -> vector<16x16xf32>
    %cst_79 = arith.constant dense<0xFF800000> : vector<16xf32>
    %101 = vector.multi_reduction <maximumf>, %100, %cst_79 [1] : vector<16x16xf32> to vector<16xf32>
    %102 = vector.shape_cast %101 : vector<16xf32> to vector<16x1xf32>
    %103 = vector.broadcast %102 : vector<16x1xf32> to vector<16x16xf32>
    %104 = arith.subf %100, %103 : vector<16x16xf32>
    %105 = math.exp %104 : vector<16x16xf32>
    %cst_80 = arith.constant dense<0.000000e+00> : vector<16xf32>
    %106 = vector.multi_reduction <add>, %105, %cst_80 [1] : vector<16x16xf32> to vector<16xf32>
    %107 = vector.shape_cast %106 : vector<16xf32> to vector<16x1xf32>
    %108 = tpu.reciprocal %107 {approx = true} : vector<16x1xf32> -> vector<16x1xf32>
    %109 = vector.broadcast %108 : vector<16x1xf32> to vector<16x16xf32>
    %110 = arith.mulf %105, %109 : vector<16x16xf32>
    %cst_81 = arith.constant dense<0.000000e+00> : vector<16x8xf32>
    %111 = tpu.matmul %110, %99, %cst_81 {dimension_numbers = #tpu.dot_dimension_numbers<[1], [0], [0], [1], [0, 0, 1, 1], [], []>} : vector<16x16xf32>, vector<16x8xf32>, vector<16x8xf32> -> vector<16x8xf32>
    %112 = vector.extract_strided_slice %2 {offsets = [24, 0], sizes = [8, 32], strides = [1, 1]} : vector<32x32xbf16> to vector<8x32xbf16>
    %113 = arith.truncf %111 : vector<16x8xf32> to vector<16x8xbf16>
    %cst_82 = arith.constant dense<0.000000e+00> : vector<16x32xf32>
    %114 = tpu.matmul %113, %112, %cst_82 {dimension_numbers = #tpu.dot_dimension_numbers<[1], [0], [0], [1], [0, 0, 1, 1], [], []>} : vector<16x8xbf16>, vector<8x32xbf16>, vector<16x32xf32> -> vector<16x32xf32>
    %115 = arith.addf %96, %114 : vector<16x32xf32>
    %116 = arith.addf %31, %115 : vector<16x32xf32>
    %117 = vector.broadcast %3 : vector<1x32xf32> to vector<16x32xf32>
    %118 = arith.addf %116, %117 : vector<16x32xf32>
    %cst_83 = arith.constant dense<0.000000e+00> : vector<16xf32>
    %119 = vector.multi_reduction <add>, %118, %cst_83 [1] : vector<16x32xf32> to vector<16xf32>
    %120 = vector.shape_cast %119 : vector<16xf32> to vector<16x1xf32>
    %cst_84 = arith.constant 3.200000e+01 : f32
    %121 = vector.broadcast %cst_84 : f32 to vector<16x1xf32>
    %122 = arith.divf %120, %121 : vector<16x1xf32>
    %123 = vector.broadcast %122 : vector<16x1xf32> to vector<16x32xf32>
    %124 = arith.subf %118, %123 : vector<16x32xf32>
    %125 = arith.mulf %124, %124 : vector<16x32xf32>
    %cst_85 = arith.constant dense<0.000000e+00> : vector<16xf32>
    %126 = vector.multi_reduction <add>, %125, %cst_85 [1] : vector<16x32xf32> to vector<16xf32>
    %127 = vector.shape_cast %126 : vector<16xf32> to vector<16x1xf32>
    %cst_86 = arith.constant 3.200000e+01 : f32
    %128 = vector.broadcast %cst_86 : f32 to vector<16x1xf32>
    %129 = arith.divf %127, %128 : vector<16x1xf32>
    %130 = vector.broadcast %122 : vector<16x1xf32> to vector<16x32xf32>
    %131 = arith.subf %118, %130 : vector<16x32xf32>
    %cst_87 = arith.constant 9.99999974E-6 : f32
    %132 = vector.broadcast %cst_87 : f32 to vector<16x1xf32>
    %133 = arith.addf %129, %132 : vector<16x1xf32>
    %134 = math.rsqrt %133 : vector<16x1xf32>
    %135 = vector.broadcast %134 : vector<16x1xf32> to vector<16x32xf32>
    %136 = arith.mulf %131, %135 : vector<16x32xf32>
    %137 = vector.broadcast %4 : vector<1x32xf32> to vector<16x32xf32>
    %138 = arith.mulf %136, %137 : vector<16x32xf32>
    %139 = vector.broadcast %5 : vector<1x32xf32> to vector<16x32xf32>
    %140 = arith.addf %138, %139 : vector<16x32xf32>
    %141 = arith.truncf %140 : vector<16x32xf32> to vector<16x32xbf16>
    %cst_88 = arith.constant dense<0.000000e+00> : vector<16x64xf32>
    %142 = tpu.matmul %141, %6, %cst_88 {dimension_numbers = #tpu.dot_dimension_numbers<[1], [0], [0], [1], [0, 0, 1, 1], [], []>} : vector<16x32xbf16>, vector<32x64xbf16>, vector<16x64xf32> -> vector<16x64xf32>
    %143 = vector.broadcast %7 : vector<1x64xf32> to vector<16x64xf32>
    %144 = arith.addf %142, %143 : vector<16x64xf32>
    %cst_89 = arith.constant 0.000000e+00 : f32
    %145 = vector.broadcast %cst_89 : f32 to vector<16x64xf32>
    %146 = arith.maximumf %144, %145 : vector<16x64xf32>
    %147 = arith.truncf %146 : vector<16x64xf32> to vector<16x64xbf16>
    %cst_90 = arith.constant dense<0.000000e+00> : vector<16x32xf32>
    %148 = tpu.matmul %147, %8, %cst_90 {dimension_numbers = #tpu.dot_dimension_numbers<[1], [0], [0], [1], [0, 0, 1, 1], [], []>} : vector<16x64xbf16>, vector<64x32xbf16>, vector<16x32xf32> -> vector<16x32xf32>
    %149 = vector.broadcast %9 : vector<1x32xf32> to vector<16x32xf32>
    %150 = arith.addf %148, %149 : vector<16x32xf32>
    %151 = arith.addf %140, %150 : vector<16x32xf32>
    %cst_91 = arith.constant dense<0.000000e+00> : vector<16xf32>
    %152 = vector.multi_reduction <add>, %151, %cst_91 [1] : vector<16x32xf32> to vector<16xf32>
    %153 = vector.shape_cast %152 : vector<16xf32> to vector<16x1xf32>
    %cst_92 = arith.constant 3.200000e+01 : f32
    %154 = vector.broadcast %cst_92 : f32 to vector<16x1xf32>
    %155 = arith.divf %153, %154 : vector<16x1xf32>
    %156 = vector.broadcast %155 : vector<16x1xf32> to vector<16x32xf32>
    %157 = arith.subf %151, %156 : vector<16x32xf32>
    %158 = arith.mulf %157, %157 : vector<16x32xf32>
    %cst_93 = arith.constant dense<0.000000e+00> : vector<16xf32>
    %159 = vector.multi_reduction <add>, %158, %cst_93 [1] : vector<16x32xf32> to vector<16xf32>
    %160 = vector.shape_cast %159 : vector<16xf32> to vector<16x1xf32>
    %cst_94 = arith.constant 3.200000e+01 : f32
    %161 = vector.broadcast %cst_94 : f32 to vector<16x1xf32>
    %162 = arith.divf %160, %161 : vector<16x1xf32>
    %163 = vector.broadcast %155 : vector<16x1xf32> to vector<16x32xf32>
    %164 = arith.subf %151, %163 : vector<16x32xf32>
    %cst_95 = arith.constant 9.99999974E-6 : f32
    %165 = vector.broadcast %cst_95 : f32 to vector<16x1xf32>
    %166 = arith.addf %162, %165 : vector<16x1xf32>
    %167 = math.rsqrt %166 : vector<16x1xf32>
    %168 = vector.broadcast %167 : vector<16x1xf32> to vector<16x32xf32>
    %169 = arith.mulf %164, %168 : vector<16x32xf32>
    %170 = vector.broadcast %10 : vector<1x32xf32> to vector<16x32xf32>
    %171 = arith.mulf %169, %170 : vector<16x32xf32>
    %172 = vector.broadcast %11 : vector<1x32xf32> to vector<16x32xf32>
    %173 = arith.addf %171, %172 : vector<16x32xf32>
    %174 = arith.truncf %173 : vector<16x32xf32> to vector<16x32xbf16>
    %cst_96 = arith.constant dense<0.000000e+00> : vector<16x96xf32>
    %175 = tpu.matmul %174, %0, %cst_96 {dimension_numbers = #tpu.dot_dimension_numbers<[1], [0], [0], [1], [0, 0, 1, 1], [], []>} : vector<16x32xbf16>, vector<32x96xbf16>, vector<16x96xf32> -> vector<16x96xf32>
    %176 = vector.broadcast %1 : vector<1x96xf32> to vector<16x96xf32>
    %177 = arith.addf %175, %176 : vector<16x96xf32>
    %178 = vector.extract_strided_slice %177 {offsets = [0, 0], sizes = [16, 32], strides = [1, 1]} : vector<16x96xf32> to vector<16x32xf32>
    %179 = vector.extract_strided_slice %177 {offsets = [0, 32], sizes = [16, 32], strides = [1, 1]} : vector<16x96xf32> to vector<16x32xf32>
    %180 = vector.extract_strided_slice %177 {offsets = [0, 64], sizes = [16, 32], strides = [1, 1]} : vector<16x96xf32> to vector<16x32xf32>
    %cst_97 = arith.constant 0.000000e+00 : f32
    %181 = vector.broadcast %cst_97 : f32 to vector<16x32xf32>
    %182 = vector.extract_strided_slice %178 {offsets = [0, 0], sizes = [16, 8], strides = [1, 1]} : vector<16x32xf32> to vector<16x8xf32>
    %183 = vector.extract_strided_slice %179 {offsets = [0, 0], sizes = [16, 8], strides = [1, 1]} : vector<16x32xf32> to vector<16x8xf32>
    %184 = vector.extract_strided_slice %180 {offsets = [0, 0], sizes = [16, 8], strides = [1, 1]} : vector<16x32xf32> to vector<16x8xf32>
    %cst_98 = arith.constant dense<0.000000e+00> : vector<16x16xf32>
    %185 = tpu.matmul %182, %183, %cst_98 {dimension_numbers = #tpu.dot_dimension_numbers<[1], [1], [0], [0], [0, 0, 1, 0], [], []>} : vector<16x8xf32>, vector<16x8xf32>, vector<16x16xf32> -> vector<16x16xf32>
    %cst_99 = arith.constant dense<0xFF800000> : vector<16xf32>
    %186 = vector.multi_reduction <maximumf>, %185, %cst_99 [1] : vector<16x16xf32> to vector<16xf32>
    %187 = vector.shape_cast %186 : vector<16xf32> to vector<16x1xf32>
    %188 = vector.broadcast %187 : vector<16x1xf32> to vector<16x16xf32>
    %189 = arith.subf %185, %188 : vector<16x16xf32>
    %190 = math.exp %189 : vector<16x16xf32>
    %cst_100 = arith.constant dense<0.000000e+00> : vector<16xf32>
    %191 = vector.multi_reduction <add>, %190, %cst_100 [1] : vector<16x16xf32> to vector<16xf32>
    %192 = vector.shape_cast %191 : vector<16xf32> to vector<16x1xf32>
    %193 = tpu.reciprocal %192 {approx = true} : vector<16x1xf32> -> vector<16x1xf32>
    %194 = vector.broadcast %193 : vector<16x1xf32> to vector<16x16xf32>
    %195 = arith.mulf %190, %194 : vector<16x16xf32>
    %cst_101 = arith.constant dense<0.000000e+00> : vector<16x8xf32>
    %196 = tpu.matmul %195, %184, %cst_101 {dimension_numbers = #tpu.dot_dimension_numbers<[1], [0], [0], [1], [0, 0, 1, 1], [], []>} : vector<16x16xf32>, vector<16x8xf32>, vector<16x8xf32> -> vector<16x8xf32>
    %197 = vector.extract_strided_slice %2 {offsets = [0, 0], sizes = [8, 32], strides = [1, 1]} : vector<32x32xbf16> to vector<8x32xbf16>
    %198 = arith.truncf %196 : vector<16x8xf32> to vector<16x8xbf16>
    %cst_102 = arith.constant dense<0.000000e+00> : vector<16x32xf32>
    %199 = tpu.matmul %198, %197, %cst_102 {dimension_numbers = #tpu.dot_dimension_numbers<[1], [0], [0], [1], [0, 0, 1, 1], [], []>} : vector<16x8xbf16>, vector<8x32xbf16>, vector<16x32xf32> -> vector<16x32xf32>
    %200 = arith.addf %181, %199 : vector<16x32xf32>
    %201 = vector.extract_strided_slice %178 {offsets = [0, 8], sizes = [16, 8], strides = [1, 1]} : vector<16x32xf32> to vector<16x8xf32>
    %202 = vector.extract_strided_slice %179 {offsets = [0, 8], sizes = [16, 8], strides = [1, 1]} : vector<16x32xf32> to vector<16x8xf32>
    %203 = vector.extract_strided_slice %180 {offsets = [0, 8], sizes = [16, 8], strides = [1, 1]} : vector<16x32xf32> to vector<16x8xf32>
    %cst_103 = arith.constant dense<0.000000e+00> : vector<16x16xf32>
    %204 = tpu.matmul %201, %202, %cst_103 {dimension_numbers = #tpu.dot_dimension_numbers<[1], [1], [0], [0], [0, 0, 1, 0], [], []>} : vector<16x8xf32>, vector<16x8xf32>, vector<16x16xf32> -> vector<16x16xf32>
    %cst_104 = arith.constant dense<0xFF800000> : vector<16xf32>
    %205 = vector.multi_reduction <maximumf>, %204, %cst_104 [1] : vector<16x16xf32> to vector<16xf32>
    %206 = vector.shape_cast %205 : vector<16xf32> to vector<16x1xf32>
    %207 = vector.broadcast %206 : vector<16x1xf32> to vector<16x16xf32>
    %208 = arith.subf %204, %207 : vector<16x16xf32>
    %209 = math.exp %208 : vector<16x16xf32>
    %cst_105 = arith.constant dense<0.000000e+00> : vector<16xf32>
    %210 = vector.multi_reduction <add>, %209, %cst_105 [1] : vector<16x16xf32> to vector<16xf32>
    %211 = vector.shape_cast %210 : vector<16xf32> to vector<16x1xf32>
    %212 = tpu.reciprocal %211 {approx = true} : vector<16x1xf32> -> vector<16x1xf32>
    %213 = vector.broadcast %212 : vector<16x1xf32> to vector<16x16xf32>
    %214 = arith.mulf %209, %213 : vector<16x16xf32>
    %cst_106 = arith.constant dense<0.000000e+00> : vector<16x8xf32>
    %215 = tpu.matmul %214, %203, %cst_106 {dimension_numbers = #tpu.dot_dimension_numbers<[1], [0], [0], [1], [0, 0, 1, 1], [], []>} : vector<16x16xf32>, vector<16x8xf32>, vector<16x8xf32> -> vector<16x8xf32>
    %216 = vector.extract_strided_slice %2 {offsets = [8, 0], sizes = [8, 32], strides = [1, 1]} : vector<32x32xbf16> to vector<8x32xbf16>
    %217 = arith.truncf %215 : vector<16x8xf32> to vector<16x8xbf16>
    %cst_107 = arith.constant dense<0.000000e+00> : vector<16x32xf32>
    %218 = tpu.matmul %217, %216, %cst_107 {dimension_numbers = #tpu.dot_dimension_numbers<[1], [0], [0], [1], [0, 0, 1, 1], [], []>} : vector<16x8xbf16>, vector<8x32xbf16>, vector<16x32xf32> -> vector<16x32xf32>
    %219 = arith.addf %200, %218 : vector<16x32xf32>
    %220 = vector.extract_strided_slice %178 {offsets = [0, 16], sizes = [16, 8], strides = [1, 1]} : vector<16x32xf32> to vector<16x8xf32>
    %221 = vector.extract_strided_slice %179 {offsets = [0, 16], sizes = [16, 8], strides = [1, 1]} : vector<16x32xf32> to vector<16x8xf32>
    %222 = vector.extract_strided_slice %180 {offsets = [0, 16], sizes = [16, 8], strides = [1, 1]} : vector<16x32xf32> to vector<16x8xf32>
    %cst_108 = arith.constant dense<0.000000e+00> : vector<16x16xf32>
    %223 = tpu.matmul %220, %221, %cst_108 {dimension_numbers = #tpu.dot_dimension_numbers<[1], [1], [0], [0], [0, 0, 1, 0], [], []>} : vector<16x8xf32>, vector<16x8xf32>, vector<16x16xf32> -> vector<16x16xf32>
    %cst_109 = arith.constant dense<0xFF800000> : vector<16xf32>
    %224 = vector.multi_reduction <maximumf>, %223, %cst_109 [1] : vector<16x16xf32> to vector<16xf32>
    %225 = vector.shape_cast %224 : vector<16xf32> to vector<16x1xf32>
    %226 = vector.broadcast %225 : vector<16x1xf32> to vector<16x16xf32>
    %227 = arith.subf %223, %226 : vector<16x16xf32>
    %228 = math.exp %227 : vector<16x16xf32>
    %cst_110 = arith.constant dense<0.000000e+00> : vector<16xf32>
    %229 = vector.multi_reduction <add>, %228, %cst_110 [1] : vector<16x16xf32> to vector<16xf32>
    %230 = vector.shape_cast %229 : vector<16xf32> to vector<16x1xf32>
    %231 = tpu.reciprocal %230 {approx = true} : vector<16x1xf32> -> vector<16x1xf32>
    %232 = vector.broadcast %231 : vector<16x1xf32> to vector<16x16xf32>
    %233 = arith.mulf %228, %232 : vector<16x16xf32>
    %cst_111 = arith.constant dense<0.000000e+00> : vector<16x8xf32>
    %234 = tpu.matmul %233, %222, %cst_111 {dimension_numbers = #tpu.dot_dimension_numbers<[1], [0], [0], [1], [0, 0, 1, 1], [], []>} : vector<16x16xf32>, vector<16x8xf32>, vector<16x8xf32> -> vector<16x8xf32>
    %235 = vector.extract_strided_slice %2 {offsets = [16, 0], sizes = [8, 32], strides = [1, 1]} : vector<32x32xbf16> to vector<8x32xbf16>
    %236 = arith.truncf %234 : vector<16x8xf32> to vector<16x8xbf16>
    %cst_112 = arith.constant dense<0.000000e+00> : vector<16x32xf32>
    %237 = tpu.matmul %236, %235, %cst_112 {dimension_numbers = #tpu.dot_dimension_numbers<[1], [0], [0], [1], [0, 0, 1, 1], [], []>} : vector<16x8xbf16>, vector<8x32xbf16>, vector<16x32xf32> -> vector<16x32xf32>
    %238 = arith.addf %219, %237 : vector<16x32xf32>
    %239 = vector.extract_strided_slice %178 {offsets = [0, 24], sizes = [16, 8], strides = [1, 1]} : vector<16x32xf32> to vector<16x8xf32>
    %240 = vector.extract_strided_slice %179 {offsets = [0, 24], sizes = [16, 8], strides = [1, 1]} : vector<16x32xf32> to vector<16x8xf32>
    %241 = vector.extract_strided_slice %180 {offsets = [0, 24], sizes = [16, 8], strides = [1, 1]} : vector<16x32xf32> to vector<16x8xf32>
    %cst_113 = arith.constant dense<0.000000e+00> : vector<16x16xf32>
    %242 = tpu.matmul %239, %240, %cst_113 {dimension_numbers = #tpu.dot_dimension_numbers<[1], [1], [0], [0], [0, 0, 1, 0], [], []>} : vector<16x8xf32>, vector<16x8xf32>, vector<16x16xf32> -> vector<16x16xf32>
    %cst_114 = arith.constant dense<0xFF800000> : vector<16xf32>
    %243 = vector.multi_reduction <maximumf>, %242, %cst_114 [1] : vector<16x16xf32> to vector<16xf32>
    %244 = vector.shape_cast %243 : vector<16xf32> to vector<16x1xf32>
    %245 = vector.broadcast %244 : vector<16x1xf32> to vector<16x16xf32>
    %246 = arith.subf %242, %245 : vector<16x16xf32>
    %247 = math.exp %246 : vector<16x16xf32>
    %cst_115 = arith.constant dense<0.000000e+00> : vector<16xf32>
    %248 = vector.multi_reduction <add>, %247, %cst_115 [1] : vector<16x16xf32> to vector<16xf32>
    %249 = vector.shape_cast %248 : vector<16xf32> to vector<16x1xf32>
    %250 = tpu.reciprocal %249 {approx = true} : vector<16x1xf32> -> vector<16x1xf32>
    %251 = vector.broadcast %250 : vector<16x1xf32> to vector<16x16xf32>
    %252 = arith.mulf %247, %251 : vector<16x16xf32>
    %cst_116 = arith.constant dense<0.000000e+00> : vector<16x8xf32>
    %253 = tpu.matmul %252, %241, %cst_116 {dimension_numbers = #tpu.dot_dimension_numbers<[1], [0], [0], [1], [0, 0, 1, 1], [], []>} : vector<16x16xf32>, vector<16x8xf32>, vector<16x8xf32> -> vector<16x8xf32>
    %254 = vector.extract_strided_slice %2 {offsets = [24, 0], sizes = [8, 32], strides = [1, 1]} : vector<32x32xbf16> to vector<8x32xbf16>
    %255 = arith.truncf %253 : vector<16x8xf32> to vector<16x8xbf16>
    %cst_117 = arith.constant dense<0.000000e+00> : vector<16x32xf32>
    %256 = tpu.matmul %255, %254, %cst_117 {dimension_numbers = #tpu.dot_dimension_numbers<[1], [0], [0], [1], [0, 0, 1, 1], [], []>} : vector<16x8xbf16>, vector<8x32xbf16>, vector<16x32xf32> -> vector<16x32xf32>
    %257 = arith.addf %238, %256 : vector<16x32xf32>
    %258 = arith.addf %173, %257 : vector<16x32xf32>
    %259 = vector.broadcast %3 : vector<1x32xf32> to vector<16x32xf32>
    %260 = arith.addf %258, %259 : vector<16x32xf32>
    %cst_118 = arith.constant dense<0.000000e+00> : vector<16xf32>
    %261 = vector.multi_reduction <add>, %260, %cst_118 [1] : vector<16x32xf32> to vector<16xf32>
    %262 = vector.shape_cast %261 : vector<16xf32> to vector<16x1xf32>
    %cst_119 = arith.constant 3.200000e+01 : f32
    %263 = vector.broadcast %cst_119 : f32 to vector<16x1xf32>
    %264 = arith.divf %262, %263 : vector<16x1xf32>
    %265 = vector.broadcast %264 : vector<16x1xf32> to vector<16x32xf32>
    %266 = arith.subf %260, %265 : vector<16x32xf32>
    %267 = arith.mulf %266, %266 : vector<16x32xf32>
    %cst_120 = arith.constant dense<0.000000e+00> : vector<16xf32>
    %268 = vector.multi_reduction <add>, %267, %cst_120 [1] : vector<16x32xf32> to vector<16xf32>
    %269 = vector.shape_cast %268 : vector<16xf32> to vector<16x1xf32>
    %cst_121 = arith.constant 3.200000e+01 : f32
    %270 = vector.broadcast %cst_121 : f32 to vector<16x1xf32>
    %271 = arith.divf %269, %270 : vector<16x1xf32>
    %272 = vector.broadcast %264 : vector<16x1xf32> to vector<16x32xf32>
    %273 = arith.subf %260, %272 : vector<16x32xf32>
    %cst_122 = arith.constant 9.99999974E-6 : f32
    %274 = vector.broadcast %cst_122 : f32 to vector<16x1xf32>
    %275 = arith.addf %271, %274 : vector<16x1xf32>
    %276 = math.rsqrt %275 : vector<16x1xf32>
    %277 = vector.broadcast %276 : vector<16x1xf32> to vector<16x32xf32>
    %278 = arith.mulf %273, %277 : vector<16x32xf32>
    %279 = vector.broadcast %4 : vector<1x32xf32> to vector<16x32xf32>
    %280 = arith.mulf %278, %279 : vector<16x32xf32>
    %281 = vector.broadcast %5 : vector<1x32xf32> to vector<16x32xf32>
    %282 = arith.addf %280, %281 : vector<16x32xf32>
    %283 = arith.truncf %282 : vector<16x32xf32> to vector<16x32xbf16>
    %cst_123 = arith.constant dense<0.000000e+00> : vector<16x64xf32>
    %284 = tpu.matmul %283, %6, %cst_123 {dimension_numbers = #tpu.dot_dimension_numbers<[1], [0], [0], [1], [0, 0, 1, 1], [], []>} : vector<16x32xbf16>, vector<32x64xbf16>, vector<16x64xf32> -> vector<16x64xf32>
    %285 = vector.broadcast %7 : vector<1x64xf32> to vector<16x64xf32>
    %286 = arith.addf %284, %285 : vector<16x64xf32>
    %cst_124 = arith.constant 0.000000e+00 : f32
    %287 = vector.broadcast %cst_124 : f32 to vector<16x64xf32>
    %288 = arith.maximumf %286, %287 : vector<16x64xf32>
    %289 = arith.truncf %288 : vector<16x64xf32> to vector<16x64xbf16>
    %cst_125 = arith.constant dense<0.000000e+00> : vector<16x32xf32>
    %290 = tpu.matmul %289, %8, %cst_125 {dimension_numbers = #tpu.dot_dimension_numbers<[1], [0], [0], [1], [0, 0, 1, 1], [], []>} : vector<16x64xbf16>, vector<64x32xbf16>, vector<16x32xf32> -> vector<16x32xf32>
    %291 = vector.broadcast %9 : vector<1x32xf32> to vector<16x32xf32>
    %292 = arith.addf %290, %291 : vector<16x32xf32>
    %293 = arith.addf %282, %292 : vector<16x32xf32>
    %cst_126 = arith.constant dense<0.000000e+00> : vector<16xf32>
    %294 = vector.multi_reduction <add>, %293, %cst_126 [1] : vector<16x32xf32> to vector<16xf32>
    %295 = vector.shape_cast %294 : vector<16xf32> to vector<16x1xf32>
    %cst_127 = arith.constant 3.200000e+01 : f32
    %296 = vector.broadcast %cst_127 : f32 to vector<16x1xf32>
    %297 = arith.divf %295, %296 : vector<16x1xf32>
    %298 = vector.broadcast %297 : vector<16x1xf32> to vector<16x32xf32>
    %299 = arith.subf %293, %298 : vector<16x32xf32>
    %300 = arith.mulf %299, %299 : vector<16x32xf32>
    %cst_128 = arith.constant dense<0.000000e+00> : vector<16xf32>
    %301 = vector.multi_reduction <add>, %300, %cst_128 [1] : vector<16x32xf32> to vector<16xf32>
    %302 = vector.shape_cast %301 : vector<16xf32> to vector<16x1xf32>
    %cst_129 = arith.constant 3.200000e+01 : f32
    %303 = vector.broadcast %cst_129 : f32 to vector<16x1xf32>
    %304 = arith.divf %302, %303 : vector<16x1xf32>
    %305 = vector.broadcast %297 : vector<16x1xf32> to vector<16x32xf32>
    %306 = arith.subf %293, %305 : vector<16x32xf32>
    %cst_130 = arith.constant 9.99999974E-6 : f32
    %307 = vector.broadcast %cst_130 : f32 to vector<16x1xf32>
    %308 = arith.addf %304, %307 : vector<16x1xf32>
    %309 = math.rsqrt %308 : vector<16x1xf32>
    %310 = vector.broadcast %309 : vector<16x1xf32> to vector<16x32xf32>
    %311 = arith.mulf %306, %310 : vector<16x32xf32>
    %312 = vector.broadcast %10 : vector<1x32xf32> to vector<16x32xf32>
    %313 = arith.mulf %311, %312 : vector<16x32xf32>
    %314 = vector.broadcast %11 : vector<1x32xf32> to vector<16x32xf32>
    %315 = arith.addf %313, %314 : vector<16x32xf32>
    %316 = vector.extract_strided_slice %18 {offsets = [0, 32], sizes = [32, 64], strides = [1, 1]} : vector<32x96xbf16> to vector<32x64xbf16>
    %317 = arith.truncf %315 : vector<16x32xf32> to vector<16x32xbf16>
    %cst_131 = arith.constant dense<0.000000e+00> : vector<16x64xf32>
    %318 = tpu.matmul %317, %316, %cst_131 {dimension_numbers = #tpu.dot_dimension_numbers<[1], [0], [0], [1], [0, 0, 1, 1], [], []>} : vector<16x32xbf16>, vector<32x64xbf16>, vector<16x64xf32> -> vector<16x64xf32>
    %319 = vector.extract_strided_slice %19 {offsets = [0, 32], sizes = [1, 64], strides = [1, 1]} : vector<1x96xf32> to vector<1x64xf32>
    %320 = vector.broadcast %319 : vector<1x64xf32> to vector<16x64xf32>
    %321 = arith.addf %318, %320 : vector<16x64xf32>
    %322 = vector.extract_strided_slice %321 {offsets = [0, 0], sizes = [16, 32], strides = [1, 1]} : vector<16x64xf32> to vector<16x32xf32>
    %323 = vector.extract_strided_slice %321 {offsets = [0, 32], sizes = [16, 32], strides = [1, 1]} : vector<16x64xf32> to vector<16x32xf32>
    %cst_132 = arith.constant 0.000000e+00 : f32
    %324 = vector.broadcast %cst_132 : f32 to vector<8x32xf32>
    %325 = arith.truncf %324 : vector<8x32xf32> to vector<8x32xbf16>
    %cst_133 = arith.constant dense<0.000000e+00> : vector<8x96xf32>
    %326 = tpu.matmul %325, %12, %cst_133 {dimension_numbers = #tpu.dot_dimension_numbers<[1], [0], [0], [1], [0, 0, 1, 1], [], []>} : vector<8x32xbf16>, vector<32x96xbf16>, vector<8x96xf32> -> vector<8x96xf32>
    %327 = vector.broadcast %13 : vector<1x96xf32> to vector<8x96xf32>
    %328 = arith.addf %326, %327 : vector<8x96xf32>
    %329 = vector.extract_strided_slice %328 {offsets = [0, 0], sizes = [8, 32], strides = [1, 1]} : vector<8x96xf32> to vector<8x32xf32>
    %330 = vector.extract_strided_slice %328 {offsets = [0, 32], sizes = [8, 32], strides = [1, 1]} : vector<8x96xf32> to vector<8x32xf32>
    %331 = vector.extract_strided_slice %328 {offsets = [0, 64], sizes = [8, 32], strides = [1, 1]} : vector<8x96xf32> to vector<8x32xf32>
    %cst_134 = arith.constant 0.000000e+00 : f32
    %332 = vector.broadcast %cst_134 : f32 to vector<8x32xf32>
    %333 = vector.extract_strided_slice %329 {offsets = [0, 0], sizes = [8, 8], strides = [1, 1]} : vector<8x32xf32> to vector<8x8xf32>
    %334 = vector.extract_strided_slice %330 {offsets = [0, 0], sizes = [8, 8], strides = [1, 1]} : vector<8x32xf32> to vector<8x8xf32>
    %335 = vector.extract_strided_slice %331 {offsets = [0, 0], sizes = [8, 8], strides = [1, 1]} : vector<8x32xf32> to vector<8x8xf32>
    %cst_135 = arith.constant dense<0.000000e+00> : vector<8x8xf32>
    %336 = tpu.matmul %333, %334, %cst_135 {dimension_numbers = #tpu.dot_dimension_numbers<[1], [1], [0], [0], [0, 0, 1, 0], [], []>} : vector<8x8xf32>, vector<8x8xf32>, vector<8x8xf32> -> vector<8x8xf32>
    %cst_136 = arith.constant dense<0xFF800000> : vector<8xf32>
    %337 = vector.multi_reduction <maximumf>, %336, %cst_136 [1] : vector<8x8xf32> to vector<8xf32>
    %338 = vector.shape_cast %337 : vector<8xf32> to vector<8x1xf32>
    %339 = vector.broadcast %338 : vector<8x1xf32> to vector<8x8xf32>
    %340 = arith.subf %336, %339 : vector<8x8xf32>
    %341 = math.exp %340 : vector<8x8xf32>
    %cst_137 = arith.constant dense<0.000000e+00> : vector<8xf32>
    %342 = vector.multi_reduction <add>, %341, %cst_137 [1] : vector<8x8xf32> to vector<8xf32>
    %343 = vector.shape_cast %342 : vector<8xf32> to vector<8x1xf32>
    %344 = tpu.reciprocal %343 {approx = true} : vector<8x1xf32> -> vector<8x1xf32>
    %345 = vector.broadcast %344 : vector<8x1xf32> to vector<8x8xf32>
    %346 = arith.mulf %341, %345 : vector<8x8xf32>
    %cst_138 = arith.constant dense<0.000000e+00> : vector<8x8xf32>
    %347 = tpu.matmul %346, %335, %cst_138 {dimension_numbers = #tpu.dot_dimension_numbers<[1], [0], [0], [1], [0, 0, 1, 1], [], []>} : vector<8x8xf32>, vector<8x8xf32>, vector<8x8xf32> -> vector<8x8xf32>
    %348 = vector.extract_strided_slice %14 {offsets = [0, 0], sizes = [8, 32], strides = [1, 1]} : vector<32x32xbf16> to vector<8x32xbf16>
    %349 = arith.truncf %347 : vector<8x8xf32> to vector<8x8xbf16>
    %cst_139 = arith.constant dense<0.000000e+00> : vector<8x32xf32>
    %350 = tpu.matmul %349, %348, %cst_139 {dimension_numbers = #tpu.dot_dimension_numbers<[1], [0], [0], [1], [0, 0, 1, 1], [], []>} : vector<8x8xbf16>, vector<8x32xbf16>, vector<8x32xf32> -> vector<8x32xf32>
    %351 = arith.addf %332, %350 : vector<8x32xf32>
    %352 = vector.extract_strided_slice %329 {offsets = [0, 8], sizes = [8, 8], strides = [1, 1]} : vector<8x32xf32> to vector<8x8xf32>
    %353 = vector.extract_strided_slice %330 {offsets = [0, 8], sizes = [8, 8], strides = [1, 1]} : vector<8x32xf32> to vector<8x8xf32>
    %354 = vector.extract_strided_slice %331 {offsets = [0, 8], sizes = [8, 8], strides = [1, 1]} : vector<8x32xf32> to vector<8x8xf32>
    %cst_140 = arith.constant dense<0.000000e+00> : vector<8x8xf32>
    %355 = tpu.matmul %352, %353, %cst_140 {dimension_numbers = #tpu.dot_dimension_numbers<[1], [1], [0], [0], [0, 0, 1, 0], [], []>} : vector<8x8xf32>, vector<8x8xf32>, vector<8x8xf32> -> vector<8x8xf32>
    %cst_141 = arith.constant dense<0xFF800000> : vector<8xf32>
    %356 = vector.multi_reduction <maximumf>, %355, %cst_141 [1] : vector<8x8xf32> to vector<8xf32>
    %357 = vector.shape_cast %356 : vector<8xf32> to vector<8x1xf32>
    %358 = vector.broadcast %357 : vector<8x1xf32> to vector<8x8xf32>
    %359 = arith.subf %355, %358 : vector<8x8xf32>
    %360 = math.exp %359 : vector<8x8xf32>
    %cst_142 = arith.constant dense<0.000000e+00> : vector<8xf32>
    %361 = vector.multi_reduction <add>, %360, %cst_142 [1] : vector<8x8xf32> to vector<8xf32>
    %362 = vector.shape_cast %361 : vector<8xf32> to vector<8x1xf32>
    %363 = tpu.reciprocal %362 {approx = true} : vector<8x1xf32> -> vector<8x1xf32>
    %364 = vector.broadcast %363 : vector<8x1xf32> to vector<8x8xf32>
    %365 = arith.mulf %360, %364 : vector<8x8xf32>
    %cst_143 = arith.constant dense<0.000000e+00> : vector<8x8xf32>
    %366 = tpu.matmul %365, %354, %cst_143 {dimension_numbers = #tpu.dot_dimension_numbers<[1], [0], [0], [1], [0, 0, 1, 1], [], []>} : vector<8x8xf32>, vector<8x8xf32>, vector<8x8xf32> -> vector<8x8xf32>
    %367 = vector.extract_strided_slice %14 {offsets = [8, 0], sizes = [8, 32], strides = [1, 1]} : vector<32x32xbf16> to vector<8x32xbf16>
    %368 = arith.truncf %366 : vector<8x8xf32> to vector<8x8xbf16>
    %cst_144 = arith.constant dense<0.000000e+00> : vector<8x32xf32>
    %369 = tpu.matmul %368, %367, %cst_144 {dimension_numbers = #tpu.dot_dimension_numbers<[1], [0], [0], [1], [0, 0, 1, 1], [], []>} : vector<8x8xbf16>, vector<8x32xbf16>, vector<8x32xf32> -> vector<8x32xf32>
    %370 = arith.addf %351, %369 : vector<8x32xf32>
    %371 = vector.extract_strided_slice %329 {offsets = [0, 16], sizes = [8, 8], strides = [1, 1]} : vector<8x32xf32> to vector<8x8xf32>
    %372 = vector.extract_strided_slice %330 {offsets = [0, 16], sizes = [8, 8], strides = [1, 1]} : vector<8x32xf32> to vector<8x8xf32>
    %373 = vector.extract_strided_slice %331 {offsets = [0, 16], sizes = [8, 8], strides = [1, 1]} : vector<8x32xf32> to vector<8x8xf32>
    %cst_145 = arith.constant dense<0.000000e+00> : vector<8x8xf32>
    %374 = tpu.matmul %371, %372, %cst_145 {dimension_numbers = #tpu.dot_dimension_numbers<[1], [1], [0], [0], [0, 0, 1, 0], [], []>} : vector<8x8xf32>, vector<8x8xf32>, vector<8x8xf32> -> vector<8x8xf32>
    %cst_146 = arith.constant dense<0xFF800000> : vector<8xf32>
    %375 = vector.multi_reduction <maximumf>, %374, %cst_146 [1] : vector<8x8xf32> to vector<8xf32>
    %376 = vector.shape_cast %375 : vector<8xf32> to vector<8x1xf32>
    %377 = vector.broadcast %376 : vector<8x1xf32> to vector<8x8xf32>
    %378 = arith.subf %374, %377 : vector<8x8xf32>
    %379 = math.exp %378 : vector<8x8xf32>
    %cst_147 = arith.constant dense<0.000000e+00> : vector<8xf32>
    %380 = vector.multi_reduction <add>, %379, %cst_147 [1] : vector<8x8xf32> to vector<8xf32>
    %381 = vector.shape_cast %380 : vector<8xf32> to vector<8x1xf32>
    %382 = tpu.reciprocal %381 {approx = true} : vector<8x1xf32> -> vector<8x1xf32>
    %383 = vector.broadcast %382 : vector<8x1xf32> to vector<8x8xf32>
    %384 = arith.mulf %379, %383 : vector<8x8xf32>
    %cst_148 = arith.constant dense<0.000000e+00> : vector<8x8xf32>
    %385 = tpu.matmul %384, %373, %cst_148 {dimension_numbers = #tpu.dot_dimension_numbers<[1], [0], [0], [1], [0, 0, 1, 1], [], []>} : vector<8x8xf32>, vector<8x8xf32>, vector<8x8xf32> -> vector<8x8xf32>
    %386 = vector.extract_strided_slice %14 {offsets = [16, 0], sizes = [8, 32], strides = [1, 1]} : vector<32x32xbf16> to vector<8x32xbf16>
    %387 = arith.truncf %385 : vector<8x8xf32> to vector<8x8xbf16>
    %cst_149 = arith.constant dense<0.000000e+00> : vector<8x32xf32>
    %388 = tpu.matmul %387, %386, %cst_149 {dimension_numbers = #tpu.dot_dimension_numbers<[1], [0], [0], [1], [0, 0, 1, 1], [], []>} : vector<8x8xbf16>, vector<8x32xbf16>, vector<8x32xf32> -> vector<8x32xf32>
    %389 = arith.addf %370, %388 : vector<8x32xf32>
    %390 = vector.extract_strided_slice %329 {offsets = [0, 24], sizes = [8, 8], strides = [1, 1]} : vector<8x32xf32> to vector<8x8xf32>
    %391 = vector.extract_strided_slice %330 {offsets = [0, 24], sizes = [8, 8], strides = [1, 1]} : vector<8x32xf32> to vector<8x8xf32>
    %392 = vector.extract_strided_slice %331 {offsets = [0, 24], sizes = [8, 8], strides = [1, 1]} : vector<8x32xf32> to vector<8x8xf32>
    %cst_150 = arith.constant dense<0.000000e+00> : vector<8x8xf32>
    %393 = tpu.matmul %390, %391, %cst_150 {dimension_numbers = #tpu.dot_dimension_numbers<[1], [1], [0], [0], [0, 0, 1, 0], [], []>} : vector<8x8xf32>, vector<8x8xf32>, vector<8x8xf32> -> vector<8x8xf32>
    %cst_151 = arith.constant dense<0xFF800000> : vector<8xf32>
    %394 = vector.multi_reduction <maximumf>, %393, %cst_151 [1] : vector<8x8xf32> to vector<8xf32>
    %395 = vector.shape_cast %394 : vector<8xf32> to vector<8x1xf32>
    %396 = vector.broadcast %395 : vector<8x1xf32> to vector<8x8xf32>
    %397 = arith.subf %393, %396 : vector<8x8xf32>
    %398 = math.exp %397 : vector<8x8xf32>
    %cst_152 = arith.constant dense<0.000000e+00> : vector<8xf32>
    %399 = vector.multi_reduction <add>, %398, %cst_152 [1] : vector<8x8xf32> to vector<8xf32>
    %400 = vector.shape_cast %399 : vector<8xf32> to vector<8x1xf32>
    %401 = tpu.reciprocal %400 {approx = true} : vector<8x1xf32> -> vector<8x1xf32>
    %402 = vector.broadcast %401 : vector<8x1xf32> to vector<8x8xf32>
    %403 = arith.mulf %398, %402 : vector<8x8xf32>
    %cst_153 = arith.constant dense<0.000000e+00> : vector<8x8xf32>
    %404 = tpu.matmul %403, %392, %cst_153 {dimension_numbers = #tpu.dot_dimension_numbers<[1], [0], [0], [1], [0, 0, 1, 1], [], []>} : vector<8x8xf32>, vector<8x8xf32>, vector<8x8xf32> -> vector<8x8xf32>
    %405 = vector.extract_strided_slice %14 {offsets = [24, 0], sizes = [8, 32], strides = [1, 1]} : vector<32x32xbf16> to vector<8x32xbf16>
    %406 = arith.truncf %404 : vector<8x8xf32> to vector<8x8xbf16>
    %cst_154 = arith.constant dense<0.000000e+00> : vector<8x32xf32>
    %407 = tpu.matmul %406, %405, %cst_154 {dimension_numbers = #tpu.dot_dimension_numbers<[1], [0], [0], [1], [0, 0, 1, 1], [], []>} : vector<8x8xbf16>, vector<8x32xbf16>, vector<8x32xf32> -> vector<8x32xf32>
    %408 = arith.addf %389, %407 : vector<8x32xf32>
    %409 = arith.addf %324, %408 : vector<8x32xf32>
    %410 = vector.broadcast %15 : vector<1x32xf32> to vector<8x32xf32>
    %411 = arith.addf %409, %410 : vector<8x32xf32>
    %cst_155 = arith.constant dense<0.000000e+00> : vector<8xf32>
    %412 = vector.multi_reduction <add>, %411, %cst_155 [1] : vector<8x32xf32> to vector<8xf32>
    %413 = vector.shape_cast %412 : vector<8xf32> to vector<8x1xf32>
    %cst_156 = arith.constant 3.200000e+01 : f32
    %414 = vector.broadcast %cst_156 : f32 to vector<8x1xf32>
    %415 = arith.divf %413, %414 : vector<8x1xf32>
    %416 = vector.broadcast %415 : vector<8x1xf32> to vector<8x32xf32>
    %417 = arith.subf %411, %416 : vector<8x32xf32>
    %418 = arith.mulf %417, %417 : vector<8x32xf32>
    %cst_157 = arith.constant dense<0.000000e+00> : vector<8xf32>
    %419 = vector.multi_reduction <add>, %418, %cst_157 [1] : vector<8x32xf32> to vector<8xf32>
    %420 = vector.shape_cast %419 : vector<8xf32> to vector<8x1xf32>
    %cst_158 = arith.constant 3.200000e+01 : f32
    %421 = vector.broadcast %cst_158 : f32 to vector<8x1xf32>
    %422 = arith.divf %420, %421 : vector<8x1xf32>
    %423 = vector.broadcast %415 : vector<8x1xf32> to vector<8x32xf32>
    %424 = arith.subf %411, %423 : vector<8x32xf32>
    %cst_159 = arith.constant 9.99999974E-6 : f32
    %425 = vector.broadcast %cst_159 : f32 to vector<8x1xf32>
    %426 = arith.addf %422, %425 : vector<8x1xf32>
    %427 = math.rsqrt %426 : vector<8x1xf32>
    %428 = vector.broadcast %427 : vector<8x1xf32> to vector<8x32xf32>
    %429 = arith.mulf %424, %428 : vector<8x32xf32>
    %430 = vector.broadcast %16 : vector<1x32xf32> to vector<8x32xf32>
    %431 = arith.mulf %429, %430 : vector<8x32xf32>
    %432 = vector.broadcast %17 : vector<1x32xf32> to vector<8x32xf32>
    %433 = arith.addf %431, %432 : vector<8x32xf32>
    %434 = vector.extract_strided_slice %18 {offsets = [0, 0], sizes = [32, 32], strides = [1, 1]} : vector<32x96xbf16> to vector<32x32xbf16>
    %435 = arith.truncf %433 : vector<8x32xf32> to vector<8x32xbf16>
    %cst_160 = arith.constant dense<0.000000e+00> : vector<8x32xf32>
    %436 = tpu.matmul %435, %434, %cst_160 {dimension_numbers = #tpu.dot_dimension_numbers<[1], [0], [0], [1], [0, 0, 1, 1], [], []>} : vector<8x32xbf16>, vector<32x32xbf16>, vector<8x32xf32> -> vector<8x32xf32>
    %437 = vector.extract_strided_slice %19 {offsets = [0, 0], sizes = [1, 32], strides = [1, 1]} : vector<1x96xf32> to vector<1x32xf32>
    %438 = vector.broadcast %437 : vector<1x32xf32> to vector<8x32xf32>
    %439 = arith.addf %436, %438 : vector<8x32xf32>
    %cst_161 = arith.constant 0.000000e+00 : f32
    %440 = vector.broadcast %cst_161 : f32 to vector<8x32xf32>
    %441 = vector.extract_strided_slice %439 {offsets = [0, 0], sizes = [8, 8], strides = [1, 1]} : vector<8x32xf32> to vector<8x8xf32>
    %442 = vector.extract_strided_slice %322 {offsets = [0, 0], sizes = [16, 8], strides = [1, 1]} : vector<16x32xf32> to vector<16x8xf32>
    %443 = vector.extract_strided_slice %323 {offsets = [0, 0], sizes = [16, 8], strides = [1, 1]} : vector<16x32xf32> to vector<16x8xf32>
    %cst_162 = arith.constant dense<0.000000e+00> : vector<8x16xf32>
    %444 = tpu.matmul %441, %442, %cst_162 {dimension_numbers = #tpu.dot_dimension_numbers<[1], [1], [0], [0], [0, 0, 1, 0], [], []>} : vector<8x8xf32>, vector<16x8xf32>, vector<8x16xf32> -> vector<8x16xf32>
    %cst_163 = arith.constant dense<0xFF800000> : vector<8xf32>
    %445 = vector.multi_reduction <maximumf>, %444, %cst_163 [1] : vector<8x16xf32> to vector<8xf32>
    %446 = vector.shape_cast %445 : vector<8xf32> to vector<8x1xf32>
    %447 = vector.broadcast %446 : vector<8x1xf32> to vector<8x16xf32>
    %448 = arith.subf %444, %447 : vector<8x16xf32>
    %449 = math.exp %448 : vector<8x16xf32>
    %cst_164 = arith.constant dense<0.000000e+00> : vector<8xf32>
    %450 = vector.multi_reduction <add>, %449, %cst_164 [1] : vector<8x16xf32> to vector<8xf32>
    %451 = vector.shape_cast %450 : vector<8xf32> to vector<8x1xf32>
    %452 = tpu.reciprocal %451 {approx = true} : vector<8x1xf32> -> vector<8x1xf32>
    %453 = vector.broadcast %452 : vector<8x1xf32> to vector<8x16xf32>
    %454 = arith.mulf %449, %453 : vector<8x16xf32>
    %cst_165 = arith.constant dense<0.000000e+00> : vector<8x8xf32>
    %455 = tpu.matmul %454, %443, %cst_165 {dimension_numbers = #tpu.dot_dimension_numbers<[1], [0], [0], [1], [0, 0, 1, 1], [], []>} : vector<8x16xf32>, vector<16x8xf32>, vector<8x8xf32> -> vector<8x8xf32>
    %456 = vector.extract_strided_slice %20 {offsets = [0, 0], sizes = [8, 32], strides = [1, 1]} : vector<32x32xbf16> to vector<8x32xbf16>
    %457 = arith.truncf %455 : vector<8x8xf32> to vector<8x8xbf16>
    %cst_166 = arith.constant dense<0.000000e+00> : vector<8x32xf32>
    %458 = tpu.matmul %457, %456, %cst_166 {dimension_numbers = #tpu.dot_dimension_numbers<[1], [0], [0], [1], [0, 0, 1, 1], [], []>} : vector<8x8xbf16>, vector<8x32xbf16>, vector<8x32xf32> -> vector<8x32xf32>
    %459 = arith.addf %440, %458 : vector<8x32xf32>
    %460 = vector.extract_strided_slice %439 {offsets = [0, 8], sizes = [8, 8], strides = [1, 1]} : vector<8x32xf32> to vector<8x8xf32>
    %461 = vector.extract_strided_slice %322 {offsets = [0, 8], sizes = [16, 8], strides = [1, 1]} : vector<16x32xf32> to vector<16x8xf32>
    %462 = vector.extract_strided_slice %323 {offsets = [0, 8], sizes = [16, 8], strides = [1, 1]} : vector<16x32xf32> to vector<16x8xf32>
    %cst_167 = arith.constant dense<0.000000e+00> : vector<8x16xf32>
    %463 = tpu.matmul %460, %461, %cst_167 {dimension_numbers = #tpu.dot_dimension_numbers<[1], [1], [0], [0], [0, 0, 1, 0], [], []>} : vector<8x8xf32>, vector<16x8xf32>, vector<8x16xf32> -> vector<8x16xf32>
    %cst_168 = arith.constant dense<0xFF800000> : vector<8xf32>
    %464 = vector.multi_reduction <maximumf>, %463, %cst_168 [1] : vector<8x16xf32> to vector<8xf32>
    %465 = vector.shape_cast %464 : vector<8xf32> to vector<8x1xf32>
    %466 = vector.broadcast %465 : vector<8x1xf32> to vector<8x16xf32>
    %467 = arith.subf %463, %466 : vector<8x16xf32>
    %468 = math.exp %467 : vector<8x16xf32>
    %cst_169 = arith.constant dense<0.000000e+00> : vector<8xf32>
    %469 = vector.multi_reduction <add>, %468, %cst_169 [1] : vector<8x16xf32> to vector<8xf32>
    %470 = vector.shape_cast %469 : vector<8xf32> to vector<8x1xf32>
    %471 = tpu.reciprocal %470 {approx = true} : vector<8x1xf32> -> vector<8x1xf32>
    %472 = vector.broadcast %471 : vector<8x1xf32> to vector<8x16xf32>
    %473 = arith.mulf %468, %472 : vector<8x16xf32>
    %cst_170 = arith.constant dense<0.000000e+00> : vector<8x8xf32>
    %474 = tpu.matmul %473, %462, %cst_170 {dimension_numbers = #tpu.dot_dimension_numbers<[1], [0], [0], [1], [0, 0, 1, 1], [], []>} : vector<8x16xf32>, vector<16x8xf32>, vector<8x8xf32> -> vector<8x8xf32>
    %475 = vector.extract_strided_slice %20 {offsets = [8, 0], sizes = [8, 32], strides = [1, 1]} : vector<32x32xbf16> to vector<8x32xbf16>
    %476 = arith.truncf %474 : vector<8x8xf32> to vector<8x8xbf16>
    %cst_171 = arith.constant dense<0.000000e+00> : vector<8x32xf32>
    %477 = tpu.matmul %476, %475, %cst_171 {dimension_numbers = #tpu.dot_dimension_numbers<[1], [0], [0], [1], [0, 0, 1, 1], [], []>} : vector<8x8xbf16>, vector<8x32xbf16>, vector<8x32xf32> -> vector<8x32xf32>
    %478 = arith.addf %459, %477 : vector<8x32xf32>
    %479 = vector.extract_strided_slice %439 {offsets = [0, 16], sizes = [8, 8], strides = [1, 1]} : vector<8x32xf32> to vector<8x8xf32>
    %480 = vector.extract_strided_slice %322 {offsets = [0, 16], sizes = [16, 8], strides = [1, 1]} : vector<16x32xf32> to vector<16x8xf32>
    %481 = vector.extract_strided_slice %323 {offsets = [0, 16], sizes = [16, 8], strides = [1, 1]} : vector<16x32xf32> to vector<16x8xf32>
    %cst_172 = arith.constant dense<0.000000e+00> : vector<8x16xf32>
    %482 = tpu.matmul %479, %480, %cst_172 {dimension_numbers = #tpu.dot_dimension_numbers<[1], [1], [0], [0], [0, 0, 1, 0], [], []>} : vector<8x8xf32>, vector<16x8xf32>, vector<8x16xf32> -> vector<8x16xf32>
    %cst_173 = arith.constant dense<0xFF800000> : vector<8xf32>
    %483 = vector.multi_reduction <maximumf>, %482, %cst_173 [1] : vector<8x16xf32> to vector<8xf32>
    %484 = vector.shape_cast %483 : vector<8xf32> to vector<8x1xf32>
    %485 = vector.broadcast %484 : vector<8x1xf32> to vector<8x16xf32>
    %486 = arith.subf %482, %485 : vector<8x16xf32>
    %487 = math.exp %486 : vector<8x16xf32>
    %cst_174 = arith.constant dense<0.000000e+00> : vector<8xf32>
    %488 = vector.multi_reduction <add>, %487, %cst_174 [1] : vector<8x16xf32> to vector<8xf32>
    %489 = vector.shape_cast %488 : vector<8xf32> to vector<8x1xf32>
    %490 = tpu.reciprocal %489 {approx = true} : vector<8x1xf32> -> vector<8x1xf32>
    %491 = vector.broadcast %490 : vector<8x1xf32> to vector<8x16xf32>
    %492 = arith.mulf %487, %491 : vector<8x16xf32>
    %cst_175 = arith.constant dense<0.000000e+00> : vector<8x8xf32>
    %493 = tpu.matmul %492, %481, %cst_175 {dimension_numbers = #tpu.dot_dimension_numbers<[1], [0], [0], [1], [0, 0, 1, 1], [], []>} : vector<8x16xf32>, vector<16x8xf32>, vector<8x8xf32> -> vector<8x8xf32>
    %494 = vector.extract_strided_slice %20 {offsets = [16, 0], sizes = [8, 32], strides = [1, 1]} : vector<32x32xbf16> to vector<8x32xbf16>
    %495 = arith.truncf %493 : vector<8x8xf32> to vector<8x8xbf16>
    %cst_176 = arith.constant dense<0.000000e+00> : vector<8x32xf32>
    %496 = tpu.matmul %495, %494, %cst_176 {dimension_numbers = #tpu.dot_dimension_numbers<[1], [0], [0], [1], [0, 0, 1, 1], [], []>} : vector<8x8xbf16>, vector<8x32xbf16>, vector<8x32xf32> -> vector<8x32xf32>
    %497 = arith.addf %478, %496 : vector<8x32xf32>
    %498 = vector.extract_strided_slice %439 {offsets = [0, 24], sizes = [8, 8], strides = [1, 1]} : vector<8x32xf32> to vector<8x8xf32>
    %499 = vector.extract_strided_slice %322 {offsets = [0, 24], sizes = [16, 8], strides = [1, 1]} : vector<16x32xf32> to vector<16x8xf32>
    %500 = vector.extract_strided_slice %323 {offsets = [0, 24], sizes = [16, 8], strides = [1, 1]} : vector<16x32xf32> to vector<16x8xf32>
    %cst_177 = arith.constant dense<0.000000e+00> : vector<8x16xf32>
    %501 = tpu.matmul %498, %499, %cst_177 {dimension_numbers = #tpu.dot_dimension_numbers<[1], [1], [0], [0], [0, 0, 1, 0], [], []>} : vector<8x8xf32>, vector<16x8xf32>, vector<8x16xf32> -> vector<8x16xf32>
    %cst_178 = arith.constant dense<0xFF800000> : vector<8xf32>
    %502 = vector.multi_reduction <maximumf>, %501, %cst_178 [1] : vector<8x16xf32> to vector<8xf32>
    %503 = vector.shape_cast %502 : vector<8xf32> to vector<8x1xf32>
    %504 = vector.broadcast %503 : vector<8x1xf32> to vector<8x16xf32>
    %505 = arith.subf %501, %504 : vector<8x16xf32>
    %506 = math.exp %505 : vector<8x16xf32>
    %cst_179 = arith.constant dense<0.000000e+00> : vector<8xf32>
    %507 = vector.multi_reduction <add>, %506, %cst_179 [1] : vector<8x16xf32> to vector<8xf32>
    %508 = vector.shape_cast %507 : vector<8xf32> to vector<8x1xf32>
    %509 = tpu.reciprocal %508 {approx = true} : vector<8x1xf32> -> vector<8x1xf32>
    %510 = vector.broadcast %509 : vector<8x1xf32> to vector<8x16xf32>
    %511 = arith.mulf %506, %510 : vector<8x16xf32>
    %cst_180 = arith.constant dense<0.000000e+00> : vector<8x8xf32>
    %512 = tpu.matmul %511, %500, %cst_180 {dimension_numbers = #tpu.dot_dimension_numbers<[1], [0], [0], [1], [0, 0, 1, 1], [], []>} : vector<8x16xf32>, vector<16x8xf32>, vector<8x8xf32> -> vector<8x8xf32>
    %513 = vector.extract_strided_slice %20 {offsets = [24, 0], sizes = [8, 32], strides = [1, 1]} : vector<32x32xbf16> to vector<8x32xbf16>
    %514 = arith.truncf %512 : vector<8x8xf32> to vector<8x8xbf16>
    %cst_181 = arith.constant dense<0.000000e+00> : vector<8x32xf32>
    %515 = tpu.matmul %514, %513, %cst_181 {dimension_numbers = #tpu.dot_dimension_numbers<[1], [0], [0], [1], [0, 0, 1, 1], [], []>} : vector<8x8xbf16>, vector<8x32xbf16>, vector<8x32xf32> -> vector<8x32xf32>
    %516 = arith.addf %497, %515 : vector<8x32xf32>
    %517 = arith.addf %433, %516 : vector<8x32xf32>
    %518 = vector.broadcast %21 : vector<1x32xf32> to vector<8x32xf32>
    %519 = arith.addf %517, %518 : vector<8x32xf32>
    %cst_182 = arith.constant dense<0.000000e+00> : vector<8xf32>
    %520 = vector.multi_reduction <add>, %519, %cst_182 [1] : vector<8x32xf32> to vector<8xf32>
    %521 = vector.shape_cast %520 : vector<8xf32> to vector<8x1xf32>
    %cst_183 = arith.constant 3.200000e+01 : f32
    %522 = vector.broadcast %cst_183 : f32 to vector<8x1xf32>
    %523 = arith.divf %521, %522 : vector<8x1xf32>
    %524 = vector.broadcast %523 : vector<8x1xf32> to vector<8x32xf32>
    %525 = arith.subf %519, %524 : vector<8x32xf32>
    %526 = arith.mulf %525, %525 : vector<8x32xf32>
    %cst_184 = arith.constant dense<0.000000e+00> : vector<8xf32>
    %527 = vector.multi_reduction <add>, %526, %cst_184 [1] : vector<8x32xf32> to vector<8xf32>
    %528 = vector.shape_cast %527 : vector<8xf32> to vector<8x1xf32>
    %cst_185 = arith.constant 3.200000e+01 : f32
    %529 = vector.broadcast %cst_185 : f32 to vector<8x1xf32>
    %530 = arith.divf %528, %529 : vector<8x1xf32>
    %531 = vector.broadcast %523 : vector<8x1xf32> to vector<8x32xf32>
    %532 = arith.subf %519, %531 : vector<8x32xf32>
    %cst_186 = arith.constant 9.99999974E-6 : f32
    %533 = vector.broadcast %cst_186 : f32 to vector<8x1xf32>
    %534 = arith.addf %530, %533 : vector<8x1xf32>
    %535 = math.rsqrt %534 : vector<8x1xf32>
    %536 = vector.broadcast %535 : vector<8x1xf32> to vector<8x32xf32>
    %537 = arith.mulf %532, %536 : vector<8x32xf32>
    %538 = vector.broadcast %22 : vector<1x32xf32> to vector<8x32xf32>
    %539 = arith.mulf %537, %538 : vector<8x32xf32>
    %540 = vector.broadcast %23 : vector<1x32xf32> to vector<8x32xf32>
    %541 = arith.addf %539, %540 : vector<8x32xf32>
    %542 = arith.truncf %541 : vector<8x32xf32> to vector<8x32xbf16>
    %cst_187 = arith.constant dense<0.000000e+00> : vector<8x64xf32>
    %543 = tpu.matmul %542, %24, %cst_187 {dimension_numbers = #tpu.dot_dimension_numbers<[1], [0], [0], [1], [0, 0, 1, 1], [], []>} : vector<8x32xbf16>, vector<32x64xbf16>, vector<8x64xf32> -> vector<8x64xf32>
    %544 = vector.broadcast %25 : vector<1x64xf32> to vector<8x64xf32>
    %545 = arith.addf %543, %544 : vector<8x64xf32>
    %cst_188 = arith.constant 0.000000e+00 : f32
    %546 = vector.broadcast %cst_188 : f32 to vector<8x64xf32>
    %547 = arith.maximumf %545, %546 : vector<8x64xf32>
    %548 = arith.truncf %547 : vector<8x64xf32> to vector<8x64xbf16>
    %cst_189 = arith.constant dense<0.000000e+00> : vector<8x32xf32>
    %549 = tpu.matmul %548, %26, %cst_189 {dimension_numbers = #tpu.dot_dimension_numbers<[1], [0], [0], [1], [0, 0, 1, 1], [], []>} : vector<8x64xbf16>, vector<64x32xbf16>, vector<8x32xf32> -> vector<8x32xf32>
    %550 = vector.broadcast %27 : vector<1x32xf32> to vector<8x32xf32>
    %551 = arith.addf %549, %550 : vector<8x32xf32>
    %552 = arith.addf %541, %551 : vector<8x32xf32>
    %cst_190 = arith.constant dense<0.000000e+00> : vector<8xf32>
    %553 = vector.multi_reduction <add>, %552, %cst_190 [1] : vector<8x32xf32> to vector<8xf32>
    %554 = vector.shape_cast %553 : vector<8xf32> to vector<8x1xf32>
    %cst_191 = arith.constant 3.200000e+01 : f32
    %555 = vector.broadcast %cst_191 : f32 to vector<8x1xf32>
    %556 = arith.divf %554, %555 : vector<8x1xf32>
    %557 = vector.broadcast %556 : vector<8x1xf32> to vector<8x32xf32>
    %558 = arith.subf %552, %557 : vector<8x32xf32>
    %559 = arith.mulf %558, %558 : vector<8x32xf32>
    %cst_192 = arith.constant dense<0.000000e+00> : vector<8xf32>
    %560 = vector.multi_reduction <add>, %559, %cst_192 [1] : vector<8x32xf32> to vector<8xf32>
    %561 = vector.shape_cast %560 : vector<8xf32> to vector<8x1xf32>
    %cst_193 = arith.constant 3.200000e+01 : f32
    %562 = vector.broadcast %cst_193 : f32 to vector<8x1xf32>
    %563 = arith.divf %561, %562 : vector<8x1xf32>
    %564 = vector.broadcast %556 : vector<8x1xf32> to vector<8x32xf32>
    %565 = arith.subf %552, %564 : vector<8x32xf32>
    %cst_194 = arith.constant 9.99999974E-6 : f32
    %566 = vector.broadcast %cst_194 : f32 to vector<8x1xf32>
    %567 = arith.addf %563, %566 : vector<8x1xf32>
    %568 = math.rsqrt %567 : vector<8x1xf32>
    %569 = vector.broadcast %568 : vector<8x1xf32> to vector<8x32xf32>
    %570 = arith.mulf %565, %569 : vector<8x32xf32>
    %571 = vector.broadcast %28 : vector<1x32xf32> to vector<8x32xf32>
    %572 = arith.mulf %570, %571 : vector<8x32xf32>
    %573 = vector.broadcast %29 : vector<1x32xf32> to vector<8x32xf32>
    %574 = arith.addf %572, %573 : vector<8x32xf32>
    %c0_195 = arith.constant 0 : index
    %c0_196 = arith.constant 0 : index
    %c0_197 = arith.constant 0 : index
    %c0_198 = arith.constant 0 : index
    %575 = vector.load %arg32[%c0_195, %c0_196, %c0_197, %c0_198] : memref<1x2x8x32xf32, #tpu.memory_space<vmem>>, vector<1x1x8x32xf32>
    %576 = vector.shape_cast %575 : vector<1x1x8x32xf32> to vector<8x32xf32>
    %577 = vector.shape_cast %574 : vector<8x32xf32> to vector<1x1x8x32xf32>
    tpu.vector_store %arg32[%c0_195, %c0_196, %c0_197, %c0_198], %577 {strides = array<i32>} : memref<1x2x8x32xf32, #tpu.memory_space<vmem>>, vector<1x1x8x32xf32>,
    %578 = arith.truncf %574 : vector<8x32xf32> to vector<8x32xbf16>
    %cst_199 = arith.constant dense<0.000000e+00> : vector<8x96xf32>
    %579 = tpu.matmul %578, %12, %cst_199 {dimension_numbers = #tpu.dot_dimension_numbers<[1], [0], [0], [1], [0, 0, 1, 1], [], []>} : vector<8x32xbf16>, vector<32x96xbf16>, vector<8x96xf32> -> vector<8x96xf32>
    %580 = vector.broadcast %13 : vector<1x96xf32> to vector<8x96xf32>
    %581 = arith.addf %579, %580 : vector<8x96xf32>
    %582 = vector.extract_strided_slice %581 {offsets = [0, 0], sizes = [8, 32], strides = [1, 1]} : vector<8x96xf32> to vector<8x32xf32>
    %583 = vector.extract_strided_slice %581 {offsets = [0, 32], sizes = [8, 32], strides = [1, 1]} : vector<8x96xf32> to vector<8x32xf32>
    %584 = vector.extract_strided_slice %581 {offsets = [0, 64], sizes = [8, 32], strides = [1, 1]} : vector<8x96xf32> to vector<8x32xf32>
    %cst_200 = arith.constant 0.000000e+00 : f32
    %585 = vector.broadcast %cst_200 : f32 to vector<8x32xf32>
    %586 = vector.extract_strided_slice %582 {offsets = [0, 0], sizes = [8, 8], strides = [1, 1]} : vector<8x32xf32> to vector<8x8xf32>
    %587 = vector.extract_strided_slice %583 {offsets = [0, 0], sizes = [8, 8], strides = [1, 1]} : vector<8x32xf32> to vector<8x8xf32>
    %588 = vector.extract_strided_slice %584 {offsets = [0, 0], sizes = [8, 8], strides = [1, 1]} : vector<8x32xf32> to vector<8x8xf32>
    %cst_201 = arith.constant dense<0.000000e+00> : vector<8x8xf32>
    %589 = tpu.matmul %586, %587, %cst_201 {dimension_numbers = #tpu.dot_dimension_numbers<[1], [1], [0], [0], [0, 0, 1, 0], [], []>} : vector<8x8xf32>, vector<8x8xf32>, vector<8x8xf32> -> vector<8x8xf32>
    %cst_202 = arith.constant dense<0xFF800000> : vector<8xf32>
    %590 = vector.multi_reduction <maximumf>, %589, %cst_202 [1] : vector<8x8xf32> to vector<8xf32>
    %591 = vector.shape_cast %590 : vector<8xf32> to vector<8x1xf32>
    %592 = vector.broadcast %591 : vector<8x1xf32> to vector<8x8xf32>
    %593 = arith.subf %589, %592 : vector<8x8xf32>
    %594 = math.exp %593 : vector<8x8xf32>
    %cst_203 = arith.constant dense<0.000000e+00> : vector<8xf32>
    %595 = vector.multi_reduction <add>, %594, %cst_203 [1] : vector<8x8xf32> to vector<8xf32>
    %596 = vector.shape_cast %595 : vector<8xf32> to vector<8x1xf32>
    %597 = tpu.reciprocal %596 {approx = true} : vector<8x1xf32> -> vector<8x1xf32>
    %598 = vector.broadcast %597 : vector<8x1xf32> to vector<8x8xf32>
    %599 = arith.mulf %594, %598 : vector<8x8xf32>
    %cst_204 = arith.constant dense<0.000000e+00> : vector<8x8xf32>
    %600 = tpu.matmul %599, %588, %cst_204 {dimension_numbers = #tpu.dot_dimension_numbers<[1], [0], [0], [1], [0, 0, 1, 1], [], []>} : vector<8x8xf32>, vector<8x8xf32>, vector<8x8xf32> -> vector<8x8xf32>
    %601 = vector.extract_strided_slice %14 {offsets = [0, 0], sizes = [8, 32], strides = [1, 1]} : vector<32x32xbf16> to vector<8x32xbf16>
    %602 = arith.truncf %600 : vector<8x8xf32> to vector<8x8xbf16>
    %cst_205 = arith.constant dense<0.000000e+00> : vector<8x32xf32>
    %603 = tpu.matmul %602, %601, %cst_205 {dimension_numbers = #tpu.dot_dimension_numbers<[1], [0], [0], [1], [0, 0, 1, 1], [], []>} : vector<8x8xbf16>, vector<8x32xbf16>, vector<8x32xf32> -> vector<8x32xf32>
    %604 = arith.addf %585, %603 : vector<8x32xf32>
    %605 = vector.extract_strided_slice %582 {offsets = [0, 8], sizes = [8, 8], strides = [1, 1]} : vector<8x32xf32> to vector<8x8xf32>
    %606 = vector.extract_strided_slice %583 {offsets = [0, 8], sizes = [8, 8], strides = [1, 1]} : vector<8x32xf32> to vector<8x8xf32>
    %607 = vector.extract_strided_slice %584 {offsets = [0, 8], sizes = [8, 8], strides = [1, 1]} : vector<8x32xf32> to vector<8x8xf32>
    %cst_206 = arith.constant dense<0.000000e+00> : vector<8x8xf32>
    %608 = tpu.matmul %605, %606, %cst_206 {dimension_numbers = #tpu.dot_dimension_numbers<[1], [1], [0], [0], [0, 0, 1, 0], [], []>} : vector<8x8xf32>, vector<8x8xf32>, vector<8x8xf32> -> vector<8x8xf32>
    %cst_207 = arith.constant dense<0xFF800000> : vector<8xf32>
    %609 = vector.multi_reduction <maximumf>, %608, %cst_207 [1] : vector<8x8xf32> to vector<8xf32>
    %610 = vector.shape_cast %609 : vector<8xf32> to vector<8x1xf32>
    %611 = vector.broadcast %610 : vector<8x1xf32> to vector<8x8xf32>
    %612 = arith.subf %608, %611 : vector<8x8xf32>
    %613 = math.exp %612 : vector<8x8xf32>
    %cst_208 = arith.constant dense<0.000000e+00> : vector<8xf32>
    %614 = vector.multi_reduction <add>, %613, %cst_208 [1] : vector<8x8xf32> to vector<8xf32>
    %615 = vector.shape_cast %614 : vector<8xf32> to vector<8x1xf32>
    %616 = tpu.reciprocal %615 {approx = true} : vector<8x1xf32> -> vector<8x1xf32>
    %617 = vector.broadcast %616 : vector<8x1xf32> to vector<8x8xf32>
    %618 = arith.mulf %613, %617 : vector<8x8xf32>
    %cst_209 = arith.constant dense<0.000000e+00> : vector<8x8xf32>
    %619 = tpu.matmul %618, %607, %cst_209 {dimension_numbers = #tpu.dot_dimension_numbers<[1], [0], [0], [1], [0, 0, 1, 1], [], []>} : vector<8x8xf32>, vector<8x8xf32>, vector<8x8xf32> -> vector<8x8xf32>
    %620 = vector.extract_strided_slice %14 {offsets = [8, 0], sizes = [8, 32], strides = [1, 1]} : vector<32x32xbf16> to vector<8x32xbf16>
    %621 = arith.truncf %619 : vector<8x8xf32> to vector<8x8xbf16>
    %cst_210 = arith.constant dense<0.000000e+00> : vector<8x32xf32>
    %622 = tpu.matmul %621, %620, %cst_210 {dimension_numbers = #tpu.dot_dimension_numbers<[1], [0], [0], [1], [0, 0, 1, 1], [], []>} : vector<8x8xbf16>, vector<8x32xbf16>, vector<8x32xf32> -> vector<8x32xf32>
    %623 = arith.addf %604, %622 : vector<8x32xf32>
    %624 = vector.extract_strided_slice %582 {offsets = [0, 16], sizes = [8, 8], strides = [1, 1]} : vector<8x32xf32> to vector<8x8xf32>
    %625 = vector.extract_strided_slice %583 {offsets = [0, 16], sizes = [8, 8], strides = [1, 1]} : vector<8x32xf32> to vector<8x8xf32>
    %626 = vector.extract_strided_slice %584 {offsets = [0, 16], sizes = [8, 8], strides = [1, 1]} : vector<8x32xf32> to vector<8x8xf32>
    %cst_211 = arith.constant dense<0.000000e+00> : vector<8x8xf32>
    %627 = tpu.matmul %624, %625, %cst_211 {dimension_numbers = #tpu.dot_dimension_numbers<[1], [1], [0], [0], [0, 0, 1, 0], [], []>} : vector<8x8xf32>, vector<8x8xf32>, vector<8x8xf32> -> vector<8x8xf32>
    %cst_212 = arith.constant dense<0xFF800000> : vector<8xf32>
    %628 = vector.multi_reduction <maximumf>, %627, %cst_212 [1] : vector<8x8xf32> to vector<8xf32>
    %629 = vector.shape_cast %628 : vector<8xf32> to vector<8x1xf32>
    %630 = vector.broadcast %629 : vector<8x1xf32> to vector<8x8xf32>
    %631 = arith.subf %627, %630 : vector<8x8xf32>
    %632 = math.exp %631 : vector<8x8xf32>
    %cst_213 = arith.constant dense<0.000000e+00> : vector<8xf32>
    %633 = vector.multi_reduction <add>, %632, %cst_213 [1] : vector<8x8xf32> to vector<8xf32>
    %634 = vector.shape_cast %633 : vector<8xf32> to vector<8x1xf32>
    %635 = tpu.reciprocal %634 {approx = true} : vector<8x1xf32> -> vector<8x1xf32>
    %636 = vector.broadcast %635 : vector<8x1xf32> to vector<8x8xf32>
    %637 = arith.mulf %632, %636 : vector<8x8xf32>
    %cst_214 = arith.constant dense<0.000000e+00> : vector<8x8xf32>
    %638 = tpu.matmul %637, %626, %cst_214 {dimension_numbers = #tpu.dot_dimension_numbers<[1], [0], [0], [1], [0, 0, 1, 1], [], []>} : vector<8x8xf32>, vector<8x8xf32>, vector<8x8xf32> -> vector<8x8xf32>
    %639 = vector.extract_strided_slice %14 {offsets = [16, 0], sizes = [8, 32], strides = [1, 1]} : vector<32x32xbf16> to vector<8x32xbf16>
    %640 = arith.truncf %638 : vector<8x8xf32> to vector<8x8xbf16>
    %cst_215 = arith.constant dense<0.000000e+00> : vector<8x32xf32>
    %641 = tpu.matmul %640, %639, %cst_215 {dimension_numbers = #tpu.dot_dimension_numbers<[1], [0], [0], [1], [0, 0, 1, 1], [], []>} : vector<8x8xbf16>, vector<8x32xbf16>, vector<8x32xf32> -> vector<8x32xf32>
    %642 = arith.addf %623, %641 : vector<8x32xf32>
    %643 = vector.extract_strided_slice %582 {offsets = [0, 24], sizes = [8, 8], strides = [1, 1]} : vector<8x32xf32> to vector<8x8xf32>
    %644 = vector.extract_strided_slice %583 {offsets = [0, 24], sizes = [8, 8], strides = [1, 1]} : vector<8x32xf32> to vector<8x8xf32>
    %645 = vector.extract_strided_slice %584 {offsets = [0, 24], sizes = [8, 8], strides = [1, 1]} : vector<8x32xf32> to vector<8x8xf32>
    %cst_216 = arith.constant dense<0.000000e+00> : vector<8x8xf32>
    %646 = tpu.matmul %643, %644, %cst_216 {dimension_numbers = #tpu.dot_dimension_numbers<[1], [1], [0], [0], [0, 0, 1, 0], [], []>} : vector<8x8xf32>, vector<8x8xf32>, vector<8x8xf32> -> vector<8x8xf32>
    %cst_217 = arith.constant dense<0xFF800000> : vector<8xf32>
    %647 = vector.multi_reduction <maximumf>, %646, %cst_217 [1] : vector<8x8xf32> to vector<8xf32>
    %648 = vector.shape_cast %647 : vector<8xf32> to vector<8x1xf32>
    %649 = vector.broadcast %648 : vector<8x1xf32> to vector<8x8xf32>
    %650 = arith.subf %646, %649 : vector<8x8xf32>
    %651 = math.exp %650 : vector<8x8xf32>
    %cst_218 = arith.constant dense<0.000000e+00> : vector<8xf32>
    %652 = vector.multi_reduction <add>, %651, %cst_218 [1] : vector<8x8xf32> to vector<8xf32>
    %653 = vector.shape_cast %652 : vector<8xf32> to vector<8x1xf32>
    %654 = tpu.reciprocal %653 {approx = true} : vector<8x1xf32> -> vector<8x1xf32>
    %655 = vector.broadcast %654 : vector<8x1xf32> to vector<8x8xf32>
    %656 = arith.mulf %651, %655 : vector<8x8xf32>
    %cst_219 = arith.constant dense<0.000000e+00> : vector<8x8xf32>
    %657 = tpu.matmul %656, %645, %cst_219 {dimension_numbers = #tpu.dot_dimension_numbers<[1], [0], [0], [1], [0, 0, 1, 1], [], []>} : vector<8x8xf32>, vector<8x8xf32>, vector<8x8xf32> -> vector<8x8xf32>
    %658 = vector.extract_strided_slice %14 {offsets = [24, 0], sizes = [8, 32], strides = [1, 1]} : vector<32x32xbf16> to vector<8x32xbf16>
    %659 = arith.truncf %657 : vector<8x8xf32> to vector<8x8xbf16>
    %cst_220 = arith.constant dense<0.000000e+00> : vector<8x32xf32>
    %660 = tpu.matmul %659, %658, %cst_220 {dimension_numbers = #tpu.dot_dimension_numbers<[1], [0], [0], [1], [0, 0, 1, 1], [], []>} : vector<8x8xbf16>, vector<8x32xbf16>, vector<8x32xf32> -> vector<8x32xf32>
    %661 = arith.addf %642, %660 : vector<8x32xf32>
    %662 = arith.addf %574, %661 : vector<8x32xf32>
    %663 = vector.broadcast %15 : vector<1x32xf32> to vector<8x32xf32>
    %664 = arith.addf %662, %663 : vector<8x32xf32>
    %cst_221 = arith.constant dense<0.000000e+00> : vector<8xf32>
    %665 = vector.multi_reduction <add>, %664, %cst_221 [1] : vector<8x32xf32> to vector<8xf32>
    %666 = vector.shape_cast %665 : vector<8xf32> to vector<8x1xf32>
    %cst_222 = arith.constant 3.200000e+01 : f32
    %667 = vector.broadcast %cst_222 : f32 to vector<8x1xf32>
    %668 = arith.divf %666, %667 : vector<8x1xf32>
    %669 = vector.broadcast %668 : vector<8x1xf32> to vector<8x32xf32>
    %670 = arith.subf %664, %669 : vector<8x32xf32>
    %671 = arith.mulf %670, %670 : vector<8x32xf32>
    %cst_223 = arith.constant dense<0.000000e+00> : vector<8xf32>
    %672 = vector.multi_reduction <add>, %671, %cst_223 [1] : vector<8x32xf32> to vector<8xf32>
    %673 = vector.shape_cast %672 : vector<8xf32> to vector<8x1xf32>
    %cst_224 = arith.constant 3.200000e+01 : f32
    %674 = vector.broadcast %cst_224 : f32 to vector<8x1xf32>
    %675 = arith.divf %673, %674 : vector<8x1xf32>
    %676 = vector.broadcast %668 : vector<8x1xf32> to vector<8x32xf32>
    %677 = arith.subf %664, %676 : vector<8x32xf32>
    %cst_225 = arith.constant 9.99999974E-6 : f32
    %678 = vector.broadcast %cst_225 : f32 to vector<8x1xf32>
    %679 = arith.addf %675, %678 : vector<8x1xf32>
    %680 = math.rsqrt %679 : vector<8x1xf32>
    %681 = vector.broadcast %680 : vector<8x1xf32> to vector<8x32xf32>
    %682 = arith.mulf %677, %681 : vector<8x32xf32>
    %683 = vector.broadcast %16 : vector<1x32xf32> to vector<8x32xf32>
    %684 = arith.mulf %682, %683 : vector<8x32xf32>
    %685 = vector.broadcast %17 : vector<1x32xf32> to vector<8x32xf32>
    %686 = arith.addf %684, %685 : vector<8x32xf32>
    %687 = vector.extract_strided_slice %18 {offsets = [0, 0], sizes = [32, 32], strides = [1, 1]} : vector<32x96xbf16> to vector<32x32xbf16>
    %688 = arith.truncf %686 : vector<8x32xf32> to vector<8x32xbf16>
    %cst_226 = arith.constant dense<0.000000e+00> : vector<8x32xf32>
    %689 = tpu.matmul %688, %687, %cst_226 {dimension_numbers = #tpu.dot_dimension_numbers<[1], [0], [0], [1], [0, 0, 1, 1], [], []>} : vector<8x32xbf16>, vector<32x32xbf16>, vector<8x32xf32> -> vector<8x32xf32>
    %690 = vector.extract_strided_slice %19 {offsets = [0, 0], sizes = [1, 32], strides = [1, 1]} : vector<1x96xf32> to vector<1x32xf32>
    %691 = vector.broadcast %690 : vector<1x32xf32> to vector<8x32xf32>
    %692 = arith.addf %689, %691 : vector<8x32xf32>
    %cst_227 = arith.constant 0.000000e+00 : f32
    %693 = vector.broadcast %cst_227 : f32 to vector<8x32xf32>
    %694 = vector.extract_strided_slice %692 {offsets = [0, 0], sizes = [8, 8], strides = [1, 1]} : vector<8x32xf32> to vector<8x8xf32>
    %695 = vector.extract_strided_slice %322 {offsets = [0, 0], sizes = [16, 8], strides = [1, 1]} : vector<16x32xf32> to vector<16x8xf32>
    %696 = vector.extract_strided_slice %323 {offsets = [0, 0], sizes = [16, 8], strides = [1, 1]} : vector<16x32xf32> to vector<16x8xf32>
    %cst_228 = arith.constant dense<0.000000e+00> : vector<8x16xf32>
    %697 = tpu.matmul %694, %695, %cst_228 {dimension_numbers = #tpu.dot_dimension_numbers<[1], [1], [0], [0], [0, 0, 1, 0], [], []>} : vector<8x8xf32>, vector<16x8xf32>, vector<8x16xf32> -> vector<8x16xf32>
    %cst_229 = arith.constant dense<0xFF800000> : vector<8xf32>
    %698 = vector.multi_reduction <maximumf>, %697, %cst_229 [1] : vector<8x16xf32> to vector<8xf32>
    %699 = vector.shape_cast %698 : vector<8xf32> to vector<8x1xf32>
    %700 = vector.broadcast %699 : vector<8x1xf32> to vector<8x16xf32>
    %701 = arith.subf %697, %700 : vector<8x16xf32>
    %702 = math.exp %701 : vector<8x16xf32>
    %cst_230 = arith.constant dense<0.000000e+00> : vector<8xf32>
    %703 = vector.multi_reduction <add>, %702, %cst_230 [1] : vector<8x16xf32> to vector<8xf32>
    %704 = vector.shape_cast %703 : vector<8xf32> to vector<8x1xf32>
    %705 = tpu.reciprocal %704 {approx = true} : vector<8x1xf32> -> vector<8x1xf32>
    %706 = vector.broadcast %705 : vector<8x1xf32> to vector<8x16xf32>
    %707 = arith.mulf %702, %706 : vector<8x16xf32>
    %cst_231 = arith.constant dense<0.000000e+00> : vector<8x8xf32>
    %708 = tpu.matmul %707, %696, %cst_231 {dimension_numbers = #tpu.dot_dimension_numbers<[1], [0], [0], [1], [0, 0, 1, 1], [], []>} : vector<8x16xf32>, vector<16x8xf32>, vector<8x8xf32> -> vector<8x8xf32>
    %709 = vector.extract_strided_slice %20 {offsets = [0, 0], sizes = [8, 32], strides = [1, 1]} : vector<32x32xbf16> to vector<8x32xbf16>
    %710 = arith.truncf %708 : vector<8x8xf32> to vector<8x8xbf16>
    %cst_232 = arith.constant dense<0.000000e+00> : vector<8x32xf32>
    %711 = tpu.matmul %710, %709, %cst_232 {dimension_numbers = #tpu.dot_dimension_numbers<[1], [0], [0], [1], [0, 0, 1, 1], [], []>} : vector<8x8xbf16>, vector<8x32xbf16>, vector<8x32xf32> -> vector<8x32xf32>
    %712 = arith.addf %693, %711 : vector<8x32xf32>
    %713 = vector.extract_strided_slice %692 {offsets = [0, 8], sizes = [8, 8], strides = [1, 1]} : vector<8x32xf32> to vector<8x8xf32>
    %714 = vector.extract_strided_slice %322 {offsets = [0, 8], sizes = [16, 8], strides = [1, 1]} : vector<16x32xf32> to vector<16x8xf32>
    %715 = vector.extract_strided_slice %323 {offsets = [0, 8], sizes = [16, 8], strides = [1, 1]} : vector<16x32xf32> to vector<16x8xf32>
    %cst_233 = arith.constant dense<0.000000e+00> : vector<8x16xf32>
    %716 = tpu.matmul %713, %714, %cst_233 {dimension_numbers = #tpu.dot_dimension_numbers<[1], [1], [0], [0], [0, 0, 1, 0], [], []>} : vector<8x8xf32>, vector<16x8xf32>, vector<8x16xf32> -> vector<8x16xf32>
    %cst_234 = arith.constant dense<0xFF800000> : vector<8xf32>
    %717 = vector.multi_reduction <maximumf>, %716, %cst_234 [1] : vector<8x16xf32> to vector<8xf32>
    %718 = vector.shape_cast %717 : vector<8xf32> to vector<8x1xf32>
    %719 = vector.broadcast %718 : vector<8x1xf32> to vector<8x16xf32>
    %720 = arith.subf %716, %719 : vector<8x16xf32>
    %721 = math.exp %720 : vector<8x16xf32>
    %cst_235 = arith.constant dense<0.000000e+00> : vector<8xf32>
    %722 = vector.multi_reduction <add>, %721, %cst_235 [1] : vector<8x16xf32> to vector<8xf32>
    %723 = vector.shape_cast %722 : vector<8xf32> to vector<8x1xf32>
    %724 = tpu.reciprocal %723 {approx = true} : vector<8x1xf32> -> vector<8x1xf32>
    %725 = vector.broadcast %724 : vector<8x1xf32> to vector<8x16xf32>
    %726 = arith.mulf %721, %725 : vector<8x16xf32>
    %cst_236 = arith.constant dense<0.000000e+00> : vector<8x8xf32>
    %727 = tpu.matmul %726, %715, %cst_236 {dimension_numbers = #tpu.dot_dimension_numbers<[1], [0], [0], [1], [0, 0, 1, 1], [], []>} : vector<8x16xf32>, vector<16x8xf32>, vector<8x8xf32> -> vector<8x8xf32>
    %728 = vector.extract_strided_slice %20 {offsets = [8, 0], sizes = [8, 32], strides = [1, 1]} : vector<32x32xbf16> to vector<8x32xbf16>
    %729 = arith.truncf %727 : vector<8x8xf32> to vector<8x8xbf16>
    %cst_237 = arith.constant dense<0.000000e+00> : vector<8x32xf32>
    %730 = tpu.matmul %729, %728, %cst_237 {dimension_numbers = #tpu.dot_dimension_numbers<[1], [0], [0], [1], [0, 0, 1, 1], [], []>} : vector<8x8xbf16>, vector<8x32xbf16>, vector<8x32xf32> -> vector<8x32xf32>
    %731 = arith.addf %712, %730 : vector<8x32xf32>
    %732 = vector.extract_strided_slice %692 {offsets = [0, 16], sizes = [8, 8], strides = [1, 1]} : vector<8x32xf32> to vector<8x8xf32>
    %733 = vector.extract_strided_slice %322 {offsets = [0, 16], sizes = [16, 8], strides = [1, 1]} : vector<16x32xf32> to vector<16x8xf32>
    %734 = vector.extract_strided_slice %323 {offsets = [0, 16], sizes = [16, 8], strides = [1, 1]} : vector<16x32xf32> to vector<16x8xf32>
    %cst_238 = arith.constant dense<0.000000e+00> : vector<8x16xf32>
    %735 = tpu.matmul %732, %733, %cst_238 {dimension_numbers = #tpu.dot_dimension_numbers<[1], [1], [0], [0], [0, 0, 1, 0], [], []>} : vector<8x8xf32>, vector<16x8xf32>, vector<8x16xf32> -> vector<8x16xf32>
    %cst_239 = arith.constant dense<0xFF800000> : vector<8xf32>
    %736 = vector.multi_reduction <maximumf>, %735, %cst_239 [1] : vector<8x16xf32> to vector<8xf32>
    %737 = vector.shape_cast %736 : vector<8xf32> to vector<8x1xf32>
    %738 = vector.broadcast %737 : vector<8x1xf32> to vector<8x16xf32>
    %739 = arith.subf %735, %738 : vector<8x16xf32>
    %740 = math.exp %739 : vector<8x16xf32>
    %cst_240 = arith.constant dense<0.000000e+00> : vector<8xf32>
    %741 = vector.multi_reduction <add>, %740, %cst_240 [1] : vector<8x16xf32> to vector<8xf32>
    %742 = vector.shape_cast %741 : vector<8xf32> to vector<8x1xf32>
    %743 = tpu.reciprocal %742 {approx = true} : vector<8x1xf32> -> vector<8x1xf32>
    %744 = vector.broadcast %743 : vector<8x1xf32> to vector<8x16xf32>
    %745 = arith.mulf %740, %744 : vector<8x16xf32>
    %cst_241 = arith.constant dense<0.000000e+00> : vector<8x8xf32>
    %746 = tpu.matmul %745, %734, %cst_241 {dimension_numbers = #tpu.dot_dimension_numbers<[1], [0], [0], [1], [0, 0, 1, 1], [], []>} : vector<8x16xf32>, vector<16x8xf32>, vector<8x8xf32> -> vector<8x8xf32>
    %747 = vector.extract_strided_slice %20 {offsets = [16, 0], sizes = [8, 32], strides = [1, 1]} : vector<32x32xbf16> to vector<8x32xbf16>
    %748 = arith.truncf %746 : vector<8x8xf32> to vector<8x8xbf16>
    %cst_242 = arith.constant dense<0.000000e+00> : vector<8x32xf32>
    %749 = tpu.matmul %748, %747, %cst_242 {dimension_numbers = #tpu.dot_dimension_numbers<[1], [0], [0], [1], [0, 0, 1, 1], [], []>} : vector<8x8xbf16>, vector<8x32xbf16>, vector<8x32xf32> -> vector<8x32xf32>
    %750 = arith.addf %731, %749 : vector<8x32xf32>
    %751 = vector.extract_strided_slice %692 {offsets = [0, 24], sizes = [8, 8], strides = [1, 1]} : vector<8x32xf32> to vector<8x8xf32>
    %752 = vector.extract_strided_slice %322 {offsets = [0, 24], sizes = [16, 8], strides = [1, 1]} : vector<16x32xf32> to vector<16x8xf32>
    %753 = vector.extract_strided_slice %323 {offsets = [0, 24], sizes = [16, 8], strides = [1, 1]} : vector<16x32xf32> to vector<16x8xf32>
    %cst_243 = arith.constant dense<0.000000e+00> : vector<8x16xf32>
    %754 = tpu.matmul %751, %752, %cst_243 {dimension_numbers = #tpu.dot_dimension_numbers<[1], [1], [0], [0], [0, 0, 1, 0], [], []>} : vector<8x8xf32>, vector<16x8xf32>, vector<8x16xf32> -> vector<8x16xf32>
    %cst_244 = arith.constant dense<0xFF800000> : vector<8xf32>
    %755 = vector.multi_reduction <maximumf>, %754, %cst_244 [1] : vector<8x16xf32> to vector<8xf32>
    %756 = vector.shape_cast %755 : vector<8xf32> to vector<8x1xf32>
    %757 = vector.broadcast %756 : vector<8x1xf32> to vector<8x16xf32>
    %758 = arith.subf %754, %757 : vector<8x16xf32>
    %759 = math.exp %758 : vector<8x16xf32>
    %cst_245 = arith.constant dense<0.000000e+00> : vector<8xf32>
    %760 = vector.multi_reduction <add>, %759, %cst_245 [1] : vector<8x16xf32> to vector<8xf32>
    %761 = vector.shape_cast %760 : vector<8xf32> to vector<8x1xf32>
    %762 = tpu.reciprocal %761 {approx = true} : vector<8x1xf32> -> vector<8x1xf32>
    %763 = vector.broadcast %762 : vector<8x1xf32> to vector<8x16xf32>
    %764 = arith.mulf %759, %763 : vector<8x16xf32>
    %cst_246 = arith.constant dense<0.000000e+00> : vector<8x8xf32>
    %765 = tpu.matmul %764, %753, %cst_246 {dimension_numbers = #tpu.dot_dimension_numbers<[1], [0], [0], [1], [0, 0, 1, 1], [], []>} : vector<8x16xf32>, vector<16x8xf32>, vector<8x8xf32> -> vector<8x8xf32>
    %766 = vector.extract_strided_slice %20 {offsets = [24, 0], sizes = [8, 32], strides = [1, 1]} : vector<32x32xbf16> to vector<8x32xbf16>
    %767 = arith.truncf %765 : vector<8x8xf32> to vector<8x8xbf16>
    %cst_247 = arith.constant dense<0.000000e+00> : vector<8x32xf32>
    %768 = tpu.matmul %767, %766, %cst_247 {dimension_numbers = #tpu.dot_dimension_numbers<[1], [0], [0], [1], [0, 0, 1, 1], [], []>} : vector<8x8xbf16>, vector<8x32xbf16>, vector<8x32xf32> -> vector<8x32xf32>
    %769 = arith.addf %750, %768 : vector<8x32xf32>
    %770 = arith.addf %686, %769 : vector<8x32xf32>
    %771 = vector.broadcast %21 : vector<1x32xf32> to vector<8x32xf32>
    %772 = arith.addf %770, %771 : vector<8x32xf32>
    %cst_248 = arith.constant dense<0.000000e+00> : vector<8xf32>
    %773 = vector.multi_reduction <add>, %772, %cst_248 [1] : vector<8x32xf32> to vector<8xf32>
    %774 = vector.shape_cast %773 : vector<8xf32> to vector<8x1xf32>
    %cst_249 = arith.constant 3.200000e+01 : f32
    %775 = vector.broadcast %cst_249 : f32 to vector<8x1xf32>
    %776 = arith.divf %774, %775 : vector<8x1xf32>
    %777 = vector.broadcast %776 : vector<8x1xf32> to vector<8x32xf32>
    %778 = arith.subf %772, %777 : vector<8x32xf32>
    %779 = arith.mulf %778, %778 : vector<8x32xf32>
    %cst_250 = arith.constant dense<0.000000e+00> : vector<8xf32>
    %780 = vector.multi_reduction <add>, %779, %cst_250 [1] : vector<8x32xf32> to vector<8xf32>
    %781 = vector.shape_cast %780 : vector<8xf32> to vector<8x1xf32>
    %cst_251 = arith.constant 3.200000e+01 : f32
    %782 = vector.broadcast %cst_251 : f32 to vector<8x1xf32>
    %783 = arith.divf %781, %782 : vector<8x1xf32>
    %784 = vector.broadcast %776 : vector<8x1xf32> to vector<8x32xf32>
    %785 = arith.subf %772, %784 : vector<8x32xf32>
    %cst_252 = arith.constant 9.99999974E-6 : f32
    %786 = vector.broadcast %cst_252 : f32 to vector<8x1xf32>
    %787 = arith.addf %783, %786 : vector<8x1xf32>
    %788 = math.rsqrt %787 : vector<8x1xf32>
    %789 = vector.broadcast %788 : vector<8x1xf32> to vector<8x32xf32>
    %790 = arith.mulf %785, %789 : vector<8x32xf32>
    %791 = vector.broadcast %22 : vector<1x32xf32> to vector<8x32xf32>
    %792 = arith.mulf %790, %791 : vector<8x32xf32>
    %793 = vector.broadcast %23 : vector<1x32xf32> to vector<8x32xf32>
    %794 = arith.addf %792, %793 : vector<8x32xf32>
    %795 = arith.truncf %794 : vector<8x32xf32> to vector<8x32xbf16>
    %cst_253 = arith.constant dense<0.000000e+00> : vector<8x64xf32>
    %796 = tpu.matmul %795, %24, %cst_253 {dimension_numbers = #tpu.dot_dimension_numbers<[1], [0], [0], [1], [0, 0, 1, 1], [], []>} : vector<8x32xbf16>, vector<32x64xbf16>, vector<8x64xf32> -> vector<8x64xf32>
    %797 = vector.broadcast %25 : vector<1x64xf32> to vector<8x64xf32>
    %798 = arith.addf %796, %797 : vector<8x64xf32>
    %cst_254 = arith.constant 0.000000e+00 : f32
    %799 = vector.broadcast %cst_254 : f32 to vector<8x64xf32>
    %800 = arith.maximumf %798, %799 : vector<8x64xf32>
    %801 = arith.truncf %800 : vector<8x64xf32> to vector<8x64xbf16>
    %cst_255 = arith.constant dense<0.000000e+00> : vector<8x32xf32>
    %802 = tpu.matmul %801, %26, %cst_255 {dimension_numbers = #tpu.dot_dimension_numbers<[1], [0], [0], [1], [0, 0, 1, 1], [], []>} : vector<8x64xbf16>, vector<64x32xbf16>, vector<8x32xf32> -> vector<8x32xf32>
    %803 = vector.broadcast %27 : vector<1x32xf32> to vector<8x32xf32>
    %804 = arith.addf %802, %803 : vector<8x32xf32>
    %805 = arith.addf %794, %804 : vector<8x32xf32>
    %cst_256 = arith.constant dense<0.000000e+00> : vector<8xf32>
    %806 = vector.multi_reduction <add>, %805, %cst_256 [1] : vector<8x32xf32> to vector<8xf32>
    %807 = vector.shape_cast %806 : vector<8xf32> to vector<8x1xf32>
    %cst_257 = arith.constant 3.200000e+01 : f32
    %808 = vector.broadcast %cst_257 : f32 to vector<8x1xf32>
    %809 = arith.divf %807, %808 : vector<8x1xf32>
    %810 = vector.broadcast %809 : vector<8x1xf32> to vector<8x32xf32>
    %811 = arith.subf %805, %810 : vector<8x32xf32>
    %812 = arith.mulf %811, %811 : vector<8x32xf32>
    %cst_258 = arith.constant dense<0.000000e+00> : vector<8xf32>
    %813 = vector.multi_reduction <add>, %812, %cst_258 [1] : vector<8x32xf32> to vector<8xf32>
    %814 = vector.shape_cast %813 : vector<8xf32> to vector<8x1xf32>
    %cst_259 = arith.constant 3.200000e+01 : f32
    %815 = vector.broadcast %cst_259 : f32 to vector<8x1xf32>
    %816 = arith.divf %814, %815 : vector<8x1xf32>
    %817 = vector.broadcast %809 : vector<8x1xf32> to vector<8x32xf32>
    %818 = arith.subf %805, %817 : vector<8x32xf32>
    %cst_260 = arith.constant 9.99999974E-6 : f32
    %819 = vector.broadcast %cst_260 : f32 to vector<8x1xf32>
    %820 = arith.addf %816, %819 : vector<8x1xf32>
    %821 = math.rsqrt %820 : vector<8x1xf32>
    %822 = vector.broadcast %821 : vector<8x1xf32> to vector<8x32xf32>
    %823 = arith.mulf %818, %822 : vector<8x32xf32>
    %824 = vector.broadcast %28 : vector<1x32xf32> to vector<8x32xf32>
    %825 = arith.mulf %823, %824 : vector<8x32xf32>
    %826 = vector.broadcast %29 : vector<1x32xf32> to vector<8x32xf32>
    %827 = arith.addf %825, %826 : vector<8x32xf32>
    %c0_261 = arith.constant 0 : index
    %c1 = arith.constant 1 : index
    %c0_262 = arith.constant 0 : index
    %c0_263 = arith.constant 0 : index
    %828 = vector.load %arg32[%c0_261, %c1, %c0_262, %c0_263] : memref<1x2x8x32xf32, #tpu.memory_space<vmem>>, vector<1x1x8x32xf32>
    %829 = vector.shape_cast %828 : vector<1x1x8x32xf32> to vector<8x32xf32>
    %830 = vector.shape_cast %827 : vector<8x32xf32> to vector<1x1x8x32xf32>
    tpu.vector_store %arg32[%c0_261, %c1, %c0_262, %c0_263], %830 {strides = array<i32>} : memref<1x2x8x32xf32, #tpu.memory_space<vmem>>, vector<1x1x8x32xf32>,
    return
  }
  func.func @transform_0(%arg0: i32) -> (i32, i32, i32) {
    %c0_i32 = arith.constant 0 : i32
    %c0_i32_0 = arith.constant 0 : i32
    %c0_i32_1 = arith.constant 0 : i32
    return %arg0, %c0_i32, %c0_i32_0 : i32, i32, i32
  }
  func.func @transform_1(%arg0: i32) -> (i32, i32) {
    %c0_i32 = arith.constant 0 : i32
    %c0_i32_0 = arith.constant 0 : i32
    %c0_i32_1 = arith.constant 0 : i32
    return %c0_i32, %c0_i32_0 : i32, i32
  }
  func.func @transform_2(%arg0: i32) -> (i32, i32) {
    %c0_i32 = arith.constant 0 : i32
    %c0_i32_0 = arith.constant 0 : i32
    %c0_i32_1 = arith.constant 0 : i32
    return %c0_i32, %c0_i32_0 : i32, i32
  }
  func.func @transform_3(%arg0: i32) -> (i32, i32) {
    %c0_i32 = arith.constant 0 : i32
    %c0_i32_0 = arith.constant 0 : i32
    %c0_i32_1 = arith.constant 0 : i32
    return %c0_i32, %c0_i32_0 : i32, i32
  }
  func.func @transform_4(%arg0: i32) -> (i32, i32) {
    %c0_i32 = arith.constant 0 : i32
    %c0_i32_0 = arith.constant 0 : i32
    %c0_i32_1 = arith.constant 0 : i32
    return %c0_i32, %c0_i32_0 : i32, i32
  }
  func.func @transform_5(%arg0: i32) -> (i32, i32) {
    %c0_i32 = arith.constant 0 : i32
    %c0_i32_0 = arith.constant 0 : i32
    %c0_i32_1 = arith.constant 0 : i32
    return %c0_i32, %c0_i32_0 : i32, i32
  }
  func.func @transform_6(%arg0: i32) -> (i32, i32) {
    %c0_i32 = arith.constant 0 : i32
    %c0_i32_0 = arith.constant 0 : i32
    %c0_i32_1 = arith.constant 0 : i32
    return %c0_i32, %c0_i32_0 : i32, i32
  }
  func.func @transform_7(%arg0: i32) -> (i32, i32) {
    %c0_i32 = arith.constant 0 : i32
    %c0_i32_0 = arith.constant 0 : i32
    %c0_i32_1 = arith.constant 0 : i32
    return %c0_i32, %c0_i32_0 : i32, i32
  }
  func.func @transform_8(%arg0: i32) -> (i32, i32) {
    %c0_i32 = arith.constant 0 : i32
    %c0_i32_0 = arith.constant 0 : i32
    %c0_i32_1 = arith.constant 0 : i32
    return %c0_i32, %c0_i32_0 : i32, i32
  }
  func.func @transform_9(%arg0: i32) -> (i32, i32) {
    %c0_i32 = arith.constant 0 : i32
    %c0_i32_0 = arith.constant 0 : i32
    %c0_i32_1 = arith.constant 0 : i32
    return %c0_i32, %c0_i32_0 : i32, i32
  }
  func.func @transform_10(%arg0: i32) -> (i32, i32) {
    %c0_i32 = arith.constant 0 : i32
    %c0_i32_0 = arith.constant 0 : i32
    %c0_i32_1 = arith.constant 0 : i32
    return %c0_i32, %c0_i32_0 : i32, i32
  }
  func.func @transform_11(%arg0: i32) -> (i32, i32) {
    %c0_i32 = arith.constant 0 : i32
    %c0_i32_0 = arith.constant 0 : i32
    %c0_i32_1 = arith.constant 0 : i32
    return %c0_i32, %c0_i32_0 : i32, i32
  }
  func.func @transform_12(%arg0: i32) -> (i32, i32) {
    %c0_i32 = arith.constant 0 : i32
    %c0_i32_0 = arith.constant 0 : i32
    %c0_i32_1 = arith.constant 0 : i32
    return %c0_i32, %c0_i32_0 : i32, i32
  }
  func.func @transform_13(%arg0: i32) -> (i32, i32) {
    %c0_i32 = arith.constant 0 : i32
    %c0_i32_0 = arith.constant 0 : i32
    %c0_i32_1 = arith.constant 0 : i32
    return %c0_i32, %c0_i32_0 : i32, i32
  }
  func.func @transform_14(%arg0: i32) -> (i32, i32) {
    %c0_i32 = arith.constant 0 : i32
    %c0_i32_0 = arith.constant 0 : i32
    %c0_i32_1 = arith.constant 0 : i32
    return %c0_i32, %c0_i32_0 : i32, i32
  }
  func.func @transform_15(%arg0: i32) -> (i32, i32) {
    %c0_i32 = arith.constant 0 : i32
    %c0_i32_0 = arith.constant 0 : i32
    %c0_i32_1 = arith.constant 0 : i32
    return %c0_i32, %c0_i32_0 : i32, i32
  }
  func.func @transform_16(%arg0: i32) -> (i32, i32) {
    %c0_i32 = arith.constant 0 : i32
    %c0_i32_0 = arith.constant 0 : i32
    %c0_i32_1 = arith.constant 0 : i32
    return %c0_i32, %c0_i32_0 : i32, i32
  }
  func.func @transform_17(%arg0: i32) -> (i32, i32) {
    %c0_i32 = arith.constant 0 : i32
    %c0_i32_0 = arith.constant 0 : i32
    %c0_i32_1 = arith.constant 0 : i32
    return %c0_i32, %c0_i32_0 : i32, i32
  }
  func.func @transform_18(%arg0: i32) -> (i32, i32) {
    %c0_i32 = arith.constant 0 : i32
    %c0_i32_0 = arith.constant 0 : i32
    %c0_i32_1 = arith.constant 0 : i32
    return %c0_i32, %c0_i32_0 : i32, i32
  }
  func.func @transform_19(%arg0: i32) -> (i32, i32) {
    %c0_i32 = arith.constant 0 : i32
    %c0_i32_0 = arith.constant 0 : i32
    %c0_i32_1 = arith.constant 0 : i32
    return %c0_i32, %c0_i32_0 : i32, i32
  }
  func.func @transform_20(%arg0: i32) -> (i32, i32) {
    %c0_i32 = arith.constant 0 : i32
    %c0_i32_0 = arith.constant 0 : i32
    %c0_i32_1 = arith.constant 0 : i32
    return %c0_i32, %c0_i32_0 : i32, i32
  }
  func.func @transform_21(%arg0: i32) -> (i32, i32) {
    %c0_i32 = arith.constant 0 : i32
    %c0_i32_0 = arith.constant 0 : i32
    %c0_i32_1 = arith.constant 0 : i32
    return %c0_i32, %c0_i32_0 : i32, i32
  }
  func.func @transform_22(%arg0: i32) -> (i32, i32) {
    %c0_i32 = arith.constant 0 : i32
    %c0_i32_0 = arith.constant 0 : i32
    %c0_i32_1 = arith.constant 0 : i32
    return %c0_i32, %c0_i32_0 : i32, i32
  }
  func.func @transform_23(%arg0: i32) -> (i32, i32) {
    %c0_i32 = arith.constant 0 : i32
    %c0_i32_0 = arith.constant 0 : i32
    %c0_i32_1 = arith.constant 0 : i32
    return %c0_i32, %c0_i32_0 : i32, i32
  }
  func.func @transform_24(%arg0: i32) -> (i32, i32) {
    %c0_i32 = arith.constant 0 : i32
    %c0_i32_0 = arith.constant 0 : i32
    %c0_i32_1 = arith.constant 0 : i32
    return %c0_i32, %c0_i32_0 : i32, i32
  }
  func.func @transform_25(%arg0: i32) -> (i32, i32) {
    %c0_i32 = arith.constant 0 : i32
    %c0_i32_0 = arith.constant 0 : i32
    %c0_i32_1 = arith.constant 0 : i32
    return %c0_i32, %c0_i32_0 : i32, i32
  }
  func.func @transform_26(%arg0: i32) -> (i32, i32) {
    %c0_i32 = arith.constant 0 : i32
    %c0_i32_0 = arith.constant 0 : i32
    %c0_i32_1 = arith.constant 0 : i32
    return %c0_i32, %c0_i32_0 : i32, i32
  }
  func.func @transform_27(%arg0: i32) -> (i32, i32) {
    %c0_i32 = arith.constant 0 : i32
    %c0_i32_0 = arith.constant 0 : i32
    %c0_i32_1 = arith.constant 0 : i32
    return %c0_i32, %c0_i32_0 : i32, i32
  }
  func.func @transform_28(%arg0: i32) -> (i32, i32) {
    %c0_i32 = arith.constant 0 : i32
    %c0_i32_0 = arith.constant 0 : i32
    %c0_i32_1 = arith.constant 0 : i32
    return %c0_i32, %c0_i32_0 : i32, i32
  }
  func.func @transform_29(%arg0: i32) -> (i32, i32) {
    %c0_i32 = arith.constant 0 : i32
    %c0_i32_0 = arith.constant 0 : i32
    %c0_i32_1 = arith.constant 0 : i32
    return %c0_i32, %c0_i32_0 : i32, i32
  }
  func.func @transform_30(%arg0: i32) -> (i32, i32) {
    %c0_i32 = arith.constant 0 : i32
    %c0_i32_0 = arith.constant 0 : i32
    %c0_i32_1 = arith.constant 0 : i32
    return %c0_i32, %c0_i32_0 : i32, i32
  }
  func.func @transform_31(%arg0: i32) -> (i32, i32, i32, i32) {
    %c0_i32 = arith.constant 0 : i32
    %c0_i32_0 = arith.constant 0 : i32
    %c0_i32_1 = arith.constant 0 : i32
    %c0_i32_2 = arith.constant 0 : i32
    return %arg0, %c0_i32, %c0_i32_0, %c0_i32_1 : i32, i32, i32, i32
  }
}

</mosaic_0001>

<llo_original>
// kernel: transformer_forward.1
$region0: #{transformer_forward.1}
  #allocation0 [shape = 'u32[]', space=smem, size = 0x4, offset = 0x4, fixed_abs, tag = 'smem constant byte address 0x4 - core index']
  #allocation1 [shape = 'u32[144,128]{1,0:T(1,128)}', space=vmem, size = 0x12000, scoped, tag = 'internal scratch']
  %s0 = inlined_call_operand.smem [shape: u32[32], index: -1, kind: input, shape index: {}]
  %s1 = sld [smem:[%s0]]
  %s2 = scalar_lea.smem %s0, 1
  %s3 = sld [smem:[%s2]]
  %s4 = scalar_lea.smem %s0, 2
  %s5 = sld [smem:[%s4]]
  %s6 = scalar_lea.smem %s0, 3
  %s7 = sld [smem:[%s6]]
  %s8 = scalar_lea.smem %s0, 4
  %s9 = sld [smem:[%s8]]
  %s10 = scalar_lea.smem %s0, 5
  %s11 = sld [smem:[%s10]]
  %s12 = scalar_lea.smem %s0, 6
  %s13 = sld [smem:[%s12]]
  %s14 = scalar_lea.smem %s0, 7
  %s15 = sld [smem:[%s14]]
  %s16 = scalar_lea.smem %s0, 8
  %s17 = sld [smem:[%s16]]
  %s18 = scalar_lea.smem %s0, 9
  %s19 = sld [smem:[%s18]]
  %s20 = scalar_lea.smem %s0, 10
  %s21 = sld [smem:[%s20]]
  %s22 = scalar_lea.smem %s0, 11
  %s23 = sld [smem:[%s22]]
  %s24 = scalar_lea.smem %s0, 12
  %s25 = sld [smem:[%s24]]
  %s26 = scalar_lea.smem %s0, 13
  %s27 = sld [smem:[%s26]]
  %s28 = scalar_lea.smem %s0, 14
  %s29 = sld [smem:[%s28]]
  %s30 = scalar_lea.smem %s0, 15
  %s31 = sld [smem:[%s30]]
  %s32 = scalar_lea.smem %s0, 16
  %s33 = sld [smem:[%s32]]
  %s34 = scalar_lea.smem %s0, 17
  %s35 = sld [smem:[%s34]]
  %s36 = scalar_lea.smem %s0, 18
  %s37 = sld [smem:[%s36]]
  %s38 = scalar_lea.smem %s0, 19
  %s39 = sld [smem:[%s38]]
  %s40 = scalar_lea.smem %s0, 20
  %s41 = sld [smem:[%s40]]
  %s42 = scalar_lea.smem %s0, 21
  %s43 = sld [smem:[%s42]]
  %s44 = scalar_lea.smem %s0, 22
  %s45 = sld [smem:[%s44]]
  %s46 = scalar_lea.smem %s0, 23
  %s47 = sld [smem:[%s46]]
  %s48 = scalar_lea.smem %s0, 24
  %s49 = sld [smem:[%s48]]
  %s50 = scalar_lea.smem %s0, 25
  %s51 = sld [smem:[%s50]]
  %s52 = scalar_lea.smem %s0, 26
  %s53 = sld [smem:[%s52]]
  %s54 = scalar_lea.smem %s0, 27
  %s55 = sld [smem:[%s54]]
  %s56 = scalar_lea.smem %s0, 28
  %s57 = sld [smem:[%s56]]
  %s58 = scalar_lea.smem %s0, 29
  %s59 = sld [smem:[%s58]]
  %s60 = scalar_lea.smem %s0, 30
  %s61 = sld [smem:[%s60]]
  %s62 = scalar_lea.smem %s0, 31
  %s63 = sld [smem:[%s62]]
  %s64 = sld [smem:[#allocation0]]
  $region157: #{transformer_forward.1} parent=0
    _
  %s66 = ssub.s32 1, %s64
  %s67 = scalar_select 0, %s66, %s64
  loop: start=0, step=1, limit=4
  $region2: #{transformer_forward.1} parent=0 // loop_pre_header
    _
  $region3: #{transformer_forward.1} parent=0 // loop_header
    %s69 = sphi 0, %s73
    %p70 = scmp.ge.s32.totalorder %s69, 4
    %s79 = sphi 0, %s81
    %s82 = sphi 0, %s79
    %s83 = sphi 0, %s82
    %s99 = sphi 0, %s83
    %s103 = sphi 0, %s103
    %s105 = sphi 0, %s103
    %s106 = sphi 0, %s105
    %s120 = sphi 0, %s106
    %s124 = sphi 0, %s124
    %s126 = sphi 0, %s124
    %s127 = sphi 0, %s126
    %s141 = sphi 0, %s127
    %s145 = sphi 0, %s145
    %s147 = sphi 0, %s145
    %s148 = sphi 0, %s147
    %s162 = sphi 0, %s148
    %s166 = sphi 0, %s166
    %s168 = sphi 0, %s166
    %s169 = sphi 0, %s168
    %s183 = sphi 0, %s169
    %s187 = sphi 0, %s187
    %s189 = sphi 0, %s187
    %s190 = sphi 0, %s189
    %s204 = sphi 0, %s190
    %s208 = sphi 0, %s208
    %s210 = sphi 0, %s208
    %s211 = sphi 0, %s210
    %s225 = sphi 0, %s211
    %s229 = sphi 0, %s229
    %s231 = sphi 0, %s229
    %s232 = sphi 0, %s231
    %s246 = sphi 0, %s232
    %s250 = sphi 0, %s250
    %s252 = sphi 0, %s250
    %s253 = sphi 0, %s252
    %s267 = sphi 0, %s253
    %s271 = sphi 0, %s271
    %s273 = sphi 0, %s271
    %s274 = sphi 0, %s273
    %s288 = sphi 0, %s274
    %s292 = sphi 0, %s292
    %s294 = sphi 0, %s292
    %s295 = sphi 0, %s294
    %s309 = sphi 0, %s295
    %s313 = sphi 0, %s313
    %s315 = sphi 0, %s313
    %s316 = sphi 0, %s315
    %s330 = sphi 0, %s316
    %s334 = sphi 0, %s334
    %s336 = sphi 0, %s334
    %s337 = sphi 0, %s336
    %s351 = sphi 0, %s337
    %s355 = sphi 0, %s355
    %s357 = sphi 0, %s355
    %s358 = sphi 0, %s357
    %s372 = sphi 0, %s358
    %s376 = sphi 0, %s376
    %s378 = sphi 0, %s376
    %s379 = sphi 0, %s378
    %s393 = sphi 0, %s379
    %s397 = sphi 0, %s397
    %s399 = sphi 0, %s397
    %s400 = sphi 0, %s399
    %s414 = sphi 0, %s400
    %s418 = sphi 0, %s418
    %s420 = sphi 0, %s418
    %s421 = sphi 0, %s420
    %s435 = sphi 0, %s421
    %s439 = sphi 0, %s439
    %s441 = sphi 0, %s439
    %s442 = sphi 0, %s441
    %s456 = sphi 0, %s442
    %s460 = sphi 0, %s460
    %s462 = sphi 0, %s460
    %s463 = sphi 0, %s462
    %s477 = sphi 0, %s463
    %s481 = sphi 0, %s481
    %s483 = sphi 0, %s481
    %s484 = sphi 0, %s483
    %s498 = sphi 0, %s484
    %s502 = sphi 0, %s502
    %s504 = sphi 0, %s502
    %s505 = sphi 0, %s504
    %s519 = sphi 0, %s505
    %s523 = sphi 0, %s523
    %s525 = sphi 0, %s523
    %s526 = sphi 0, %s525
    %s540 = sphi 0, %s526
    %s544 = sphi 0, %s544
    %s546 = sphi 0, %s544
    %s547 = sphi 0, %s546
    %s561 = sphi 0, %s547
    %s565 = sphi 0, %s565
    %s567 = sphi 0, %s565
    %s568 = sphi 0, %s567
    %s582 = sphi 0, %s568
    %s586 = sphi 0, %s586
    %s588 = sphi 0, %s586
    %s589 = sphi 0, %s588
    %s603 = sphi 0, %s589
    %s607 = sphi 0, %s607
    %s609 = sphi 0, %s607
    %s610 = sphi 0, %s609
    %s624 = sphi 0, %s610
    %s628 = sphi 0, %s628
    %s630 = sphi 0, %s628
    %s631 = sphi 0, %s630
    %s645 = sphi 0, %s631
    %s649 = sphi 0, %s649
    %s651 = sphi 0, %s649
    %s652 = sphi 0, %s651
    %s666 = sphi 0, %s652
    %s670 = sphi 0, %s670
    %s672 = sphi 0, %s670
    %s673 = sphi 0, %s672
    %s687 = sphi 0, %s673
    %s691 = sphi 0, %s691
    %s693 = sphi 0, %s691
    %s694 = sphi 0, %s693
    %s708 = sphi 0, %s694
    %s712 = sphi 0, %s712
    %s714 = sphi 0, %s712
    %s715 = sphi 0, %s714
    %s729 = sphi 0, %s715
    %s735 = sphi 0, %s737
    %s738 = sphi 0, %s735
    %s739 = sphi 0, %s738
    %s755 = sphi 0, %s739
  $region4: #{transformer_forward.1} parent=0 // loop_header_branch
    %72 = sbr.rel (%p70) target = $region8
  $region5: #{transformer_forward.1} parent=0 // loop_body
    %s74 = ssub.s32 %s69, 1
    %s75 = ssub.s32 %s69, 2
    %s76 = sadd.s32 %s69, 1
    %s77 = ssub.s32 %s69, %s76
    %p78 = scmp.eq.s32.totalorder %s77, 0
    %s80 = sadd.s32 %s79, 1
    %s81 = scalar_select %p78, %s79, %s80
    %p84 = pneg %p78
    %p85 = scmp.eq.s32.totalorder %s69, 1
    %p86 = por %p84, %p85
    %p87 = scmp.ne.s32.totalorder %s79, %s82
    %p88 = scmp.eq.s32.totalorder %s69, 0
    %p89 = por %p87, %p88
    %p90 = scmp.ne.s32.totalorder %s79, %s82
    %p91 = scmp.eq.s32.totalorder %s74, 1
    %p92 = por %p90, %p91
    %p93 = scmp.ne.s32.totalorder %s82, %s83
    %p94 = scmp.eq.s32.totalorder %s74, 0
    %p95 = por %p93, %p94
    %p96 = scmp.ne.s32.totalorder %s82, %s83
    %p97 = scmp.eq.s32.totalorder %s75, 1
    %p98 = por %p96, %p97
    %p100 = scmp.ne.s32.totalorder %s83, %s99
    %p101 = scmp.eq.s32.totalorder %s75, 0
    %p102 = por %p100, %p101
    %s104 = sadd.s32 %s103, 1
    %p107 = scmp.eq.s32.totalorder %s69, 1
    %p108 = scmp.ne.s32.totalorder %s103, %s105
    %p109 = scmp.eq.s32.totalorder %s69, 0
    %p110 = por %p108, %p109
    %p111 = scmp.ne.s32.totalorder %s103, %s105
    %p112 = scmp.eq.s32.totalorder %s74, 1
    %p113 = por %p111, %p112
    %p114 = scmp.ne.s32.totalorder %s105, %s106
    %p115 = scmp.eq.s32.totalorder %s74, 0
    %p116 = por %p114, %p115
    %p117 = scmp.ne.s32.totalorder %s105, %s106
    %p118 = scmp.eq.s32.totalorder %s75, 1
    %p119 = por %p117, %p118
    %p121 = scmp.ne.s32.totalorder %s106, %s120
    %p122 = scmp.eq.s32.totalorder %s75, 0
    %p123 = por %p121, %p122
    %s125 = sadd.s32 %s124, 1
    %p128 = scmp.eq.s32.totalorder %s69, 1
    %p129 = scmp.ne.s32.totalorder %s124, %s126
    %p130 = scmp.eq.s32.totalorder %s69, 0
    %p131 = por %p129, %p130
    %p132 = scmp.ne.s32.totalorder %s124, %s126
    %p133 = scmp.eq.s32.totalorder %s74, 1
    %p134 = por %p132, %p133
    %p135 = scmp.ne.s32.totalorder %s126, %s127
    %p136 = scmp.eq.s32.totalorder %s74, 0
    %p137 = por %p135, %p136
    %p138 = scmp.ne.s32.totalorder %s126, %s127
    %p139 = scmp.eq.s32.totalorder %s75, 1
    %p140 = por %p138, %p139
    %p142 = scmp.ne.s32.totalorder %s127, %s141
    %p143 = scmp.eq.s32.totalorder %s75, 0
    %p144 = por %p142, %p143
    %s146 = sadd.s32 %s145, 1
    %p149 = scmp.eq.s32.totalorder %s69, 1
    %p150 = scmp.ne.s32.totalorder %s145, %s147
    %p151 = scmp.eq.s32.totalorder %s69, 0
    %p152 = por %p150, %p151
    %p153 = scmp.ne.s32.totalorder %s145, %s147
    %p154 = scmp.eq.s32.totalorder %s74, 1
    %p155 = por %p153, %p154
    %p156 = scmp.ne.s32.totalorder %s147, %s148
    %p157 = scmp.eq.s32.totalorder %s74, 0
    %p158 = por %p156, %p157
    %p159 = scmp.ne.s32.totalorder %s147, %s148
    %p160 = scmp.eq.s32.totalorder %s75, 1
    %p161 = por %p159, %p160
    %p163 = scmp.ne.s32.totalorder %s148, %s162
    %p164 = scmp.eq.s32.totalorder %s75, 0
    %p165 = por %p163, %p164
    %s167 = sadd.s32 %s166, 1
    %p170 = scmp.eq.s32.totalorder %s69, 1
    %p171 = scmp.ne.s32.totalorder %s166, %s168
    %p172 = scmp.eq.s32.totalorder %s69, 0
    %p173 = por %p171, %p172
    %p174 = scmp.ne.s32.totalorder %s166, %s168
    %p175 = scmp.eq.s32.totalorder %s74, 1
    %p176 = por %p174, %p175
    %p177 = scmp.ne.s32.totalorder %s168, %s169
    %p178 = scmp.eq.s32.totalorder %s74, 0
    %p179 = por %p177, %p178
    %p180 = scmp.ne.s32.totalorder %s168, %s169
    %p181 = scmp.eq.s32.totalorder %s75, 1
    %p182 = por %p180, %p181
    %p184 = scmp.ne.s32.totalorder %s169, %s183
    %p185 = scmp.eq.s32.totalorder %s75, 0
    %p186 = por %p184, %p185
    %s188 = sadd.s32 %s187, 1
    %p191 = scmp.eq.s32.totalorder %s69, 1
    %p192 = scmp.ne.s32.totalorder %s187, %s189
    %p193 = scmp.eq.s32.totalorder %s69, 0
    %p194 = por %p192, %p193
    %p195 = scmp.ne.s32.totalorder %s187, %s189
    %p196 = scmp.eq.s32.totalorder %s74, 1
    %p197 = por %p195, %p196
    %p198 = scmp.ne.s32.totalorder %s189, %s190
    %p199 = scmp.eq.s32.totalorder %s74, 0
    %p200 = por %p198, %p199
    %p201 = scmp.ne.s32.totalorder %s189, %s190
    %p202 = scmp.eq.s32.totalorder %s75, 1
    %p203 = por %p201, %p202
    %p205 = scmp.ne.s32.totalorder %s190, %s204
    %p206 = scmp.eq.s32.totalorder %s75, 0
    %p207 = por %p205, %p206
    %s209 = sadd.s32 %s208, 1
    %p212 = scmp.eq.s32.totalorder %s69, 1
    %p213 = scmp.ne.s32.totalorder %s208, %s210
    %p214 = scmp.eq.s32.totalorder %s69, 0
    %p215 = por %p213, %p214
    %p216 = scmp.ne.s32.totalorder %s208, %s210
    %p217 = scmp.eq.s32.totalorder %s74, 1
    %p218 = por %p216, %p217
    %p219 = scmp.ne.s32.totalorder %s210, %s211
    %p220 = scmp.eq.s32.totalorder %s74, 0
    %p221 = por %p219, %p220
    %p222 = scmp.ne.s32.totalorder %s210, %s211
    %p223 = scmp.eq.s32.totalorder %s75, 1
    %p224 = por %p222, %p223
    %p226 = scmp.ne.s32.totalorder %s211, %s225
    %p227 = scmp.eq.s32.totalorder %s75, 0
    %p228 = por %p226, %p227
    %s230 = sadd.s32 %s229, 1
    %p233 = scmp.eq.s32.totalorder %s69, 1
    %p234 = scmp.ne.s32.totalorder %s229, %s231
    %p235 = scmp.eq.s32.totalorder %s69, 0
    %p236 = por %p234, %p235
    %p237 = scmp.ne.s32.totalorder %s229, %s231
    %p238 = scmp.eq.s32.totalorder %s74, 1
    %p239 = por %p237, %p238
    %p240 = scmp.ne.s32.totalorder %s231, %s232
    %p241 = scmp.eq.s32.totalorder %s74, 0
    %p242 = por %p240, %p241
    %p243 = scmp.ne.s32.totalorder %s231, %s232
    %p244 = scmp.eq.s32.totalorder %s75, 1
    %p245 = por %p243, %p244
    %p247 = scmp.ne.s32.totalorder %s232, %s246
    %p248 = scmp.eq.s32.totalorder %s75, 0
    %p249 = por %p247, %p248
    %s251 = sadd.s32 %s250, 1
    %p254 = scmp.eq.s32.totalorder %s69, 1
    %p255 = scmp.ne.s32.totalorder %s250, %s252
    %p256 = scmp.eq.s32.totalorder %s69, 0
    %p257 = por %p255, %p256
    %p258 = scmp.ne.s32.totalorder %s250, %s252
    %p259 = scmp.eq.s32.totalorder %s74, 1
    %p260 = por %p258, %p259
    %p261 = scmp.ne.s32.totalorder %s252, %s253
    %p262 = scmp.eq.s32.totalorder %s74, 0
    %p263 = por %p261, %p262
    %p264 = scmp.ne.s32.totalorder %s252, %s253
    %p265 = scmp.eq.s32.totalorder %s75, 1
    %p266 = por %p264, %p265
    %p268 = scmp.ne.s32.totalorder %s253, %s267
    %p269 = scmp.eq.s32.totalorder %s75, 0
    %p270 = por %p268, %p269
    %s272 = sadd.s32 %s271, 1
    %p275 = scmp.eq.s32.totalorder %s69, 1
    %p276 = scmp.ne.s32.totalorder %s271, %s273
    %p277 = scmp.eq.s32.totalorder %s69, 0
    %p278 = por %p276, %p277
    %p279 = scmp.ne.s32.totalorder %s271, %s273
    %p280 = scmp.eq.s32.totalorder %s74, 1
    %p281 = por %p279, %p280
    %p282 = scmp.ne.s32.totalorder %s273, %s274
    %p283 = scmp.eq.s32.totalorder %s74, 0
    %p284 = por %p282, %p283
    %p285 = scmp.ne.s32.totalorder %s273, %s274
    %p286 = scmp.eq.s32.totalorder %s75, 1
    %p287 = por %p285, %p286
    %p289 = scmp.ne.s32.totalorder %s274, %s288
    %p290 = scmp.eq.s32.totalorder %s75, 0
    %p291 = por %p289, %p290
    %s293 = sadd.s32 %s292, 1
    %p296 = scmp.eq.s32.totalorder %s69, 1
    %p297 = scmp.ne.s32.totalorder %s292, %s294
    %p298 = scmp.eq.s32.totalorder %s69, 0
    %p299 = por %p297, %p298
    %p300 = scmp.ne.s32.totalorder %s292, %s294
    %p301 = scmp.eq.s32.totalorder %s74, 1
    %p302 = por %p300, %p301
    %p303 = scmp.ne.s32.totalorder %s294, %s295
    %p304 = scmp.eq.s32.totalorder %s74, 0
    %p305 = por %p303, %p304
    %p306 = scmp.ne.s32.totalorder %s294, %s295
    %p307 = scmp.eq.s32.totalorder %s75, 1
    %p308 = por %p306, %p307
    %p310 = scmp.ne.s32.totalorder %s295, %s309
    %p311 = scmp.eq.s32.totalorder %s75, 0
    %p312 = por %p310, %p311
    %s314 = sadd.s32 %s313, 1
    %p317 = scmp.eq.s32.totalorder %s69, 1
    %p318 = scmp.ne.s32.totalorder %s313, %s315
    %p319 = scmp.eq.s32.totalorder %s69, 0
    %p320 = por %p318, %p319
    %p321 = scmp.ne.s32.totalorder %s313, %s315
    %p322 = scmp.eq.s32.totalorder %s74, 1
    %p323 = por %p321, %p322
    %p324 = scmp.ne.s32.totalorder %s315, %s316
    %p325 = scmp.eq.s32.totalorder %s74, 0
    %p326 = por %p324, %p325
    %p327 = scmp.ne.s32.totalorder %s315, %s316
    %p328 = scmp.eq.s32.totalorder %s75, 1
    %p329 = por %p327, %p328
    %p331 = scmp.ne.s32.totalorder %s316, %s330
    %p332 = scmp.eq.s32.totalorder %s75, 0
    %p333 = por %p331, %p332
    %s335 = sadd.s32 %s334, 1
    %p338 = scmp.eq.s32.totalorder %s69, 1
    %p339 = scmp.ne.s32.totalorder %s334, %s336
    %p340 = scmp.eq.s32.totalorder %s69, 0
    %p341 = por %p339, %p340
    %p342 = scmp.ne.s32.totalorder %s334, %s336
    %p343 = scmp.eq.s32.totalorder %s74, 1
    %p344 = por %p342, %p343
    %p345 = scmp.ne.s32.totalorder %s336, %s337
    %p346 = scmp.eq.s32.totalorder %s74, 0
    %p347 = por %p345, %p346
    %p348 = scmp.ne.s32.totalorder %s336, %s337
    %p349 = scmp.eq.s32.totalorder %s75, 1
    %p350 = por %p348, %p349
    %p352 = scmp.ne.s32.totalorder %s337, %s351
    %p353 = scmp.eq.s32.totalorder %s75, 0
    %p354 = por %p352, %p353
    %s356 = sadd.s32 %s355, 1
    %p359 = scmp.eq.s32.totalorder %s69, 1
    %p360 = scmp.ne.s32.totalorder %s355, %s357
    %p361 = scmp.eq.s32.totalorder %s69, 0
    %p362 = por %p360, %p361
    %p363 = scmp.ne.s32.totalorder %s355, %s357
    %p364 = scmp.eq.s32.totalorder %s74, 1
    %p365 = por %p363, %p364
    %p366 = scmp.ne.s32.totalorder %s357, %s358
    %p367 = scmp.eq.s32.totalorder %s74, 0
    %p368 = por %p366, %p367
    %p369 = scmp.ne.s32.totalorder %s357, %s358
    %p370 = scmp.eq.s32.totalorder %s75, 1
    %p371 = por %p369, %p370
    %p373 = scmp.ne.s32.totalorder %s358, %s372
    %p374 = scmp.eq.s32.totalorder %s75, 0
    %p375 = por %p373, %p374
    %s377 = sadd.s32 %s376, 1
    %p380 = scmp.eq.s32.totalorder %s69, 1
    %p381 = scmp.ne.s32.totalorder %s376, %s378
    %p382 = scmp.eq.s32.totalorder %s69, 0
    %p383 = por %p381, %p382
    %p384 = scmp.ne.s32.totalorder %s376, %s378
    %p385 = scmp.eq.s32.totalorder %s74, 1
    %p386 = por %p384, %p385
    %p387 = scmp.ne.s32.totalorder %s378, %s379
    %p388 = scmp.eq.s32.totalorder %s74, 0
    %p389 = por %p387, %p388
    %p390 = scmp.ne.s32.totalorder %s378, %s379
    %p391 = scmp.eq.s32.totalorder %s75, 1
    %p392 = por %p390, %p391
    %p394 = scmp.ne.s32.totalorder %s379, %s393
    %p395 = scmp.eq.s32.totalorder %s75, 0
    %p396 = por %p394, %p395
    %s398 = sadd.s32 %s397, 1
    %p401 = scmp.eq.s32.totalorder %s69, 1
    %p402 = scmp.ne.s32.totalorder %s397, %s399
    %p403 = scmp.eq.s32.totalorder %s69, 0
    %p404 = por %p402, %p403
    %p405 = scmp.ne.s32.totalorder %s397, %s399
    %p406 = scmp.eq.s32.totalorder %s74, 1
    %p407 = por %p405, %p406
    %p408 = scmp.ne.s32.totalorder %s399, %s400
    %p409 = scmp.eq.s32.totalorder %s74, 0
    %p410 = por %p408, %p409
    %p411 = scmp.ne.s32.totalorder %s399, %s400
    %p412 = scmp.eq.s32.totalorder %s75, 1
    %p413 = por %p411, %p412
    %p415 = scmp.ne.s32.totalorder %s400, %s414
    %p416 = scmp.eq.s32.totalorder %s75, 0
    %p417 = por %p415, %p416
    %s419 = sadd.s32 %s418, 1
    %p422 = scmp.eq.s32.totalorder %s69, 1
    %p423 = scmp.ne.s32.totalorder %s418, %s420
    %p424 = scmp.eq.s32.totalorder %s69, 0
    %p425 = por %p423, %p424
    %p426 = scmp.ne.s32.totalorder %s418, %s420
    %p427 = scmp.eq.s32.totalorder %s74, 1
    %p428 = por %p426, %p427
    %p429 = scmp.ne.s32.totalorder %s420, %s421
    %p430 = scmp.eq.s32.totalorder %s74, 0
    %p431 = por %p429, %p430
    %p432 = scmp.ne.s32.totalorder %s420, %s421
    %p433 = scmp.eq.s32.totalorder %s75, 1
    %p434 = por %p432, %p433
    %p436 = scmp.ne.s32.totalorder %s421, %s435
    %p437 = scmp.eq.s32.totalorder %s75, 0
    %p438 = por %p436, %p437
    %s440 = sadd.s32 %s439, 1
    %p443 = scmp.eq.s32.totalorder %s69, 1
    %p444 = scmp.ne.s32.totalorder %s439, %s441
    %p445 = scmp.eq.s32.totalorder %s69, 0
    %p446 = por %p444, %p445
    %p447 = scmp.ne.s32.totalorder %s439, %s441
    %p448 = scmp.eq.s32.totalorder %s74, 1
    %p449 = por %p447, %p448
    %p450 = scmp.ne.s32.totalorder %s441, %s442
    %p451 = scmp.eq.s32.totalorder %s74, 0
    %p452 = por %p450, %p451
    %p453 = scmp.ne.s32.totalorder %s441, %s442
    %p454 = scmp.eq.s32.totalorder %s75, 1
    %p455 = por %p453, %p454
    %p457 = scmp.ne.s32.totalorder %s442, %s456
    %p458 = scmp.eq.s32.totalorder %s75, 0
    %p459 = por %p457, %p458
    %s461 = sadd.s32 %s460, 1
    %p464 = scmp.eq.s32.totalorder %s69, 1
    %p465 = scmp.ne.s32.totalorder %s460, %s462
    %p466 = scmp.eq.s32.totalorder %s69, 0
    %p467 = por %p465, %p466
    %p468 = scmp.ne.s32.totalorder %s460, %s462
    %p469 = scmp.eq.s32.totalorder %s74, 1
    %p470 = por %p468, %p469
    %p471 = scmp.ne.s32.totalorder %s462, %s463
    %p472 = scmp.eq.s32.totalorder %s74, 0
    %p473 = por %p471, %p472
    %p474 = scmp.ne.s32.totalorder %s462, %s463
    %p475 = scmp.eq.s32.totalorder %s75, 1
    %p476 = por %p474, %p475
    %p478 = scmp.ne.s32.totalorder %s463, %s477
    %p479 = scmp.eq.s32.totalorder %s75, 0
    %p480 = por %p478, %p479
    %s482 = sadd.s32 %s481, 1
    %p485 = scmp.eq.s32.totalorder %s69, 1
    %p486 = scmp.ne.s32.totalorder %s481, %s483
    %p487 = scmp.eq.s32.totalorder %s69, 0
    %p488 = por %p486, %p487
    %p489 = scmp.ne.s32.totalorder %s481, %s483
    %p490 = scmp.eq.s32.totalorder %s74, 1
    %p491 = por %p489, %p490
    %p492 = scmp.ne.s32.totalorder %s483, %s484
    %p493 = scmp.eq.s32.totalorder %s74, 0
    %p494 = por %p492, %p493
    %p495 = scmp.ne.s32.totalorder %s483, %s484
    %p496 = scmp.eq.s32.totalorder %s75, 1
    %p497 = por %p495, %p496
    %p499 = scmp.ne.s32.totalorder %s484, %s498
    %p500 = scmp.eq.s32.totalorder %s75, 0
    %p501 = por %p499, %p500
    %s503 = sadd.s32 %s502, 1
    %p506 = scmp.eq.s32.totalorder %s69, 1
    %p507 = scmp.ne.s32.totalorder %s502, %s504
    %p508 = scmp.eq.s32.totalorder %s69, 0
    %p509 = por %p507, %p508
    %p510 = scmp.ne.s32.totalorder %s502, %s504
    %p511 = scmp.eq.s32.totalorder %s74, 1
    %p512 = por %p510, %p511
    %p513 = scmp.ne.s32.totalorder %s504, %s505
    %p514 = scmp.eq.s32.totalorder %s74, 0
    %p515 = por %p513, %p514
    %p516 = scmp.ne.s32.totalorder %s504, %s505
    %p517 = scmp.eq.s32.totalorder %s75, 1
    %p518 = por %p516, %p517
    %p520 = scmp.ne.s32.totalorder %s505, %s519
    %p521 = scmp.eq.s32.totalorder %s75, 0
    %p522 = por %p520, %p521
    %s524 = sadd.s32 %s523, 1
    %p527 = scmp.eq.s32.totalorder %s69, 1
    %p528 = scmp.ne.s32.totalorder %s523, %s525
    %p529 = scmp.eq.s32.totalorder %s69, 0
    %p530 = por %p528, %p529
    %p531 = scmp.ne.s32.totalorder %s523, %s525
    %p532 = scmp.eq.s32.totalorder %s74, 1
    %p533 = por %p531, %p532
    %p534 = scmp.ne.s32.totalorder %s525, %s526
    %p535 = scmp.eq.s32.totalorder %s74, 0
    %p536 = por %p534, %p535
    %p537 = scmp.ne.s32.totalorder %s525, %s526
    %p538 = scmp.eq.s32.totalorder %s75, 1
    %p539 = por %p537, %p538
    %p541 = scmp.ne.s32.totalorder %s526, %s540
    %p542 = scmp.eq.s32.totalorder %s75, 0
    %p543 = por %p541, %p542
    %s545 = sadd.s32 %s544, 1
    %p548 = scmp.eq.s32.totalorder %s69, 1
    %p549 = scmp.ne.s32.totalorder %s544, %s546
    %p550 = scmp.eq.s32.totalorder %s69, 0
    %p551 = por %p549, %p550
    %p552 = scmp.ne.s32.totalorder %s544, %s546
    %p553 = scmp.eq.s32.totalorder %s74, 1
    %p554 = por %p552, %p553
    %p555 = scmp.ne.s32.totalorder %s546, %s547
    %p556 = scmp.eq.s32.totalorder %s74, 0
    %p557 = por %p555, %p556
    %p558 = scmp.ne.s32.totalorder %s546, %s547
    %p559 = scmp.eq.s32.totalorder %s75, 1
    %p560 = por %p558, %p559
    %p562 = scmp.ne.s32.totalorder %s547, %s561
    %p563 = scmp.eq.s32.totalorder %s75, 0
    %p564 = por %p562, %p563
    %s566 = sadd.s32 %s565, 1
    %p569 = scmp.eq.s32.totalorder %s69, 1
    %p570 = scmp.ne.s32.totalorder %s565, %s567
    %p571 = scmp.eq.s32.totalorder %s69, 0
    %p572 = por %p570, %p571
    %p573 = scmp.ne.s32.totalorder %s565, %s567
    %p574 = scmp.eq.s32.totalorder %s74, 1
    %p575 = por %p573, %p574
    %p576 = scmp.ne.s32.totalorder %s567, %s568
    %p577 = scmp.eq.s32.totalorder %s74, 0
    %p578 = por %p576, %p577
    %p579 = scmp.ne.s32.totalorder %s567, %s568
    %p580 = scmp.eq.s32.totalorder %s75, 1
    %p581 = por %p579, %p580
    %p583 = scmp.ne.s32.totalorder %s568, %s582
    %p584 = scmp.eq.s32.totalorder %s75, 0
    %p585 = por %p583, %p584
    %s587 = sadd.s32 %s586, 1
    %p590 = scmp.eq.s32.totalorder %s69, 1
    %p591 = scmp.ne.s32.totalorder %s586, %s588
    %p592 = scmp.eq.s32.totalorder %s69, 0
    %p593 = por %p591, %p592
    %p594 = scmp.ne.s32.totalorder %s586, %s588
    %p595 = scmp.eq.s32.totalorder %s74, 1
    %p596 = por %p594, %p595
    %p597 = scmp.ne.s32.totalorder %s588, %s589
    %p598 = scmp.eq.s32.totalorder %s74, 0
    %p599 = por %p597, %p598
    %p600 = scmp.ne.s32.totalorder %s588, %s589
    %p601 = scmp.eq.s32.totalorder %s75, 1
    %p602 = por %p600, %p601
    %p604 = scmp.ne.s32.totalorder %s589, %s603
    %p605 = scmp.eq.s32.totalorder %s75, 0
    %p606 = por %p604, %p605
    %s608 = sadd.s32 %s607, 1
    %p611 = scmp.eq.s32.totalorder %s69, 1
    %p612 = scmp.ne.s32.totalorder %s607, %s609
    %p613 = scmp.eq.s32.totalorder %s69, 0
    %p614 = por %p612, %p613
    %p615 = scmp.ne.s32.totalorder %s607, %s609
    %p616 = scmp.eq.s32.totalorder %s74, 1
    %p617 = por %p615, %p616
    %p618 = scmp.ne.s32.totalorder %s609, %s610
    %p619 = scmp.eq.s32.totalorder %s74, 0
    %p620 = por %p618, %p619
    %p621 = scmp.ne.s32.totalorder %s609, %s610
    %p622 = scmp.eq.s32.totalorder %s75, 1
    %p623 = por %p621, %p622
    %p625 = scmp.ne.s32.totalorder %s610, %s624
    %p626 = scmp.eq.s32.totalorder %s75, 0
    %p627 = por %p625, %p626
    %s629 = sadd.s32 %s628, 1
    %p632 = scmp.eq.s32.totalorder %s69, 1
    %p633 = scmp.ne.s32.totalorder %s628, %s630
    %p634 = scmp.eq.s32.totalorder %s69, 0
    %p635 = por %p633, %p634
    %p636 = scmp.ne.s32.totalorder %s628, %s630
    %p637 = scmp.eq.s32.totalorder %s74, 1
    %p638 = por %p636, %p637
    %p639 = scmp.ne.s32.totalorder %s630, %s631
    %p640 = scmp.eq.s32.totalorder %s74, 0
    %p641 = por %p639, %p640
    %p642 = scmp.ne.s32.totalorder %s630, %s631
    %p643 = scmp.eq.s32.totalorder %s75, 1
    %p644 = por %p642, %p643
    %p646 = scmp.ne.s32.totalorder %s631, %s645
    %p647 = scmp.eq.s32.totalorder %s75, 0
    %p648 = por %p646, %p647
    %s650 = sadd.s32 %s649, 1
    %p653 = scmp.eq.s32.totalorder %s69, 1
    %p654 = scmp.ne.s32.totalorder %s649, %s651
    %p655 = scmp.eq.s32.totalorder %s69, 0
    %p656 = por %p654, %p655
    %p657 = scmp.ne.s32.totalorder %s649, %s651
    %p658 = scmp.eq.s32.totalorder %s74, 1
    %p659 = por %p657, %p658
    %p660 = scmp.ne.s32.totalorder %s651, %s652
    %p661 = scmp.eq.s32.totalorder %s74, 0
    %p662 = por %p660, %p661
    %p663 = scmp.ne.s32.totalorder %s651, %s652
    %p664 = scmp.eq.s32.totalorder %s75, 1
    %p665 = por %p663, %p664
    %p667 = scmp.ne.s32.totalorder %s652, %s666
    %p668 = scmp.eq.s32.totalorder %s75, 0
    %p669 = por %p667, %p668
    %s671 = sadd.s32 %s670, 1
    %p674 = scmp.eq.s32.totalorder %s69, 1
    %p675 = scmp.ne.s32.totalorder %s670, %s672
    %p676 = scmp.eq.s32.totalorder %s69, 0
    %p677 = por %p675, %p676
    %p678 = scmp.ne.s32.totalorder %s670, %s672
    %p679 = scmp.eq.s32.totalorder %s74, 1
    %p680 = por %p678, %p679
    %p681 = scmp.ne.s32.totalorder %s672, %s673
    %p682 = scmp.eq.s32.totalorder %s74, 0
    %p683 = por %p681, %p682
    %p684 = scmp.ne.s32.totalorder %s672, %s673
    %p685 = scmp.eq.s32.totalorder %s75, 1
    %p686 = por %p684, %p685
    %p688 = scmp.ne.s32.totalorder %s673, %s687
    %p689 = scmp.eq.s32.totalorder %s75, 0
    %p690 = por %p688, %p689
    %s692 = sadd.s32 %s691, 1
    %p695 = scmp.eq.s32.totalorder %s69, 1
    %p696 = scmp.ne.s32.totalorder %s691, %s693
    %p697 = scmp.eq.s32.totalorder %s69, 0
    %p698 = por %p696, %p697
    %p699 = scmp.ne.s32.totalorder %s691, %s693
    %p700 = scmp.eq.s32.totalorder %s74, 1
    %p701 = por %p699, %p700
    %p702 = scmp.ne.s32.totalorder %s693, %s694
    %p703 = scmp.eq.s32.totalorder %s74, 0
    %p704 = por %p702, %p703
    %p705 = scmp.ne.s32.totalorder %s693, %s694
    %p706 = scmp.eq.s32.totalorder %s75, 1
    %p707 = por %p705, %p706
    %p709 = scmp.ne.s32.totalorder %s694, %s708
    %p710 = scmp.eq.s32.totalorder %s75, 0
    %p711 = por %p709, %p710
    %s713 = sadd.s32 %s712, 1
    %p716 = scmp.eq.s32.totalorder %s69, 1
    %p717 = scmp.ne.s32.totalorder %s712, %s714
    %p718 = scmp.eq.s32.totalorder %s69, 0
    %p719 = por %p717, %p718
    %p720 = scmp.ne.s32.totalorder %s712, %s714
    %p721 = scmp.eq.s32.totalorder %s74, 1
    %p722 = por %p720, %p721
    %p723 = scmp.ne.s32.totalorder %s714, %s715
    %p724 = scmp.eq.s32.totalorder %s74, 0
    %p725 = por %p723, %p724
    %p726 = scmp.ne.s32.totalorder %s714, %s715
    %p727 = scmp.eq.s32.totalorder %s75, 1
    %p728 = por %p726, %p727
    %p730 = scmp.ne.s32.totalorder %s715, %s729
    %p731 = scmp.eq.s32.totalorder %s75, 0
    %p732 = por %p730, %p731
    %s733 = ssub.s32 %s69, %s76
    %p734 = scmp.eq.s32.totalorder %s733, 0
    %s736 = sadd.s32 %s735, 1
    %s737 = scalar_select %p734, %s735, %s736
    %p740 = pneg %p734
    %p741 = scmp.eq.s32.totalorder %s69, 1
    %p742 = por %p740, %p741
    %p743 = scmp.ne.s32.totalorder %s735, %s738
    %p744 = scmp.eq.s32.totalorder %s69, 0
    %p745 = por %p743, %p744
    %p746 = scmp.ne.s32.totalorder %s735, %s738
    %p747 = scmp.eq.s32.totalorder %s74, 1
    %p748 = por %p746, %p747
    %p749 = scmp.ne.s32.totalorder %s738, %s739
    %p750 = scmp.eq.s32.totalorder %s74, 0
    %p751 = por %p749, %p750
    %p752 = scmp.ne.s32.totalorder %s738, %s739
    %p753 = scmp.eq.s32.totalorder %s75, 1
    %p754 = por %p752, %p753
    %p756 = scmp.ne.s32.totalorder %s739, %s755
    %p757 = scmp.eq.s32.totalorder %s75, 0
    %p758 = por %p756, %p757
    %p759 = scmp.le.s32.totalorder 1, %s69
    %p760 = scmp.lt.s32.totalorder %s69, 3
    %p761 = pnand %p759, %p760
    %p762 = pneg %p761
    // Predicated region
    $region9: #{transformer_forward.1} parent=5 // pred_check
      _
    $region10: #{transformer_forward.1} parent=5 // pred_check_branch
      %764 = sbr.rel (%p761) target = $region12
    $region11: #{transformer_forward.1} parent=5 // pred_region
      %s765 = ssub.s32 %s69, 1
      // Predicated region
      $region13: #{transformer_forward.1} parent=11 // pred_check
        %p766 = pneg %p116
      $region14: #{transformer_forward.1} parent=11 // pred_check_branch
        %768 = sbr.rel (%p766) target = $region16
      $region15: #{transformer_forward.1} parent=11 // pred_region
        _
      $region16: #{transformer_forward.1} parent=11 // pred_fallthru
        _
      // Predicated region
      $region17: #{transformer_forward.1} parent=11 // pred_check
        %p769 = pneg %p137
      $region18: #{transformer_forward.1} parent=11 // pred_check_branch
        %771 = sbr.rel (%p769) target = $region20
      $region19: #{transformer_forward.1} parent=11 // pred_region
        _
      $region20: #{transformer_forward.1} parent=11 // pred_fallthru
        _
      // Predicated region
      $region21: #{transformer_forward.1} parent=11 // pred_check
        %p772 = pneg %p158
      $region22: #{transformer_forward.1} parent=11 // pred_check_branch
        %774 = sbr.rel (%p772) target = $region24
      $region23: #{transformer_forward.1} parent=11 // pred_region
        _
      $region24: #{transformer_forward.1} parent=11 // pred_fallthru
        _
      // Predicated region
      $region25: #{transformer_forward.1} parent=11 // pred_check
        %p775 = pneg %p179
      $region26: #{transformer_forward.1} parent=11 // pred_check_branch
        %777 = sbr.rel (%p775) target = $region28
      $region27: #{transformer_forward.1} parent=11 // pred_region
        _
      $region28: #{transformer_forward.1} parent=11 // pred_fallthru
        _
      // Predicated region
      $region29: #{transformer_forward.1} parent=11 // pred_check
        %p778 = pneg %p200
      $region30: #{transformer_forward.1} parent=11 // pred_check_branch
        %780 = sbr.rel (%p778) target = $region32
      $region31: #{transformer_forward.1} parent=11 // pred_region
        _
      $region32: #{transformer_forward.1} parent=11 // pred_fallthru
        _
      // Predicated region
      $region33: #{transformer_forward.1} parent=11 // pred_check
        %p781 = pneg %p221
      $region34: #{transformer_forward.1} parent=11 // pred_check_branch
        %783 = sbr.rel (%p781) target = $region36
      $region35: #{transformer_forward.1} parent=11 // pred_region
        _
      $region36: #{transformer_forward.1} parent=11 // pred_fallthru
        _
      // Predicated region
      $region37: #{transformer_forward.1} parent=11 // pred_check
        %p784 = pneg %p242
      $region38: #{transformer_forward.1} parent=11 // pred_check_branch
        %786 = sbr.rel (%p784) target = $region40
      $region39: #{transformer_forward.1} parent=11 // pred_region
        _
      $region40: #{transformer_forward.1} parent=11 // pred_fallthru
        _
      // Predicated region
      $region41: #{transformer_forward.1} parent=11 // pred_check
        %p787 = pneg %p263
      $region42: #{transformer_forward.1} parent=11 // pred_check_branch
        %789 = sbr.rel (%p787) target = $region44
      $region43: #{transformer_forward.1} parent=11 // pred_region
        _
      $region44: #{transformer_forward.1} parent=11 // pred_fallthru
        _
      // Predicated region
      $region45: #{transformer_forward.1} parent=11 // pred_check
        %p790 = pneg %p284
      $region46: #{transformer_forward.1} parent=11 // pred_check_branch
        %792 = sbr.rel (%p790) target = $region48
      $region47: #{transformer_forward.1} parent=11 // pred_region
        _
      $region48: #{transformer_forward.1} parent=11 // pred_fallthru
        _
      // Predicated region
      $region49: #{transformer_forward.1} parent=11 // pred_check
        %p793 = pneg %p305
      $region50: #{transformer_forward.1} parent=11 // pred_check_branch
        %795 = sbr.rel (%p793) target = $region52
      $region51: #{transformer_forward.1} parent=11 // pred_region
        _
      $region52: #{transformer_forward.1} parent=11 // pred_fallthru
        _
      // Predicated region
      $region53: #{transformer_forward.1} parent=11 // pred_check
        %p796 = pneg %p326
      $region54: #{transformer_forward.1} parent=11 // pred_check_branch
        %798 = sbr.rel (%p796) target = $region56
      $region55: #{transformer_forward.1} parent=11 // pred_region
        _
      $region56: #{transformer_forward.1} parent=11 // pred_fallthru
        _
      // Predicated region
      $region57: #{transformer_forward.1} parent=11 // pred_check
        %p799 = pneg %p347
      $region58: #{transformer_forward.1} parent=11 // pred_check_branch
        %801 = sbr.rel (%p799) target = $region60
      $region59: #{transformer_forward.1} parent=11 // pred_region
        _
      $region60: #{transformer_forward.1} parent=11 // pred_fallthru
        _
      // Predicated region
      $region61: #{transformer_forward.1} parent=11 // pred_check
        %p802 = pneg %p368
      $region62: #{transformer_forward.1} parent=11 // pred_check_branch
        %804 = sbr.rel (%p802) target = $region64
      $region63: #{transformer_forward.1} parent=11 // pred_region
        _
      $region64: #{transformer_forward.1} parent=11 // pred_fallthru
        _
      // Predicated region
      $region65: #{transformer_forward.1} parent=11 // pred_check
        %p805 = pneg %p389
      $region66: #{transformer_forward.1} parent=11 // pred_check_branch
        %807 = sbr.rel (%p805) target = $region68
      $region67: #{transformer_forward.1} parent=11 // pred_region
        _
      $region68: #{transformer_forward.1} parent=11 // pred_fallthru
        _
      // Predicated region
      $region69: #{transformer_forward.1} parent=11 // pred_check
        %p808 = pneg %p410
      $region70: #{transformer_forward.1} parent=11 // pred_check_branch
        %810 = sbr.rel (%p808) target = $region72
      $region71: #{transformer_forward.1} parent=11 // pred_region
        _
      $region72: #{transformer_forward.1} parent=11 // pred_fallthru
        _
      // Predicated region
      $region73: #{transformer_forward.1} parent=11 // pred_check
        %p811 = pneg %p431
      $region74: #{transformer_forward.1} parent=11 // pred_check_branch
        %813 = sbr.rel (%p811) target = $region76
      $region75: #{transformer_forward.1} parent=11 // pred_region
        _
      $region76: #{transformer_forward.1} parent=11 // pred_fallthru
        _
      // Predicated region
      $region77: #{transformer_forward.1} parent=11 // pred_check
        %p814 = pneg %p452
      $region78: #{transformer_forward.1} parent=11 // pred_check_branch
        %816 = sbr.rel (%p814) target = $region80
      $region79: #{transformer_forward.1} parent=11 // pred_region
        _
      $region80: #{transformer_forward.1} parent=11 // pred_fallthru
        _
      // Predicated region
      $region81: #{transformer_forward.1} parent=11 // pred_check
        %p817 = pneg %p473
      $region82: #{transformer_forward.1} parent=11 // pred_check_branch
        %819 = sbr.rel (%p817) target = $region84
      $region83: #{transformer_forward.1} parent=11 // pred_region
        _
      $region84: #{transformer_forward.1} parent=11 // pred_fallthru
        _
      // Predicated region
      $region85: #{transformer_forward.1} parent=11 // pred_check
        %p820 = pneg %p494
      $region86: #{transformer_forward.1} parent=11 // pred_check_branch
        %822 = sbr.rel (%p820) target = $region88
      $region87: #{transformer_forward.1} parent=11 // pred_region
        _
      $region88: #{transformer_forward.1} parent=11 // pred_fallthru
        _
      // Predicated region
      $region89: #{transformer_forward.1} parent=11 // pred_check
        %p823 = pneg %p515
      $region90: #{transformer_forward.1} parent=11 // pred_check_branch
        %825 = sbr.rel (%p823) target = $region92
      $region91: #{transformer_forward.1} parent=11 // pred_region
        _
      $region92: #{transformer_forward.1} parent=11 // pred_fallthru
        _
      // Predicated region
      $region93: #{transformer_forward.1} parent=11 // pred_check
        %p826 = pneg %p536
      $region94: #{transformer_forward.1} parent=11 // pred_check_branch
        %828 = sbr.rel (%p826) target = $region96
      $region95: #{transformer_forward.1} parent=11 // pred_region
        _
      $region96: #{transformer_forward.1} parent=11 // pred_fallthru
        _
      // Predicated region
      $region97: #{transformer_forward.1} parent=11 // pred_check
        %p829 = pneg %p557
      $region98: #{transformer_forward.1} parent=11 // pred_check_branch
        %831 = sbr.rel (%p829) target = $region100
      $region99: #{transformer_forward.1} parent=11 // pred_region
        _
      $region100: #{transformer_forward.1} parent=11 // pred_fallthru
        _
      // Predicated region
      $region101: #{transformer_forward.1} parent=11 // pred_check
        %p832 = pneg %p578
      $region102: #{transformer_forward.1} parent=11 // pred_check_branch
        %834 = sbr.rel (%p832) target = $region104
      $region103: #{transformer_forward.1} parent=11 // pred_region
        _
      $region104: #{transformer_forward.1} parent=11 // pred_fallthru
        _
      // Predicated region
      $region105: #{transformer_forward.1} parent=11 // pred_check
        %p835 = pneg %p599
      $region106: #{transformer_forward.1} parent=11 // pred_check_branch
        %837 = sbr.rel (%p835) target = $region108
      $region107: #{transformer_forward.1} parent=11 // pred_region
        _
      $region108: #{transformer_forward.1} parent=11 // pred_fallthru
        _
      // Predicated region
      $region109: #{transformer_forward.1} parent=11 // pred_check
        %p838 = pneg %p620
      $region110: #{transformer_forward.1} parent=11 // pred_check_branch
        %840 = sbr.rel (%p838) target = $region112
      $region111: #{transformer_forward.1} parent=11 // pred_region
        _
      $region112: #{transformer_forward.1} parent=11 // pred_fallthru
        _
      // Predicated region
      $region113: #{transformer_forward.1} parent=11 // pred_check
        %p841 = pneg %p641
      $region114: #{transformer_forward.1} parent=11 // pred_check_branch
        %843 = sbr.rel (%p841) target = $region116
      $region115: #{transformer_forward.1} parent=11 // pred_region
        _
      $region116: #{transformer_forward.1} parent=11 // pred_fallthru
        _
      // Predicated region
      $region117: #{transformer_forward.1} parent=11 // pred_check
        %p844 = pneg %p662
      $region118: #{transformer_forward.1} parent=11 // pred_check_branch
        %846 = sbr.rel (%p844) target = $region120
      $region119: #{transformer_forward.1} parent=11 // pred_region
        _
      $region120: #{transformer_forward.1} parent=11 // pred_fallthru
        _
      // Predicated region
      $region121: #{transformer_forward.1} parent=11 // pred_check
        %p847 = pneg %p683
      $region122: #{transformer_forward.1} parent=11 // pred_check_branch
        %849 = sbr.rel (%p847) target = $region124
      $region123: #{transformer_forward.1} parent=11 // pred_region
        _
      $region124: #{transformer_forward.1} parent=11 // pred_fallthru
        _
      // Predicated region
      $region125: #{transformer_forward.1} parent=11 // pred_check
        %p850 = pneg %p704
      $region126: #{transformer_forward.1} parent=11 // pred_check_branch
        %852 = sbr.rel (%p850) target = $region128
      $region127: #{transformer_forward.1} parent=11 // pred_region
        _
      $region128: #{transformer_forward.1} parent=11 // pred_fallthru
        _
      // Predicated region
      $region129: #{transformer_forward.1} parent=11 // pred_check
        %p853 = pneg %p725
      $region130: #{transformer_forward.1} parent=11 // pred_check_branch
        %855 = sbr.rel (%p853) target = $region132
      $region131: #{transformer_forward.1} parent=11 // pred_region
        _
      $region132: #{transformer_forward.1} parent=11 // pred_fallthru
        _
    $region12: #{transformer_forward.1} parent=5 // pred_fallthru
      _
    %p856 = scmp.lt.s32.totalorder %s69, 2
    // Predicated region
    $region133: #{transformer_forward.1} parent=5 // pred_check
      %p857 = pneg %p856
    $region134: #{transformer_forward.1} parent=5 // pred_check_branch
      %859 = sbr.rel (%p857) target = $region136
    $region135: #{transformer_forward.1} parent=5 // pred_region
      // Predicated region
      $region137: #{transformer_forward.1} parent=135 // pred_check
        %p860 = pneg %p89
      $region138: #{transformer_forward.1} parent=135 // pred_check_branch
        %862 = sbr.rel (%p860) target = $region140
      $region139: #{transformer_forward.1} parent=135 // pred_region
        %p863 = scmp.lt.s32.totalorder %s69, 1
        %s864 = scalar_select %p863, %s69, 1
        %s865 = smul.addr %s864, 2
        %s866 = smul.addr %s865, 8
        %s867 = scalar_lea.vmem %s1, %s866
      $region140: #{transformer_forward.1} parent=135 // pred_fallthru
        _
    $region136: #{transformer_forward.1} parent=5 // pred_fallthru
      _
    %p868 = scmp.le.s32.totalorder 1, %s69
    %p869 = scmp.lt.s32.totalorder %s69, 3
    %p870 = pnand %p868, %p869
    %p871 = pneg %p870
    // Predicated region
    $region141: #{transformer_forward.1} parent=5 // pred_check
      _
    $region142: #{transformer_forward.1} parent=5 // pred_check_branch
      %873 = sbr.rel (%p870) target = $region144
    $region143: #{transformer_forward.1} parent=5 // pred_region
      %s874 = ssub.s32 %s69, 1
      %p875 = scmp.lt.s32.totalorder %s74, 1
      %s876 = scalar_select %p875, %s74, 1
      %s877 = smul.addr %s876, 2
      %s878 = smul.addr %s877, 8
      %s879 = scalar_lea.vmem %s1, %s878
      %p880 = pneg %p95
      %p881 = pneg %p92
      %p882 = pneg %p116
      %p883 = pneg %p113
      %p884 = pneg %p137
      %p885 = pneg %p134
      %p886 = pneg %p158
      %p887 = pneg %p155
      %p888 = pneg %p179
      %p889 = pneg %p176
      %p890 = pneg %p200
      %p891 = pneg %p197
      %p892 = pneg %p221
      %p893 = pneg %p218
      %p894 = pneg %p242
      %p895 = pneg %p239
      %p896 = pneg %p263
      %p897 = pneg %p260
      %p898 = pneg %p284
      %p899 = pneg %p281
      %p900 = pneg %p305
      %p901 = pneg %p302
      %p902 = pneg %p326
      %p903 = pneg %p323
      %p904 = pneg %p347
      %p905 = pneg %p344
      %p906 = pneg %p368
      %p907 = pneg %p365
      %p908 = pneg %p389
      %p909 = pneg %p386
      %p910 = pneg %p410
      %p911 = pneg %p407
      %p912 = pneg %p431
      %p913 = pneg %p428
      %p914 = pneg %p452
      %p915 = pneg %p449
      %p916 = pneg %p473
      %p917 = pneg %p470
      %p918 = pneg %p494
      %p919 = pneg %p491
      %p920 = pneg %p515
      %p921 = pneg %p512
      %p922 = pneg %p536
      %p923 = pneg %p533
      %p924 = pneg %p557
      %p925 = pneg %p554
      %p926 = pneg %p578
      %p927 = pneg %p575
      %p928 = pneg %p599
      %p929 = pneg %p596
      %p930 = pneg %p620
      %p931 = pneg %p617
      %p932 = pneg %p641
      %p933 = pneg %p638
      %p934 = pneg %p662
      %p935 = pneg %p659
      %p936 = pneg %p683
      %p937 = pneg %p680
      %p938 = pneg %p704
      %p939 = pneg %p701
      %p940 = pneg %p725
      %p941 = pneg %p722
      %p942 = pneg %p751
      %p943 = pneg %p748
      %p944 = scmp.lt.s32.totalorder %s74, 1
      %s945 = scalar_select %p944, %s74, 1
      %s946 = smul.addr %s945, 2
      %s947 = smul.addr %s946, 8
      %s948 = scalar_lea.vmem %s63, %s947
      %p949 = scmp.lt.s32.totalorder %s74, 1
      %s950 = scalar_select %p949, %s74, 1
      %s951 = smul.addr %s950, 2
      %s952 = smul.addr %s951, 8
      %s953 = scalar_lea.vmem %s1, %s952
      %p954 = scmp.lt.s32.totalorder %s74, 1
      %s955 = scalar_select %p954, %s74, 1
      %s956 = smul.addr %s955, 2
      %s957 = smul.addr %s956, 8
      %s958 = scalar_lea.vmem %s63, %s957
      %v960 = vld [vmem:[%s3] sm:$0xf]
      %v961 = vld [vmem:[%s3 + $0x4] sm:$0xf]
      %v962 = vld [vmem:[%s3 + $0x8] sm:$0xf]
      %v963 = vld [vmem:[%s3 + $0xc] sm:$0xf]
      %v964 = vld [vmem:[%s5] sm:$0x1]
      %v965 = vld [vmem:[%s7] sm:$0xf]
      %v966 = vld [vmem:[%s7 + $0x4] sm:$0xf]
      %v967 = vld [vmem:[%s7 + $0x8] sm:$0xf]
      %v968 = vld [vmem:[%s7 + $0xc] sm:$0xf]
      %v969 = vld [vmem:[%s9] sm:$0x1]
      %v970 = vld [vmem:[%s11] sm:$0x1]
      %v971 = vld [vmem:[%s13] sm:$0x1]
      %v972 = vld [vmem:[%s15] sm:$0xf]
      %v973 = vld [vmem:[%s15 + $0x4] sm:$0xf]
      %v974 = vld [vmem:[%s15 + $0x8] sm:$0xf]
      %v975 = vld [vmem:[%s15 + $0xc] sm:$0xf]
      %v976 = vld [vmem:[%s17] sm:$0x1]
      %v977 = vld [vmem:[%s19] sm:$0xf]
      %v978 = vld [vmem:[%s19 + $0x4] sm:$0xf]
      %v979 = vld [vmem:[%s19 + $0x8] sm:$0xf]
      %v980 = vld [vmem:[%s19 + $0xc] sm:$0xf]
      %v981 = vld [vmem:[%s19 + $0x10] sm:$0xf]
      %v982 = vld [vmem:[%s19 + $0x14] sm:$0xf]
      %v983 = vld [vmem:[%s19 + $0x18] sm:$0xf]
      %v984 = vld [vmem:[%s19 + $0x1c] sm:$0xf]
      %v985 = vld [vmem:[%s21] sm:$0x1]
      %v986 = vld [vmem:[%s23] sm:$0x1]
      %v987 = vld [vmem:[%s25] sm:$0x1]
      %v988 = vld [vmem:[%s27] sm:$0xf]
      %v989 = vld [vmem:[%s27 + $0x4] sm:$0xf]
      %v990 = vld [vmem:[%s27 + $0x8] sm:$0xf]
      %v991 = vld [vmem:[%s27 + $0xc] sm:$0xf]
      %v992 = vld [vmem:[%s29] sm:$0x1]
      %v993 = vld [vmem:[%s31] sm:$0xf]
      %v994 = vld [vmem:[%s31 + $0x4] sm:$0xf]
      %v995 = vld [vmem:[%s31 + $0x8] sm:$0xf]
      %v996 = vld [vmem:[%s31 + $0xc] sm:$0xf]
      %v997 = vld [vmem:[%s33] sm:$0x1]
      %v998 = vld [vmem:[%s35] sm:$0x1]
      %v999 = vld [vmem:[%s37] sm:$0x1]
      %v1000 = vld [vmem:[%s39] sm:$0xf]
      %v1001 = vld [vmem:[%s39 + $0x4] sm:$0xf]
      %v1002 = vld [vmem:[%s39 + $0x8] sm:$0xf]
      %v1003 = vld [vmem:[%s39 + $0xc] sm:$0xf]
      %v1004 = vld [vmem:[%s41] sm:$0x1]
      %v1005 = vld [vmem:[%s43] sm:$0xf]
      %v1006 = vld [vmem:[%s43 + $0x4] sm:$0xf]
      %v1007 = vld [vmem:[%s43 + $0x8] sm:$0xf]
      %v1008 = vld [vmem:[%s43 + $0xc] sm:$0xf]
      %v1009 = vld [vmem:[%s45] sm:$0x1]
      %v1010 = vld [vmem:[%s47] sm:$0x1]
      %v1011 = vld [vmem:[%s49] sm:$0x1]
      %v1012 = vld [vmem:[%s51] sm:$0xf]
      %v1013 = vld [vmem:[%s51 + $0x4] sm:$0xf]
      %v1014 = vld [vmem:[%s51 + $0x8] sm:$0xf]
      %v1015 = vld [vmem:[%s51 + $0xc] sm:$0xf]
      %v1016 = vld [vmem:[%s53] sm:$0x1]
      %v1017 = vld [vmem:[%s55] sm:$0xf]
      %v1018 = vld [vmem:[%s55 + $0x4] sm:$0xf]
      %v1019 = vld [vmem:[%s55 + $0x8] sm:$0xf]
      %v1020 = vld [vmem:[%s55 + $0xc] sm:$0xf]
      %v1021 = vld [vmem:[%s55 + $0x10] sm:$0xf]
      %v1022 = vld [vmem:[%s55 + $0x14] sm:$0xf]
      %v1023 = vld [vmem:[%s55 + $0x18] sm:$0xf]
      %v1024 = vld [vmem:[%s55 + $0x1c] sm:$0xf]
      %v1025 = vld [vmem:[%s57] sm:$0x1]
      %v1026 = vld [vmem:[%s59] sm:$0x1]
      %v1027 = vld [vmem:[%s61] sm:$0x1]
      %v1028 = vld [vmem:[%s953] sm:$0xff]
      %v1029 = vld [vmem:[%s953 + $0x8] sm:$0xff]
      %v1030 = vpack.c.bf16 %v1029, %v1028
      %v1032 = vlaneseq
      %v1033 = vshrl.u32 %v1032, 7
      %v1034 = vsub.s32 0, %v1033
      %v1035 = vrot.slane %v964, %v1034
      %v1041 = vunpack.c.l.b16 %v960
      %v1042 = vunpack.c.l.b16 %v961
      %v1043 = vunpack.c.l.b16 %v962
      %v1044 = vunpack.c.l.b16 %v963
      %v1045 = vpack.c.b16 %v1042, %v1041
      %v1046 = vpack.c.b16 %v1044, %v1043
      %vm1049 = vcmask 261120
      %v1051 = vsel %vm1049, %v1030, 0
      %1053 = vmatprep.subr.bf16.mxu0 0
      %1054 = vmatpush1.bf16.msra.mxu0 %v1045
      %1055 = vmatprep.subr.bf16.mxu0 0
      %1056 = vmatpush1.bf16.msra.mxu0 %v1046
      %1057 = vmatprep.subr.bf16.mxu0 0
      %1058 = vmatpush1.bf16.msra.mxu0 0
      %1059 = vmatprep.subr.bf16.mxu0 0
      %1060 = vmatpush1.bf16.msra.mxu0 0
      %1061 = vmatprep.subr.bf16.mxu0 0
      %1062 = vmatpush1.bf16.msra.mxu0 0
      %1063 = vmatprep.subr.bf16.mxu0 0
      %1064 = vmatpush1.bf16.msra.mxu0 0
      %1065 = vmatprep.subr.bf16.mxu0 0
      %1066 = vmatpush1.bf16.msra.mxu0 0
      %1067 = vmatprep.subr.bf16.mxu0 0
      %1068 = vmatpush1.bf16.msra.mxu0 0
      %1069 = vmatprep.subr.bf16.mxu0 0
      %1070 = vmatpush1.bf16.msra.mxu0 0
      %1071 = vmatprep.subr.bf16.mxu0 0
      %1072 = vmatpush1.bf16.msra.mxu0 0
      %1073 = vmatprep.subr.bf16.mxu0 0
      %1074 = vmatpush1.bf16.msra.mxu0 0
      %1075 = vmatprep.subr.bf16.mxu0 0
      %1076 = vmatpush1.bf16.msra.mxu0 0
      %1077 = vmatprep.subr.bf16.mxu0 0
      %1078 = vmatpush1.bf16.msra.mxu0 0
      %1079 = vmatprep.subr.bf16.mxu0 0
      %1080 = vmatpush1.bf16.msra.mxu0 0
      %1081 = vmatprep.subr.bf16.mxu0 0
      %1082 = vmatpush1.bf16.msra.mxu0 0
      %1083 = vmatprep.subr.bf16.mxu0 0
      %1084 = vmatpush1.bf16.msra.mxu0 0
      %1085 = vmatprep.mubr.bf16.mxu0 0
      %1086 = vmatmul.mubr.bf16.gmra.mrb[0].mxu0 %v1051
      %v1087 = vpop.f32.mrb[0].mxu0
      %v1088 = vadd.f32 %v1035, %v1087
      %v1089 = vpop.f32.mrb[0].mxu0
      %v1090 = vpop.f32.mrb[0].mxu0
      %v1091 = vadd.f32 %v1035, %v1090
      %v1092 = vpop.f32.mrb[0].mxu0
      %1093 = vdwg.mxu0
      %1096 = vrot.lane.b32.xlu0 %v1088, 96
      %v1097 = vpop.permute.xlu0 %1096
      %1098 = vrot.lane.b32.xlu0 %v1091, 96
      %v1099 = vpop.permute.xlu0 %1098
      %vm1100 = vcmask 64512
      %v1101 = vsel %vm1100, %v1088, 0
      %v1103 = vsel %vm1100, %v1091, 0
      %v1105 = vsel %vm1100, %v1097, 0
      %v1107 = vsel %vm1100, %v1099, 0
      %1109 = vmatprep.subr.mxu0 0.0
      %1110 = vmatpush1.xpose.msra.mxu0 %v1105
      %1111 = vmatprep.subr.mxu0 0.0
      %1112 = vmatpush1.xpose.msra.mxu0 %v1107
      %1113 = vmatprep.subr.mxu0 0.0
      %1114 = vmatpush1.xpose.msra.mxu0 0.0
      %1115 = vmatprep.subr.mxu0 0.0
      %1116 = vmatpush1.xpose.msra.mxu0 0.0
      %1117 = vmatprep.subr.mxu0 0.0
      %1118 = vmatpush1.xpose.msra.mxu0 0.0
      %1119 = vmatprep.subr.mxu0 0.0
      %1120 = vmatpush1.xpose.msra.mxu0 0.0
      %1121 = vmatprep.subr.mxu0 0.0
      %1122 = vmatpush1.xpose.msra.mxu0 0.0
      %1123 = vmatprep.subr.mxu0 0.0
      %1124 = vmatpush1.xpose.msra.mxu0 0.0
      %1125 = vmatprep.subr.mxu0 0.0
      %1126 = vmatpush1.xpose.msra.mxu0 0.0
      %1127 = vmatprep.subr.mxu0 0.0
      %1128 = vmatpush1.xpose.msra.mxu0 0.0
      %1129 = vmatprep.subr.mxu0 0.0
      %1130 = vmatpush1.xpose.msra.mxu0 0.0
      %1131 = vmatprep.subr.mxu0 0.0
      %1132 = vmatpush1.xpose.msra.mxu0 0.0
      %1133 = vmatprep.subr.mxu0 0.0
      %1134 = vmatpush1.xpose.msra.mxu0 0.0
      %1135 = vmatprep.subr.mxu0 0.0
      %1136 = vmatpush1.xpose.msra.mxu0 0.0
      %1137 = vmatprep.subr.mxu0 0.0
      %1138 = vmatpush1.xpose.msra.mxu0 0.0
      %1139 = vmatprep.subr.mxu0 0.0
      %1140 = vmatpush1.xpose.msra.mxu0 0.0
      %1141 = vmatprep.subr.mxu0 0.0
      %1142 = vmatpush1.xpose.msra.mxu0 0.0
      %1143 = vmatprep.subr.mxu0 0.0
      %1144 = vmatpush1.xpose.msra.mxu0 0.0
      %1145 = vmatprep.subr.mxu0 0.0
      %1146 = vmatpush1.xpose.msra.mxu0 0.0
      %1147 = vmatprep.subr.mxu0 0.0
      %1148 = vmatpush1.xpose.msra.mxu0 0.0
      %1149 = vmatprep.subr.mxu0 0.0
      %1150 = vmatpush1.xpose.msra.mxu0 0.0
      %1151 = vmatprep.subr.mxu0 0.0
      %1152 = vmatpush1.xpose.msra.mxu0 0.0
      %1153 = vmatprep.subr.mxu0 0.0
      %1154 = vmatpush1.xpose.msra.mxu0 0.0
      %1155 = vmatprep.subr.mxu0 0.0
      %1156 = vmatpush1.xpose.msra.mxu0 0.0
      %1157 = vmatprep.subr.mxu0 0.0
      %1158 = vmatpush1.xpose.msra.mxu0 0.0
      %1159 = vmatprep.subr.mxu0 0.0
      %1160 = vmatpush1.xpose.msra.mxu0 0.0
      %1161 = vmatprep.subr.mxu0 0.0
      %1162 = vmatpush1.xpose.msra.mxu0 0.0
      %1163 = vmatprep.subr.mxu0 0.0
      %1164 = vmatpush1.xpose.msra.mxu0 0.0
      %1165 = vmatprep.subr.mxu0 0.0
      %1166 = vmatpush1.xpose.msra.mxu0 0.0
      %1167 = vmatprep.subr.mxu0 0.0
      %1168 = vmatpush1.xpose.msra.mxu0 0.0
      %1169 = vmatprep.subr.mxu0 0.0
      %1170 = vmatpush1.xpose.msra.mxu0 0.0
      %1171 = vmatprep.subr.mxu0 0.0
      %1172 = vmatpush1.xpose.msra.mxu0 0.0
      %1173 = vmatprep.mubr.f32.mxu0 0.0
      %1174 = vmatmul.mubr.f32.gmra.mrb[0].mxu0 %v1101
      %v1175 = vpop.f32.mrb[0].mxu0
      %v1176 = vadd.f32 0.0, %v1175
      %v1177 = vpop.f32.mrb[0].mxu0
      %1178 = vmatprep.mubr.f32.mxu0 0.0
      %1179 = vmatmul.mubr.f32.gmra.mrb[0].mxu0 %v1103
      %v1180 = vpop.f32.mrb[0].mxu0
      %v1181 = vadd.f32 0.0, %v1180
      %v1182 = vpop.f32.mrb[0].mxu0
      %1183 = vdwg.mxu0
      %vm1184 = vcmask 130048
      %v1185 = vsel %vm1184, %v1176, -inf
      %1186 = vmax.xlane.f32.xlu0 %v1185
      %v1187 = vpop.xlane.xlu0 %1186
      %v1188 = vsel %vm1184, %v1181, -inf
      %1189 = vmax.xlane.f32.xlu0 %v1188
      %v1190 = vpop.xlane.xlu0 %1189
      %v1191 = vsub.f32 %v1176, %v1187
      %v1192 = vsub.f32 %v1181, %v1190
      %v1193 = vmul.f32 %v1191, 1.442695
      %v1194 = vpow.pop %v1193
      %v1195 = vmul.f32 %v1192, 1.442695
      %v1196 = vpow.pop %v1195
      %v1197 = vsel %vm1184, %v1194, 0.0
      %1198 = vadd.xlane.f32.xlu0 %v1197
      %v1199 = vpop.xlane.xlu0 %1198
      %v1200 = vsel %vm1184, %v1196, 0.0
      %1201 = vadd.xlane.f32.xlu0 %v1200
      %v1202 = vpop.xlane.xlu0 %1201
      %v1203 = vrcp.pop %v1199
      %v1204 = vrcp.pop %v1202
      %v1205 = vmul.f32 %v1194, %v1203
      %v1206 = vmul.f32 %v1196, %v1204
      %1207 = vrot.lane.b32.xlu0 %v1088, 64
      %v1208 = vpop.permute.xlu0 %1207
      %1209 = vrot.lane.b32.xlu0 %v1091, 64
      %v1210 = vpop.permute.xlu0 %1209
      %v1214 = vsel %vm1184, %v1205, 0
      %v1217 = vsel %vm1184, %v1206, 0
      %1219 = vmatprep.subr.mxu0 0.0
      %1220 = vmatpush1.msra.mxu0 %v1208
      %1221 = vmatprep.subr.mxu0 0.0
      %1222 = vmatpush1.msra.mxu0 %v1210
      %1223 = vmatprep.subr.mxu0 0.0
      %1224 = vmatpush1.msra.mxu0 0.0
      %1225 = vmatprep.subr.mxu0 0.0
      %1226 = vmatpush1.msra.mxu0 0.0
      %1227 = vmatprep.subr.mxu0 0.0
      %1228 = vmatpush1.msra.mxu0 0.0
      %1229 = vmatprep.subr.mxu0 0.0
      %1230 = vmatpush1.msra.mxu0 0.0
      %1231 = vmatprep.subr.mxu0 0.0
      %1232 = vmatpush1.msra.mxu0 0.0
      %1233 = vmatprep.subr.mxu0 0.0
      %1234 = vmatpush1.msra.mxu0 0.0
      %1235 = vmatprep.subr.mxu0 0.0
      %1236 = vmatpush1.msra.mxu0 0.0
      %1237 = vmatprep.subr.mxu0 0.0
      %1238 = vmatpush1.msra.mxu0 0.0
      %1239 = vmatprep.subr.mxu0 0.0
      %1240 = vmatpush1.msra.mxu0 0.0
      %1241 = vmatprep.subr.mxu0 0.0
      %1242 = vmatpush1.msra.mxu0 0.0
      %1243 = vmatprep.subr.mxu0 0.0
      %1244 = vmatpush1.msra.mxu0 0.0
      %1245 = vmatprep.subr.mxu0 0.0
      %1246 = vmatpush1.msra.mxu0 0.0
      %1247 = vmatprep.subr.mxu0 0.0
      %1248 = vmatpush1.msra.mxu0 0.0
      %1249 = vmatprep.subr.mxu0 0.0
      %1250 = vmatpush1.msra.mxu0 0.0
      %1251 = vmatprep.subr.mxu0 0.0
      %1252 = vmatpush1.msra.mxu0 0.0
      %1253 = vmatprep.subr.mxu0 0.0
      %1254 = vmatpush1.msra.mxu0 0.0
      %1255 = vmatprep.subr.mxu0 0.0
      %1256 = vmatpush1.msra.mxu0 0.0
      %1257 = vmatprep.subr.mxu0 0.0
      %1258 = vmatpush1.msra.mxu0 0.0
      %1259 = vmatprep.subr.mxu0 0.0
      %1260 = vmatpush1.msra.mxu0 0.0
      %1261 = vmatprep.subr.mxu0 0.0
      %1262 = vmatpush1.msra.mxu0 0.0
      %1263 = vmatprep.subr.mxu0 0.0
      %1264 = vmatpush1.msra.mxu0 0.0
      %1265 = vmatprep.subr.mxu0 0.0
      %1266 = vmatpush1.msra.mxu0 0.0
      %1267 = vmatprep.subr.mxu0 0.0
      %1268 = vmatpush1.msra.mxu0 0.0
      %1269 = vmatprep.subr.mxu0 0.0
      %1270 = vmatpush1.msra.mxu0 0.0
      %1271 = vmatprep.subr.mxu0 0.0
      %1272 = vmatpush1.msra.mxu0 0.0
      %1273 = vmatprep.subr.mxu0 0.0
      %1274 = vmatpush1.msra.mxu0 0.0
      %1275 = vmatprep.subr.mxu0 0.0
      %1276 = vmatpush1.msra.mxu0 0.0
      %1277 = vmatprep.subr.mxu0 0.0
      %1278 = vmatpush1.msra.mxu0 0.0
      %1279 = vmatprep.subr.mxu0 0.0
      %1280 = vmatpush1.msra.mxu0 0.0
      %1281 = vmatprep.subr.mxu0 0.0
      %1282 = vmatpush1.msra.mxu0 0.0
      %1283 = vmatprep.mubr.f32.mxu0 0.0
      %1284 = vmatmul.mubr.f32.gmra.mrb[0].mxu0 %v1214
      %v1285 = vpop.f32.mrb[0].mxu0
      %v1286 = vadd.f32 0.0, %v1285
      %v1287 = vpop.f32.mrb[0].mxu0
      %1288 = vmatprep.mubr.f32.mxu0 0.0
      %1289 = vmatmul.mubr.f32.gmra.mrb[0].mxu0 %v1217
      %v1290 = vpop.f32.mrb[0].mxu0
      %v1291 = vadd.f32 0.0, %v1290
      %v1292 = vpop.f32.mrb[0].mxu0
      %1293 = vdwg.mxu0
      %v1294 = vpack.c.bf16 %v1291, %v1286
      %1295 = vrot.lane.b32.xlu0 %v1088, 120
      %v1296 = vpop.permute.xlu0 %1295
      %1297 = vrot.lane.b32.xlu0 %v1091, 120
      %v1298 = vpop.permute.xlu0 %1297
      %1299 = vrot.lane.b32.xlu0 %v1088, 88
      %v1300 = vpop.permute.xlu0 %1299
      %1301 = vrot.lane.b32.xlu0 %v1091, 88
      %v1302 = vpop.permute.xlu0 %1301
      %v1303 = vsel %vm1100, %v1296, 0
      %v1305 = vsel %vm1100, %v1298, 0
      %v1307 = vsel %vm1100, %v1300, 0
      %v1309 = vsel %vm1100, %v1302, 0
      %1311 = vmatprep.subr.mxu0 0.0
      %1312 = vmatpush1.xpose.msra.mxu0 %v1307
      %1313 = vmatprep.subr.mxu0 0.0
      %1314 = vmatpush1.xpose.msra.mxu0 %v1309
      %1315 = vmatprep.subr.mxu0 0.0
      %1316 = vmatpush1.xpose.msra.mxu0 0.0
      %1317 = vmatprep.subr.mxu0 0.0
      %1318 = vmatpush1.xpose.msra.mxu0 0.0
      %1319 = vmatprep.subr.mxu0 0.0
      %1320 = vmatpush1.xpose.msra.mxu0 0.0
      %1321 = vmatprep.subr.mxu0 0.0
      %1322 = vmatpush1.xpose.msra.mxu0 0.0
      %1323 = vmatprep.subr.mxu0 0.0
      %1324 = vmatpush1.xpose.msra.mxu0 0.0
      %1325 = vmatprep.subr.mxu0 0.0
      %1326 = vmatpush1.xpose.msra.mxu0 0.0
      %1327 = vmatprep.subr.mxu0 0.0
      %1328 = vmatpush1.xpose.msra.mxu0 0.0
      %1329 = vmatprep.subr.mxu0 0.0
      %1330 = vmatpush1.xpose.msra.mxu0 0.0
      %1331 = vmatprep.subr.mxu0 0.0
      %1332 = vmatpush1.xpose.msra.mxu0 0.0
      %1333 = vmatprep.subr.mxu0 0.0
      %1334 = vmatpush1.xpose.msra.mxu0 0.0
      %1335 = vmatprep.subr.mxu0 0.0
      %1336 = vmatpush1.xpose.msra.mxu0 0.0
      %1337 = vmatprep.subr.mxu0 0.0
      %1338 = vmatpush1.xpose.msra.mxu0 0.0
      %1339 = vmatprep.subr.mxu0 0.0
      %1340 = vmatpush1.xpose.msra.mxu0 0.0
      %1341 = vmatprep.subr.mxu0 0.0
      %1342 = vmatpush1.xpose.msra.mxu0 0.0
      %1343 = vmatprep.subr.mxu0 0.0
      %1344 = vmatpush1.xpose.msra.mxu0 0.0
      %1345 = vmatprep.subr.mxu0 0.0
      %1346 = vmatpush1.xpose.msra.mxu0 0.0
      %1347 = vmatprep.subr.mxu0 0.0
      %1348 = vmatpush1.xpose.msra.mxu0 0.0
      %1349 = vmatprep.subr.mxu0 0.0
      %1350 = vmatpush1.xpose.msra.mxu0 0.0
      %1351 = vmatprep.subr.mxu0 0.0
      %1352 = vmatpush1.xpose.msra.mxu0 0.0
      %1353 = vmatprep.subr.mxu0 0.0
      %1354 = vmatpush1.xpose.msra.mxu0 0.0
      %1355 = vmatprep.subr.mxu0 0.0
      %1356 = vmatpush1.xpose.msra.mxu0 0.0
      %1357 = vmatprep.subr.mxu0 0.0
      %1358 = vmatpush1.xpose.msra.mxu0 0.0
      %1359 = vmatprep.subr.mxu0 0.0
      %1360 = vmatpush1.xpose.msra.mxu0 0.0
      %1361 = vmatprep.subr.mxu0 0.0
      %1362 = vmatpush1.xpose.msra.mxu0 0.0
      %1363 = vmatprep.subr.mxu0 0.0
      %1364 = vmatpush1.xpose.msra.mxu0 0.0
      %1365 = vmatprep.subr.mxu0 0.0
      %1366 = vmatpush1.xpose.msra.mxu0 0.0
      %1367 = vmatprep.subr.mxu0 0.0
      %1368 = vmatpush1.xpose.msra.mxu0 0.0
      %1369 = vmatprep.subr.mxu0 0.0
      %1370 = vmatpush1.xpose.msra.mxu0 0.0
      %1371 = vmatprep.subr.mxu0 0.0
      %1372 = vmatpush1.xpose.msra.mxu0 0.0
      %1373 = vmatprep.subr.mxu0 0.0
      %1374 = vmatpush1.xpose.msra.mxu0 0.0
      %1375 = vmatprep.mubr.f32.mxu0 0.0
      %1376 = vmatmul.mubr.f32.gmra.mrb[0].mxu0 %v1303
      %v1377 = vpop.f32.mrb[0].mxu0
      %v1378 = vadd.f32 0.0, %v1377
      %v1379 = vpop.f32.mrb[0].mxu0
      %1380 = vmatprep.mubr.f32.mxu0 0.0
      %1381 = vmatmul.mubr.f32.gmra.mrb[0].mxu0 %v1305
      %v1382 = vpop.f32.mrb[0].mxu0
      %v1383 = vadd.f32 0.0, %v1382
      %v1384 = vpop.f32.mrb[0].mxu0
      %1385 = vdwg.mxu0
      %v1386 = vsel %vm1184, %v1378, -inf
      %1387 = vmax.xlane.f32.xlu0 %v1386
      %v1388 = vpop.xlane.xlu0 %1387
      %v1389 = vsel %vm1184, %v1383, -inf
      %1390 = vmax.xlane.f32.xlu0 %v1389
      %v1391 = vpop.xlane.xlu0 %1390
      %v1392 = vsub.f32 %v1378, %v1388
      %v1393 = vsub.f32 %v1383, %v1391
      %v1394 = vmul.f32 %v1392, 1.442695
      %v1395 = vpow.pop %v1394
      %v1396 = vmul.f32 %v1393, 1.442695
      %v1397 = vpow.pop %v1396
      %v1398 = vsel %vm1184, %v1395, 0.0
      %1399 = vadd.xlane.f32.xlu0 %v1398
      %v1400 = vpop.xlane.xlu0 %1399
      %v1401 = vsel %vm1184, %v1397, 0.0
      %1402 = vadd.xlane.f32.xlu0 %v1401
      %v1403 = vpop.xlane.xlu0 %1402
      %v1404 = vrcp.pop %v1400
      %v1405 = vrcp.pop %v1403
      %v1406 = vmul.f32 %v1395, %v1404
      %v1407 = vmul.f32 %v1397, %v1405
      %1408 = vrot.lane.b32.xlu0 %v1088, 56
      %v1409 = vpop.permute.xlu0 %1408
      %1410 = vrot.lane.b32.xlu0 %v1091, 56
      %v1411 = vpop.permute.xlu0 %1410
      %v1415 = vsel %vm1184, %v1406, 0
      %v1418 = vsel %vm1184, %v1407, 0
      %1420 = vmatprep.subr.mxu0 0.0
      %1421 = vmatpush1.msra.mxu0 %v1409
      %1422 = vmatprep.subr.mxu0 0.0
      %1423 = vmatpush1.msra.mxu0 %v1411
      %1424 = vmatprep.subr.mxu0 0.0
      %1425 = vmatpush1.msra.mxu0 0.0
      %1426 = vmatprep.subr.mxu0 0.0
      %1427 = vmatpush1.msra.mxu0 0.0
      %1428 = vmatprep.subr.mxu0 0.0
      %1429 = vmatpush1.msra.mxu0 0.0
      %1430 = vmatprep.subr.mxu0 0.0
      %1431 = vmatpush1.msra.mxu0 0.0
      %1432 = vmatprep.subr.mxu0 0.0
      %1433 = vmatpush1.msra.mxu0 0.0
      %1434 = vmatprep.subr.mxu0 0.0
      %1435 = vmatpush1.msra.mxu0 0.0
      %1436 = vmatprep.subr.mxu0 0.0
      %1437 = vmatpush1.msra.mxu0 0.0
      %1438 = vmatprep.subr.mxu0 0.0
      %1439 = vmatpush1.msra.mxu0 0.0
      %1440 = vmatprep.subr.mxu0 0.0
      %1441 = vmatpush1.msra.mxu0 0.0
      %1442 = vmatprep.subr.mxu0 0.0
      %1443 = vmatpush1.msra.mxu0 0.0
      %1444 = vmatprep.subr.mxu0 0.0
      %1445 = vmatpush1.msra.mxu0 0.0
      %1446 = vmatprep.subr.mxu0 0.0
      %1447 = vmatpush1.msra.mxu0 0.0
      %1448 = vmatprep.subr.mxu0 0.0
      %1449 = vmatpush1.msra.mxu0 0.0
      %1450 = vmatprep.subr.mxu0 0.0
      %1451 = vmatpush1.msra.mxu0 0.0
      %1452 = vmatprep.subr.mxu0 0.0
      %1453 = vmatpush1.msra.mxu0 0.0
      %1454 = vmatprep.subr.mxu0 0.0
      %1455 = vmatpush1.msra.mxu0 0.0
      %1456 = vmatprep.subr.mxu0 0.0
      %1457 = vmatpush1.msra.mxu0 0.0
      %1458 = vmatprep.subr.mxu0 0.0
      %1459 = vmatpush1.msra.mxu0 0.0
      %1460 = vmatprep.subr.mxu0 0.0
      %1461 = vmatpush1.msra.mxu0 0.0
      %1462 = vmatprep.subr.mxu0 0.0
      %1463 = vmatpush1.msra.mxu0 0.0
      %1464 = vmatprep.subr.mxu0 0.0
      %1465 = vmatpush1.msra.mxu0 0.0
      %1466 = vmatprep.subr.mxu0 0.0
      %1467 = vmatpush1.msra.mxu0 0.0
      %1468 = vmatprep.subr.mxu0 0.0
      %1469 = vmatpush1.msra.mxu0 0.0
      %1470 = vmatprep.subr.mxu0 0.0
      %1471 = vmatpush1.msra.mxu0 0.0
      %1472 = vmatprep.subr.mxu0 0.0
      %1473 = vmatpush1.msra.mxu0 0.0
      %1474 = vmatprep.subr.mxu0 0.0
      %1475 = vmatpush1.msra.mxu0 0.0
      %1476 = vmatprep.subr.mxu0 0.0
      %1477 = vmatpush1.msra.mxu0 0.0
      %1478 = vmatprep.subr.mxu0 0.0
      %1479 = vmatpush1.msra.mxu0 0.0
      %1480 = vmatprep.subr.mxu0 0.0
      %1481 = vmatpush1.msra.mxu0 0.0
      %1482 = vmatprep.subr.mxu0 0.0
      %1483 = vmatpush1.msra.mxu0 0.0
      %1484 = vmatprep.mubr.f32.mxu0 0.0
      %1485 = vmatmul.mubr.f32.gmra.mrb[0].mxu0 %v1415
      %v1486 = vpop.f32.mrb[0].mxu0
      %v1487 = vadd.f32 0.0, %v1486
      %v1488 = vpop.f32.mrb[0].mxu0
      %1489 = vmatprep.mubr.f32.mxu0 0.0
      %1490 = vmatmul.mubr.f32.gmra.mrb[0].mxu0 %v1418
      %v1491 = vpop.f32.mrb[0].mxu0
      %v1492 = vadd.f32 0.0, %v1491
      %v1493 = vpop.f32.mrb[0].mxu0
      %1494 = vdwg.mxu0
      %v1495 = vpack.c.bf16 %v1492, %v1487
      %v1497 = vsel %vm1100, %v1495, 0
      %vm1499 = vcmask 1043456
      %v1501 = vsel %vm1499, %v966, 0
      %1503 = vmatprep.subr.bf16.mxu0 0
      %1504 = vmatpush1.bf16.msra.mxu0 %v1501
      %1505 = vmatprep.subr.bf16.mxu0 0
      %1506 = vmatpush1.bf16.msra.mxu0 0
      %1507 = vmatprep.subr.bf16.mxu0 0
      %1508 = vmatpush1.bf16.msra.mxu0 0
      %1509 = vmatprep.subr.bf16.mxu0 0
      %1510 = vmatpush1.bf16.msra.mxu0 0
      %1511 = vmatprep.subr.bf16.mxu0 0
      %1512 = vmatpush1.bf16.msra.mxu0 0
      %1513 = vmatprep.subr.bf16.mxu0 0
      %1514 = vmatpush1.bf16.msra.mxu0 0
      %1515 = vmatprep.subr.bf16.mxu0 0
      %1516 = vmatpush1.bf16.msra.mxu0 0
      %1517 = vmatprep.subr.bf16.mxu0 0
      %1518 = vmatpush1.bf16.msra.mxu0 0
      %1519 = vmatprep.subr.bf16.mxu0 0
      %1520 = vmatpush1.bf16.msra.mxu0 0
      %1521 = vmatprep.subr.bf16.mxu0 0
      %1522 = vmatpush1.bf16.msra.mxu0 0
      %1523 = vmatprep.subr.bf16.mxu0 0
      %1524 = vmatpush1.bf16.msra.mxu0 0
      %1525 = vmatprep.subr.bf16.mxu0 0
      %1526 = vmatpush1.bf16.msra.mxu0 0
      %1527 = vmatprep.subr.bf16.mxu0 0
      %1528 = vmatpush1.bf16.msra.mxu0 0
      %1529 = vmatprep.subr.bf16.mxu0 0
      %1530 = vmatpush1.bf16.msra.mxu0 0
      %1531 = vmatprep.subr.bf16.mxu0 0
      %1532 = vmatpush1.bf16.msra.mxu0 0
      %1533 = vmatprep.subr.bf16.mxu0 0
      %1534 = vmatpush1.bf16.msra.mxu0 0
      %1535 = vmatprep.mubr.bf16.mxu0 0
      %1536 = vmatmul.mubr.bf16.gmra.mrb[0].mxu0 %v1497
      %v1537 = vpop.f32.mrb[0].mxu0
      %v1538 = vadd.f32 0.0, %v1537
      %v1539 = vpop.f32.mrb[0].mxu0
      %v1540 = vpop.f32.mrb[0].mxu0
      %v1541 = vadd.f32 0.0, %v1540
      %v1542 = vpop.f32.mrb[0].mxu0
      %1543 = vdwg.mxu0
      %v1545 = vsel %vm1100, %v1294, 0
      %v1548 = vsel %vm1499, %v965, 0
      %1550 = vmatprep.subr.bf16.mxu0 0
      %1551 = vmatpush1.bf16.msra.mxu0 %v1548
      %1552 = vmatprep.subr.bf16.mxu0 0
      %1553 = vmatpush1.bf16.msra.mxu0 0
      %1554 = vmatprep.subr.bf16.mxu0 0
      %1555 = vmatpush1.bf16.msra.mxu0 0
      %1556 = vmatprep.subr.bf16.mxu0 0
      %1557 = vmatpush1.bf16.msra.mxu0 0
      %1558 = vmatprep.subr.bf16.mxu0 0
      %1559 = vmatpush1.bf16.msra.mxu0 0
      %1560 = vmatprep.subr.bf16.mxu0 0
      %1561 = vmatpush1.bf16.msra.mxu0 0
      %1562 = vmatprep.subr.bf16.mxu0 0
      %1563 = vmatpush1.bf16.msra.mxu0 0
      %1564 = vmatprep.subr.bf16.mxu0 0
      %1565 = vmatpush1.bf16.msra.mxu0 0
      %1566 = vmatprep.subr.bf16.mxu0 0
      %1567 = vmatpush1.bf16.msra.mxu0 0
      %1568 = vmatprep.subr.bf16.mxu0 0
      %1569 = vmatpush1.bf16.msra.mxu0 0
      %1570 = vmatprep.subr.bf16.mxu0 0
      %1571 = vmatpush1.bf16.msra.mxu0 0
      %1572 = vmatprep.subr.bf16.mxu0 0
      %1573 = vmatpush1.bf16.msra.mxu0 0
      %1574 = vmatprep.subr.bf16.mxu0 0
      %1575 = vmatpush1.bf16.msra.mxu0 0
      %1576 = vmatprep.subr.bf16.mxu0 0
      %1577 = vmatpush1.bf16.msra.mxu0 0
      %1578 = vmatprep.subr.bf16.mxu0 0
      %1579 = vmatpush1.bf16.msra.mxu0 0
      %1580 = vmatprep.subr.bf16.mxu0 0
      %1581 = vmatpush1.bf16.msra.mxu0 0
      %1582 = vmatprep.mubr.bf16.mxu0 0
      %1583 = vmatmul.mubr.bf16.gmra.mrb[0].mxu0 %v1545
      %v1584 = vpop.f32.mrb[0].mxu0
      %v1585 = vadd.f32 %v1538, %v1584
      %v1586 = vpop.f32.mrb[0].mxu0
      %v1587 = vpop.f32.mrb[0].mxu0
      %v1588 = vadd.f32 %v1541, %v1587
      %v1589 = vpop.f32.mrb[0].mxu0
      %1590 = vdwg.mxu0
      %1591 = vrot.lane.b32.xlu0 %v1088, 112
      %v1592 = vpop.permute.xlu0 %1591
      %1593 = vrot.lane.b32.xlu0 %v1091, 112
      %v1594 = vpop.permute.xlu0 %1593
      %1595 = vrot.lane.b32.xlu0 %v1088, 80
      %v1596 = vpop.permute.xlu0 %1595
      %1597 = vrot.lane.b32.xlu0 %v1091, 80
      %v1598 = vpop.permute.xlu0 %1597
      %v1599 = vsel %vm1100, %v1592, 0
      %v1601 = vsel %vm1100, %v1594, 0
      %v1603 = vsel %vm1100, %v1596, 0
      %v1605 = vsel %vm1100, %v1598, 0
      %1607 = vmatprep.subr.mxu0 0.0
      %1608 = vmatpush1.xpose.msra.mxu0 %v1603
      %1609 = vmatprep.subr.mxu0 0.0
      %1610 = vmatpush1.xpose.msra.mxu0 %v1605
      %1611 = vmatprep.subr.mxu0 0.0
      %1612 = vmatpush1.xpose.msra.mxu0 0.0
      %1613 = vmatprep.subr.mxu0 0.0
      %1614 = vmatpush1.xpose.msra.mxu0 0.0
      %1615 = vmatprep.subr.mxu0 0.0
      %1616 = vmatpush1.xpose.msra.mxu0 0.0
      %1617 = vmatprep.subr.mxu0 0.0
      %1618 = vmatpush1.xpose.msra.mxu0 0.0
      %1619 = vmatprep.subr.mxu0 0.0
      %1620 = vmatpush1.xpose.msra.mxu0 0.0
      %1621 = vmatprep.subr.mxu0 0.0
      %1622 = vmatpush1.xpose.msra.mxu0 0.0
      %1623 = vmatprep.subr.mxu0 0.0
      %1624 = vmatpush1.xpose.msra.mxu0 0.0
      %1625 = vmatprep.subr.mxu0 0.0
      %1626 = vmatpush1.xpose.msra.mxu0 0.0
      %1627 = vmatprep.subr.mxu0 0.0
      %1628 = vmatpush1.xpose.msra.mxu0 0.0
      %1629 = vmatprep.subr.mxu0 0.0
      %1630 = vmatpush1.xpose.msra.mxu0 0.0
      %1631 = vmatprep.subr.mxu0 0.0
      %1632 = vmatpush1.xpose.msra.mxu0 0.0
      %1633 = vmatprep.subr.mxu0 0.0
      %1634 = vmatpush1.xpose.msra.mxu0 0.0
      %1635 = vmatprep.subr.mxu0 0.0
      %1636 = vmatpush1.xpose.msra.mxu0 0.0
      %1637 = vmatprep.subr.mxu0 0.0
      %1638 = vmatpush1.xpose.msra.mxu0 0.0
      %1639 = vmatprep.subr.mxu0 0.0
      %1640 = vmatpush1.xpose.msra.mxu0 0.0
      %1641 = vmatprep.subr.mxu0 0.0
      %1642 = vmatpush1.xpose.msra.mxu0 0.0
      %1643 = vmatprep.subr.mxu0 0.0
      %1644 = vmatpush1.xpose.msra.mxu0 0.0
      %1645 = vmatprep.subr.mxu0 0.0
      %1646 = vmatpush1.xpose.msra.mxu0 0.0
      %1647 = vmatprep.subr.mxu0 0.0
      %1648 = vmatpush1.xpose.msra.mxu0 0.0
      %1649 = vmatprep.subr.mxu0 0.0
      %1650 = vmatpush1.xpose.msra.mxu0 0.0
      %1651 = vmatprep.subr.mxu0 0.0
      %1652 = vmatpush1.xpose.msra.mxu0 0.0
      %1653 = vmatprep.subr.mxu0 0.0
      %1654 = vmatpush1.xpose.msra.mxu0 0.0
      %1655 = vmatprep.subr.mxu0 0.0
      %1656 = vmatpush1.xpose.msra.mxu0 0.0
      %1657 = vmatprep.subr.mxu0 0.0
      %1658 = vmatpush1.xpose.msra.mxu0 0.0
      %1659 = vmatprep.subr.mxu0 0.0
      %1660 = vmatpush1.xpose.msra.mxu0 0.0
      %1661 = vmatprep.subr.mxu0 0.0
      %1662 = vmatpush1.xpose.msra.mxu0 0.0
      %1663 = vmatprep.subr.mxu0 0.0
      %1664 = vmatpush1.xpose.msra.mxu0 0.0
      %1665 = vmatprep.subr.mxu0 0.0
      %1666 = vmatpush1.xpose.msra.mxu0 0.0
      %1667 = vmatprep.subr.mxu0 0.0
      %1668 = vmatpush1.xpose.msra.mxu0 0.0
      %1669 = vmatprep.subr.mxu0 0.0
      %1670 = vmatpush1.xpose.msra.mxu0 0.0
      %1671 = vmatprep.mubr.f32.mxu0 0.0
      %1672 = vmatmul.mubr.f32.gmra.mrb[0].mxu0 %v1599
      %v1673 = vpop.f32.mrb[0].mxu0
      %v1674 = vadd.f32 0.0, %v1673
      %v1675 = vpop.f32.mrb[0].mxu0
      %1676 = vmatprep.mubr.f32.mxu0 0.0
      %1677 = vmatmul.mubr.f32.gmra.mrb[0].mxu0 %v1601
      %v1678 = vpop.f32.mrb[0].mxu0
      %v1679 = vadd.f32 0.0, %v1678
      %v1680 = vpop.f32.mrb[0].mxu0
      %1681 = vdwg.mxu0
      %v1682 = vsel %vm1184, %v1674, -inf
      %1683 = vmax.xlane.f32.xlu0 %v1682
      %v1684 = vpop.xlane.xlu0 %1683
      %v1685 = vsel %vm1184, %v1679, -inf
      %1686 = vmax.xlane.f32.xlu0 %v1685
      %v1687 = vpop.xlane.xlu0 %1686
      %v1688 = vsub.f32 %v1674, %v1684
      %v1689 = vsub.f32 %v1679, %v1687
      %v1690 = vmul.f32 %v1688, 1.442695
      %v1691 = vpow.pop %v1690
      %v1692 = vmul.f32 %v1689, 1.442695
      %v1693 = vpow.pop %v1692
      %v1694 = vsel %vm1184, %v1691, 0.0
      %1695 = vadd.xlane.f32.xlu0 %v1694
      %v1696 = vpop.xlane.xlu0 %1695
      %v1697 = vsel %vm1184, %v1693, 0.0
      %1698 = vadd.xlane.f32.xlu0 %v1697
      %v1699 = vpop.xlane.xlu0 %1698
      %v1700 = vrcp.pop %v1696
      %v1701 = vrcp.pop %v1699
      %v1702 = vmul.f32 %v1691, %v1700
      %v1703 = vmul.f32 %v1693, %v1701
      %1704 = vrot.lane.b32.xlu0 %v1088, 48
      %v1705 = vpop.permute.xlu0 %1704
      %1706 = vrot.lane.b32.xlu0 %v1091, 48
      %v1707 = vpop.permute.xlu0 %1706
      %v1711 = vsel %vm1184, %v1702, 0
      %v1714 = vsel %vm1184, %v1703, 0
      %1716 = vmatprep.subr.mxu0 0.0
      %1717 = vmatpush1.msra.mxu0 %v1705
      %1718 = vmatprep.subr.mxu0 0.0
      %1719 = vmatpush1.msra.mxu0 %v1707
      %1720 = vmatprep.subr.mxu0 0.0
      %1721 = vmatpush1.msra.mxu0 0.0
      %1722 = vmatprep.subr.mxu0 0.0
      %1723 = vmatpush1.msra.mxu0 0.0
      %1724 = vmatprep.subr.mxu0 0.0
      %1725 = vmatpush1.msra.mxu0 0.0
      %1726 = vmatprep.subr.mxu0 0.0
      %1727 = vmatpush1.msra.mxu0 0.0
      %1728 = vmatprep.subr.mxu0 0.0
      %1729 = vmatpush1.msra.mxu0 0.0
      %1730 = vmatprep.subr.mxu0 0.0
      %1731 = vmatpush1.msra.mxu0 0.0
      %1732 = vmatprep.subr.mxu0 0.0
      %1733 = vmatpush1.msra.mxu0 0.0
      %1734 = vmatprep.subr.mxu0 0.0
      %1735 = vmatpush1.msra.mxu0 0.0
      %1736 = vmatprep.subr.mxu0 0.0
      %1737 = vmatpush1.msra.mxu0 0.0
      %1738 = vmatprep.subr.mxu0 0.0
      %1739 = vmatpush1.msra.mxu0 0.0
      %1740 = vmatprep.subr.mxu0 0.0
      %1741 = vmatpush1.msra.mxu0 0.0
      %1742 = vmatprep.subr.mxu0 0.0
      %1743 = vmatpush1.msra.mxu0 0.0
      %1744 = vmatprep.subr.mxu0 0.0
      %1745 = vmatpush1.msra.mxu0 0.0
      %1746 = vmatprep.subr.mxu0 0.0
      %1747 = vmatpush1.msra.mxu0 0.0
      %1748 = vmatprep.subr.mxu0 0.0
      %1749 = vmatpush1.msra.mxu0 0.0
      %1750 = vmatprep.subr.mxu0 0.0
      %1751 = vmatpush1.msra.mxu0 0.0
      %1752 = vmatprep.subr.mxu0 0.0
      %1753 = vmatpush1.msra.mxu0 0.0
      %1754 = vmatprep.subr.mxu0 0.0
      %1755 = vmatpush1.msra.mxu0 0.0
      %1756 = vmatprep.subr.mxu0 0.0
      %1757 = vmatpush1.msra.mxu0 0.0
      %1758 = vmatprep.subr.mxu0 0.0
      %1759 = vmatpush1.msra.mxu0 0.0
      %1760 = vmatprep.subr.mxu0 0.0
      %1761 = vmatpush1.msra.mxu0 0.0
      %1762 = vmatprep.subr.mxu0 0.0
      %1763 = vmatpush1.msra.mxu0 0.0
      %1764 = vmatprep.subr.mxu0 0.0
      %1765 = vmatpush1.msra.mxu0 0.0
      %1766 = vmatprep.subr.mxu0 0.0
      %1767 = vmatpush1.msra.mxu0 0.0
      %1768 = vmatprep.subr.mxu0 0.0
      %1769 = vmatpush1.msra.mxu0 0.0
      %1770 = vmatprep.subr.mxu0 0.0
      %1771 = vmatpush1.msra.mxu0 0.0
      %1772 = vmatprep.subr.mxu0 0.0
      %1773 = vmatpush1.msra.mxu0 0.0
      %1774 = vmatprep.subr.mxu0 0.0
      %1775 = vmatpush1.msra.mxu0 0.0
      %1776 = vmatprep.subr.mxu0 0.0
      %1777 = vmatpush1.msra.mxu0 0.0
      %1778 = vmatprep.subr.mxu0 0.0
      %1779 = vmatpush1.msra.mxu0 0.0
      %1780 = vmatprep.mubr.f32.mxu0 0.0
      %1781 = vmatmul.mubr.f32.gmra.mrb[0].mxu0 %v1711
      %v1782 = vpop.f32.mrb[0].mxu0
      %v1783 = vadd.f32 0.0, %v1782
      %v1784 = vpop.f32.mrb[0].mxu0
      %1785 = vmatprep.mubr.f32.mxu0 0.0
      %1786 = vmatmul.mubr.f32.gmra.mrb[0].mxu0 %v1714
      %v1787 = vpop.f32.mrb[0].mxu0
      %v1788 = vadd.f32 0.0, %v1787
      %v1789 = vpop.f32.mrb[0].mxu0
      %1790 = vdwg.mxu0
      %v1791 = vpack.c.bf16 %v1788, %v1783
      %v1793 = vsel %vm1100, %v1791, 0
      %v1796 = vsel %vm1499, %v967, 0
      %1798 = vmatprep.subr.bf16.mxu0 0
      %1799 = vmatpush1.bf16.msra.mxu0 %v1796
      %1800 = vmatprep.subr.bf16.mxu0 0
      %1801 = vmatpush1.bf16.msra.mxu0 0
      %1802 = vmatprep.subr.bf16.mxu0 0
      %1803 = vmatpush1.bf16.msra.mxu0 0
      %1804 = vmatprep.subr.bf16.mxu0 0
      %1805 = vmatpush1.bf16.msra.mxu0 0
      %1806 = vmatprep.subr.bf16.mxu0 0
      %1807 = vmatpush1.bf16.msra.mxu0 0
      %1808 = vmatprep.subr.bf16.mxu0 0
      %1809 = vmatpush1.bf16.msra.mxu0 0
      %1810 = vmatprep.subr.bf16.mxu0 0
      %1811 = vmatpush1.bf16.msra.mxu0 0
      %1812 = vmatprep.subr.bf16.mxu0 0
      %1813 = vmatpush1.bf16.msra.mxu0 0
      %1814 = vmatprep.subr.bf16.mxu0 0
      %1815 = vmatpush1.bf16.msra.mxu0 0
      %1816 = vmatprep.subr.bf16.mxu0 0
      %1817 = vmatpush1.bf16.msra.mxu0 0
      %1818 = vmatprep.subr.bf16.mxu0 0
      %1819 = vmatpush1.bf16.msra.mxu0 0
      %1820 = vmatprep.subr.bf16.mxu0 0
      %1821 = vmatpush1.bf16.msra.mxu0 0
      %1822 = vmatprep.subr.bf16.mxu0 0
      %1823 = vmatpush1.bf16.msra.mxu0 0
      %1824 = vmatprep.subr.bf16.mxu0 0
      %1825 = vmatpush1.bf16.msra.mxu0 0
      %1826 = vmatprep.subr.bf16.mxu0 0
      %1827 = vmatpush1.bf16.msra.mxu0 0
      %1828 = vmatprep.subr.bf16.mxu0 0
      %1829 = vmatpush1.bf16.msra.mxu0 0
      %1830 = vmatprep.mubr.bf16.mxu0 0
      %1831 = vmatmul.mubr.bf16.gmra.mrb[0].mxu0 %v1793
      %v1832 = vpop.f32.mrb[0].mxu0
      %v1833 = vadd.f32 0.0, %v1832
      %v1834 = vpop.f32.mrb[0].mxu0
      %v1835 = vpop.f32.mrb[0].mxu0
      %v1836 = vadd.f32 0.0, %v1835
      %v1837 = vpop.f32.mrb[0].mxu0
      %1838 = vdwg.mxu0
      %v1839 = vadd.f32 %v1585, %v1833
      %v1840 = vadd.f32 %v1588, %v1836
      %1841 = vrot.lane.b32.xlu0 %v1088, 104
      %v1842 = vpop.permute.xlu0 %1841
      %1843 = vrot.lane.b32.xlu0 %v1091, 104
      %v1844 = vpop.permute.xlu0 %1843
      %1845 = vrot.lane.b32.xlu0 %v1088, 72
      %v1846 = vpop.permute.xlu0 %1845
      %1847 = vrot.lane.b32.xlu0 %v1091, 72
      %v1848 = vpop.permute.xlu0 %1847
      %v1849 = vsel %vm1100, %v1842, 0
      %v1851 = vsel %vm1100, %v1844, 0
      %v1853 = vsel %vm1100, %v1846, 0
      %v1855 = vsel %vm1100, %v1848, 0
      %1857 = vmatprep.subr.mxu0 0.0
      %1858 = vmatpush1.xpose.msra.mxu0 %v1853
      %1859 = vmatprep.subr.mxu0 0.0
      %1860 = vmatpush1.xpose.msra.mxu0 %v1855
      %1861 = vmatprep.subr.mxu0 0.0
      %1862 = vmatpush1.xpose.msra.mxu0 0.0
      %1863 = vmatprep.subr.mxu0 0.0
      %1864 = vmatpush1.xpose.msra.mxu0 0.0
      %1865 = vmatprep.subr.mxu0 0.0
      %1866 = vmatpush1.xpose.msra.mxu0 0.0
      %1867 = vmatprep.subr.mxu0 0.0
      %1868 = vmatpush1.xpose.msra.mxu0 0.0
      %1869 = vmatprep.subr.mxu0 0.0
      %1870 = vmatpush1.xpose.msra.mxu0 0.0
      %1871 = vmatprep.subr.mxu0 0.0
      %1872 = vmatpush1.xpose.msra.mxu0 0.0
      %1873 = vmatprep.subr.mxu0 0.0
      %1874 = vmatpush1.xpose.msra.mxu0 0.0
      %1875 = vmatprep.subr.mxu0 0.0
      %1876 = vmatpush1.xpose.msra.mxu0 0.0
      %1877 = vmatprep.subr.mxu0 0.0
      %1878 = vmatpush1.xpose.msra.mxu0 0.0
      %1879 = vmatprep.subr.mxu0 0.0
      %1880 = vmatpush1.xpose.msra.mxu0 0.0
      %1881 = vmatprep.subr.mxu0 0.0
      %1882 = vmatpush1.xpose.msra.mxu0 0.0
      %1883 = vmatprep.subr.mxu0 0.0
      %1884 = vmatpush1.xpose.msra.mxu0 0.0
      %1885 = vmatprep.subr.mxu0 0.0
      %1886 = vmatpush1.xpose.msra.mxu0 0.0
      %1887 = vmatprep.subr.mxu0 0.0
      %1888 = vmatpush1.xpose.msra.mxu0 0.0
      %1889 = vmatprep.subr.mxu0 0.0
      %1890 = vmatpush1.xpose.msra.mxu0 0.0
      %1891 = vmatprep.subr.mxu0 0.0
      %1892 = vmatpush1.xpose.msra.mxu0 0.0
      %1893 = vmatprep.subr.mxu0 0.0
      %1894 = vmatpush1.xpose.msra.mxu0 0.0
      %1895 = vmatprep.subr.mxu0 0.0
      %1896 = vmatpush1.xpose.msra.mxu0 0.0
      %1897 = vmatprep.subr.mxu0 0.0
      %1898 = vmatpush1.xpose.msra.mxu0 0.0
      %1899 = vmatprep.subr.mxu0 0.0
      %1900 = vmatpush1.xpose.msra.mxu0 0.0
      %1901 = vmatprep.subr.mxu0 0.0
      %1902 = vmatpush1.xpose.msra.mxu0 0.0
      %1903 = vmatprep.subr.mxu0 0.0
      %1904 = vmatpush1.xpose.msra.mxu0 0.0
      %1905 = vmatprep.subr.mxu0 0.0
      %1906 = vmatpush1.xpose.msra.mxu0 0.0
      %1907 = vmatprep.subr.mxu0 0.0
      %1908 = vmatpush1.xpose.msra.mxu0 0.0
      %1909 = vmatprep.subr.mxu0 0.0
      %1910 = vmatpush1.xpose.msra.mxu0 0.0
      %1911 = vmatprep.subr.mxu0 0.0
      %1912 = vmatpush1.xpose.msra.mxu0 0.0
      %1913 = vmatprep.subr.mxu0 0.0
      %1914 = vmatpush1.xpose.msra.mxu0 0.0
      %1915 = vmatprep.subr.mxu0 0.0
      %1916 = vmatpush1.xpose.msra.mxu0 0.0
      %1917 = vmatprep.subr.mxu0 0.0
      %1918 = vmatpush1.xpose.msra.mxu0 0.0
      %1919 = vmatprep.subr.mxu0 0.0
      %1920 = vmatpush1.xpose.msra.mxu0 0.0
      %1921 = vmatprep.mubr.f32.mxu0 0.0
      %1922 = vmatmul.mubr.f32.gmra.mrb[0].mxu0 %v1849
      %v1923 = vpop.f32.mrb[0].mxu0
      %v1924 = vadd.f32 0.0, %v1923
      %v1925 = vpop.f32.mrb[0].mxu0
      %1926 = vmatprep.mubr.f32.mxu0 0.0
      %1927 = vmatmul.mubr.f32.gmra.mrb[0].mxu0 %v1851
      %v1928 = vpop.f32.mrb[0].mxu0
      %v1929 = vadd.f32 0.0, %v1928
      %v1930 = vpop.f32.mrb[0].mxu0
      %1931 = vdwg.mxu0
      %v1932 = vsel %vm1184, %v1924, -inf
      %1933 = vmax.xlane.f32.xlu0 %v1932
      %v1934 = vpop.xlane.xlu0 %1933
      %v1935 = vsel %vm1184, %v1929, -inf
      %1936 = vmax.xlane.f32.xlu0 %v1935
      %v1937 = vpop.xlane.xlu0 %1936
      %v1938 = vsub.f32 %v1924, %v1934
      %v1939 = vsub.f32 %v1929, %v1937
      %v1940 = vmul.f32 %v1938, 1.442695
      %v1941 = vpow.pop %v1940
      %v1942 = vmul.f32 %v1939, 1.442695
      %v1943 = vpow.pop %v1942
      %v1944 = vsel %vm1184, %v1941, 0.0
      %1945 = vadd.xlane.f32.xlu0 %v1944
      %v1946 = vpop.xlane.xlu0 %1945
      %v1947 = vsel %vm1184, %v1943, 0.0
      %1948 = vadd.xlane.f32.xlu0 %v1947
      %v1949 = vpop.xlane.xlu0 %1948
      %v1950 = vrcp.pop %v1946
      %v1951 = vrcp.pop %v1949
      %v1952 = vmul.f32 %v1941, %v1950
      %v1953 = vmul.f32 %v1943, %v1951
      %1954 = vrot.lane.b32.xlu0 %v1088, 40
      %v1955 = vpop.permute.xlu0 %1954
      %1956 = vrot.lane.b32.xlu0 %v1091, 40
      %v1957 = vpop.permute.xlu0 %1956
      %v1961 = vsel %vm1184, %v1952, 0
      %v1964 = vsel %vm1184, %v1953, 0
      %1966 = vmatprep.subr.mxu0 0.0
      %1967 = vmatpush1.msra.mxu0 %v1955
      %1968 = vmatprep.subr.mxu0 0.0
      %1969 = vmatpush1.msra.mxu0 %v1957
      %1970 = vmatprep.subr.mxu0 0.0
      %1971 = vmatpush1.msra.mxu0 0.0
      %1972 = vmatprep.subr.mxu0 0.0
      %1973 = vmatpush1.msra.mxu0 0.0
      %1974 = vmatprep.subr.mxu0 0.0
      %1975 = vmatpush1.msra.mxu0 0.0
      %1976 = vmatprep.subr.mxu0 0.0
      %1977 = vmatpush1.msra.mxu0 0.0
      %1978 = vmatprep.subr.mxu0 0.0
      %1979 = vmatpush1.msra.mxu0 0.0
      %1980 = vmatprep.subr.mxu0 0.0
      %1981 = vmatpush1.msra.mxu0 0.0
      %1982 = vmatprep.subr.mxu0 0.0
      %1983 = vmatpush1.msra.mxu0 0.0
      %1984 = vmatprep.subr.mxu0 0.0
      %1985 = vmatpush1.msra.mxu0 0.0
      %1986 = vmatprep.subr.mxu0 0.0
      %1987 = vmatpush1.msra.mxu0 0.0
      %1988 = vmatprep.subr.mxu0 0.0
      %1989 = vmatpush1.msra.mxu0 0.0
      %1990 = vmatprep.subr.mxu0 0.0
      %1991 = vmatpush1.msra.mxu0 0.0
      %1992 = vmatprep.subr.mxu0 0.0
      %1993 = vmatpush1.msra.mxu0 0.0
      %1994 = vmatprep.subr.mxu0 0.0
      %1995 = vmatpush1.msra.mxu0 0.0
      %1996 = vmatprep.subr.mxu0 0.0
      %1997 = vmatpush1.msra.mxu0 0.0
      %1998 = vmatprep.subr.mxu0 0.0
      %1999 = vmatpush1.msra.mxu0 0.0
      %2000 = vmatprep.subr.mxu0 0.0
      %2001 = vmatpush1.msra.mxu0 0.0
      %2002 = vmatprep.subr.mxu0 0.0
      %2003 = vmatpush1.msra.mxu0 0.0
      %2004 = vmatprep.subr.mxu0 0.0
      %2005 = vmatpush1.msra.mxu0 0.0
      %2006 = vmatprep.subr.mxu0 0.0
      %2007 = vmatpush1.msra.mxu0 0.0
      %2008 = vmatprep.subr.mxu0 0.0
      %2009 = vmatpush1.msra.mxu0 0.0
      %2010 = vmatprep.subr.mxu0 0.0
      %2011 = vmatpush1.msra.mxu0 0.0
      %2012 = vmatprep.subr.mxu0 0.0
      %2013 = vmatpush1.msra.mxu0 0.0
      %2014 = vmatprep.subr.mxu0 0.0
      %2015 = vmatpush1.msra.mxu0 0.0
      %2016 = vmatprep.subr.mxu0 0.0
      %2017 = vmatpush1.msra.mxu0 0.0
      %2018 = vmatprep.subr.mxu0 0.0
      %2019 = vmatpush1.msra.mxu0 0.0
      %2020 = vmatprep.subr.mxu0 0.0
      %2021 = vmatpush1.msra.mxu0 0.0
      %2022 = vmatprep.subr.mxu0 0.0
      %2023 = vmatpush1.msra.mxu0 0.0
      %2024 = vmatprep.subr.mxu0 0.0
      %2025 = vmatpush1.msra.mxu0 0.0
      %2026 = vmatprep.subr.mxu0 0.0
      %2027 = vmatpush1.msra.mxu0 0.0
      %2028 = vmatprep.subr.mxu0 0.0
      %2029 = vmatpush1.msra.mxu0 0.0
      %2030 = vmatprep.mubr.f32.mxu0 0.0
      %2031 = vmatmul.mubr.f32.gmra.mrb[0].mxu0 %v1961
      %v2032 = vpop.f32.mrb[0].mxu0
      %v2033 = vadd.f32 0.0, %v2032
      %v2034 = vpop.f32.mrb[0].mxu0
      %2035 = vmatprep.mubr.f32.mxu0 0.0
      %2036 = vmatmul.mubr.f32.gmra.mrb[0].mxu0 %v1964
      %v2037 = vpop.f32.mrb[0].mxu0
      %v2038 = vadd.f32 0.0, %v2037
      %v2039 = vpop.f32.mrb[0].mxu0
      %2040 = vdwg.mxu0
      %v2041 = vpack.c.bf16 %v2038, %v2033
      %v2043 = vsel %vm1100, %v2041, 0
      %v2046 = vsel %vm1499, %v968, 0
      %2048 = vmatprep.subr.bf16.mxu0 0
      %2049 = vmatpush1.bf16.msra.mxu0 %v2046
      %2050 = vmatprep.subr.bf16.mxu0 0
      %2051 = vmatpush1.bf16.msra.mxu0 0
      %2052 = vmatprep.subr.bf16.mxu0 0
      %2053 = vmatpush1.bf16.msra.mxu0 0
      %2054 = vmatprep.subr.bf16.mxu0 0
      %2055 = vmatpush1.bf16.msra.mxu0 0
      %2056 = vmatprep.subr.bf16.mxu0 0
      %2057 = vmatpush1.bf16.msra.mxu0 0
      %2058 = vmatprep.subr.bf16.mxu0 0
      %2059 = vmatpush1.bf16.msra.mxu0 0
      %2060 = vmatprep.subr.bf16.mxu0 0
      %2061 = vmatpush1.bf16.msra.mxu0 0
      %2062 = vmatprep.subr.bf16.mxu0 0
      %2063 = vmatpush1.bf16.msra.mxu0 0
      %2064 = vmatprep.subr.bf16.mxu0 0
      %2065 = vmatpush1.bf16.msra.mxu0 0
      %2066 = vmatprep.subr.bf16.mxu0 0
      %2067 = vmatpush1.bf16.msra.mxu0 0
      %2068 = vmatprep.subr.bf16.mxu0 0
      %2069 = vmatpush1.bf16.msra.mxu0 0
      %2070 = vmatprep.subr.bf16.mxu0 0
      %2071 = vmatpush1.bf16.msra.mxu0 0
      %2072 = vmatprep.subr.bf16.mxu0 0
      %2073 = vmatpush1.bf16.msra.mxu0 0
      %2074 = vmatprep.subr.bf16.mxu0 0
      %2075 = vmatpush1.bf16.msra.mxu0 0
      %2076 = vmatprep.subr.bf16.mxu0 0
      %2077 = vmatpush1.bf16.msra.mxu0 0
      %2078 = vmatprep.subr.bf16.mxu0 0
      %2079 = vmatpush1.bf16.msra.mxu0 0
      %2080 = vmatprep.mubr.bf16.mxu0 0
      %2081 = vmatmul.mubr.bf16.gmra.mrb[0].mxu0 %v2043
      %v2082 = vpop.f32.mrb[0].mxu0
      %v2083 = vadd.f32 0.0, %v2082
      %v2084 = vpop.f32.mrb[0].mxu0
      %v2085 = vpop.f32.mrb[0].mxu0
      %v2086 = vadd.f32 0.0, %v2085
      %v2087 = vpop.f32.mrb[0].mxu0
      %2088 = vdwg.mxu0
      %v2089 = vadd.f32 %v1839, %v2083
      %v2090 = vadd.f32 %v1840, %v2086
      %v2091 = vadd.f32 %v1028, %v2089
      %v2092 = vadd.f32 %v1029, %v2090
      %v2094 = vlaneseq
      %v2095 = vshrl.u32 %v2094, 7
      %v2096 = vsub.s32 0, %v2095
      %v2097 = vrot.slane %v969, %v2096
      %v2099 = vadd.f32 %v2091, %v2097
      %v2100 = vadd.f32 %v2092, %v2097
      %v2101 = vsel %vm1049, %v2099, 0.0
      %2102 = vadd.xlane.f32.xlu0 %v2101
      %v2103 = vpop.xlane.xlu0 %2102
      %v2104 = vsel %vm1049, %v2100, 0.0
      %2105 = vadd.xlane.f32.xlu0 %v2104
      %v2106 = vpop.xlane.xlu0 %2105
      %v2107 = vrcp.pop 32.0
      %v2108 = vmul.f32 %v2103, %v2107
      %v2109 = vmul.f32 %v2106, %v2107
      %v2110 = vsub.f32 %v2099, %v2108
      %v2111 = vsub.f32 %v2100, %v2109
      %v2112 = vmul.f32 %v2110, %v2110
      %v2113 = vmul.f32 %v2111, %v2111
      %v2114 = vsel %vm1049, %v2112, 0.0
      %2115 = vadd.xlane.f32.xlu0 %v2114
      %v2116 = vpop.xlane.xlu0 %2115
      %v2117 = vsel %vm1049, %v2113, 0.0
      %2118 = vadd.xlane.f32.xlu0 %v2117
      %v2119 = vpop.xlane.xlu0 %2118
      %v2120 = vmul.f32 %v2116, %v2107
      %v2121 = vmul.f32 %v2119, %v2107
      %v2122 = vadd.f32 %v2120, 1e-05
      %v2123 = vadd.f32 %v2121, 1e-05
      %v2124 = vrsqrt.pop %v2122
      %v2125 = vrsqrt.pop %v2123
      %v2126 = vmul.f32 %v2110, %v2124
      %v2127 = vmul.f32 %v2111, %v2125
      %v2129 = vlaneseq
      %v2130 = vshrl.u32 %v2129, 7
      %v2131 = vsub.s32 0, %v2130
      %v2132 = vrot.slane %v970, %v2131
      %v2134 = vmul.f32 %v2126, %v2132
      %v2135 = vmul.f32 %v2127, %v2132
      %v2137 = vlaneseq
      %v2138 = vshrl.u32 %v2137, 7
      %v2139 = vsub.s32 0, %v2138
      %v2140 = vrot.slane %v971, %v2139
      %v2142 = vadd.f32 %v2134, %v2140
      %v2143 = vadd.f32 %v2135, %v2140
      %v2144 = vpack.c.bf16 %v2143, %v2142
      %v2146 = vlaneseq
      %v2147 = vshrl.u32 %v2146, 7
      %v2148 = vsub.s32 0, %v2147
      %v2149 = vrot.slane %v976, %v2148
      %v2155 = vunpack.c.l.b16 %v972
      %v2156 = vunpack.c.l.b16 %v973
      %v2157 = vunpack.c.l.b16 %v974
      %v2158 = vunpack.c.l.b16 %v975
      %v2159 = vpack.c.b16 %v2156, %v2155
      %v2160 = vpack.c.b16 %v2158, %v2157
      %v2164 = vsel %vm1049, %v2144, 0
      %2166 = vmatprep.subr.bf16.mxu0 0
      %2167 = vmatpush1.bf16.msra.mxu0 %v2159
      %2168 = vmatprep.subr.bf16.mxu0 0
      %2169 = vmatpush1.bf16.msra.mxu0 %v2160
      %2170 = vmatprep.subr.bf16.mxu0 0
      %2171 = vmatpush1.bf16.msra.mxu0 0
      %2172 = vmatprep.subr.bf16.mxu0 0
      %2173 = vmatpush1.bf16.msra.mxu0 0
      %2174 = vmatprep.subr.bf16.mxu0 0
      %2175 = vmatpush1.bf16.msra.mxu0 0
      %2176 = vmatprep.subr.bf16.mxu0 0
      %2177 = vmatpush1.bf16.msra.mxu0 0
      %2178 = vmatprep.subr.bf16.mxu0 0
      %2179 = vmatpush1.bf16.msra.mxu0 0
      %2180 = vmatprep.subr.bf16.mxu0 0
      %2181 = vmatpush1.bf16.msra.mxu0 0
      %2182 = vmatprep.subr.bf16.mxu0 0
      %2183 = vmatpush1.bf16.msra.mxu0 0
      %2184 = vmatprep.subr.bf16.mxu0 0
      %2185 = vmatpush1.bf16.msra.mxu0 0
      %2186 = vmatprep.subr.bf16.mxu0 0
      %2187 = vmatpush1.bf16.msra.mxu0 0
      %2188 = vmatprep.subr.bf16.mxu0 0
      %2189 = vmatpush1.bf16.msra.mxu0 0
      %2190 = vmatprep.subr.bf16.mxu0 0
      %2191 = vmatpush1.bf16.msra.mxu0 0
      %2192 = vmatprep.subr.bf16.mxu0 0
      %2193 = vmatpush1.bf16.msra.mxu0 0
      %2194 = vmatprep.subr.bf16.mxu0 0
      %2195 = vmatpush1.bf16.msra.mxu0 0
      %2196 = vmatprep.subr.bf16.mxu0 0
      %2197 = vmatpush1.bf16.msra.mxu0 0
      %2198 = vmatprep.mubr.bf16.mxu0 0
      %2199 = vmatmul.mubr.bf16.gmra.mrb[0].mxu0 %v2164
      %v2200 = vpop.f32.mrb[0].mxu0
      %v2201 = vadd.f32 %v2149, %v2200
      %v2202 = vpop.f32.mrb[0].mxu0
      %v2203 = vpop.f32.mrb[0].mxu0
      %v2204 = vadd.f32 %v2149, %v2203
      %v2205 = vpop.f32.mrb[0].mxu0
      %2206 = vdwg.mxu0
      %v2207 = vmax.f32 %v2201, 0.0
      %v2208 = vmax.f32 %v2204, 0.0
      %v2209 = vpack.c.bf16 %v2208, %v2207
      %v2211 = vlaneseq
      %v2212 = vshrl.u32 %v2211, 7
      %v2213 = vsub.s32 0, %v2212
      %v2214 = vrot.slane %v985, %v2213
      %v2224 = vunpack.c.l.b16 %v977
      %v2225 = vunpack.c.l.b16 %v978
      %v2226 = vunpack.c.l.b16 %v979
      %v2227 = vunpack.c.l.b16 %v980
      %v2228 = vunpack.c.l.b16 %v981
      %v2229 = vunpack.c.l.b16 %v982
      %v2230 = vunpack.c.l.b16 %v983
      %v2231 = vunpack.c.l.b16 %v984
      %v2232 = vpack.c.b16 %v2225, %v2224
      %v2233 = vpack.c.b16 %v2227, %v2226
      %v2234 = vpack.c.b16 %v2229, %v2228
      %v2235 = vpack.c.b16 %v2231, %v2230
      %vm2240 = vcmask 523264
      %v2242 = vsel %vm2240, %v2209, 0
      %2244 = vmatprep.subr.bf16.mxu0 0
      %2245 = vmatpush1.bf16.msra.mxu0 %v2232
      %2246 = vmatprep.subr.bf16.mxu0 0
      %2247 = vmatpush1.bf16.msra.mxu0 %v2233
      %2248 = vmatprep.subr.bf16.mxu0 0
      %2249 = vmatpush1.bf16.msra.mxu0 %v2234
      %2250 = vmatprep.subr.bf16.mxu0 0
      %2251 = vmatpush1.bf16.msra.mxu0 %v2235
      %2252 = vmatprep.subr.bf16.mxu0 0
      %2253 = vmatpush1.bf16.msra.mxu0 0
      %2254 = vmatprep.subr.bf16.mxu0 0
      %2255 = vmatpush1.bf16.msra.mxu0 0
      %2256 = vmatprep.subr.bf16.mxu0 0
      %2257 = vmatpush1.bf16.msra.mxu0 0
      %2258 = vmatprep.subr.bf16.mxu0 0
      %2259 = vmatpush1.bf16.msra.mxu0 0
      %2260 = vmatprep.subr.bf16.mxu0 0
      %2261 = vmatpush1.bf16.msra.mxu0 0
      %2262 = vmatprep.subr.bf16.mxu0 0
      %2263 = vmatpush1.bf16.msra.mxu0 0
      %2264 = vmatprep.subr.bf16.mxu0 0
      %2265 = vmatpush1.bf16.msra.mxu0 0
      %2266 = vmatprep.subr.bf16.mxu0 0
      %2267 = vmatpush1.bf16.msra.mxu0 0
      %2268 = vmatprep.subr.bf16.mxu0 0
      %2269 = vmatpush1.bf16.msra.mxu0 0
      %2270 = vmatprep.subr.bf16.mxu0 0
      %2271 = vmatpush1.bf16.msra.mxu0 0
      %2272 = vmatprep.subr.bf16.mxu0 0
      %2273 = vmatpush1.bf16.msra.mxu0 0
      %2274 = vmatprep.subr.bf16.mxu0 0
      %2275 = vmatpush1.bf16.msra.mxu0 0
      %2276 = vmatprep.mubr.bf16.mxu0 0
      %2277 = vmatmul.mubr.bf16.gmra.mrb[0].mxu0 %v2242
      %v2278 = vpop.f32.mrb[0].mxu0
      %v2279 = vadd.f32 %v2214, %v2278
      %v2280 = vpop.f32.mrb[0].mxu0
      %v2281 = vpop.f32.mrb[0].mxu0
      %v2282 = vadd.f32 %v2214, %v2281
      %v2283 = vpop.f32.mrb[0].mxu0
      %2284 = vdwg.mxu0
      %v2285 = vadd.f32 %v2142, %v2279
      %v2286 = vadd.f32 %v2143, %v2282
      %v2287 = vsel %vm1049, %v2285, 0.0
      %2288 = vadd.xlane.f32.xlu0 %v2287
      %v2289 = vpop.xlane.xlu0 %2288
      %v2290 = vsel %vm1049, %v2286, 0.0
      %2291 = vadd.xlane.f32.xlu0 %v2290
      %v2292 = vpop.xlane.xlu0 %2291
      %v2293 = vmul.f32 %v2289, %v2107
      %v2294 = vmul.f32 %v2292, %v2107
      %v2295 = vsub.f32 %v2285, %v2293
      %v2296 = vsub.f32 %v2286, %v2294
      %v2297 = vmul.f32 %v2295, %v2295
      %v2298 = vmul.f32 %v2296, %v2296
      %v2299 = vsel %vm1049, %v2297, 0.0
      %2300 = vadd.xlane.f32.xlu0 %v2299
      %v2301 = vpop.xlane.xlu0 %2300
      %v2302 = vsel %vm1049, %v2298, 0.0
      %2303 = vadd.xlane.f32.xlu0 %v2302
      %v2304 = vpop.xlane.xlu0 %2303
      %v2305 = vmul.f32 %v2301, %v2107
      %v2306 = vmul.f32 %v2304, %v2107
      %v2307 = vadd.f32 %v2305, 1e-05
      %v2308 = vadd.f32 %v2306, 1e-05
      %v2309 = vrsqrt.pop %v2307
      %v2310 = vrsqrt.pop %v2308
      %v2311 = vmul.f32 %v2295, %v2309
      %v2312 = vmul.f32 %v2296, %v2310
      %v2314 = vlaneseq
      %v2315 = vshrl.u32 %v2314, 7
      %v2316 = vsub.s32 0, %v2315
      %v2317 = vrot.slane %v986, %v2316
      %v2319 = vmul.f32 %v2311, %v2317
      %v2320 = vmul.f32 %v2312, %v2317
      %v2322 = vlaneseq
      %v2323 = vshrl.u32 %v2322, 7
      %v2324 = vsub.s32 0, %v2323
      %v2325 = vrot.slane %v987, %v2324
      %v2327 = vadd.f32 %v2319, %v2325
      %v2328 = vadd.f32 %v2320, %v2325
      %v2329 = vpack.c.bf16 %v2328, %v2327
      %v2331 = vsel %vm1049, %v2329, 0
      %2333 = vmatprep.subr.bf16.mxu0 0
      %2334 = vmatpush1.bf16.msra.mxu0 %v1045
      %2335 = vmatprep.subr.bf16.mxu0 0
      %2336 = vmatpush1.bf16.msra.mxu0 %v1046
      %2337 = vmatprep.subr.bf16.mxu0 0
      %2338 = vmatpush1.bf16.msra.mxu0 0
      %2339 = vmatprep.subr.bf16.mxu0 0
      %2340 = vmatpush1.bf16.msra.mxu0 0
      %2341 = vmatprep.subr.bf16.mxu0 0
      %2342 = vmatpush1.bf16.msra.mxu0 0
      %2343 = vmatprep.subr.bf16.mxu0 0
      %2344 = vmatpush1.bf16.msra.mxu0 0
      %2345 = vmatprep.subr.bf16.mxu0 0
      %2346 = vmatpush1.bf16.msra.mxu0 0
      %2347 = vmatprep.subr.bf16.mxu0 0
      %2348 = vmatpush1.bf16.msra.mxu0 0
      %2349 = vmatprep.subr.bf16.mxu0 0
      %2350 = vmatpush1.bf16.msra.mxu0 0
      %2351 = vmatprep.subr.bf16.mxu0 0
      %2352 = vmatpush1.bf16.msra.mxu0 0
      %2353 = vmatprep.subr.bf16.mxu0 0
      %2354 = vmatpush1.bf16.msra.mxu0 0
      %2355 = vmatprep.subr.bf16.mxu0 0
      %2356 = vmatpush1.bf16.msra.mxu0 0
      %2357 = vmatprep.subr.bf16.mxu0 0
      %2358 = vmatpush1.bf16.msra.mxu0 0
      %2359 = vmatprep.subr.bf16.mxu0 0
      %2360 = vmatpush1.bf16.msra.mxu0 0
      %2361 = vmatprep.subr.bf16.mxu0 0
      %2362 = vmatpush1.bf16.msra.mxu0 0
      %2363 = vmatprep.subr.bf16.mxu0 0
      %2364 = vmatpush1.bf16.msra.mxu0 0
      %2365 = vmatprep.mubr.bf16.mxu0 0
      %2366 = vmatmul.mubr.bf16.gmra.mrb[0].mxu0 %v2331
      %v2367 = vpop.f32.mrb[0].mxu0
      %v2368 = vadd.f32 %v1035, %v2367
      %v2369 = vpop.f32.mrb[0].mxu0
      %v2370 = vpop.f32.mrb[0].mxu0
      %v2371 = vadd.f32 %v1035, %v2370
      %v2372 = vpop.f32.mrb[0].mxu0
      %2373 = vdwg.mxu0
      %2376 = vrot.lane.b32.xlu0 %v2368, 96
      %v2377 = vpop.permute.xlu0 %2376
      %2378 = vrot.lane.b32.xlu0 %v2371, 96
      %v2379 = vpop.permute.xlu0 %2378
      %v2380 = vsel %vm1100, %v2368, 0
      %v2382 = vsel %vm1100, %v2371, 0
      %v2384 = vsel %vm1100, %v2377, 0
      %v2386 = vsel %vm1100, %v2379, 0
      %2388 = vmatprep.subr.mxu0 0.0
      %2389 = vmatpush1.xpose.msra.mxu0 %v2384
      %2390 = vmatprep.subr.mxu0 0.0
      %2391 = vmatpush1.xpose.msra.mxu0 %v2386
      %2392 = vmatprep.subr.mxu0 0.0
      %2393 = vmatpush1.xpose.msra.mxu0 0.0
      %2394 = vmatprep.subr.mxu0 0.0
      %2395 = vmatpush1.xpose.msra.mxu0 0.0
      %2396 = vmatprep.subr.mxu0 0.0
      %2397 = vmatpush1.xpose.msra.mxu0 0.0
      %2398 = vmatprep.subr.mxu0 0.0
      %2399 = vmatpush1.xpose.msra.mxu0 0.0
      %2400 = vmatprep.subr.mxu0 0.0
      %2401 = vmatpush1.xpose.msra.mxu0 0.0
      %2402 = vmatprep.subr.mxu0 0.0
      %2403 = vmatpush1.xpose.msra.mxu0 0.0
      %2404 = vmatprep.subr.mxu0 0.0
      %2405 = vmatpush1.xpose.msra.mxu0 0.0
      %2406 = vmatprep.subr.mxu0 0.0
      %2407 = vmatpush1.xpose.msra.mxu0 0.0
      %2408 = vmatprep.subr.mxu0 0.0
      %2409 = vmatpush1.xpose.msra.mxu0 0.0
      %2410 = vmatprep.subr.mxu0 0.0
      %2411 = vmatpush1.xpose.msra.mxu0 0.0
      %2412 = vmatprep.subr.mxu0 0.0
      %2413 = vmatpush1.xpose.msra.mxu0 0.0
      %2414 = vmatprep.subr.mxu0 0.0
      %2415 = vmatpush1.xpose.msra.mxu0 0.0
      %2416 = vmatprep.subr.mxu0 0.0
      %2417 = vmatpush1.xpose.msra.mxu0 0.0
      %2418 = vmatprep.subr.mxu0 0.0
      %2419 = vmatpush1.xpose.msra.mxu0 0.0
      %2420 = vmatprep.subr.mxu0 0.0
      %2421 = vmatpush1.xpose.msra.mxu0 0.0
      %2422 = vmatprep.subr.mxu0 0.0
      %2423 = vmatpush1.xpose.msra.mxu0 0.0
      %2424 = vmatprep.subr.mxu0 0.0
      %2425 = vmatpush1.xpose.msra.mxu0 0.0
      %2426 = vmatprep.subr.mxu0 0.0
      %2427 = vmatpush1.xpose.msra.mxu0 0.0
      %2428 = vmatprep.subr.mxu0 0.0
      %2429 = vmatpush1.xpose.msra.mxu0 0.0
      %2430 = vmatprep.subr.mxu0 0.0
      %2431 = vmatpush1.xpose.msra.mxu0 0.0
      %2432 = vmatprep.subr.mxu0 0.0
      %2433 = vmatpush1.xpose.msra.mxu0 0.0
      %2434 = vmatprep.subr.mxu0 0.0
      %2435 = vmatpush1.xpose.msra.mxu0 0.0
      %2436 = vmatprep.subr.mxu0 0.0
      %2437 = vmatpush1.xpose.msra.mxu0 0.0
      %2438 = vmatprep.subr.mxu0 0.0
      %2439 = vmatpush1.xpose.msra.mxu0 0.0
      %2440 = vmatprep.subr.mxu0 0.0
      %2441 = vmatpush1.xpose.msra.mxu0 0.0
      %2442 = vmatprep.subr.mxu0 0.0
      %2443 = vmatpush1.xpose.msra.mxu0 0.0
      %2444 = vmatprep.subr.mxu0 0.0
      %2445 = vmatpush1.xpose.msra.mxu0 0.0
      %2446 = vmatprep.subr.mxu0 0.0
      %2447 = vmatpush1.xpose.msra.mxu0 0.0
      %2448 = vmatprep.subr.mxu0 0.0
      %2449 = vmatpush1.xpose.msra.mxu0 0.0
      %2450 = vmatprep.subr.mxu0 0.0
      %2451 = vmatpush1.xpose.msra.mxu0 0.0
      %2452 = vmatprep.mubr.f32.mxu0 0.0
      %2453 = vmatmul.mubr.f32.gmra.mrb[0].mxu0 %v2380
      %v2454 = vpop.f32.mrb[0].mxu0
      %v2455 = vadd.f32 0.0, %v2454
      %v2456 = vpop.f32.mrb[0].mxu0
      %2457 = vmatprep.mubr.f32.mxu0 0.0
      %2458 = vmatmul.mubr.f32.gmra.mrb[0].mxu0 %v2382
      %v2459 = vpop.f32.mrb[0].mxu0
      %v2460 = vadd.f32 0.0, %v2459
      %v2461 = vpop.f32.mrb[0].mxu0
      %2462 = vdwg.mxu0
      %v2463 = vsel %vm1184, %v2455, -inf
      %2464 = vmax.xlane.f32.xlu0 %v2463
      %v2465 = vpop.xlane.xlu0 %2464
      %v2466 = vsel %vm1184, %v2460, -inf
      %2467 = vmax.xlane.f32.xlu0 %v2466
      %v2468 = vpop.xlane.xlu0 %2467
      %v2469 = vsub.f32 %v2455, %v2465
      %v2470 = vsub.f32 %v2460, %v2468
      %v2471 = vmul.f32 %v2469, 1.442695
      %v2472 = vpow.pop %v2471
      %v2473 = vmul.f32 %v2470, 1.442695
      %v2474 = vpow.pop %v2473
      %v2475 = vsel %vm1184, %v2472, 0.0
      %2476 = vadd.xlane.f32.xlu0 %v2475
      %v2477 = vpop.xlane.xlu0 %2476
      %v2478 = vsel %vm1184, %v2474, 0.0
      %2479 = vadd.xlane.f32.xlu0 %v2478
      %v2480 = vpop.xlane.xlu0 %2479
      %v2481 = vrcp.pop %v2477
      %v2482 = vrcp.pop %v2480
      %v2483 = vmul.f32 %v2472, %v2481
      %v2484 = vmul.f32 %v2474, %v2482
      %2485 = vrot.lane.b32.xlu0 %v2368, 64
      %v2486 = vpop.permute.xlu0 %2485
      %2487 = vrot.lane.b32.xlu0 %v2371, 64
      %v2488 = vpop.permute.xlu0 %2487
      %v2492 = vsel %vm1184, %v2483, 0
      %v2495 = vsel %vm1184, %v2484, 0
      %2497 = vmatprep.subr.mxu0 0.0
      %2498 = vmatpush1.msra.mxu0 %v2486
      %2499 = vmatprep.subr.mxu0 0.0
      %2500 = vmatpush1.msra.mxu0 %v2488
      %2501 = vmatprep.subr.mxu0 0.0
      %2502 = vmatpush1.msra.mxu0 0.0
      %2503 = vmatprep.subr.mxu0 0.0
      %2504 = vmatpush1.msra.mxu0 0.0
      %2505 = vmatprep.subr.mxu0 0.0
      %2506 = vmatpush1.msra.mxu0 0.0
      %2507 = vmatprep.subr.mxu0 0.0
      %2508 = vmatpush1.msra.mxu0 0.0
      %2509 = vmatprep.subr.mxu0 0.0
      %2510 = vmatpush1.msra.mxu0 0.0
      %2511 = vmatprep.subr.mxu0 0.0
      %2512 = vmatpush1.msra.mxu0 0.0
      %2513 = vmatprep.subr.mxu0 0.0
      %2514 = vmatpush1.msra.mxu0 0.0
      %2515 = vmatprep.subr.mxu0 0.0
      %2516 = vmatpush1.msra.mxu0 0.0
      %2517 = vmatprep.subr.mxu0 0.0
      %2518 = vmatpush1.msra.mxu0 0.0
      %2519 = vmatprep.subr.mxu0 0.0
      %2520 = vmatpush1.msra.mxu0 0.0
      %2521 = vmatprep.subr.mxu0 0.0
      %2522 = vmatpush1.msra.mxu0 0.0
      %2523 = vmatprep.subr.mxu0 0.0
      %2524 = vmatpush1.msra.mxu0 0.0
      %2525 = vmatprep.subr.mxu0 0.0
      %2526 = vmatpush1.msra.mxu0 0.0
      %2527 = vmatprep.subr.mxu0 0.0
      %2528 = vmatpush1.msra.mxu0 0.0
      %2529 = vmatprep.subr.mxu0 0.0
      %2530 = vmatpush1.msra.mxu0 0.0
      %2531 = vmatprep.subr.mxu0 0.0
      %2532 = vmatpush1.msra.mxu0 0.0
      %2533 = vmatprep.subr.mxu0 0.0
      %2534 = vmatpush1.msra.mxu0 0.0
      %2535 = vmatprep.subr.mxu0 0.0
      %2536 = vmatpush1.msra.mxu0 0.0
      %2537 = vmatprep.subr.mxu0 0.0
      %2538 = vmatpush1.msra.mxu0 0.0
      %2539 = vmatprep.subr.mxu0 0.0
      %2540 = vmatpush1.msra.mxu0 0.0
      %2541 = vmatprep.subr.mxu0 0.0
      %2542 = vmatpush1.msra.mxu0 0.0
      %2543 = vmatprep.subr.mxu0 0.0
      %2544 = vmatpush1.msra.mxu0 0.0
      %2545 = vmatprep.subr.mxu0 0.0
      %2546 = vmatpush1.msra.mxu0 0.0
      %2547 = vmatprep.subr.mxu0 0.0
      %2548 = vmatpush1.msra.mxu0 0.0
      %2549 = vmatprep.subr.mxu0 0.0
      %2550 = vmatpush1.msra.mxu0 0.0
      %2551 = vmatprep.subr.mxu0 0.0
      %2552 = vmatpush1.msra.mxu0 0.0
      %2553 = vmatprep.subr.mxu0 0.0
      %2554 = vmatpush1.msra.mxu0 0.0
      %2555 = vmatprep.subr.mxu0 0.0
      %2556 = vmatpush1.msra.mxu0 0.0
      %2557 = vmatprep.subr.mxu0 0.0
      %2558 = vmatpush1.msra.mxu0 0.0
      %2559 = vmatprep.subr.mxu0 0.0
      %2560 = vmatpush1.msra.mxu0 0.0
      %2561 = vmatprep.mubr.f32.mxu0 0.0
      %2562 = vmatmul.mubr.f32.gmra.mrb[0].mxu0 %v2492
      %v2563 = vpop.f32.mrb[0].mxu0
      %v2564 = vadd.f32 0.0, %v2563
      %v2565 = vpop.f32.mrb[0].mxu0
      %2566 = vmatprep.mubr.f32.mxu0 0.0
      %2567 = vmatmul.mubr.f32.gmra.mrb[0].mxu0 %v2495
      %v2568 = vpop.f32.mrb[0].mxu0
      %v2569 = vadd.f32 0.0, %v2568
      %v2570 = vpop.f32.mrb[0].mxu0
      %2571 = vdwg.mxu0
      %v2572 = vpack.c.bf16 %v2569, %v2564
      %2573 = vrot.lane.b32.xlu0 %v2368, 120
      %v2574 = vpop.permute.xlu0 %2573
      %2575 = vrot.lane.b32.xlu0 %v2371, 120
      %v2576 = vpop.permute.xlu0 %2575
      %2577 = vrot.lane.b32.xlu0 %v2368, 88
      %v2578 = vpop.permute.xlu0 %2577
      %2579 = vrot.lane.b32.xlu0 %v2371, 88
      %v2580 = vpop.permute.xlu0 %2579
      %v2581 = vsel %vm1100, %v2574, 0
      %v2583 = vsel %vm1100, %v2576, 0
      %v2585 = vsel %vm1100, %v2578, 0
      %v2587 = vsel %vm1100, %v2580, 0
      %2589 = vmatprep.subr.mxu0 0.0
      %2590 = vmatpush1.xpose.msra.mxu0 %v2585
      %2591 = vmatprep.subr.mxu0 0.0
      %2592 = vmatpush1.xpose.msra.mxu0 %v2587
      %2593 = vmatprep.subr.mxu0 0.0
      %2594 = vmatpush1.xpose.msra.mxu0 0.0
      %2595 = vmatprep.subr.mxu0 0.0
      %2596 = vmatpush1.xpose.msra.mxu0 0.0
      %2597 = vmatprep.subr.mxu0 0.0
      %2598 = vmatpush1.xpose.msra.mxu0 0.0
      %2599 = vmatprep.subr.mxu0 0.0
      %2600 = vmatpush1.xpose.msra.mxu0 0.0
      %2601 = vmatprep.subr.mxu0 0.0
      %2602 = vmatpush1.xpose.msra.mxu0 0.0
      %2603 = vmatprep.subr.mxu0 0.0
      %2604 = vmatpush1.xpose.msra.mxu0 0.0
      %2605 = vmatprep.subr.mxu0 0.0
      %2606 = vmatpush1.xpose.msra.mxu0 0.0
      %2607 = vmatprep.subr.mxu0 0.0
      %2608 = vmatpush1.xpose.msra.mxu0 0.0
      %2609 = vmatprep.subr.mxu0 0.0
      %2610 = vmatpush1.xpose.msra.mxu0 0.0
      %2611 = vmatprep.subr.mxu0 0.0
      %2612 = vmatpush1.xpose.msra.mxu0 0.0
      %2613 = vmatprep.subr.mxu0 0.0
      %2614 = vmatpush1.xpose.msra.mxu0 0.0
      %2615 = vmatprep.subr.mxu0 0.0
      %2616 = vmatpush1.xpose.msra.mxu0 0.0
      %2617 = vmatprep.subr.mxu0 0.0
      %2618 = vmatpush1.xpose.msra.mxu0 0.0
      %2619 = vmatprep.subr.mxu0 0.0
      %2620 = vmatpush1.xpose.msra.mxu0 0.0
      %2621 = vmatprep.subr.mxu0 0.0
      %2622 = vmatpush1.xpose.msra.mxu0 0.0
      %2623 = vmatprep.subr.mxu0 0.0
      %2624 = vmatpush1.xpose.msra.mxu0 0.0
      %2625 = vmatprep.subr.mxu0 0.0
      %2626 = vmatpush1.xpose.msra.mxu0 0.0
      %2627 = vmatprep.subr.mxu0 0.0
      %2628 = vmatpush1.xpose.msra.mxu0 0.0
      %2629 = vmatprep.subr.mxu0 0.0
      %2630 = vmatpush1.xpose.msra.mxu0 0.0
      %2631 = vmatprep.subr.mxu0 0.0
      %2632 = vmatpush1.xpose.msra.mxu0 0.0
      %2633 = vmatprep.subr.mxu0 0.0
      %2634 = vmatpush1.xpose.msra.mxu0 0.0
      %2635 = vmatprep.subr.mxu0 0.0
      %2636 = vmatpush1.xpose.msra.mxu0 0.0
      %2637 = vmatprep.subr.mxu0 0.0
      %2638 = vmatpush1.xpose.msra.mxu0 0.0
      %2639 = vmatprep.subr.mxu0 0.0
      %2640 = vmatpush1.xpose.msra.mxu0 0.0
      %2641 = vmatprep.subr.mxu0 0.0
      %2642 = vmatpush1.xpose.msra.mxu0 0.0
      %2643 = vmatprep.subr.mxu0 0.0
      %2644 = vmatpush1.xpose.msra.mxu0 0.0
      %2645 = vmatprep.subr.mxu0 0.0
      %2646 = vmatpush1.xpose.msra.mxu0 0.0
      %2647 = vmatprep.subr.mxu0 0.0
      %2648 = vmatpush1.xpose.msra.mxu0 0.0
      %2649 = vmatprep.subr.mxu0 0.0
      %2650 = vmatpush1.xpose.msra.mxu0 0.0
      %2651 = vmatprep.subr.mxu0 0.0
      %2652 = vmatpush1.xpose.msra.mxu0 0.0
      %2653 = vmatprep.mubr.f32.mxu0 0.0
      %2654 = vmatmul.mubr.f32.gmra.mrb[0].mxu0 %v2581
      %v2655 = vpop.f32.mrb[0].mxu0
      %v2656 = vadd.f32 0.0, %v2655
      %v2657 = vpop.f32.mrb[0].mxu0
      %2658 = vmatprep.mubr.f32.mxu0 0.0
      %2659 = vmatmul.mubr.f32.gmra.mrb[0].mxu0 %v2583
      %v2660 = vpop.f32.mrb[0].mxu0
      %v2661 = vadd.f32 0.0, %v2660
      %v2662 = vpop.f32.mrb[0].mxu0
      %2663 = vdwg.mxu0
      %v2664 = vsel %vm1184, %v2656, -inf
      %2665 = vmax.xlane.f32.xlu0 %v2664
      %v2666 = vpop.xlane.xlu0 %2665
      %v2667 = vsel %vm1184, %v2661, -inf
      %2668 = vmax.xlane.f32.xlu0 %v2667
      %v2669 = vpop.xlane.xlu0 %2668
      %v2670 = vsub.f32 %v2656, %v2666
      %v2671 = vsub.f32 %v2661, %v2669
      %v2672 = vmul.f32 %v2670, 1.442695
      %v2673 = vpow.pop %v2672
      %v2674 = vmul.f32 %v2671, 1.442695
      %v2675 = vpow.pop %v2674
      %v2676 = vsel %vm1184, %v2673, 0.0
      %2677 = vadd.xlane.f32.xlu0 %v2676
      %v2678 = vpop.xlane.xlu0 %2677
      %v2679 = vsel %vm1184, %v2675, 0.0
      %2680 = vadd.xlane.f32.xlu0 %v2679
      %v2681 = vpop.xlane.xlu0 %2680
      %v2682 = vrcp.pop %v2678
      %v2683 = vrcp.pop %v2681
      %v2684 = vmul.f32 %v2673, %v2682
      %v2685 = vmul.f32 %v2675, %v2683
      %2686 = vrot.lane.b32.xlu0 %v2368, 56
      %v2687 = vpop.permute.xlu0 %2686
      %2688 = vrot.lane.b32.xlu0 %v2371, 56
      %v2689 = vpop.permute.xlu0 %2688
      %v2693 = vsel %vm1184, %v2684, 0
      %v2696 = vsel %vm1184, %v2685, 0
      %2698 = vmatprep.subr.mxu0 0.0
      %2699 = vmatpush1.msra.mxu0 %v2687
      %2700 = vmatprep.subr.mxu0 0.0
      %2701 = vmatpush1.msra.mxu0 %v2689
      %2702 = vmatprep.subr.mxu0 0.0
      %2703 = vmatpush1.msra.mxu0 0.0
      %2704 = vmatprep.subr.mxu0 0.0
      %2705 = vmatpush1.msra.mxu0 0.0
      %2706 = vmatprep.subr.mxu0 0.0
      %2707 = vmatpush1.msra.mxu0 0.0
      %2708 = vmatprep.subr.mxu0 0.0
      %2709 = vmatpush1.msra.mxu0 0.0
      %2710 = vmatprep.subr.mxu0 0.0
      %2711 = vmatpush1.msra.mxu0 0.0
      %2712 = vmatprep.subr.mxu0 0.0
      %2713 = vmatpush1.msra.mxu0 0.0
      %2714 = vmatprep.subr.mxu0 0.0
      %2715 = vmatpush1.msra.mxu0 0.0
      %2716 = vmatprep.subr.mxu0 0.0
      %2717 = vmatpush1.msra.mxu0 0.0
      %2718 = vmatprep.subr.mxu0 0.0
      %2719 = vmatpush1.msra.mxu0 0.0
      %2720 = vmatprep.subr.mxu0 0.0
      %2721 = vmatpush1.msra.mxu0 0.0
      %2722 = vmatprep.subr.mxu0 0.0
      %2723 = vmatpush1.msra.mxu0 0.0
      %2724 = vmatprep.subr.mxu0 0.0
      %2725 = vmatpush1.msra.mxu0 0.0
      %2726 = vmatprep.subr.mxu0 0.0
      %2727 = vmatpush1.msra.mxu0 0.0
      %2728 = vmatprep.subr.mxu0 0.0
      %2729 = vmatpush1.msra.mxu0 0.0
      %2730 = vmatprep.subr.mxu0 0.0
      %2731 = vmatpush1.msra.mxu0 0.0
      %2732 = vmatprep.subr.mxu0 0.0
      %2733 = vmatpush1.msra.mxu0 0.0
      %2734 = vmatprep.subr.mxu0 0.0
      %2735 = vmatpush1.msra.mxu0 0.0
      %2736 = vmatprep.subr.mxu0 0.0
      %2737 = vmatpush1.msra.mxu0 0.0
      %2738 = vmatprep.subr.mxu0 0.0
      %2739 = vmatpush1.msra.mxu0 0.0
      %2740 = vmatprep.subr.mxu0 0.0
      %2741 = vmatpush1.msra.mxu0 0.0
      %2742 = vmatprep.subr.mxu0 0.0
      %2743 = vmatpush1.msra.mxu0 0.0
      %2744 = vmatprep.subr.mxu0 0.0
      %2745 = vmatpush1.msra.mxu0 0.0
      %2746 = vmatprep.subr.mxu0 0.0
      %2747 = vmatpush1.msra.mxu0 0.0
      %2748 = vmatprep.subr.mxu0 0.0
      %2749 = vmatpush1.msra.mxu0 0.0
      %2750 = vmatprep.subr.mxu0 0.0
      %2751 = vmatpush1.msra.mxu0 0.0
      %2752 = vmatprep.subr.mxu0 0.0
      %2753 = vmatpush1.msra.mxu0 0.0
      %2754 = vmatprep.subr.mxu0 0.0
      %2755 = vmatpush1.msra.mxu0 0.0
      %2756 = vmatprep.subr.mxu0 0.0
      %2757 = vmatpush1.msra.mxu0 0.0
      %2758 = vmatprep.subr.mxu0 0.0
      %2759 = vmatpush1.msra.mxu0 0.0
      %2760 = vmatprep.subr.mxu0 0.0
      %2761 = vmatpush1.msra.mxu0 0.0
      %2762 = vmatprep.mubr.f32.mxu0 0.0
      %2763 = vmatmul.mubr.f32.gmra.mrb[0].mxu0 %v2693
      %v2764 = vpop.f32.mrb[0].mxu0
      %v2765 = vadd.f32 0.0, %v2764
      %v2766 = vpop.f32.mrb[0].mxu0
      %2767 = vmatprep.mubr.f32.mxu0 0.0
      %2768 = vmatmul.mubr.f32.gmra.mrb[0].mxu0 %v2696
      %v2769 = vpop.f32.mrb[0].mxu0
      %v2770 = vadd.f32 0.0, %v2769
      %v2771 = vpop.f32.mrb[0].mxu0
      %2772 = vdwg.mxu0
      %v2773 = vpack.c.bf16 %v2770, %v2765
      %v2775 = vsel %vm1100, %v2773, 0
      %2777 = vmatprep.subr.bf16.mxu0 0
      %2778 = vmatpush1.bf16.msra.mxu0 %v1501
      %2779 = vmatprep.subr.bf16.mxu0 0
      %2780 = vmatpush1.bf16.msra.mxu0 0
      %2781 = vmatprep.subr.bf16.mxu0 0
      %2782 = vmatpush1.bf16.msra.mxu0 0
      %2783 = vmatprep.subr.bf16.mxu0 0
      %2784 = vmatpush1.bf16.msra.mxu0 0
      %2785 = vmatprep.subr.bf16.mxu0 0
      %2786 = vmatpush1.bf16.msra.mxu0 0
      %2787 = vmatprep.subr.bf16.mxu0 0
      %2788 = vmatpush1.bf16.msra.mxu0 0
      %2789 = vmatprep.subr.bf16.mxu0 0
      %2790 = vmatpush1.bf16.msra.mxu0 0
      %2791 = vmatprep.subr.bf16.mxu0 0
      %2792 = vmatpush1.bf16.msra.mxu0 0
      %2793 = vmatprep.subr.bf16.mxu0 0
      %2794 = vmatpush1.bf16.msra.mxu0 0
      %2795 = vmatprep.subr.bf16.mxu0 0
      %2796 = vmatpush1.bf16.msra.mxu0 0
      %2797 = vmatprep.subr.bf16.mxu0 0
      %2798 = vmatpush1.bf16.msra.mxu0 0
      %2799 = vmatprep.subr.bf16.mxu0 0
      %2800 = vmatpush1.bf16.msra.mxu0 0
      %2801 = vmatprep.subr.bf16.mxu0 0
      %2802 = vmatpush1.bf16.msra.mxu0 0
      %2803 = vmatprep.subr.bf16.mxu0 0
      %2804 = vmatpush1.bf16.msra.mxu0 0
      %2805 = vmatprep.subr.bf16.mxu0 0
      %2806 = vmatpush1.bf16.msra.mxu0 0
      %2807 = vmatprep.subr.bf16.mxu0 0
      %2808 = vmatpush1.bf16.msra.mxu0 0
      %2809 = vmatprep.mubr.bf16.mxu0 0
      %2810 = vmatmul.mubr.bf16.gmra.mrb[0].mxu0 %v2775
      %v2811 = vpop.f32.mrb[0].mxu0
      %v2812 = vadd.f32 0.0, %v2811
      %v2813 = vpop.f32.mrb[0].mxu0
      %v2814 = vpop.f32.mrb[0].mxu0
      %v2815 = vadd.f32 0.0, %v2814
      %v2816 = vpop.f32.mrb[0].mxu0
      %2817 = vdwg.mxu0
      %v2819 = vsel %vm1100, %v2572, 0
      %2821 = vmatprep.subr.bf16.mxu0 0
      %2822 = vmatpush1.bf16.msra.mxu0 %v1548
      %2823 = vmatprep.subr.bf16.mxu0 0
      %2824 = vmatpush1.bf16.msra.mxu0 0
      %2825 = vmatprep.subr.bf16.mxu0 0
      %2826 = vmatpush1.bf16.msra.mxu0 0
      %2827 = vmatprep.subr.bf16.mxu0 0
      %2828 = vmatpush1.bf16.msra.mxu0 0
      %2829 = vmatprep.subr.bf16.mxu0 0
      %2830 = vmatpush1.bf16.msra.mxu0 0
      %2831 = vmatprep.subr.bf16.mxu0 0
      %2832 = vmatpush1.bf16.msra.mxu0 0
      %2833 = vmatprep.subr.bf16.mxu0 0
      %2834 = vmatpush1.bf16.msra.mxu0 0
      %2835 = vmatprep.subr.bf16.mxu0 0
      %2836 = vmatpush1.bf16.msra.mxu0 0
      %2837 = vmatprep.subr.bf16.mxu0 0
      %2838 = vmatpush1.bf16.msra.mxu0 0
      %2839 = vmatprep.subr.bf16.mxu0 0
      %2840 = vmatpush1.bf16.msra.mxu0 0
      %2841 = vmatprep.subr.bf16.mxu0 0
      %2842 = vmatpush1.bf16.msra.mxu0 0
      %2843 = vmatprep.subr.bf16.mxu0 0
      %2844 = vmatpush1.bf16.msra.mxu0 0
      %2845 = vmatprep.subr.bf16.mxu0 0
      %2846 = vmatpush1.bf16.msra.mxu0 0
      %2847 = vmatprep.subr.bf16.mxu0 0
      %2848 = vmatpush1.bf16.msra.mxu0 0
      %2849 = vmatprep.subr.bf16.mxu0 0
      %2850 = vmatpush1.bf16.msra.mxu0 0
      %2851 = vmatprep.subr.bf16.mxu0 0
      %2852 = vmatpush1.bf16.msra.mxu0 0
      %2853 = vmatprep.mubr.bf16.mxu0 0
      %2854 = vmatmul.mubr.bf16.gmra.mrb[0].mxu0 %v2819
      %v2855 = vpop.f32.mrb[0].mxu0
      %v2856 = vadd.f32 %v2812, %v2855
      %v2857 = vpop.f32.mrb[0].mxu0
      %v2858 = vpop.f32.mrb[0].mxu0
      %v2859 = vadd.f32 %v2815, %v2858
      %v2860 = vpop.f32.mrb[0].mxu0
      %2861 = vdwg.mxu0
      %2862 = vrot.lane.b32.xlu0 %v2368, 112
      %v2863 = vpop.permute.xlu0 %2862
      %2864 = vrot.lane.b32.xlu0 %v2371, 112
      %v2865 = vpop.permute.xlu0 %2864
      %2866 = vrot.lane.b32.xlu0 %v2368, 80
      %v2867 = vpop.permute.xlu0 %2866
      %2868 = vrot.lane.b32.xlu0 %v2371, 80
      %v2869 = vpop.permute.xlu0 %2868
      %v2870 = vsel %vm1100, %v2863, 0
      %v2872 = vsel %vm1100, %v2865, 0
      %v2874 = vsel %vm1100, %v2867, 0
      %v2876 = vsel %vm1100, %v2869, 0
      %2878 = vmatprep.subr.mxu0 0.0
      %2879 = vmatpush1.xpose.msra.mxu0 %v2874
      %2880 = vmatprep.subr.mxu0 0.0
      %2881 = vmatpush1.xpose.msra.mxu0 %v2876
      %2882 = vmatprep.subr.mxu0 0.0
      %2883 = vmatpush1.xpose.msra.mxu0 0.0
      %2884 = vmatprep.subr.mxu0 0.0
      %2885 = vmatpush1.xpose.msra.mxu0 0.0
      %2886 = vmatprep.subr.mxu0 0.0
      %2887 = vmatpush1.xpose.msra.mxu0 0.0
      %2888 = vmatprep.subr.mxu0 0.0
      %2889 = vmatpush1.xpose.msra.mxu0 0.0
      %2890 = vmatprep.subr.mxu0 0.0
      %2891 = vmatpush1.xpose.msra.mxu0 0.0
      %2892 = vmatprep.subr.mxu0 0.0
      %2893 = vmatpush1.xpose.msra.mxu0 0.0
      %2894 = vmatprep.subr.mxu0 0.0
      %2895 = vmatpush1.xpose.msra.mxu0 0.0
      %2896 = vmatprep.subr.mxu0 0.0
      %2897 = vmatpush1.xpose.msra.mxu0 0.0
      %2898 = vmatprep.subr.mxu0 0.0
      %2899 = vmatpush1.xpose.msra.mxu0 0.0
      %2900 = vmatprep.subr.mxu0 0.0
      %2901 = vmatpush1.xpose.msra.mxu0 0.0
      %2902 = vmatprep.subr.mxu0 0.0
      %2903 = vmatpush1.xpose.msra.mxu0 0.0
      %2904 = vmatprep.subr.mxu0 0.0
      %2905 = vmatpush1.xpose.msra.mxu0 0.0
      %2906 = vmatprep.subr.mxu0 0.0
      %2907 = vmatpush1.xpose.msra.mxu0 0.0
      %2908 = vmatprep.subr.mxu0 0.0
      %2909 = vmatpush1.xpose.msra.mxu0 0.0
      %2910 = vmatprep.subr.mxu0 0.0
      %2911 = vmatpush1.xpose.msra.mxu0 0.0
      %2912 = vmatprep.subr.mxu0 0.0
      %2913 = vmatpush1.xpose.msra.mxu0 0.0
      %2914 = vmatprep.subr.mxu0 0.0
      %2915 = vmatpush1.xpose.msra.mxu0 0.0
      %2916 = vmatprep.subr.mxu0 0.0
      %2917 = vmatpush1.xpose.msra.mxu0 0.0
      %2918 = vmatprep.subr.mxu0 0.0
      %2919 = vmatpush1.xpose.msra.mxu0 0.0
      %2920 = vmatprep.subr.mxu0 0.0
      %2921 = vmatpush1.xpose.msra.mxu0 0.0
      %2922 = vmatprep.subr.mxu0 0.0
      %2923 = vmatpush1.xpose.msra.mxu0 0.0
      %2924 = vmatprep.subr.mxu0 0.0
      %2925 = vmatpush1.xpose.msra.mxu0 0.0
      %2926 = vmatprep.subr.mxu0 0.0
      %2927 = vmatpush1.xpose.msra.mxu0 0.0
      %2928 = vmatprep.subr.mxu0 0.0
      %2929 = vmatpush1.xpose.msra.mxu0 0.0
      %2930 = vmatprep.subr.mxu0 0.0
      %2931 = vmatpush1.xpose.msra.mxu0 0.0
      %2932 = vmatprep.subr.mxu0 0.0
      %2933 = vmatpush1.xpose.msra.mxu0 0.0
      %2934 = vmatprep.subr.mxu0 0.0
      %2935 = vmatpush1.xpose.msra.mxu0 0.0
      %2936 = vmatprep.subr.mxu0 0.0
      %2937 = vmatpush1.xpose.msra.mxu0 0.0
      %2938 = vmatprep.subr.mxu0 0.0
      %2939 = vmatpush1.xpose.msra.mxu0 0.0
      %2940 = vmatprep.subr.mxu0 0.0
      %2941 = vmatpush1.xpose.msra.mxu0 0.0
      %2942 = vmatprep.mubr.f32.mxu0 0.0
      %2943 = vmatmul.mubr.f32.gmra.mrb[0].mxu0 %v2870
      %v2944 = vpop.f32.mrb[0].mxu0
      %v2945 = vadd.f32 0.0, %v2944
      %v2946 = vpop.f32.mrb[0].mxu0
      %2947 = vmatprep.mubr.f32.mxu0 0.0
      %2948 = vmatmul.mubr.f32.gmra.mrb[0].mxu0 %v2872
      %v2949 = vpop.f32.mrb[0].mxu0
      %v2950 = vadd.f32 0.0, %v2949
      %v2951 = vpop.f32.mrb[0].mxu0
      %2952 = vdwg.mxu0
      %v2953 = vsel %vm1184, %v2945, -inf
      %2954 = vmax.xlane.f32.xlu0 %v2953
      %v2955 = vpop.xlane.xlu0 %2954
      %v2956 = vsel %vm1184, %v2950, -inf
      %2957 = vmax.xlane.f32.xlu0 %v2956
      %v2958 = vpop.xlane.xlu0 %2957
      %v2959 = vsub.f32 %v2945, %v2955
      %v2960 = vsub.f32 %v2950, %v2958
      %v2961 = vmul.f32 %v2959, 1.442695
      %v2962 = vpow.pop %v2961
      %v2963 = vmul.f32 %v2960, 1.442695
      %v2964 = vpow.pop %v2963
      %v2965 = vsel %vm1184, %v2962, 0.0
      %2966 = vadd.xlane.f32.xlu0 %v2965
      %v2967 = vpop.xlane.xlu0 %2966
      %v2968 = vsel %vm1184, %v2964, 0.0
      %2969 = vadd.xlane.f32.xlu0 %v2968
      %v2970 = vpop.xlane.xlu0 %2969
      %v2971 = vrcp.pop %v2967
      %v2972 = vrcp.pop %v2970
      %v2973 = vmul.f32 %v2962, %v2971
      %v2974 = vmul.f32 %v2964, %v2972
      %2975 = vrot.lane.b32.xlu0 %v2368, 48
      %v2976 = vpop.permute.xlu0 %2975
      %2977 = vrot.lane.b32.xlu0 %v2371, 48
      %v2978 = vpop.permute.xlu0 %2977
      %v2982 = vsel %vm1184, %v2973, 0
      %v2985 = vsel %vm1184, %v2974, 0
      %2987 = vmatprep.subr.mxu0 0.0
      %2988 = vmatpush1.msra.mxu0 %v2976
      %2989 = vmatprep.subr.mxu0 0.0
      %2990 = vmatpush1.msra.mxu0 %v2978
      %2991 = vmatprep.subr.mxu0 0.0
      %2992 = vmatpush1.msra.mxu0 0.0
      %2993 = vmatprep.subr.mxu0 0.0
      %2994 = vmatpush1.msra.mxu0 0.0
      %2995 = vmatprep.subr.mxu0 0.0
      %2996 = vmatpush1.msra.mxu0 0.0
      %2997 = vmatprep.subr.mxu0 0.0
      %2998 = vmatpush1.msra.mxu0 0.0
      %2999 = vmatprep.subr.mxu0 0.0
      %3000 = vmatpush1.msra.mxu0 0.0
      %3001 = vmatprep.subr.mxu0 0.0
      %3002 = vmatpush1.msra.mxu0 0.0
      %3003 = vmatprep.subr.mxu0 0.0
      %3004 = vmatpush1.msra.mxu0 0.0
      %3005 = vmatprep.subr.mxu0 0.0
      %3006 = vmatpush1.msra.mxu0 0.0
      %3007 = vmatprep.subr.mxu0 0.0
      %3008 = vmatpush1.msra.mxu0 0.0
      %3009 = vmatprep.subr.mxu0 0.0
      %3010 = vmatpush1.msra.mxu0 0.0
      %3011 = vmatprep.subr.mxu0 0.0
      %3012 = vmatpush1.msra.mxu0 0.0
      %3013 = vmatprep.subr.mxu0 0.0
      %3014 = vmatpush1.msra.mxu0 0.0
      %3015 = vmatprep.subr.mxu0 0.0
      %3016 = vmatpush1.msra.mxu0 0.0
      %3017 = vmatprep.subr.mxu0 0.0
      %3018 = vmatpush1.msra.mxu0 0.0
      %3019 = vmatprep.subr.mxu0 0.0
      %3020 = vmatpush1.msra.mxu0 0.0
      %3021 = vmatprep.subr.mxu0 0.0
      %3022 = vmatpush1.msra.mxu0 0.0
      %3023 = vmatprep.subr.mxu0 0.0
      %3024 = vmatpush1.msra.mxu0 0.0
      %3025 = vmatprep.subr.mxu0 0.0
      %3026 = vmatpush1.msra.mxu0 0.0
      %3027 = vmatprep.subr.mxu0 0.0
      %3028 = vmatpush1.msra.mxu0 0.0
      %3029 = vmatprep.subr.mxu0 0.0
      %3030 = vmatpush1.msra.mxu0 0.0
      %3031 = vmatprep.subr.mxu0 0.0
      %3032 = vmatpush1.msra.mxu0 0.0
      %3033 = vmatprep.subr.mxu0 0.0
      %3034 = vmatpush1.msra.mxu0 0.0
      %3035 = vmatprep.subr.mxu0 0.0
      %3036 = vmatpush1.msra.mxu0 0.0
      %3037 = vmatprep.subr.mxu0 0.0
      %3038 = vmatpush1.msra.mxu0 0.0
      %3039 = vmatprep.subr.mxu0 0.0
      %3040 = vmatpush1.msra.mxu0 0.0
      %3041 = vmatprep.subr.mxu0 0.0
      %3042 = vmatpush1.msra.mxu0 0.0
      %3043 = vmatprep.subr.mxu0 0.0
      %3044 = vmatpush1.msra.mxu0 0.0
      %3045 = vmatprep.subr.mxu0 0.0
      %3046 = vmatpush1.msra.mxu0 0.0
      %3047 = vmatprep.subr.mxu0 0.0
      %3048 = vmatpush1.msra.mxu0 0.0
      %3049 = vmatprep.subr.mxu0 0.0
      %3050 = vmatpush1.msra.mxu0 0.0
      %3051 = vmatprep.mubr.f32.mxu0 0.0
      %3052 = vmatmul.mubr.f32.gmra.mrb[0].mxu0 %v2982
      %v3053 = vpop.f32.mrb[0].mxu0
      %v3054 = vadd.f32 0.0, %v3053
      %v3055 = vpop.f32.mrb[0].mxu0
      %3056 = vmatprep.mubr.f32.mxu0 0.0
      %3057 = vmatmul.mubr.f32.gmra.mrb[0].mxu0 %v2985
      %v3058 = vpop.f32.mrb[0].mxu0
      %v3059 = vadd.f32 0.0, %v3058
      %v3060 = vpop.f32.mrb[0].mxu0
      %3061 = vdwg.mxu0
      %v3062 = vpack.c.bf16 %v3059, %v3054
      %v3064 = vsel %vm1100, %v3062, 0
      %3066 = vmatprep.subr.bf16.mxu0 0
      %3067 = vmatpush1.bf16.msra.mxu0 %v1796
      %3068 = vmatprep.subr.bf16.mxu0 0
      %3069 = vmatpush1.bf16.msra.mxu0 0
      %3070 = vmatprep.subr.bf16.mxu0 0
      %3071 = vmatpush1.bf16.msra.mxu0 0
      %3072 = vmatprep.subr.bf16.mxu0 0
      %3073 = vmatpush1.bf16.msra.mxu0 0
      %3074 = vmatprep.subr.bf16.mxu0 0
      %3075 = vmatpush1.bf16.msra.mxu0 0
      %3076 = vmatprep.subr.bf16.mxu0 0
      %3077 = vmatpush1.bf16.msra.mxu0 0
      %3078 = vmatprep.subr.bf16.mxu0 0
      %3079 = vmatpush1.bf16.msra.mxu0 0
      %3080 = vmatprep.subr.bf16.mxu0 0
      %3081 = vmatpush1.bf16.msra.mxu0 0
      %3082 = vmatprep.subr.bf16.mxu0 0
      %3083 = vmatpush1.bf16.msra.mxu0 0
      %3084 = vmatprep.subr.bf16.mxu0 0
      %3085 = vmatpush1.bf16.msra.mxu0 0
      %3086 = vmatprep.subr.bf16.mxu0 0
      %3087 = vmatpush1.bf16.msra.mxu0 0
      %3088 = vmatprep.subr.bf16.mxu0 0
      %3089 = vmatpush1.bf16.msra.mxu0 0
      %3090 = vmatprep.subr.bf16.mxu0 0
      %3091 = vmatpush1.bf16.msra.mxu0 0
      %3092 = vmatprep.subr.bf16.mxu0 0
      %3093 = vmatpush1.bf16.msra.mxu0 0
      %3094 = vmatprep.subr.bf16.mxu0 0
      %3095 = vmatpush1.bf16.msra.mxu0 0
      %3096 = vmatprep.subr.bf16.mxu0 0
      %3097 = vmatpush1.bf16.msra.mxu0 0
      %3098 = vmatprep.mubr.bf16.mxu0 0
      %3099 = vmatmul.mubr.bf16.gmra.mrb[0].mxu0 %v3064
      %v3100 = vpop.f32.mrb[0].mxu0
      %v3101 = vadd.f32 0.0, %v3100
      %v3102 = vpop.f32.mrb[0].mxu0
      %v3103 = vpop.f32.mrb[0].mxu0
      %v3104 = vadd.f32 0.0, %v3103
      %v3105 = vpop.f32.mrb[0].mxu0
      %3106 = vdwg.mxu0
      %v3107 = vadd.f32 %v2856, %v3101
      %v3108 = vadd.f32 %v2859, %v3104
      %3109 = vrot.lane.b32.xlu0 %v2368, 104
      %v3110 = vpop.permute.xlu0 %3109
      %3111 = vrot.lane.b32.xlu0 %v2371, 104
      %v3112 = vpop.permute.xlu0 %3111
      %3113 = vrot.lane.b32.xlu0 %v2368, 72
      %v3114 = vpop.permute.xlu0 %3113
      %3115 = vrot.lane.b32.xlu0 %v2371, 72
      %v3116 = vpop.permute.xlu0 %3115
      %v3117 = vsel %vm1100, %v3110, 0
      %v3119 = vsel %vm1100, %v3112, 0
      %v3121 = vsel %vm1100, %v3114, 0
      %v3123 = vsel %vm1100, %v3116, 0
      %3125 = vmatprep.subr.mxu0 0.0
      %3126 = vmatpush1.xpose.msra.mxu0 %v3121
      %3127 = vmatprep.subr.mxu0 0.0
      %3128 = vmatpush1.xpose.msra.mxu0 %v3123
      %3129 = vmatprep.subr.mxu0 0.0
      %3130 = vmatpush1.xpose.msra.mxu0 0.0
      %3131 = vmatprep.subr.mxu0 0.0
      %3132 = vmatpush1.xpose.msra.mxu0 0.0
      %3133 = vmatprep.subr.mxu0 0.0
      %3134 = vmatpush1.xpose.msra.mxu0 0.0
      %3135 = vmatprep.subr.mxu0 0.0
      %3136 = vmatpush1.xpose.msra.mxu0 0.0
      %3137 = vmatprep.subr.mxu0 0.0
      %3138 = vmatpush1.xpose.msra.mxu0 0.0
      %3139 = vmatprep.subr.mxu0 0.0
      %3140 = vmatpush1.xpose.msra.mxu0 0.0
      %3141 = vmatprep.subr.mxu0 0.0
      %3142 = vmatpush1.xpose.msra.mxu0 0.0
      %3143 = vmatprep.subr.mxu0 0.0
      %3144 = vmatpush1.xpose.msra.mxu0 0.0
      %3145 = vmatprep.subr.mxu0 0.0
      %3146 = vmatpush1.xpose.msra.mxu0 0.0
      %3147 = vmatprep.subr.mxu0 0.0
      %3148 = vmatpush1.xpose.msra.mxu0 0.0
      %3149 = vmatprep.subr.mxu0 0.0
      %3150 = vmatpush1.xpose.msra.mxu0 0.0
      %3151 = vmatprep.subr.mxu0 0.0
      %3152 = vmatpush1.xpose.msra.mxu0 0.0
      %3153 = vmatprep.subr.mxu0 0.0
      %3154 = vmatpush1.xpose.msra.mxu0 0.0
      %3155 = vmatprep.subr.mxu0 0.0
      %3156 = vmatpush1.xpose.msra.mxu0 0.0
      %3157 = vmatprep.subr.mxu0 0.0
      %3158 = vmatpush1.xpose.msra.mxu0 0.0
      %3159 = vmatprep.subr.mxu0 0.0
      %3160 = vmatpush1.xpose.msra.mxu0 0.0
      %3161 = vmatprep.subr.mxu0 0.0
      %3162 = vmatpush1.xpose.msra.mxu0 0.0
      %3163 = vmatprep.subr.mxu0 0.0
      %3164 = vmatpush1.xpose.msra.mxu0 0.0
      %3165 = vmatprep.subr.mxu0 0.0
      %3166 = vmatpush1.xpose.msra.mxu0 0.0
      %3167 = vmatprep.subr.mxu0 0.0
      %3168 = vmatpush1.xpose.msra.mxu0 0.0
      %3169 = vmatprep.subr.mxu0 0.0
      %3170 = vmatpush1.xpose.msra.mxu0 0.0
      %3171 = vmatprep.subr.mxu0 0.0
      %3172 = vmatpush1.xpose.msra.mxu0 0.0
      %3173 = vmatprep.subr.mxu0 0.0
      %3174 = vmatpush1.xpose.msra.mxu0 0.0
      %3175 = vmatprep.subr.mxu0 0.0
      %3176 = vmatpush1.xpose.msra.mxu0 0.0
      %3177 = vmatprep.subr.mxu0 0.0
      %3178 = vmatpush1.xpose.msra.mxu0 0.0
      %3179 = vmatprep.subr.mxu0 0.0
      %3180 = vmatpush1.xpose.msra.mxu0 0.0
      %3181 = vmatprep.subr.mxu0 0.0
      %3182 = vmatpush1.xpose.msra.mxu0 0.0
      %3183 = vmatprep.subr.mxu0 0.0
      %3184 = vmatpush1.xpose.msra.mxu0 0.0
      %3185 = vmatprep.subr.mxu0 0.0
      %3186 = vmatpush1.xpose.msra.mxu0 0.0
      %3187 = vmatprep.subr.mxu0 0.0
      %3188 = vmatpush1.xpose.msra.mxu0 0.0
      %3189 = vmatprep.mubr.f32.mxu0 0.0
      %3190 = vmatmul.mubr.f32.gmra.mrb[0].mxu0 %v3117
      %v3191 = vpop.f32.mrb[0].mxu0
      %v3192 = vadd.f32 0.0, %v3191
      %v3193 = vpop.f32.mrb[0].mxu0
      %3194 = vmatprep.mubr.f32.mxu0 0.0
      %3195 = vmatmul.mubr.f32.gmra.mrb[0].mxu0 %v3119
      %v3196 = vpop.f32.mrb[0].mxu0
      %v3197 = vadd.f32 0.0, %v3196
      %v3198 = vpop.f32.mrb[0].mxu0
      %3199 = vdwg.mxu0
      %v3200 = vsel %vm1184, %v3192, -inf
      %3201 = vmax.xlane.f32.xlu0 %v3200
      %v3202 = vpop.xlane.xlu0 %3201
      %v3203 = vsel %vm1184, %v3197, -inf
      %3204 = vmax.xlane.f32.xlu0 %v3203
      %v3205 = vpop.xlane.xlu0 %3204
      %v3206 = vsub.f32 %v3192, %v3202
      %v3207 = vsub.f32 %v3197, %v3205
      %v3208 = vmul.f32 %v3206, 1.442695
      %v3209 = vpow.pop %v3208
      %v3210 = vmul.f32 %v3207, 1.442695
      %v3211 = vpow.pop %v3210
      %v3212 = vsel %vm1184, %v3209, 0.0
      %3213 = vadd.xlane.f32.xlu0 %v3212
      %v3214 = vpop.xlane.xlu0 %3213
      %v3215 = vsel %vm1184, %v3211, 0.0
      %3216 = vadd.xlane.f32.xlu0 %v3215
      %v3217 = vpop.xlane.xlu0 %3216
      %v3218 = vrcp.pop %v3214
      %v3219 = vrcp.pop %v3217
      %v3220 = vmul.f32 %v3209, %v3218
      %v3221 = vmul.f32 %v3211, %v3219
      %3222 = vrot.lane.b32.xlu0 %v2368, 40
      %v3223 = vpop.permute.xlu0 %3222
      %3224 = vrot.lane.b32.xlu0 %v2371, 40
      %v3225 = vpop.permute.xlu0 %3224
      %v3229 = vsel %vm1184, %v3220, 0
      %v3232 = vsel %vm1184, %v3221, 0
      %3234 = vmatprep.subr.mxu0 0.0
      %3235 = vmatpush1.msra.mxu0 %v3223
      %3236 = vmatprep.subr.mxu0 0.0
      %3237 = vmatpush1.msra.mxu0 %v3225
      %3238 = vmatprep.subr.mxu0 0.0
      %3239 = vmatpush1.msra.mxu0 0.0
      %3240 = vmatprep.subr.mxu0 0.0
      %3241 = vmatpush1.msra.mxu0 0.0
      %3242 = vmatprep.subr.mxu0 0.0
      %3243 = vmatpush1.msra.mxu0 0.0
      %3244 = vmatprep.subr.mxu0 0.0
      %3245 = vmatpush1.msra.mxu0 0.0
      %3246 = vmatprep.subr.mxu0 0.0
      %3247 = vmatpush1.msra.mxu0 0.0
      %3248 = vmatprep.subr.mxu0 0.0
      %3249 = vmatpush1.msra.mxu0 0.0
      %3250 = vmatprep.subr.mxu0 0.0
      %3251 = vmatpush1.msra.mxu0 0.0
      %3252 = vmatprep.subr.mxu0 0.0
      %3253 = vmatpush1.msra.mxu0 0.0
      %3254 = vmatprep.subr.mxu0 0.0
      %3255 = vmatpush1.msra.mxu0 0.0
      %3256 = vmatprep.subr.mxu0 0.0
      %3257 = vmatpush1.msra.mxu0 0.0
      %3258 = vmatprep.subr.mxu0 0.0
      %3259 = vmatpush1.msra.mxu0 0.0
      %3260 = vmatprep.subr.mxu0 0.0
      %3261 = vmatpush1.msra.mxu0 0.0
      %3262 = vmatprep.subr.mxu0 0.0
      %3263 = vmatpush1.msra.mxu0 0.0
      %3264 = vmatprep.subr.mxu0 0.0
      %3265 = vmatpush1.msra.mxu0 0.0
      %3266 = vmatprep.subr.mxu0 0.0
      %3267 = vmatpush1.msra.mxu0 0.0
      %3268 = vmatprep.subr.mxu0 0.0
      %3269 = vmatpush1.msra.mxu0 0.0
      %3270 = vmatprep.subr.mxu0 0.0
      %3271 = vmatpush1.msra.mxu0 0.0
      %3272 = vmatprep.subr.mxu0 0.0
      %3273 = vmatpush1.msra.mxu0 0.0
      %3274 = vmatprep.subr.mxu0 0.0
      %3275 = vmatpush1.msra.mxu0 0.0
      %3276 = vmatprep.subr.mxu0 0.0
      %3277 = vmatpush1.msra.mxu0 0.0
      %3278 = vmatprep.subr.mxu0 0.0
      %3279 = vmatpush1.msra.mxu0 0.0
      %3280 = vmatprep.subr.mxu0 0.0
      %3281 = vmatpush1.msra.mxu0 0.0
      %3282 = vmatprep.subr.mxu0 0.0
      %3283 = vmatpush1.msra.mxu0 0.0
      %3284 = vmatprep.subr.mxu0 0.0
      %3285 = vmatpush1.msra.mxu0 0.0
      %3286 = vmatprep.subr.mxu0 0.0
      %3287 = vmatpush1.msra.mxu0 0.0
      %3288 = vmatprep.subr.mxu0 0.0
      %3289 = vmatpush1.msra.mxu0 0.0
      %3290 = vmatprep.subr.mxu0 0.0
      %3291 = vmatpush1.msra.mxu0 0.0
      %3292 = vmatprep.subr.mxu0 0.0
      %3293 = vmatpush1.msra.mxu0 0.0
      %3294 = vmatprep.subr.mxu0 0.0
      %3295 = vmatpush1.msra.mxu0 0.0
      %3296 = vmatprep.subr.mxu0 0.0
      %3297 = vmatpush1.msra.mxu0 0.0
      %3298 = vmatprep.mubr.f32.mxu0 0.0
      %3299 = vmatmul.mubr.f32.gmra.mrb[0].mxu0 %v3229
      %v3300 = vpop.f32.mrb[0].mxu0
      %v3301 = vadd.f32 0.0, %v3300
      %v3302 = vpop.f32.mrb[0].mxu0
      %3303 = vmatprep.mubr.f32.mxu0 0.0
      %3304 = vmatmul.mubr.f32.gmra.mrb[0].mxu0 %v3232
      %v3305 = vpop.f32.mrb[0].mxu0
      %v3306 = vadd.f32 0.0, %v3305
      %v3307 = vpop.f32.mrb[0].mxu0
      %3308 = vdwg.mxu0
      %v3309 = vpack.c.bf16 %v3306, %v3301
      %v3311 = vsel %vm1100, %v3309, 0
      %3313 = vmatprep.subr.bf16.mxu0 0
      %3314 = vmatpush1.bf16.msra.mxu0 %v2046
      %3315 = vmatprep.subr.bf16.mxu0 0
      %3316 = vmatpush1.bf16.msra.mxu0 0
      %3317 = vmatprep.subr.bf16.mxu0 0
      %3318 = vmatpush1.bf16.msra.mxu0 0
      %3319 = vmatprep.subr.bf16.mxu0 0
      %3320 = vmatpush1.bf16.msra.mxu0 0
      %3321 = vmatprep.subr.bf16.mxu0 0
      %3322 = vmatpush1.bf16.msra.mxu0 0
      %3323 = vmatprep.subr.bf16.mxu0 0
      %3324 = vmatpush1.bf16.msra.mxu0 0
      %3325 = vmatprep.subr.bf16.mxu0 0
      %3326 = vmatpush1.bf16.msra.mxu0 0
      %3327 = vmatprep.subr.bf16.mxu0 0
      %3328 = vmatpush1.bf16.msra.mxu0 0
      %3329 = vmatprep.subr.bf16.mxu0 0
      %3330 = vmatpush1.bf16.msra.mxu0 0
      %3331 = vmatprep.subr.bf16.mxu0 0
      %3332 = vmatpush1.bf16.msra.mxu0 0
      %3333 = vmatprep.subr.bf16.mxu0 0
      %3334 = vmatpush1.bf16.msra.mxu0 0
      %3335 = vmatprep.subr.bf16.mxu0 0
      %3336 = vmatpush1.bf16.msra.mxu0 0
      %3337 = vmatprep.subr.bf16.mxu0 0
      %3338 = vmatpush1.bf16.msra.mxu0 0
      %3339 = vmatprep.subr.bf16.mxu0 0
      %3340 = vmatpush1.bf16.msra.mxu0 0
      %3341 = vmatprep.subr.bf16.mxu0 0
      %3342 = vmatpush1.bf16.msra.mxu0 0
      %3343 = vmatprep.subr.bf16.mxu0 0
      %3344 = vmatpush1.bf16.msra.mxu0 0
      %3345 = vmatprep.mubr.bf16.mxu0 0
      %3346 = vmatmul.mubr.bf16.gmra.mrb[0].mxu0 %v3311
      %v3347 = vpop.f32.mrb[0].mxu0
      %v3348 = vadd.f32 0.0, %v3347
      %v3349 = vpop.f32.mrb[0].mxu0
      %v3350 = vpop.f32.mrb[0].mxu0
      %v3351 = vadd.f32 0.0, %v3350
      %v3352 = vpop.f32.mrb[0].mxu0
      %3353 = vdwg.mxu0
      %v3354 = vadd.f32 %v3107, %v3348
      %v3355 = vadd.f32 %v3108, %v3351
      %v3356 = vadd.f32 %v2327, %v3354
      %v3357 = vadd.f32 %v2328, %v3355
      %v3358 = vadd.f32 %v3356, %v2097
      %v3359 = vadd.f32 %v3357, %v2097
      %v3360 = vsel %vm1049, %v3358, 0.0
      %3361 = vadd.xlane.f32.xlu0 %v3360
      %v3362 = vpop.xlane.xlu0 %3361
      %v3363 = vsel %vm1049, %v3359, 0.0
      %3364 = vadd.xlane.f32.xlu0 %v3363
      %v3365 = vpop.xlane.xlu0 %3364
      %v3366 = vmul.f32 %v3362, %v2107
      %v3367 = vmul.f32 %v3365, %v2107
      %v3368 = vsub.f32 %v3358, %v3366
      %v3369 = vsub.f32 %v3359, %v3367
      %v3370 = vmul.f32 %v3368, %v3368
      %v3371 = vmul.f32 %v3369, %v3369
      %v3372 = vsel %vm1049, %v3370, 0.0
      %3373 = vadd.xlane.f32.xlu0 %v3372
      %v3374 = vpop.xlane.xlu0 %3373
      %v3375 = vsel %vm1049, %v3371, 0.0
      %3376 = vadd.xlane.f32.xlu0 %v3375
      %v3377 = vpop.xlane.xlu0 %3376
      %v3378 = vmul.f32 %v3374, %v2107
      %v3379 = vmul.f32 %v3377, %v2107
      %v3380 = vadd.f32 %v3378, 1e-05
      %v3381 = vadd.f32 %v3379, 1e-05
      %v3382 = vrsqrt.pop %v3380
      %v3383 = vrsqrt.pop %v3381
      %v3384 = vmul.f32 %v3368, %v3382
      %v3385 = vmul.f32 %v3369, %v3383
      %v3386 = vmul.f32 %v3384, %v2132
      %v3387 = vmul.f32 %v3385, %v2132
      %v3388 = vadd.f32 %v3386, %v2140
      %v3389 = vadd.f32 %v3387, %v2140
      %v3390 = vpack.c.bf16 %v3389, %v3388
      %v3392 = vsel %vm1049, %v3390, 0
      %3394 = vmatprep.subr.bf16.mxu0 0
      %3395 = vmatpush1.bf16.msra.mxu0 %v2159
      %3396 = vmatprep.subr.bf16.mxu0 0
      %3397 = vmatpush1.bf16.msra.mxu0 %v2160
      %3398 = vmatprep.subr.bf16.mxu0 0
      %3399 = vmatpush1.bf16.msra.mxu0 0
      %3400 = vmatprep.subr.bf16.mxu0 0
      %3401 = vmatpush1.bf16.msra.mxu0 0
      %3402 = vmatprep.subr.bf16.mxu0 0
      %3403 = vmatpush1.bf16.msra.mxu0 0
      %3404 = vmatprep.subr.bf16.mxu0 0
      %3405 = vmatpush1.bf16.msra.mxu0 0
      %3406 = vmatprep.subr.bf16.mxu0 0
      %3407 = vmatpush1.bf16.msra.mxu0 0
      %3408 = vmatprep.subr.bf16.mxu0 0
      %3409 = vmatpush1.bf16.msra.mxu0 0
      %3410 = vmatprep.subr.bf16.mxu0 0
      %3411 = vmatpush1.bf16.msra.mxu0 0
      %3412 = vmatprep.subr.bf16.mxu0 0
      %3413 = vmatpush1.bf16.msra.mxu0 0
      %3414 = vmatprep.subr.bf16.mxu0 0
      %3415 = vmatpush1.bf16.msra.mxu0 0
      %3416 = vmatprep.subr.bf16.mxu0 0
      %3417 = vmatpush1.bf16.msra.mxu0 0
      %3418 = vmatprep.subr.bf16.mxu0 0
      %3419 = vmatpush1.bf16.msra.mxu0 0
      %3420 = vmatprep.subr.bf16.mxu0 0
      %3421 = vmatpush1.bf16.msra.mxu0 0
      %3422 = vmatprep.subr.bf16.mxu0 0
      %3423 = vmatpush1.bf16.msra.mxu0 0
      %3424 = vmatprep.subr.bf16.mxu0 0
      %3425 = vmatpush1.bf16.msra.mxu0 0
      %3426 = vmatprep.mubr.bf16.mxu0 0
      %3427 = vmatmul.mubr.bf16.gmra.mrb[0].mxu0 %v3392
      %v3428 = vpop.f32.mrb[0].mxu0
      %v3429 = vadd.f32 %v2149, %v3428
      %v3430 = vpop.f32.mrb[0].mxu0
      %v3431 = vpop.f32.mrb[0].mxu0
      %v3432 = vadd.f32 %v2149, %v3431
      %v3433 = vpop.f32.mrb[0].mxu0
      %3434 = vdwg.mxu0
      %v3435 = vmax.f32 %v3429, 0.0
      %v3436 = vmax.f32 %v3432, 0.0
      %v3437 = vpack.c.bf16 %v3436, %v3435
      %v3439 = vsel %vm2240, %v3437, 0
      %3441 = vmatprep.subr.bf16.mxu0 0
      %3442 = vmatpush1.bf16.msra.mxu0 %v2232
      %3443 = vmatprep.subr.bf16.mxu0 0
      %3444 = vmatpush1.bf16.msra.mxu0 %v2233
      %3445 = vmatprep.subr.bf16.mxu0 0
      %3446 = vmatpush1.bf16.msra.mxu0 %v2234
      %3447 = vmatprep.subr.bf16.mxu0 0
      %3448 = vmatpush1.bf16.msra.mxu0 %v2235
      %3449 = vmatprep.subr.bf16.mxu0 0
      %3450 = vmatpush1.bf16.msra.mxu0 0
      %3451 = vmatprep.subr.bf16.mxu0 0
      %3452 = vmatpush1.bf16.msra.mxu0 0
      %3453 = vmatprep.subr.bf16.mxu0 0
      %3454 = vmatpush1.bf16.msra.mxu0 0
      %3455 = vmatprep.subr.bf16.mxu0 0
      %3456 = vmatpush1.bf16.msra.mxu0 0
      %3457 = vmatprep.subr.bf16.mxu0 0
      %3458 = vmatpush1.bf16.msra.mxu0 0
      %3459 = vmatprep.subr.bf16.mxu0 0
      %3460 = vmatpush1.bf16.msra.mxu0 0
      %3461 = vmatprep.subr.bf16.mxu0 0
      %3462 = vmatpush1.bf16.msra.mxu0 0
      %3463 = vmatprep.subr.bf16.mxu0 0
      %3464 = vmatpush1.bf16.msra.mxu0 0
      %3465 = vmatprep.subr.bf16.mxu0 0
      %3466 = vmatpush1.bf16.msra.mxu0 0
      %3467 = vmatprep.subr.bf16.mxu0 0
      %3468 = vmatpush1.bf16.msra.mxu0 0
      %3469 = vmatprep.subr.bf16.mxu0 0
      %3470 = vmatpush1.bf16.msra.mxu0 0
      %3471 = vmatprep.subr.bf16.mxu0 0
      %3472 = vmatpush1.bf16.msra.mxu0 0
      %3473 = vmatprep.mubr.bf16.mxu0 0
      %3474 = vmatmul.mubr.bf16.gmra.mrb[0].mxu0 %v3439
      %v3475 = vpop.f32.mrb[0].mxu0
      %v3476 = vadd.f32 %v2214, %v3475
      %v3477 = vpop.f32.mrb[0].mxu0
      %v3478 = vpop.f32.mrb[0].mxu0
      %v3479 = vadd.f32 %v2214, %v3478
      %v3480 = vpop.f32.mrb[0].mxu0
      %3481 = vdwg.mxu0
      %v3482 = vadd.f32 %v3388, %v3476
      %v3483 = vadd.f32 %v3389, %v3479
      %v3484 = vsel %vm1049, %v3482, 0.0
      %3485 = vadd.xlane.f32.xlu0 %v3484
      %v3486 = vpop.xlane.xlu0 %3485
      %v3487 = vsel %vm1049, %v3483, 0.0
      %3488 = vadd.xlane.f32.xlu0 %v3487
      %v3489 = vpop.xlane.xlu0 %3488
      %v3490 = vmul.f32 %v3486, %v2107
      %v3491 = vmul.f32 %v3489, %v2107
      %v3492 = vsub.f32 %v3482, %v3490
      %v3493 = vsub.f32 %v3483, %v3491
      %v3494 = vmul.f32 %v3492, %v3492
      %v3495 = vmul.f32 %v3493, %v3493
      %v3496 = vsel %vm1049, %v3494, 0.0
      %3497 = vadd.xlane.f32.xlu0 %v3496
      %v3498 = vpop.xlane.xlu0 %3497
      %v3499 = vsel %vm1049, %v3495, 0.0
      %3500 = vadd.xlane.f32.xlu0 %v3499
      %v3501 = vpop.xlane.xlu0 %3500
      %v3502 = vmul.f32 %v3498, %v2107
      %v3503 = vmul.f32 %v3501, %v2107
      %v3504 = vadd.f32 %v3502, 1e-05
      %v3505 = vadd.f32 %v3503, 1e-05
      %v3506 = vrsqrt.pop %v3504
      %v3507 = vrsqrt.pop %v3505
      %v3508 = vmul.f32 %v3492, %v3506
      %v3509 = vmul.f32 %v3493, %v3507
      %v3510 = vmul.f32 %v3508, %v2317
      %v3511 = vmul.f32 %v3509, %v2317
      %v3512 = vadd.f32 %v3510, %v2325
      %v3513 = vadd.f32 %v3511, %v2325
      %v3514 = vpack.c.bf16 %v3513, %v3512
      %v3516 = vlaneseq
      %v3517 = vshrl.u32 %v3516, 7
      %v3518 = vsub.s32 0, %v3517
      %v3519 = vrot.slane %v1004, %v3518
      %v3524 = vunpack.c.l.b16 %v1000
      %v3525 = vunpack.c.l.b16 %v1001
      %v3526 = vunpack.c.l.b16 %v1002
      %v3527 = vunpack.c.l.b16 %v1003
      %v3528 = vpack.c.b16 %v3525, %v3524
      %v3529 = vpack.c.b16 %v3527, %v3526
      %3530 = vrot.lane.b32.xlu0 %v3528, 96
      %v3531 = vpop.permute.xlu0 %3530
      %3532 = vrot.lane.b32.xlu0 %v3529, 96
      %v3533 = vpop.permute.xlu0 %3532
      %3536 = vrot.lane.b32.xlu0 %v3519, 96
      %v3537 = vpop.permute.xlu0 %3536
      %v3540 = vsel %vm1049, %v3514, 0
      %3542 = vmatprep.subr.bf16.mxu0 0
      %3543 = vmatpush1.bf16.msra.mxu0 %v3531
      %3544 = vmatprep.subr.bf16.mxu0 0
      %3545 = vmatpush1.bf16.msra.mxu0 %v3533
      %3546 = vmatprep.subr.bf16.mxu0 0
      %3547 = vmatpush1.bf16.msra.mxu0 0
      %3548 = vmatprep.subr.bf16.mxu0 0
      %3549 = vmatpush1.bf16.msra.mxu0 0
      %3550 = vmatprep.subr.bf16.mxu0 0
      %3551 = vmatpush1.bf16.msra.mxu0 0
      %3552 = vmatprep.subr.bf16.mxu0 0
      %3553 = vmatpush1.bf16.msra.mxu0 0
      %3554 = vmatprep.subr.bf16.mxu0 0
      %3555 = vmatpush1.bf16.msra.mxu0 0
      %3556 = vmatprep.subr.bf16.mxu0 0
      %3557 = vmatpush1.bf16.msra.mxu0 0
      %3558 = vmatprep.subr.bf16.mxu0 0
      %3559 = vmatpush1.bf16.msra.mxu0 0
      %3560 = vmatprep.subr.bf16.mxu0 0
      %3561 = vmatpush1.bf16.msra.mxu0 0
      %3562 = vmatprep.subr.bf16.mxu0 0
      %3563 = vmatpush1.bf16.msra.mxu0 0
      %3564 = vmatprep.subr.bf16.mxu0 0
      %3565 = vmatpush1.bf16.msra.mxu0 0
      %3566 = vmatprep.subr.bf16.mxu0 0
      %3567 = vmatpush1.bf16.msra.mxu0 0
      %3568 = vmatprep.subr.bf16.mxu0 0
      %3569 = vmatpush1.bf16.msra.mxu0 0
      %3570 = vmatprep.subr.bf16.mxu0 0
      %3571 = vmatpush1.bf16.msra.mxu0 0
      %3572 = vmatprep.subr.bf16.mxu0 0
      %3573 = vmatpush1.bf16.msra.mxu0 0
      %3574 = vmatprep.mubr.bf16.mxu0 0
      %3575 = vmatmul.mubr.bf16.gmra.mrb[0].mxu0 %v3540
      %v3576 = vpop.f32.mrb[0].mxu0
      %v3577 = vadd.f32 %v3537, %v3576
      %v3578 = vpop.f32.mrb[0].mxu0
      %v3579 = vpop.f32.mrb[0].mxu0
      %v3580 = vadd.f32 %v3537, %v3579
      %v3581 = vpop.f32.mrb[0].mxu0
      %3582 = vdwg.mxu0
      %v3584 = vlaneseq
      %v3585 = vshrl.u32 %v3584, 7
      %v3586 = vsub.s32 0, %v3585
      %v3587 = vrot.slane %v992, %v3586
      %v3593 = vunpack.c.l.b16 %v988
      %v3594 = vunpack.c.l.b16 %v989
      %v3595 = vunpack.c.l.b16 %v990
      %v3596 = vunpack.c.l.b16 %v991
      %v3597 = vpack.c.b16 %v3594, %v3593
      %v3598 = vpack.c.b16 %v3596, %v3595
      %v3602 = vsel %vm1049, 0, 0
      %3604 = vmatprep.subr.bf16.mxu0 0
      %3605 = vmatpush1.bf16.msra.mxu0 %v3597
      %3606 = vmatprep.subr.bf16.mxu0 0
      %3607 = vmatpush1.bf16.msra.mxu0 %v3598
      %3608 = vmatprep.subr.bf16.mxu0 0
      %3609 = vmatpush1.bf16.msra.mxu0 0
      %3610 = vmatprep.subr.bf16.mxu0 0
      %3611 = vmatpush1.bf16.msra.mxu0 0
      %3612 = vmatprep.subr.bf16.mxu0 0
      %3613 = vmatpush1.bf16.msra.mxu0 0
      %3614 = vmatprep.subr.bf16.mxu0 0
      %3615 = vmatpush1.bf16.msra.mxu0 0
      %3616 = vmatprep.subr.bf16.mxu0 0
      %3617 = vmatpush1.bf16.msra.mxu0 0
      %3618 = vmatprep.subr.bf16.mxu0 0
      %3619 = vmatpush1.bf16.msra.mxu0 0
      %3620 = vmatprep.subr.bf16.mxu0 0
      %3621 = vmatpush1.bf16.msra.mxu0 0
      %3622 = vmatprep.subr.bf16.mxu0 0
      %3623 = vmatpush1.bf16.msra.mxu0 0
      %3624 = vmatprep.subr.bf16.mxu0 0
      %3625 = vmatpush1.bf16.msra.mxu0 0
      %3626 = vmatprep.subr.bf16.mxu0 0
      %3627 = vmatpush1.bf16.msra.mxu0 0
      %3628 = vmatprep.subr.bf16.mxu0 0
      %3629 = vmatpush1.bf16.msra.mxu0 0
      %3630 = vmatprep.subr.bf16.mxu0 0
      %3631 = vmatpush1.bf16.msra.mxu0 0
      %3632 = vmatprep.subr.bf16.mxu0 0
      %3633 = vmatpush1.bf16.msra.mxu0 0
      %3634 = vmatprep.subr.bf16.mxu0 0
      %3635 = vmatpush1.bf16.msra.mxu0 0
      %3636 = vmatprep.mubr.bf16.mxu0 0
      %3637 = vmatmul.mubr.bf16.gmra.mrb[0].mxu0 %v3602
      %v3638 = vpop.f32.mrb[0].mxu0
      %v3639 = vadd.f32 %v3587, %v3638
      %v3640 = vpop.f32.mrb[0].mxu0
      %v3641 = vpop.f32.mrb[0].mxu0
      %v3642 = vpop.f32.mrb[0].mxu0
      %3643 = vdwg.mxu0
      %3645 = vrot.lane.b32.xlu0 %v3639, 96
      %v3646 = vpop.permute.xlu0 %3645
      %v3647 = vsel %vm1100, %v3639, 0
      %v3649 = vsel %vm1100, %v3646, 0
      %3651 = vmatprep.subr.mxu0 0.0
      %3652 = vmatpush1.xpose.msra.mxu0 %v3649
      %3653 = vmatprep.subr.mxu0 0.0
      %3654 = vmatpush1.xpose.msra.mxu0 0.0
      %3655 = vmatprep.subr.mxu0 0.0
      %3656 = vmatpush1.xpose.msra.mxu0 0.0
      %3657 = vmatprep.subr.mxu0 0.0
      %3658 = vmatpush1.xpose.msra.mxu0 0.0
      %3659 = vmatprep.subr.mxu0 0.0
      %3660 = vmatpush1.xpose.msra.mxu0 0.0
      %3661 = vmatprep.subr.mxu0 0.0
      %3662 = vmatpush1.xpose.msra.mxu0 0.0
      %3663 = vmatprep.subr.mxu0 0.0
      %3664 = vmatpush1.xpose.msra.mxu0 0.0
      %3665 = vmatprep.subr.mxu0 0.0
      %3666 = vmatpush1.xpose.msra.mxu0 0.0
      %3667 = vmatprep.subr.mxu0 0.0
      %3668 = vmatpush1.xpose.msra.mxu0 0.0
      %3669 = vmatprep.subr.mxu0 0.0
      %3670 = vmatpush1.xpose.msra.mxu0 0.0
      %3671 = vmatprep.subr.mxu0 0.0
      %3672 = vmatpush1.xpose.msra.mxu0 0.0
      %3673 = vmatprep.subr.mxu0 0.0
      %3674 = vmatpush1.xpose.msra.mxu0 0.0
      %3675 = vmatprep.subr.mxu0 0.0
      %3676 = vmatpush1.xpose.msra.mxu0 0.0
      %3677 = vmatprep.subr.mxu0 0.0
      %3678 = vmatpush1.xpose.msra.mxu0 0.0
      %3679 = vmatprep.subr.mxu0 0.0
      %3680 = vmatpush1.xpose.msra.mxu0 0.0
      %3681 = vmatprep.subr.mxu0 0.0
      %3682 = vmatpush1.xpose.msra.mxu0 0.0
      %3683 = vmatprep.subr.mxu0 0.0
      %3684 = vmatpush1.xpose.msra.mxu0 0.0
      %3685 = vmatprep.subr.mxu0 0.0
      %3686 = vmatpush1.xpose.msra.mxu0 0.0
      %3687 = vmatprep.subr.mxu0 0.0
      %3688 = vmatpush1.xpose.msra.mxu0 0.0
      %3689 = vmatprep.subr.mxu0 0.0
      %3690 = vmatpush1.xpose.msra.mxu0 0.0
      %3691 = vmatprep.subr.mxu0 0.0
      %3692 = vmatpush1.xpose.msra.mxu0 0.0
      %3693 = vmatprep.subr.mxu0 0.0
      %3694 = vmatpush1.xpose.msra.mxu0 0.0
      %3695 = vmatprep.subr.mxu0 0.0
      %3696 = vmatpush1.xpose.msra.mxu0 0.0
      %3697 = vmatprep.subr.mxu0 0.0
      %3698 = vmatpush1.xpose.msra.mxu0 0.0
      %3699 = vmatprep.subr.mxu0 0.0
      %3700 = vmatpush1.xpose.msra.mxu0 0.0
      %3701 = vmatprep.subr.mxu0 0.0
      %3702 = vmatpush1.xpose.msra.mxu0 0.0
      %3703 = vmatprep.subr.mxu0 0.0
      %3704 = vmatpush1.xpose.msra.mxu0 0.0
      %3705 = vmatprep.subr.mxu0 0.0
      %3706 = vmatpush1.xpose.msra.mxu0 0.0
      %3707 = vmatprep.subr.mxu0 0.0
      %3708 = vmatpush1.xpose.msra.mxu0 0.0
      %3709 = vmatprep.subr.mxu0 0.0
      %3710 = vmatpush1.xpose.msra.mxu0 0.0
      %3711 = vmatprep.subr.mxu0 0.0
      %3712 = vmatpush1.xpose.msra.mxu0 0.0
      %3713 = vmatprep.subr.mxu0 0.0
      %3714 = vmatpush1.xpose.msra.mxu0 0.0
      %3715 = vmatprep.mubr.f32.mxu0 0.0
      %3716 = vmatmul.mubr.f32.gmra.mrb[0].mxu0 %v3647
      %v3717 = vpop.f32.mrb[0].mxu0
      %v3718 = vadd.f32 0.0, %v3717
      %v3719 = vpop.f32.mrb[0].mxu0
      %3720 = vdwg.mxu0
      %v3721 = vsel %vm1100, %v3718, -inf
      %3722 = vmax.xlane.f32.xlu0 %v3721
      %v3723 = vpop.xlane.xlu0 %3722
      %v3724 = vsub.f32 %v3718, %v3723
      %v3725 = vmul.f32 %v3724, 1.442695
      %v3726 = vpow.pop %v3725
      %v3727 = vsel %vm1100, %v3726, 0.0
      %3728 = vadd.xlane.f32.xlu0 %v3727
      %v3729 = vpop.xlane.xlu0 %3728
      %v3730 = vrcp.pop %v3729
      %v3731 = vmul.f32 %v3726, %v3730
      %3732 = vrot.lane.b32.xlu0 %v3639, 64
      %v3733 = vpop.permute.xlu0 %3732
      %v3736 = vsel %vm1100, %v3731, 0
      %3738 = vmatprep.subr.mxu0 0.0
      %3739 = vmatpush1.msra.mxu0 %v3733
      %3740 = vmatprep.subr.mxu0 0.0
      %3741 = vmatpush1.msra.mxu0 0.0
      %3742 = vmatprep.subr.mxu0 0.0
      %3743 = vmatpush1.msra.mxu0 0.0
      %3744 = vmatprep.subr.mxu0 0.0
      %3745 = vmatpush1.msra.mxu0 0.0
      %3746 = vmatprep.subr.mxu0 0.0
      %3747 = vmatpush1.msra.mxu0 0.0
      %3748 = vmatprep.subr.mxu0 0.0
      %3749 = vmatpush1.msra.mxu0 0.0
      %3750 = vmatprep.subr.mxu0 0.0
      %3751 = vmatpush1.msra.mxu0 0.0
      %3752 = vmatprep.subr.mxu0 0.0
      %3753 = vmatpush1.msra.mxu0 0.0
      %3754 = vmatprep.subr.mxu0 0.0
      %3755 = vmatpush1.msra.mxu0 0.0
      %3756 = vmatprep.subr.mxu0 0.0
      %3757 = vmatpush1.msra.mxu0 0.0
      %3758 = vmatprep.subr.mxu0 0.0
      %3759 = vmatpush1.msra.mxu0 0.0
      %3760 = vmatprep.subr.mxu0 0.0
      %3761 = vmatpush1.msra.mxu0 0.0
      %3762 = vmatprep.subr.mxu0 0.0
      %3763 = vmatpush1.msra.mxu0 0.0
      %3764 = vmatprep.subr.mxu0 0.0
      %3765 = vmatpush1.msra.mxu0 0.0
      %3766 = vmatprep.subr.mxu0 0.0
      %3767 = vmatpush1.msra.mxu0 0.0
      %3768 = vmatprep.subr.mxu0 0.0
      %3769 = vmatpush1.msra.mxu0 0.0
      %3770 = vmatprep.subr.mxu0 0.0
      %3771 = vmatpush1.msra.mxu0 0.0
      %3772 = vmatprep.subr.mxu0 0.0
      %3773 = vmatpush1.msra.mxu0 0.0
      %3774 = vmatprep.subr.mxu0 0.0
      %3775 = vmatpush1.msra.mxu0 0.0
      %3776 = vmatprep.subr.mxu0 0.0
      %3777 = vmatpush1.msra.mxu0 0.0
      %3778 = vmatprep.subr.mxu0 0.0
      %3779 = vmatpush1.msra.mxu0 0.0
      %3780 = vmatprep.subr.mxu0 0.0
      %3781 = vmatpush1.msra.mxu0 0.0
      %3782 = vmatprep.subr.mxu0 0.0
      %3783 = vmatpush1.msra.mxu0 0.0
      %3784 = vmatprep.subr.mxu0 0.0
      %3785 = vmatpush1.msra.mxu0 0.0
      %3786 = vmatprep.subr.mxu0 0.0
      %3787 = vmatpush1.msra.mxu0 0.0
      %3788 = vmatprep.subr.mxu0 0.0
      %3789 = vmatpush1.msra.mxu0 0.0
      %3790 = vmatprep.subr.mxu0 0.0
      %3791 = vmatpush1.msra.mxu0 0.0
      %3792 = vmatprep.subr.mxu0 0.0
      %3793 = vmatpush1.msra.mxu0 0.0
      %3794 = vmatprep.subr.mxu0 0.0
      %3795 = vmatpush1.msra.mxu0 0.0
      %3796 = vmatprep.subr.mxu0 0.0
      %3797 = vmatpush1.msra.mxu0 0.0
      %3798 = vmatprep.subr.mxu0 0.0
      %3799 = vmatpush1.msra.mxu0 0.0
      %3800 = vmatprep.subr.mxu0 0.0
      %3801 = vmatpush1.msra.mxu0 0.0
      %3802 = vmatprep.mubr.f32.mxu0 0.0
      %3803 = vmatmul.mubr.f32.gmra.mrb[0].mxu0 %v3736
      %v3804 = vpop.f32.mrb[0].mxu0
      %v3805 = vadd.f32 0.0, %v3804
      %v3806 = vpop.f32.mrb[0].mxu0
      %3807 = vdwg.mxu0
      %v3808 = vpack.c.bf16 %v3805, %v3805
      %3809 = vrot.lane.b32.xlu0 %v3639, 120
      %v3810 = vpop.permute.xlu0 %3809
      %3811 = vrot.lane.b32.xlu0 %v3639, 88
      %v3812 = vpop.permute.xlu0 %3811
      %v3813 = vsel %vm1100, %v3810, 0
      %v3815 = vsel %vm1100, %v3812, 0
      %3817 = vmatprep.subr.mxu0 0.0
      %3818 = vmatpush1.xpose.msra.mxu0 %v3815
      %3819 = vmatprep.subr.mxu0 0.0
      %3820 = vmatpush1.xpose.msra.mxu0 0.0
      %3821 = vmatprep.subr.mxu0 0.0
      %3822 = vmatpush1.xpose.msra.mxu0 0.0
      %3823 = vmatprep.subr.mxu0 0.0
      %3824 = vmatpush1.xpose.msra.mxu0 0.0
      %3825 = vmatprep.subr.mxu0 0.0
      %3826 = vmatpush1.xpose.msra.mxu0 0.0
      %3827 = vmatprep.subr.mxu0 0.0
      %3828 = vmatpush1.xpose.msra.mxu0 0.0
      %3829 = vmatprep.subr.mxu0 0.0
      %3830 = vmatpush1.xpose.msra.mxu0 0.0
      %3831 = vmatprep.subr.mxu0 0.0
      %3832 = vmatpush1.xpose.msra.mxu0 0.0
      %3833 = vmatprep.subr.mxu0 0.0
      %3834 = vmatpush1.xpose.msra.mxu0 0.0
      %3835 = vmatprep.subr.mxu0 0.0
      %3836 = vmatpush1.xpose.msra.mxu0 0.0
      %3837 = vmatprep.subr.mxu0 0.0
      %3838 = vmatpush1.xpose.msra.mxu0 0.0
      %3839 = vmatprep.subr.mxu0 0.0
      %3840 = vmatpush1.xpose.msra.mxu0 0.0
      %3841 = vmatprep.subr.mxu0 0.0
      %3842 = vmatpush1.xpose.msra.mxu0 0.0
      %3843 = vmatprep.subr.mxu0 0.0
      %3844 = vmatpush1.xpose.msra.mxu0 0.0
      %3845 = vmatprep.subr.mxu0 0.0
      %3846 = vmatpush1.xpose.msra.mxu0 0.0
      %3847 = vmatprep.subr.mxu0 0.0
      %3848 = vmatpush1.xpose.msra.mxu0 0.0
      %3849 = vmatprep.subr.mxu0 0.0
      %3850 = vmatpush1.xpose.msra.mxu0 0.0
      %3851 = vmatprep.subr.mxu0 0.0
      %3852 = vmatpush1.xpose.msra.mxu0 0.0
      %3853 = vmatprep.subr.mxu0 0.0
      %3854 = vmatpush1.xpose.msra.mxu0 0.0
      %3855 = vmatprep.subr.mxu0 0.0
      %3856 = vmatpush1.xpose.msra.mxu0 0.0
      %3857 = vmatprep.subr.mxu0 0.0
      %3858 = vmatpush1.xpose.msra.mxu0 0.0
      %3859 = vmatprep.subr.mxu0 0.0
      %3860 = vmatpush1.xpose.msra.mxu0 0.0
      %3861 = vmatprep.subr.mxu0 0.0
      %3862 = vmatpush1.xpose.msra.mxu0 0.0
      %3863 = vmatprep.subr.mxu0 0.0
      %3864 = vmatpush1.xpose.msra.mxu0 0.0
      %3865 = vmatprep.subr.mxu0 0.0
      %3866 = vmatpush1.xpose.msra.mxu0 0.0
      %3867 = vmatprep.subr.mxu0 0.0
      %3868 = vmatpush1.xpose.msra.mxu0 0.0
      %3869 = vmatprep.subr.mxu0 0.0
      %3870 = vmatpush1.xpose.msra.mxu0 0.0
      %3871 = vmatprep.subr.mxu0 0.0
      %3872 = vmatpush1.xpose.msra.mxu0 0.0
      %3873 = vmatprep.subr.mxu0 0.0
      %3874 = vmatpush1.xpose.msra.mxu0 0.0
      %3875 = vmatprep.subr.mxu0 0.0
      %3876 = vmatpush1.xpose.msra.mxu0 0.0
      %3877 = vmatprep.subr.mxu0 0.0
      %3878 = vmatpush1.xpose.msra.mxu0 0.0
      %3879 = vmatprep.subr.mxu0 0.0
      %3880 = vmatpush1.xpose.msra.mxu0 0.0
      %3881 = vmatprep.mubr.f32.mxu0 0.0
      %3882 = vmatmul.mubr.f32.gmra.mrb[0].mxu0 %v3813
      %v3883 = vpop.f32.mrb[0].mxu0
      %v3884 = vadd.f32 0.0, %v3883
      %v3885 = vpop.f32.mrb[0].mxu0
      %3886 = vdwg.mxu0
      %v3887 = vsel %vm1100, %v3884, -inf
      %3888 = vmax.xlane.f32.xlu0 %v3887
      %v3889 = vpop.xlane.xlu0 %3888
      %v3890 = vsub.f32 %v3884, %v3889
      %v3891 = vmul.f32 %v3890, 1.442695
      %v3892 = vpow.pop %v3891
      %v3893 = vsel %vm1100, %v3892, 0.0
      %3894 = vadd.xlane.f32.xlu0 %v3893
      %v3895 = vpop.xlane.xlu0 %3894
      %v3896 = vrcp.pop %v3895
      %v3897 = vmul.f32 %v3892, %v3896
      %3898 = vrot.lane.b32.xlu0 %v3639, 56
      %v3899 = vpop.permute.xlu0 %3898
      %v3902 = vsel %vm1100, %v3897, 0
      %3904 = vmatprep.subr.mxu0 0.0
      %3905 = vmatpush1.msra.mxu0 %v3899
      %3906 = vmatprep.subr.mxu0 0.0
      %3907 = vmatpush1.msra.mxu0 0.0
      %3908 = vmatprep.subr.mxu0 0.0
      %3909 = vmatpush1.msra.mxu0 0.0
      %3910 = vmatprep.subr.mxu0 0.0
      %3911 = vmatpush1.msra.mxu0 0.0
      %3912 = vmatprep.subr.mxu0 0.0
      %3913 = vmatpush1.msra.mxu0 0.0
      %3914 = vmatprep.subr.mxu0 0.0
      %3915 = vmatpush1.msra.mxu0 0.0
      %3916 = vmatprep.subr.mxu0 0.0
      %3917 = vmatpush1.msra.mxu0 0.0
      %3918 = vmatprep.subr.mxu0 0.0
      %3919 = vmatpush1.msra.mxu0 0.0
      %3920 = vmatprep.subr.mxu0 0.0
      %3921 = vmatpush1.msra.mxu0 0.0
      %3922 = vmatprep.subr.mxu0 0.0
      %3923 = vmatpush1.msra.mxu0 0.0
      %3924 = vmatprep.subr.mxu0 0.0
      %3925 = vmatpush1.msra.mxu0 0.0
      %3926 = vmatprep.subr.mxu0 0.0
      %3927 = vmatpush1.msra.mxu0 0.0
      %3928 = vmatprep.subr.mxu0 0.0
      %3929 = vmatpush1.msra.mxu0 0.0
      %3930 = vmatprep.subr.mxu0 0.0
      %3931 = vmatpush1.msra.mxu0 0.0
      %3932 = vmatprep.subr.mxu0 0.0
      %3933 = vmatpush1.msra.mxu0 0.0
      %3934 = vmatprep.subr.mxu0 0.0
      %3935 = vmatpush1.msra.mxu0 0.0
      %3936 = vmatprep.subr.mxu0 0.0
      %3937 = vmatpush1.msra.mxu0 0.0
      %3938 = vmatprep.subr.mxu0 0.0
      %3939 = vmatpush1.msra.mxu0 0.0
      %3940 = vmatprep.subr.mxu0 0.0
      %3941 = vmatpush1.msra.mxu0 0.0
      %3942 = vmatprep.subr.mxu0 0.0
      %3943 = vmatpush1.msra.mxu0 0.0
      %3944 = vmatprep.subr.mxu0 0.0
      %3945 = vmatpush1.msra.mxu0 0.0
      %3946 = vmatprep.subr.mxu0 0.0
      %3947 = vmatpush1.msra.mxu0 0.0
      %3948 = vmatprep.subr.mxu0 0.0
      %3949 = vmatpush1.msra.mxu0 0.0
      %3950 = vmatprep.subr.mxu0 0.0
      %3951 = vmatpush1.msra.mxu0 0.0
      %3952 = vmatprep.subr.mxu0 0.0
      %3953 = vmatpush1.msra.mxu0 0.0
      %3954 = vmatprep.subr.mxu0 0.0
      %3955 = vmatpush1.msra.mxu0 0.0
      %3956 = vmatprep.subr.mxu0 0.0
      %3957 = vmatpush1.msra.mxu0 0.0
      %3958 = vmatprep.subr.mxu0 0.0
      %3959 = vmatpush1.msra.mxu0 0.0
      %3960 = vmatprep.subr.mxu0 0.0
      %3961 = vmatpush1.msra.mxu0 0.0
      %3962 = vmatprep.subr.mxu0 0.0
      %3963 = vmatpush1.msra.mxu0 0.0
      %3964 = vmatprep.subr.mxu0 0.0
      %3965 = vmatpush1.msra.mxu0 0.0
      %3966 = vmatprep.subr.mxu0 0.0
      %3967 = vmatpush1.msra.mxu0 0.0
      %3968 = vmatprep.mubr.f32.mxu0 0.0
      %3969 = vmatmul.mubr.f32.gmra.mrb[0].mxu0 %v3902
      %v3970 = vpop.f32.mrb[0].mxu0
      %v3971 = vadd.f32 0.0, %v3970
      %v3972 = vpop.f32.mrb[0].mxu0
      %3973 = vdwg.mxu0
      %v3974 = vpack.c.bf16 %v3971, %v3971
      %v3976 = vsel %vm1100, %v3974, 0
      %v3979 = vsel %vm1499, %v994, 0
      %3981 = vmatprep.subr.bf16.mxu0 0
      %3982 = vmatpush1.bf16.msra.mxu0 %v3979
      %3983 = vmatprep.subr.bf16.mxu0 0
      %3984 = vmatpush1.bf16.msra.mxu0 0
      %3985 = vmatprep.subr.bf16.mxu0 0
      %3986 = vmatpush1.bf16.msra.mxu0 0
      %3987 = vmatprep.subr.bf16.mxu0 0
      %3988 = vmatpush1.bf16.msra.mxu0 0
      %3989 = vmatprep.subr.bf16.mxu0 0
      %3990 = vmatpush1.bf16.msra.mxu0 0
      %3991 = vmatprep.subr.bf16.mxu0 0
      %3992 = vmatpush1.bf16.msra.mxu0 0
      %3993 = vmatprep.subr.bf16.mxu0 0
      %3994 = vmatpush1.bf16.msra.mxu0 0
      %3995 = vmatprep.subr.bf16.mxu0 0
      %3996 = vmatpush1.bf16.msra.mxu0 0
      %3997 = vmatprep.subr.bf16.mxu0 0
      %3998 = vmatpush1.bf16.msra.mxu0 0
      %3999 = vmatprep.subr.bf16.mxu0 0
      %4000 = vmatpush1.bf16.msra.mxu0 0
      %4001 = vmatprep.subr.bf16.mxu0 0
      %4002 = vmatpush1.bf16.msra.mxu0 0
      %4003 = vmatprep.subr.bf16.mxu0 0
      %4004 = vmatpush1.bf16.msra.mxu0 0
      %4005 = vmatprep.subr.bf16.mxu0 0
      %4006 = vmatpush1.bf16.msra.mxu0 0
      %4007 = vmatprep.subr.bf16.mxu0 0
      %4008 = vmatpush1.bf16.msra.mxu0 0
      %4009 = vmatprep.subr.bf16.mxu0 0
      %4010 = vmatpush1.bf16.msra.mxu0 0
      %4011 = vmatprep.subr.bf16.mxu0 0
      %4012 = vmatpush1.bf16.msra.mxu0 0
      %4013 = vmatprep.mubr.bf16.mxu0 0
      %4014 = vmatmul.mubr.bf16.gmra.mrb[0].mxu0 %v3976
      %v4015 = vpop.f32.mrb[0].mxu0
      %v4016 = vadd.f32 0.0, %v4015
      %v4017 = vpop.f32.mrb[0].mxu0
      %v4018 = vpop.f32.mrb[0].mxu0
      %v4019 = vpop.f32.mrb[0].mxu0
      %4020 = vdwg.mxu0
      %v4022 = vsel %vm1100, %v3808, 0
      %v4025 = vsel %vm1499, %v993, 0
      %4027 = vmatprep.subr.bf16.mxu0 0
      %4028 = vmatpush1.bf16.msra.mxu0 %v4025
      %4029 = vmatprep.subr.bf16.mxu0 0
      %4030 = vmatpush1.bf16.msra.mxu0 0
      %4031 = vmatprep.subr.bf16.mxu0 0
      %4032 = vmatpush1.bf16.msra.mxu0 0
      %4033 = vmatprep.subr.bf16.mxu0 0
      %4034 = vmatpush1.bf16.msra.mxu0 0
      %4035 = vmatprep.subr.bf16.mxu0 0
      %4036 = vmatpush1.bf16.msra.mxu0 0
      %4037 = vmatprep.subr.bf16.mxu0 0
      %4038 = vmatpush1.bf16.msra.mxu0 0
      %4039 = vmatprep.subr.bf16.mxu0 0
      %4040 = vmatpush1.bf16.msra.mxu0 0
      %4041 = vmatprep.subr.bf16.mxu0 0
      %4042 = vmatpush1.bf16.msra.mxu0 0
      %4043 = vmatprep.subr.bf16.mxu0 0
      %4044 = vmatpush1.bf16.msra.mxu0 0
      %4045 = vmatprep.subr.bf16.mxu0 0
      %4046 = vmatpush1.bf16.msra.mxu0 0
      %4047 = vmatprep.subr.bf16.mxu0 0
      %4048 = vmatpush1.bf16.msra.mxu0 0
      %4049 = vmatprep.subr.bf16.mxu0 0
      %4050 = vmatpush1.bf16.msra.mxu0 0
      %4051 = vmatprep.subr.bf16.mxu0 0
      %4052 = vmatpush1.bf16.msra.mxu0 0
      %4053 = vmatprep.subr.bf16.mxu0 0
      %4054 = vmatpush1.bf16.msra.mxu0 0
      %4055 = vmatprep.subr.bf16.mxu0 0
      %4056 = vmatpush1.bf16.msra.mxu0 0
      %4057 = vmatprep.subr.bf16.mxu0 0
      %4058 = vmatpush1.bf16.msra.mxu0 0
      %4059 = vmatprep.mubr.bf16.mxu0 0
      %4060 = vmatmul.mubr.bf16.gmra.mrb[0].mxu0 %v4022
      %v4061 = vpop.f32.mrb[0].mxu0
      %v4062 = vadd.f32 %v4016, %v4061
      %v4063 = vpop.f32.mrb[0].mxu0
      %v4064 = vpop.f32.mrb[0].mxu0
      %v4065 = vpop.f32.mrb[0].mxu0
      %4066 = vdwg.mxu0
      %4067 = vrot.lane.b32.xlu0 %v3639, 112
      %v4068 = vpop.permute.xlu0 %4067
      %4069 = vrot.lane.b32.xlu0 %v3639, 80
      %v4070 = vpop.permute.xlu0 %4069
      %v4071 = vsel %vm1100, %v4068, 0
      %v4073 = vsel %vm1100, %v4070, 0
      %4075 = vmatprep.subr.mxu0 0.0
      %4076 = vmatpush1.xpose.msra.mxu0 %v4073
      %4077 = vmatprep.subr.mxu0 0.0
      %4078 = vmatpush1.xpose.msra.mxu0 0.0
      %4079 = vmatprep.subr.mxu0 0.0
      %4080 = vmatpush1.xpose.msra.mxu0 0.0
      %4081 = vmatprep.subr.mxu0 0.0
      %4082 = vmatpush1.xpose.msra.mxu0 0.0
      %4083 = vmatprep.subr.mxu0 0.0
      %4084 = vmatpush1.xpose.msra.mxu0 0.0
      %4085 = vmatprep.subr.mxu0 0.0
      %4086 = vmatpush1.xpose.msra.mxu0 0.0
      %4087 = vmatprep.subr.mxu0 0.0
      %4088 = vmatpush1.xpose.msra.mxu0 0.0
      %4089 = vmatprep.subr.mxu0 0.0
      %4090 = vmatpush1.xpose.msra.mxu0 0.0
      %4091 = vmatprep.subr.mxu0 0.0
      %4092 = vmatpush1.xpose.msra.mxu0 0.0
      %4093 = vmatprep.subr.mxu0 0.0
      %4094 = vmatpush1.xpose.msra.mxu0 0.0
      %4095 = vmatprep.subr.mxu0 0.0
      %4096 = vmatpush1.xpose.msra.mxu0 0.0
      %4097 = vmatprep.subr.mxu0 0.0
      %4098 = vmatpush1.xpose.msra.mxu0 0.0
      %4099 = vmatprep.subr.mxu0 0.0
      %4100 = vmatpush1.xpose.msra.mxu0 0.0
      %4101 = vmatprep.subr.mxu0 0.0
      %4102 = vmatpush1.xpose.msra.mxu0 0.0
      %4103 = vmatprep.subr.mxu0 0.0
      %4104 = vmatpush1.xpose.msra.mxu0 0.0
      %4105 = vmatprep.subr.mxu0 0.0
      %4106 = vmatpush1.xpose.msra.mxu0 0.0
      %4107 = vmatprep.subr.mxu0 0.0
      %4108 = vmatpush1.xpose.msra.mxu0 0.0
      %4109 = vmatprep.subr.mxu0 0.0
      %4110 = vmatpush1.xpose.msra.mxu0 0.0
      %4111 = vmatprep.subr.mxu0 0.0
      %4112 = vmatpush1.xpose.msra.mxu0 0.0
      %4113 = vmatprep.subr.mxu0 0.0
      %4114 = vmatpush1.xpose.msra.mxu0 0.0
      %4115 = vmatprep.subr.mxu0 0.0
      %4116 = vmatpush1.xpose.msra.mxu0 0.0
      %4117 = vmatprep.subr.mxu0 0.0
      %4118 = vmatpush1.xpose.msra.mxu0 0.0
      %4119 = vmatprep.subr.mxu0 0.0
      %4120 = vmatpush1.xpose.msra.mxu0 0.0
      %4121 = vmatprep.subr.mxu0 0.0
      %4122 = vmatpush1.xpose.msra.mxu0 0.0
      %4123 = vmatprep.subr.mxu0 0.0
      %4124 = vmatpush1.xpose.msra.mxu0 0.0
      %4125 = vmatprep.subr.mxu0 0.0
      %4126 = vmatpush1.xpose.msra.mxu0 0.0
      %4127 = vmatprep.subr.mxu0 0.0
      %4128 = vmatpush1.xpose.msra.mxu0 0.0
      %4129 = vmatprep.subr.mxu0 0.0
      %4130 = vmatpush1.xpose.msra.mxu0 0.0
      %4131 = vmatprep.subr.mxu0 0.0
      %4132 = vmatpush1.xpose.msra.mxu0 0.0
      %4133 = vmatprep.subr.mxu0 0.0
      %4134 = vmatpush1.xpose.msra.mxu0 0.0
      %4135 = vmatprep.subr.mxu0 0.0
      %4136 = vmatpush1.xpose.msra.mxu0 0.0
      %4137 = vmatprep.subr.mxu0 0.0
      %4138 = vmatpush1.xpose.msra.mxu0 0.0
      %4139 = vmatprep.mubr.f32.mxu0 0.0
      %4140 = vmatmul.mubr.f32.gmra.mrb[0].mxu0 %v4071
      %v4141 = vpop.f32.mrb[0].mxu0
      %v4142 = vadd.f32 0.0, %v4141
      %v4143 = vpop.f32.mrb[0].mxu0
      %4144 = vdwg.mxu0
      %v4145 = vsel %vm1100, %v4142, -inf
      %4146 = vmax.xlane.f32.xlu0 %v4145
      %v4147 = vpop.xlane.xlu0 %4146
      %v4148 = vsub.f32 %v4142, %v4147
      %v4149 = vmul.f32 %v4148, 1.442695
      %v4150 = vpow.pop %v4149
      %v4151 = vsel %vm1100, %v4150, 0.0
      %4152 = vadd.xlane.f32.xlu0 %v4151
      %v4153 = vpop.xlane.xlu0 %4152
      %v4154 = vrcp.pop %v4153
      %v4155 = vmul.f32 %v4150, %v4154
      %4156 = vrot.lane.b32.xlu0 %v3639, 48
      %v4157 = vpop.permute.xlu0 %4156
      %v4160 = vsel %vm1100, %v4155, 0
      %4162 = vmatprep.subr.mxu0 0.0
      %4163 = vmatpush1.msra.mxu0 %v4157
      %4164 = vmatprep.subr.mxu0 0.0
      %4165 = vmatpush1.msra.mxu0 0.0
      %4166 = vmatprep.subr.mxu0 0.0
      %4167 = vmatpush1.msra.mxu0 0.0
      %4168 = vmatprep.subr.mxu0 0.0
      %4169 = vmatpush1.msra.mxu0 0.0
      %4170 = vmatprep.subr.mxu0 0.0
      %4171 = vmatpush1.msra.mxu0 0.0
      %4172 = vmatprep.subr.mxu0 0.0
      %4173 = vmatpush1.msra.mxu0 0.0
      %4174 = vmatprep.subr.mxu0 0.0
      %4175 = vmatpush1.msra.mxu0 0.0
      %4176 = vmatprep.subr.mxu0 0.0
      %4177 = vmatpush1.msra.mxu0 0.0
      %4178 = vmatprep.subr.mxu0 0.0
      %4179 = vmatpush1.msra.mxu0 0.0
      %4180 = vmatprep.subr.mxu0 0.0
      %4181 = vmatpush1.msra.mxu0 0.0
      %4182 = vmatprep.subr.mxu0 0.0
      %4183 = vmatpush1.msra.mxu0 0.0
      %4184 = vmatprep.subr.mxu0 0.0
      %4185 = vmatpush1.msra.mxu0 0.0
      %4186 = vmatprep.subr.mxu0 0.0
      %4187 = vmatpush1.msra.mxu0 0.0
      %4188 = vmatprep.subr.mxu0 0.0
      %4189 = vmatpush1.msra.mxu0 0.0
      %4190 = vmatprep.subr.mxu0 0.0
      %4191 = vmatpush1.msra.mxu0 0.0
      %4192 = vmatprep.subr.mxu0 0.0
      %4193 = vmatpush1.msra.mxu0 0.0
      %4194 = vmatprep.subr.mxu0 0.0
      %4195 = vmatpush1.msra.mxu0 0.0
      %4196 = vmatprep.subr.mxu0 0.0
      %4197 = vmatpush1.msra.mxu0 0.0
      %4198 = vmatprep.subr.mxu0 0.0
      %4199 = vmatpush1.msra.mxu0 0.0
      %4200 = vmatprep.subr.mxu0 0.0
      %4201 = vmatpush1.msra.mxu0 0.0
      %4202 = vmatprep.subr.mxu0 0.0
      %4203 = vmatpush1.msra.mxu0 0.0
      %4204 = vmatprep.subr.mxu0 0.0
      %4205 = vmatpush1.msra.mxu0 0.0
      %4206 = vmatprep.subr.mxu0 0.0
      %4207 = vmatpush1.msra.mxu0 0.0
      %4208 = vmatprep.subr.mxu0 0.0
      %4209 = vmatpush1.msra.mxu0 0.0
      %4210 = vmatprep.subr.mxu0 0.0
      %4211 = vmatpush1.msra.mxu0 0.0
      %4212 = vmatprep.subr.mxu0 0.0
      %4213 = vmatpush1.msra.mxu0 0.0
      %4214 = vmatprep.subr.mxu0 0.0
      %4215 = vmatpush1.msra.mxu0 0.0
      %4216 = vmatprep.subr.mxu0 0.0
      %4217 = vmatpush1.msra.mxu0 0.0
      %4218 = vmatprep.subr.mxu0 0.0
      %4219 = vmatpush1.msra.mxu0 0.0
      %4220 = vmatprep.subr.mxu0 0.0
      %4221 = vmatpush1.msra.mxu0 0.0
      %4222 = vmatprep.subr.mxu0 0.0
      %4223 = vmatpush1.msra.mxu0 0.0
      %4224 = vmatprep.subr.mxu0 0.0
      %4225 = vmatpush1.msra.mxu0 0.0
      %4226 = vmatprep.mubr.f32.mxu0 0.0
      %4227 = vmatmul.mubr.f32.gmra.mrb[0].mxu0 %v4160
      %v4228 = vpop.f32.mrb[0].mxu0
      %v4229 = vadd.f32 0.0, %v4228
      %v4230 = vpop.f32.mrb[0].mxu0
      %4231 = vdwg.mxu0
      %v4232 = vpack.c.bf16 %v4229, %v4229
      %v4234 = vsel %vm1100, %v4232, 0
      %v4237 = vsel %vm1499, %v995, 0
      %4239 = vmatprep.subr.bf16.mxu0 0
      %4240 = vmatpush1.bf16.msra.mxu0 %v4237
      %4241 = vmatprep.subr.bf16.mxu0 0
      %4242 = vmatpush1.bf16.msra.mxu0 0
      %4243 = vmatprep.subr.bf16.mxu0 0
      %4244 = vmatpush1.bf16.msra.mxu0 0
      %4245 = vmatprep.subr.bf16.mxu0 0
      %4246 = vmatpush1.bf16.msra.mxu0 0
      %4247 = vmatprep.subr.bf16.mxu0 0
      %4248 = vmatpush1.bf16.msra.mxu0 0
      %4249 = vmatprep.subr.bf16.mxu0 0
      %4250 = vmatpush1.bf16.msra.mxu0 0
      %4251 = vmatprep.subr.bf16.mxu0 0
      %4252 = vmatpush1.bf16.msra.mxu0 0
      %4253 = vmatprep.subr.bf16.mxu0 0
      %4254 = vmatpush1.bf16.msra.mxu0 0
      %4255 = vmatprep.subr.bf16.mxu0 0
      %4256 = vmatpush1.bf16.msra.mxu0 0
      %4257 = vmatprep.subr.bf16.mxu0 0
      %4258 = vmatpush1.bf16.msra.mxu0 0
      %4259 = vmatprep.subr.bf16.mxu0 0
      %4260 = vmatpush1.bf16.msra.mxu0 0
      %4261 = vmatprep.subr.bf16.mxu0 0
      %4262 = vmatpush1.bf16.msra.mxu0 0
      %4263 = vmatprep.subr.bf16.mxu0 0
      %4264 = vmatpush1.bf16.msra.mxu0 0
      %4265 = vmatprep.subr.bf16.mxu0 0
      %4266 = vmatpush1.bf16.msra.mxu0 0
      %4267 = vmatprep.subr.bf16.mxu0 0
      %4268 = vmatpush1.bf16.msra.mxu0 0
      %4269 = vmatprep.subr.bf16.mxu0 0
      %4270 = vmatpush1.bf16.msra.mxu0 0
      %4271 = vmatprep.mubr.bf16.mxu0 0
      %4272 = vmatmul.mubr.bf16.gmra.mrb[0].mxu0 %v4234
      %v4273 = vpop.f32.mrb[0].mxu0
      %v4274 = vadd.f32 0.0, %v4273
      %v4275 = vpop.f32.mrb[0].mxu0
      %v4276 = vpop.f32.mrb[0].mxu0
      %v4277 = vpop.f32.mrb[0].mxu0
      %4278 = vdwg.mxu0
      %v4279 = vadd.f32 %v4062, %v4274
      %4280 = vrot.lane.b32.xlu0 %v3639, 104
      %v4281 = vpop.permute.xlu0 %4280
      %4282 = vrot.lane.b32.xlu0 %v3639, 72
      %v4283 = vpop.permute.xlu0 %4282
      %v4284 = vsel %vm1100, %v4281, 0
      %v4286 = vsel %vm1100, %v4283, 0
      %4288 = vmatprep.subr.mxu0 0.0
      %4289 = vmatpush1.xpose.msra.mxu0 %v4286
      %4290 = vmatprep.subr.mxu0 0.0
      %4291 = vmatpush1.xpose.msra.mxu0 0.0
      %4292 = vmatprep.subr.mxu0 0.0
      %4293 = vmatpush1.xpose.msra.mxu0 0.0
      %4294 = vmatprep.subr.mxu0 0.0
      %4295 = vmatpush1.xpose.msra.mxu0 0.0
      %4296 = vmatprep.subr.mxu0 0.0
      %4297 = vmatpush1.xpose.msra.mxu0 0.0
      %4298 = vmatprep.subr.mxu0 0.0
      %4299 = vmatpush1.xpose.msra.mxu0 0.0
      %4300 = vmatprep.subr.mxu0 0.0
      %4301 = vmatpush1.xpose.msra.mxu0 0.0
      %4302 = vmatprep.subr.mxu0 0.0
      %4303 = vmatpush1.xpose.msra.mxu0 0.0
      %4304 = vmatprep.subr.mxu0 0.0
      %4305 = vmatpush1.xpose.msra.mxu0 0.0
      %4306 = vmatprep.subr.mxu0 0.0
      %4307 = vmatpush1.xpose.msra.mxu0 0.0
      %4308 = vmatprep.subr.mxu0 0.0
      %4309 = vmatpush1.xpose.msra.mxu0 0.0
      %4310 = vmatprep.subr.mxu0 0.0
      %4311 = vmatpush1.xpose.msra.mxu0 0.0
      %4312 = vmatprep.subr.mxu0 0.0
      %4313 = vmatpush1.xpose.msra.mxu0 0.0
      %4314 = vmatprep.subr.mxu0 0.0
      %4315 = vmatpush1.xpose.msra.mxu0 0.0
      %4316 = vmatprep.subr.mxu0 0.0
      %4317 = vmatpush1.xpose.msra.mxu0 0.0
      %4318 = vmatprep.subr.mxu0 0.0
      %4319 = vmatpush1.xpose.msra.mxu0 0.0
      %4320 = vmatprep.subr.mxu0 0.0
      %4321 = vmatpush1.xpose.msra.mxu0 0.0
      %4322 = vmatprep.subr.mxu0 0.0
      %4323 = vmatpush1.xpose.msra.mxu0 0.0
      %4324 = vmatprep.subr.mxu0 0.0
      %4325 = vmatpush1.xpose.msra.mxu0 0.0
      %4326 = vmatprep.subr.mxu0 0.0
      %4327 = vmatpush1.xpose.msra.mxu0 0.0
      %4328 = vmatprep.subr.mxu0 0.0
      %4329 = vmatpush1.xpose.msra.mxu0 0.0
      %4330 = vmatprep.subr.mxu0 0.0
      %4331 = vmatpush1.xpose.msra.mxu0 0.0
      %4332 = vmatprep.subr.mxu0 0.0
      %4333 = vmatpush1.xpose.msra.mxu0 0.0
      %4334 = vmatprep.subr.mxu0 0.0
      %4335 = vmatpush1.xpose.msra.mxu0 0.0
      %4336 = vmatprep.subr.mxu0 0.0
      %4337 = vmatpush1.xpose.msra.mxu0 0.0
      %4338 = vmatprep.subr.mxu0 0.0
      %4339 = vmatpush1.xpose.msra.mxu0 0.0
      %4340 = vmatprep.subr.mxu0 0.0
      %4341 = vmatpush1.xpose.msra.mxu0 0.0
      %4342 = vmatprep.subr.mxu0 0.0
      %4343 = vmatpush1.xpose.msra.mxu0 0.0
      %4344 = vmatprep.subr.mxu0 0.0
      %4345 = vmatpush1.xpose.msra.mxu0 0.0
      %4346 = vmatprep.subr.mxu0 0.0
      %4347 = vmatpush1.xpose.msra.mxu0 0.0
      %4348 = vmatprep.subr.mxu0 0.0
      %4349 = vmatpush1.xpose.msra.mxu0 0.0
      %4350 = vmatprep.subr.mxu0 0.0
      %4351 = vmatpush1.xpose.msra.mxu0 0.0
      %4352 = vmatprep.mubr.f32.mxu0 0.0
      %4353 = vmatmul.mubr.f32.gmra.mrb[0].mxu0 %v4284
      %v4354 = vpop.f32.mrb[0].mxu0
      %v4355 = vadd.f32 0.0, %v4354
      %v4356 = vpop.f32.mrb[0].mxu0
      %4357 = vdwg.mxu0
      %v4358 = vsel %vm1100, %v4355, -inf
      %4359 = vmax.xlane.f32.xlu0 %v4358
      %v4360 = vpop.xlane.xlu0 %4359
      %v4361 = vsub.f32 %v4355, %v4360
      %v4362 = vmul.f32 %v4361, 1.442695
      %v4363 = vpow.pop %v4362
      %v4364 = vsel %vm1100, %v4363, 0.0
      %4365 = vadd.xlane.f32.xlu0 %v4364
      %v4366 = vpop.xlane.xlu0 %4365
      %v4367 = vrcp.pop %v4366
      %v4368 = vmul.f32 %v4363, %v4367
      %4369 = vrot.lane.b32.xlu0 %v3639, 40
      %v4370 = vpop.permute.xlu0 %4369
      %v4373 = vsel %vm1100, %v4368, 0
      %4375 = vmatprep.subr.mxu0 0.0
      %4376 = vmatpush1.msra.mxu0 %v4370
      %4377 = vmatprep.subr.mxu0 0.0
      %4378 = vmatpush1.msra.mxu0 0.0
      %4379 = vmatprep.subr.mxu0 0.0
      %4380 = vmatpush1.msra.mxu0 0.0
      %4381 = vmatprep.subr.mxu0 0.0
      %4382 = vmatpush1.msra.mxu0 0.0
      %4383 = vmatprep.subr.mxu0 0.0
      %4384 = vmatpush1.msra.mxu0 0.0
      %4385 = vmatprep.subr.mxu0 0.0
      %4386 = vmatpush1.msra.mxu0 0.0
      %4387 = vmatprep.subr.mxu0 0.0
      %4388 = vmatpush1.msra.mxu0 0.0
      %4389 = vmatprep.subr.mxu0 0.0
      %4390 = vmatpush1.msra.mxu0 0.0
      %4391 = vmatprep.subr.mxu0 0.0
      %4392 = vmatpush1.msra.mxu0 0.0
      %4393 = vmatprep.subr.mxu0 0.0
      %4394 = vmatpush1.msra.mxu0 0.0
      %4395 = vmatprep.subr.mxu0 0.0
      %4396 = vmatpush1.msra.mxu0 0.0
      %4397 = vmatprep.subr.mxu0 0.0
      %4398 = vmatpush1.msra.mxu0 0.0
      %4399 = vmatprep.subr.mxu0 0.0
      %4400 = vmatpush1.msra.mxu0 0.0
      %4401 = vmatprep.subr.mxu0 0.0
      %4402 = vmatpush1.msra.mxu0 0.0
      %4403 = vmatprep.subr.mxu0 0.0
      %4404 = vmatpush1.msra.mxu0 0.0
      %4405 = vmatprep.subr.mxu0 0.0
      %4406 = vmatpush1.msra.mxu0 0.0
      %4407 = vmatprep.subr.mxu0 0.0
      %4408 = vmatpush1.msra.mxu0 0.0
      %4409 = vmatprep.subr.mxu0 0.0
      %4410 = vmatpush1.msra.mxu0 0.0
      %4411 = vmatprep.subr.mxu0 0.0
      %4412 = vmatpush1.msra.mxu0 0.0
      %4413 = vmatprep.subr.mxu0 0.0
      %4414 = vmatpush1.msra.mxu0 0.0
      %4415 = vmatprep.subr.mxu0 0.0
      %4416 = vmatpush1.msra.mxu0 0.0
      %4417 = vmatprep.subr.mxu0 0.0
      %4418 = vmatpush1.msra.mxu0 0.0
      %4419 = vmatprep.subr.mxu0 0.0
      %4420 = vmatpush1.msra.mxu0 0.0
      %4421 = vmatprep.subr.mxu0 0.0
      %4422 = vmatpush1.msra.mxu0 0.0
      %4423 = vmatprep.subr.mxu0 0.0
      %4424 = vmatpush1.msra.mxu0 0.0
      %4425 = vmatprep.subr.mxu0 0.0
      %4426 = vmatpush1.msra.mxu0 0.0
      %4427 = vmatprep.subr.mxu0 0.0
      %4428 = vmatpush1.msra.mxu0 0.0
      %4429 = vmatprep.subr.mxu0 0.0
      %4430 = vmatpush1.msra.mxu0 0.0
      %4431 = vmatprep.subr.mxu0 0.0
      %4432 = vmatpush1.msra.mxu0 0.0
      %4433 = vmatprep.subr.mxu0 0.0
      %4434 = vmatpush1.msra.mxu0 0.0
      %4435 = vmatprep.subr.mxu0 0.0
      %4436 = vmatpush1.msra.mxu0 0.0
      %4437 = vmatprep.subr.mxu0 0.0
      %4438 = vmatpush1.msra.mxu0 0.0
      %4439 = vmatprep.mubr.f32.mxu0 0.0
      %4440 = vmatmul.mubr.f32.gmra.mrb[0].mxu0 %v4373
      %v4441 = vpop.f32.mrb[0].mxu0
      %v4442 = vadd.f32 0.0, %v4441
      %v4443 = vpop.f32.mrb[0].mxu0
      %4444 = vdwg.mxu0
      %v4445 = vpack.c.bf16 %v4442, %v4442
      %v4447 = vsel %vm1100, %v4445, 0
      %v4450 = vsel %vm1499, %v996, 0
      %4452 = vmatprep.subr.bf16.mxu0 0
      %4453 = vmatpush1.bf16.msra.mxu0 %v4450
      %4454 = vmatprep.subr.bf16.mxu0 0
      %4455 = vmatpush1.bf16.msra.mxu0 0
      %4456 = vmatprep.subr.bf16.mxu0 0
      %4457 = vmatpush1.bf16.msra.mxu0 0
      %4458 = vmatprep.subr.bf16.mxu0 0
      %4459 = vmatpush1.bf16.msra.mxu0 0
      %4460 = vmatprep.subr.bf16.mxu0 0
      %4461 = vmatpush1.bf16.msra.mxu0 0
      %4462 = vmatprep.subr.bf16.mxu0 0
      %4463 = vmatpush1.bf16.msra.mxu0 0
      %4464 = vmatprep.subr.bf16.mxu0 0
      %4465 = vmatpush1.bf16.msra.mxu0 0
      %4466 = vmatprep.subr.bf16.mxu0 0
      %4467 = vmatpush1.bf16.msra.mxu0 0
      %4468 = vmatprep.subr.bf16.mxu0 0
      %4469 = vmatpush1.bf16.msra.mxu0 0
      %4470 = vmatprep.subr.bf16.mxu0 0
      %4471 = vmatpush1.bf16.msra.mxu0 0
      %4472 = vmatprep.subr.bf16.mxu0 0
      %4473 = vmatpush1.bf16.msra.mxu0 0
      %4474 = vmatprep.subr.bf16.mxu0 0
      %4475 = vmatpush1.bf16.msra.mxu0 0
      %4476 = vmatprep.subr.bf16.mxu0 0
      %4477 = vmatpush1.bf16.msra.mxu0 0
      %4478 = vmatprep.subr.bf16.mxu0 0
      %4479 = vmatpush1.bf16.msra.mxu0 0
      %4480 = vmatprep.subr.bf16.mxu0 0
      %4481 = vmatpush1.bf16.msra.mxu0 0
      %4482 = vmatprep.subr.bf16.mxu0 0
      %4483 = vmatpush1.bf16.msra.mxu0 0
      %4484 = vmatprep.mubr.bf16.mxu0 0
      %4485 = vmatmul.mubr.bf16.gmra.mrb[0].mxu0 %v4447
      %v4486 = vpop.f32.mrb[0].mxu0
      %v4487 = vadd.f32 0.0, %v4486
      %v4488 = vpop.f32.mrb[0].mxu0
      %v4489 = vpop.f32.mrb[0].mxu0
      %v4490 = vpop.f32.mrb[0].mxu0
      %4491 = vdwg.mxu0
      %v4492 = vadd.f32 %v4279, %v4487
      %v4493 = vadd.f32 %v4492, 0.0
      %v4495 = vlaneseq
      %v4496 = vshrl.u32 %v4495, 7
      %v4497 = vsub.s32 0, %v4496
      %v4498 = vrot.slane %v997, %v4497
      %v4500 = vadd.f32 %v4493, %v4498
      %v4501 = vsel %vm1049, %v4500, 0.0
      %4502 = vadd.xlane.f32.xlu0 %v4501
      %v4503 = vpop.xlane.xlu0 %4502
      %v4504 = vmul.f32 %v4503, %v2107
      %v4505 = vsub.f32 %v4500, %v4504
      %v4506 = vmul.f32 %v4505, %v4505
      %v4507 = vsel %vm1049, %v4506, 0.0
      %4508 = vadd.xlane.f32.xlu0 %v4507
      %v4509 = vpop.xlane.xlu0 %4508
      %v4510 = vmul.f32 %v4509, %v2107
      %v4511 = vadd.f32 %v4510, 1e-05
      %v4512 = vrsqrt.pop %v4511
      %v4513 = vmul.f32 %v4505, %v4512
      %v4515 = vlaneseq
      %v4516 = vshrl.u32 %v4515, 7
      %v4517 = vsub.s32 0, %v4516
      %v4518 = vrot.slane %v998, %v4517
      %v4520 = vmul.f32 %v4513, %v4518
      %v4522 = vlaneseq
      %v4523 = vshrl.u32 %v4522, 7
      %v4524 = vsub.s32 0, %v4523
      %v4525 = vrot.slane %v999, %v4524
      %v4527 = vadd.f32 %v4520, %v4525
      %v4528 = vpack.c.bf16 %v4527, %v4527
      %v4533 = vsel %vm1049, %v4528, 0
      %4535 = vmatprep.subr.bf16.mxu0 0
      %4536 = vmatpush1.bf16.msra.mxu0 %v3528
      %4537 = vmatprep.subr.bf16.mxu0 0
      %4538 = vmatpush1.bf16.msra.mxu0 %v3529
      %4539 = vmatprep.subr.bf16.mxu0 0
      %4540 = vmatpush1.bf16.msra.mxu0 0
      %4541 = vmatprep.subr.bf16.mxu0 0
      %4542 = vmatpush1.bf16.msra.mxu0 0
      %4543 = vmatprep.subr.bf16.mxu0 0
      %4544 = vmatpush1.bf16.msra.mxu0 0
      %4545 = vmatprep.subr.bf16.mxu0 0
      %4546 = vmatpush1.bf16.msra.mxu0 0
      %4547 = vmatprep.subr.bf16.mxu0 0
      %4548 = vmatpush1.bf16.msra.mxu0 0
      %4549 = vmatprep.subr.bf16.mxu0 0
      %4550 = vmatpush1.bf16.msra.mxu0 0
      %4551 = vmatprep.subr.bf16.mxu0 0
      %4552 = vmatpush1.bf16.msra.mxu0 0
      %4553 = vmatprep.subr.bf16.mxu0 0
      %4554 = vmatpush1.bf16.msra.mxu0 0
      %4555 = vmatprep.subr.bf16.mxu0 0
      %4556 = vmatpush1.bf16.msra.mxu0 0
      %4557 = vmatprep.subr.bf16.mxu0 0
      %4558 = vmatpush1.bf16.msra.mxu0 0
      %4559 = vmatprep.subr.bf16.mxu0 0
      %4560 = vmatpush1.bf16.msra.mxu0 0
      %4561 = vmatprep.subr.bf16.mxu0 0
      %4562 = vmatpush1.bf16.msra.mxu0 0
      %4563 = vmatprep.subr.bf16.mxu0 0
      %4564 = vmatpush1.bf16.msra.mxu0 0
      %4565 = vmatprep.subr.bf16.mxu0 0
      %4566 = vmatpush1.bf16.msra.mxu0 0
      %4567 = vmatprep.mubr.bf16.mxu0 0
      %4568 = vmatmul.mubr.bf16.gmra.mrb[0].mxu0 %v4533
      %v4569 = vpop.f32.mrb[0].mxu0
      %v4570 = vadd.f32 %v3519, %v4569
      %v4571 = vpop.f32.mrb[0].mxu0
      %v4572 = vpop.f32.mrb[0].mxu0
      %v4573 = vpop.f32.mrb[0].mxu0
      %4574 = vdwg.mxu0
      %v4576 = vsel %vm1100, %v4570, 0
      %v4579 = vsel %vm1100, %v3577, 0
      %v4582 = vsel %vm1100, %v3580, 0
      %4584 = vmatprep.subr.mxu0 0.0
      %4585 = vmatpush1.xpose.msra.mxu0 %v4579
      %4586 = vmatprep.subr.mxu0 0.0
      %4587 = vmatpush1.xpose.msra.mxu0 %v4582
      %4588 = vmatprep.subr.mxu0 0.0
      %4589 = vmatpush1.xpose.msra.mxu0 0.0
      %4590 = vmatprep.subr.mxu0 0.0
      %4591 = vmatpush1.xpose.msra.mxu0 0.0
      %4592 = vmatprep.subr.mxu0 0.0
      %4593 = vmatpush1.xpose.msra.mxu0 0.0
      %4594 = vmatprep.subr.mxu0 0.0
      %4595 = vmatpush1.xpose.msra.mxu0 0.0
      %4596 = vmatprep.subr.mxu0 0.0
      %4597 = vmatpush1.xpose.msra.mxu0 0.0
      %4598 = vmatprep.subr.mxu0 0.0
      %4599 = vmatpush1.xpose.msra.mxu0 0.0
      %4600 = vmatprep.subr.mxu0 0.0
      %4601 = vmatpush1.xpose.msra.mxu0 0.0
      %4602 = vmatprep.subr.mxu0 0.0
      %4603 = vmatpush1.xpose.msra.mxu0 0.0
      %4604 = vmatprep.subr.mxu0 0.0
      %4605 = vmatpush1.xpose.msra.mxu0 0.0
      %4606 = vmatprep.subr.mxu0 0.0
      %4607 = vmatpush1.xpose.msra.mxu0 0.0
      %4608 = vmatprep.subr.mxu0 0.0
      %4609 = vmatpush1.xpose.msra.mxu0 0.0
      %4610 = vmatprep.subr.mxu0 0.0
      %4611 = vmatpush1.xpose.msra.mxu0 0.0
      %4612 = vmatprep.subr.mxu0 0.0
      %4613 = vmatpush1.xpose.msra.mxu0 0.0
      %4614 = vmatprep.subr.mxu0 0.0
      %4615 = vmatpush1.xpose.msra.mxu0 0.0
      %4616 = vmatprep.subr.mxu0 0.0
      %4617 = vmatpush1.xpose.msra.mxu0 0.0
      %4618 = vmatprep.subr.mxu0 0.0
      %4619 = vmatpush1.xpose.msra.mxu0 0.0
      %4620 = vmatprep.subr.mxu0 0.0
      %4621 = vmatpush1.xpose.msra.mxu0 0.0
      %4622 = vmatprep.subr.mxu0 0.0
      %4623 = vmatpush1.xpose.msra.mxu0 0.0
      %4624 = vmatprep.subr.mxu0 0.0
      %4625 = vmatpush1.xpose.msra.mxu0 0.0
      %4626 = vmatprep.subr.mxu0 0.0
      %4627 = vmatpush1.xpose.msra.mxu0 0.0
      %4628 = vmatprep.subr.mxu0 0.0
      %4629 = vmatpush1.xpose.msra.mxu0 0.0
      %4630 = vmatprep.subr.mxu0 0.0
      %4631 = vmatpush1.xpose.msra.mxu0 0.0
      %4632 = vmatprep.subr.mxu0 0.0
      %4633 = vmatpush1.xpose.msra.mxu0 0.0
      %4634 = vmatprep.subr.mxu0 0.0
      %4635 = vmatpush1.xpose.msra.mxu0 0.0
      %4636 = vmatprep.subr.mxu0 0.0
      %4637 = vmatpush1.xpose.msra.mxu0 0.0
      %4638 = vmatprep.subr.mxu0 0.0
      %4639 = vmatpush1.xpose.msra.mxu0 0.0
      %4640 = vmatprep.subr.mxu0 0.0
      %4641 = vmatpush1.xpose.msra.mxu0 0.0
      %4642 = vmatprep.subr.mxu0 0.0
      %4643 = vmatpush1.xpose.msra.mxu0 0.0
      %4644 = vmatprep.subr.mxu0 0.0
      %4645 = vmatpush1.xpose.msra.mxu0 0.0
      %4646 = vmatprep.subr.mxu0 0.0
      %4647 = vmatpush1.xpose.msra.mxu0 0.0
      %4648 = vmatprep.mubr.f32.mxu0 0.0
      %4649 = vmatmul.mubr.f32.gmra.mrb[0].mxu0 %v4576
      %v4650 = vpop.f32.mrb[0].mxu0
      %v4651 = vadd.f32 0.0, %v4650
      %v4652 = vpop.f32.mrb[0].mxu0
      %4653 = vdwg.mxu0
      %v4654 = vsel %vm1184, %v4651, -inf
      %4655 = vmax.xlane.f32.xlu0 %v4654
      %v4656 = vpop.xlane.xlu0 %4655
      %v4657 = vsub.f32 %v4651, %v4656
      %v4658 = vmul.f32 %v4657, 1.442695
      %v4659 = vpow.pop %v4658
      %v4660 = vsel %vm1184, %v4659, 0.0
      %4661 = vadd.xlane.f32.xlu0 %v4660
      %v4662 = vpop.xlane.xlu0 %4661
      %v4663 = vrcp.pop %v4662
      %v4664 = vmul.f32 %v4659, %v4663
      %4665 = vrot.lane.b32.xlu0 %v3577, 96
      %v4666 = vpop.permute.xlu0 %4665
      %4667 = vrot.lane.b32.xlu0 %v3580, 96
      %v4668 = vpop.permute.xlu0 %4667
      %v4672 = vsel %vm1184, %v4664, 0
      %4674 = vmatprep.subr.mxu0 0.0
      %4675 = vmatpush1.msra.mxu0 %v4666
      %4676 = vmatprep.subr.mxu0 0.0
      %4677 = vmatpush1.msra.mxu0 %v4668
      %4678 = vmatprep.subr.mxu0 0.0
      %4679 = vmatpush1.msra.mxu0 0.0
      %4680 = vmatprep.subr.mxu0 0.0
      %4681 = vmatpush1.msra.mxu0 0.0
      %4682 = vmatprep.subr.mxu0 0.0
      %4683 = vmatpush1.msra.mxu0 0.0
      %4684 = vmatprep.subr.mxu0 0.0
      %4685 = vmatpush1.msra.mxu0 0.0
      %4686 = vmatprep.subr.mxu0 0.0
      %4687 = vmatpush1.msra.mxu0 0.0
      %4688 = vmatprep.subr.mxu0 0.0
      %4689 = vmatpush1.msra.mxu0 0.0
      %4690 = vmatprep.subr.mxu0 0.0
      %4691 = vmatpush1.msra.mxu0 0.0
      %4692 = vmatprep.subr.mxu0 0.0
      %4693 = vmatpush1.msra.mxu0 0.0
      %4694 = vmatprep.subr.mxu0 0.0
      %4695 = vmatpush1.msra.mxu0 0.0
      %4696 = vmatprep.subr.mxu0 0.0
      %4697 = vmatpush1.msra.mxu0 0.0
      %4698 = vmatprep.subr.mxu0 0.0
      %4699 = vmatpush1.msra.mxu0 0.0
      %4700 = vmatprep.subr.mxu0 0.0
      %4701 = vmatpush1.msra.mxu0 0.0
      %4702 = vmatprep.subr.mxu0 0.0
      %4703 = vmatpush1.msra.mxu0 0.0
      %4704 = vmatprep.subr.mxu0 0.0
      %4705 = vmatpush1.msra.mxu0 0.0
      %4706 = vmatprep.subr.mxu0 0.0
      %4707 = vmatpush1.msra.mxu0 0.0
      %4708 = vmatprep.subr.mxu0 0.0
      %4709 = vmatpush1.msra.mxu0 0.0
      %4710 = vmatprep.subr.mxu0 0.0
      %4711 = vmatpush1.msra.mxu0 0.0
      %4712 = vmatprep.subr.mxu0 0.0
      %4713 = vmatpush1.msra.mxu0 0.0
      %4714 = vmatprep.subr.mxu0 0.0
      %4715 = vmatpush1.msra.mxu0 0.0
      %4716 = vmatprep.subr.mxu0 0.0
      %4717 = vmatpush1.msra.mxu0 0.0
      %4718 = vmatprep.subr.mxu0 0.0
      %4719 = vmatpush1.msra.mxu0 0.0
      %4720 = vmatprep.subr.mxu0 0.0
      %4721 = vmatpush1.msra.mxu0 0.0
      %4722 = vmatprep.subr.mxu0 0.0
      %4723 = vmatpush1.msra.mxu0 0.0
      %4724 = vmatprep.subr.mxu0 0.0
      %4725 = vmatpush1.msra.mxu0 0.0
      %4726 = vmatprep.subr.mxu0 0.0
      %4727 = vmatpush1.msra.mxu0 0.0
      %4728 = vmatprep.subr.mxu0 0.0
      %4729 = vmatpush1.msra.mxu0 0.0
      %4730 = vmatprep.subr.mxu0 0.0
      %4731 = vmatpush1.msra.mxu0 0.0
      %4732 = vmatprep.subr.mxu0 0.0
      %4733 = vmatpush1.msra.mxu0 0.0
      %4734 = vmatprep.subr.mxu0 0.0
      %4735 = vmatpush1.msra.mxu0 0.0
      %4736 = vmatprep.subr.mxu0 0.0
      %4737 = vmatpush1.msra.mxu0 0.0
      %4738 = vmatprep.mubr.f32.mxu0 0.0
      %4739 = vmatmul.mubr.f32.gmra.mrb[0].mxu0 %v4672
      %v4740 = vpop.f32.mrb[0].mxu0
      %v4741 = vadd.f32 0.0, %v4740
      %v4742 = vpop.f32.mrb[0].mxu0
      %4743 = vdwg.mxu0
      %v4744 = vpack.c.bf16 %v4741, %v4741
      %4745 = vrot.lane.b32.xlu0 %v4570, 120
      %v4746 = vpop.permute.xlu0 %4745
      %4747 = vrot.lane.b32.xlu0 %v3577, 120
      %v4748 = vpop.permute.xlu0 %4747
      %4749 = vrot.lane.b32.xlu0 %v3580, 120
      %v4750 = vpop.permute.xlu0 %4749
      %v4751 = vsel %vm1100, %v4746, 0
      %v4753 = vsel %vm1100, %v4748, 0
      %v4755 = vsel %vm1100, %v4750, 0
      %4757 = vmatprep.subr.mxu0 0.0
      %4758 = vmatpush1.xpose.msra.mxu0 %v4753
      %4759 = vmatprep.subr.mxu0 0.0
      %4760 = vmatpush1.xpose.msra.mxu0 %v4755
      %4761 = vmatprep.subr.mxu0 0.0
      %4762 = vmatpush1.xpose.msra.mxu0 0.0
      %4763 = vmatprep.subr.mxu0 0.0
      %4764 = vmatpush1.xpose.msra.mxu0 0.0
      %4765 = vmatprep.subr.mxu0 0.0
      %4766 = vmatpush1.xpose.msra.mxu0 0.0
      %4767 = vmatprep.subr.mxu0 0.0
      %4768 = vmatpush1.xpose.msra.mxu0 0.0
      %4769 = vmatprep.subr.mxu0 0.0
      %4770 = vmatpush1.xpose.msra.mxu0 0.0
      %4771 = vmatprep.subr.mxu0 0.0
      %4772 = vmatpush1.xpose.msra.mxu0 0.0
      %4773 = vmatprep.subr.mxu0 0.0
      %4774 = vmatpush1.xpose.msra.mxu0 0.0
      %4775 = vmatprep.subr.mxu0 0.0
      %4776 = vmatpush1.xpose.msra.mxu0 0.0
      %4777 = vmatprep.subr.mxu0 0.0
      %4778 = vmatpush1.xpose.msra.mxu0 0.0
      %4779 = vmatprep.subr.mxu0 0.0
      %4780 = vmatpush1.xpose.msra.mxu0 0.0
      %4781 = vmatprep.subr.mxu0 0.0
      %4782 = vmatpush1.xpose.msra.mxu0 0.0
      %4783 = vmatprep.subr.mxu0 0.0
      %4784 = vmatpush1.xpose.msra.mxu0 0.0
      %4785 = vmatprep.subr.mxu0 0.0
      %4786 = vmatpush1.xpose.msra.mxu0 0.0
      %4787 = vmatprep.subr.mxu0 0.0
      %4788 = vmatpush1.xpose.msra.mxu0 0.0
      %4789 = vmatprep.subr.mxu0 0.0
      %4790 = vmatpush1.xpose.msra.mxu0 0.0
      %4791 = vmatprep.subr.mxu0 0.0
      %4792 = vmatpush1.xpose.msra.mxu0 0.0
      %4793 = vmatprep.subr.mxu0 0.0
      %4794 = vmatpush1.xpose.msra.mxu0 0.0
      %4795 = vmatprep.subr.mxu0 0.0
      %4796 = vmatpush1.xpose.msra.mxu0 0.0
      %4797 = vmatprep.subr.mxu0 0.0
      %4798 = vmatpush1.xpose.msra.mxu0 0.0
      %4799 = vmatprep.subr.mxu0 0.0
      %4800 = vmatpush1.xpose.msra.mxu0 0.0
      %4801 = vmatprep.subr.mxu0 0.0
      %4802 = vmatpush1.xpose.msra.mxu0 0.0
      %4803 = vmatprep.subr.mxu0 0.0
      %4804 = vmatpush1.xpose.msra.mxu0 0.0
      %4805 = vmatprep.subr.mxu0 0.0
      %4806 = vmatpush1.xpose.msra.mxu0 0.0
      %4807 = vmatprep.subr.mxu0 0.0
      %4808 = vmatpush1.xpose.msra.mxu0 0.0
      %4809 = vmatprep.subr.mxu0 0.0
      %4810 = vmatpush1.xpose.msra.mxu0 0.0
      %4811 = vmatprep.subr.mxu0 0.0
      %4812 = vmatpush1.xpose.msra.mxu0 0.0
      %4813 = vmatprep.subr.mxu0 0.0
      %4814 = vmatpush1.xpose.msra.mxu0 0.0
      %4815 = vmatprep.subr.mxu0 0.0
      %4816 = vmatpush1.xpose.msra.mxu0 0.0
      %4817 = vmatprep.subr.mxu0 0.0
      %4818 = vmatpush1.xpose.msra.mxu0 0.0
      %4819 = vmatprep.subr.mxu0 0.0
      %4820 = vmatpush1.xpose.msra.mxu0 0.0
      %4821 = vmatprep.mubr.f32.mxu0 0.0
      %4822 = vmatmul.mubr.f32.gmra.mrb[0].mxu0 %v4751
      %v4823 = vpop.f32.mrb[0].mxu0
      %v4824 = vadd.f32 0.0, %v4823
      %v4825 = vpop.f32.mrb[0].mxu0
      %4826 = vdwg.mxu0
      %v4827 = vsel %vm1184, %v4824, -inf
      %4828 = vmax.xlane.f32.xlu0 %v4827
      %v4829 = vpop.xlane.xlu0 %4828
      %v4830 = vsub.f32 %v4824, %v4829
      %v4831 = vmul.f32 %v4830, 1.442695
      %v4832 = vpow.pop %v4831
      %v4833 = vsel %vm1184, %v4832, 0.0
      %4834 = vadd.xlane.f32.xlu0 %v4833
      %v4835 = vpop.xlane.xlu0 %4834
      %v4836 = vrcp.pop %v4835
      %v4837 = vmul.f32 %v4832, %v4836
      %4838 = vrot.lane.b32.xlu0 %v3577, 88
      %v4839 = vpop.permute.xlu0 %4838
      %4840 = vrot.lane.b32.xlu0 %v3580, 88
      %v4841 = vpop.permute.xlu0 %4840
      %v4845 = vsel %vm1184, %v4837, 0
      %4847 = vmatprep.subr.mxu0 0.0
      %4848 = vmatpush1.msra.mxu0 %v4839
      %4849 = vmatprep.subr.mxu0 0.0
      %4850 = vmatpush1.msra.mxu0 %v4841
      %4851 = vmatprep.subr.mxu0 0.0
      %4852 = vmatpush1.msra.mxu0 0.0
      %4853 = vmatprep.subr.mxu0 0.0
      %4854 = vmatpush1.msra.mxu0 0.0
      %4855 = vmatprep.subr.mxu0 0.0
      %4856 = vmatpush1.msra.mxu0 0.0
      %4857 = vmatprep.subr.mxu0 0.0
      %4858 = vmatpush1.msra.mxu0 0.0
      %4859 = vmatprep.subr.mxu0 0.0
      %4860 = vmatpush1.msra.mxu0 0.0
      %4861 = vmatprep.subr.mxu0 0.0
      %4862 = vmatpush1.msra.mxu0 0.0
      %4863 = vmatprep.subr.mxu0 0.0
      %4864 = vmatpush1.msra.mxu0 0.0
      %4865 = vmatprep.subr.mxu0 0.0
      %4866 = vmatpush1.msra.mxu0 0.0
      %4867 = vmatprep.subr.mxu0 0.0
      %4868 = vmatpush1.msra.mxu0 0.0
      %4869 = vmatprep.subr.mxu0 0.0
      %4870 = vmatpush1.msra.mxu0 0.0
      %4871 = vmatprep.subr.mxu0 0.0
      %4872 = vmatpush1.msra.mxu0 0.0
      %4873 = vmatprep.subr.mxu0 0.0
      %4874 = vmatpush1.msra.mxu0 0.0
      %4875 = vmatprep.subr.mxu0 0.0
      %4876 = vmatpush1.msra.mxu0 0.0
      %4877 = vmatprep.subr.mxu0 0.0
      %4878 = vmatpush1.msra.mxu0 0.0
      %4879 = vmatprep.subr.mxu0 0.0
      %4880 = vmatpush1.msra.mxu0 0.0
      %4881 = vmatprep.subr.mxu0 0.0
      %4882 = vmatpush1.msra.mxu0 0.0
      %4883 = vmatprep.subr.mxu0 0.0
      %4884 = vmatpush1.msra.mxu0 0.0
      %4885 = vmatprep.subr.mxu0 0.0
      %4886 = vmatpush1.msra.mxu0 0.0
      %4887 = vmatprep.subr.mxu0 0.0
      %4888 = vmatpush1.msra.mxu0 0.0
      %4889 = vmatprep.subr.mxu0 0.0
      %4890 = vmatpush1.msra.mxu0 0.0
      %4891 = vmatprep.subr.mxu0 0.0
      %4892 = vmatpush1.msra.mxu0 0.0
      %4893 = vmatprep.subr.mxu0 0.0
      %4894 = vmatpush1.msra.mxu0 0.0
      %4895 = vmatprep.subr.mxu0 0.0
      %4896 = vmatpush1.msra.mxu0 0.0
      %4897 = vmatprep.subr.mxu0 0.0
      %4898 = vmatpush1.msra.mxu0 0.0
      %4899 = vmatprep.subr.mxu0 0.0
      %4900 = vmatpush1.msra.mxu0 0.0
      %4901 = vmatprep.subr.mxu0 0.0
      %4902 = vmatpush1.msra.mxu0 0.0
      %4903 = vmatprep.subr.mxu0 0.0
      %4904 = vmatpush1.msra.mxu0 0.0
      %4905 = vmatprep.subr.mxu0 0.0
      %4906 = vmatpush1.msra.mxu0 0.0
      %4907 = vmatprep.subr.mxu0 0.0
      %4908 = vmatpush1.msra.mxu0 0.0
      %4909 = vmatprep.subr.mxu0 0.0
      %4910 = vmatpush1.msra.mxu0 0.0
      %4911 = vmatprep.mubr.f32.mxu0 0.0
      %4912 = vmatmul.mubr.f32.gmra.mrb[0].mxu0 %v4845
      %v4913 = vpop.f32.mrb[0].mxu0
      %v4914 = vadd.f32 0.0, %v4913
      %v4915 = vpop.f32.mrb[0].mxu0
      %4916 = vdwg.mxu0
      %v4917 = vpack.c.bf16 %v4914, %v4914
      %v4919 = vsel %vm1100, %v4917, 0
      %v4922 = vsel %vm1499, %v1006, 0
      %4924 = vmatprep.subr.bf16.mxu0 0
      %4925 = vmatpush1.bf16.msra.mxu0 %v4922
      %4926 = vmatprep.subr.bf16.mxu0 0
      %4927 = vmatpush1.bf16.msra.mxu0 0
      %4928 = vmatprep.subr.bf16.mxu0 0
      %4929 = vmatpush1.bf16.msra.mxu0 0
      %4930 = vmatprep.subr.bf16.mxu0 0
      %4931 = vmatpush1.bf16.msra.mxu0 0
      %4932 = vmatprep.subr.bf16.mxu0 0
      %4933 = vmatpush1.bf16.msra.mxu0 0
      %4934 = vmatprep.subr.bf16.mxu0 0
      %4935 = vmatpush1.bf16.msra.mxu0 0
      %4936 = vmatprep.subr.bf16.mxu0 0
      %4937 = vmatpush1.bf16.msra.mxu0 0
      %4938 = vmatprep.subr.bf16.mxu0 0
      %4939 = vmatpush1.bf16.msra.mxu0 0
      %4940 = vmatprep.subr.bf16.mxu0 0
      %4941 = vmatpush1.bf16.msra.mxu0 0
      %4942 = vmatprep.subr.bf16.mxu0 0
      %4943 = vmatpush1.bf16.msra.mxu0 0
      %4944 = vmatprep.subr.bf16.mxu0 0
      %4945 = vmatpush1.bf16.msra.mxu0 0
      %4946 = vmatprep.subr.bf16.mxu0 0
      %4947 = vmatpush1.bf16.msra.mxu0 0
      %4948 = vmatprep.subr.bf16.mxu0 0
      %4949 = vmatpush1.bf16.msra.mxu0 0
      %4950 = vmatprep.subr.bf16.mxu0 0
      %4951 = vmatpush1.bf16.msra.mxu0 0
      %4952 = vmatprep.subr.bf16.mxu0 0
      %4953 = vmatpush1.bf16.msra.mxu0 0
      %4954 = vmatprep.subr.bf16.mxu0 0
      %4955 = vmatpush1.bf16.msra.mxu0 0
      %4956 = vmatprep.mubr.bf16.mxu0 0
      %4957 = vmatmul.mubr.bf16.gmra.mrb[0].mxu0 %v4919
      %v4958 = vpop.f32.mrb[0].mxu0
      %v4959 = vadd.f32 0.0, %v4958
      %v4960 = vpop.f32.mrb[0].mxu0
      %v4961 = vpop.f32.mrb[0].mxu0
      %v4962 = vpop.f32.mrb[0].mxu0
      %4963 = vdwg.mxu0
      %v4965 = vsel %vm1100, %v4744, 0
      %v4968 = vsel %vm1499, %v1005, 0
      %4970 = vmatprep.subr.bf16.mxu0 0
      %4971 = vmatpush1.bf16.msra.mxu0 %v4968
      %4972 = vmatprep.subr.bf16.mxu0 0
      %4973 = vmatpush1.bf16.msra.mxu0 0
      %4974 = vmatprep.subr.bf16.mxu0 0
      %4975 = vmatpush1.bf16.msra.mxu0 0
      %4976 = vmatprep.subr.bf16.mxu0 0
      %4977 = vmatpush1.bf16.msra.mxu0 0
      %4978 = vmatprep.subr.bf16.mxu0 0
      %4979 = vmatpush1.bf16.msra.mxu0 0
      %4980 = vmatprep.subr.bf16.mxu0 0
      %4981 = vmatpush1.bf16.msra.mxu0 0
      %4982 = vmatprep.subr.bf16.mxu0 0
      %4983 = vmatpush1.bf16.msra.mxu0 0
      %4984 = vmatprep.subr.bf16.mxu0 0
      %4985 = vmatpush1.bf16.msra.mxu0 0
      %4986 = vmatprep.subr.bf16.mxu0 0
      %4987 = vmatpush1.bf16.msra.mxu0 0
      %4988 = vmatprep.subr.bf16.mxu0 0
      %4989 = vmatpush1.bf16.msra.mxu0 0
      %4990 = vmatprep.subr.bf16.mxu0 0
      %4991 = vmatpush1.bf16.msra.mxu0 0
      %4992 = vmatprep.subr.bf16.mxu0 0
      %4993 = vmatpush1.bf16.msra.mxu0 0
      %4994 = vmatprep.subr.bf16.mxu0 0
      %4995 = vmatpush1.bf16.msra.mxu0 0
      %4996 = vmatprep.subr.bf16.mxu0 0
      %4997 = vmatpush1.bf16.msra.mxu0 0
      %4998 = vmatprep.subr.bf16.mxu0 0
      %4999 = vmatpush1.bf16.msra.mxu0 0
      %5000 = vmatprep.subr.bf16.mxu0 0
      %5001 = vmatpush1.bf16.msra.mxu0 0
      %5002 = vmatprep.mubr.bf16.mxu0 0
      %5003 = vmatmul.mubr.bf16.gmra.mrb[0].mxu0 %v4965
      %v5004 = vpop.f32.mrb[0].mxu0
      %v5005 = vadd.f32 %v4959, %v5004
      %v5006 = vpop.f32.mrb[0].mxu0
      %v5007 = vpop.f32.mrb[0].mxu0
      %v5008 = vpop.f32.mrb[0].mxu0
      %5009 = vdwg.mxu0
      %5010 = vrot.lane.b32.xlu0 %v4570, 112
      %v5011 = vpop.permute.xlu0 %5010
      %5012 = vrot.lane.b32.xlu0 %v3577, 112
      %v5013 = vpop.permute.xlu0 %5012
      %5014 = vrot.lane.b32.xlu0 %v3580, 112
      %v5015 = vpop.permute.xlu0 %5014
      %v5016 = vsel %vm1100, %v5011, 0
      %v5018 = vsel %vm1100, %v5013, 0
      %v5020 = vsel %vm1100, %v5015, 0
      %5022 = vmatprep.subr.mxu0 0.0
      %5023 = vmatpush1.xpose.msra.mxu0 %v5018
      %5024 = vmatprep.subr.mxu0 0.0
      %5025 = vmatpush1.xpose.msra.mxu0 %v5020
      %5026 = vmatprep.subr.mxu0 0.0
      %5027 = vmatpush1.xpose.msra.mxu0 0.0
      %5028 = vmatprep.subr.mxu0 0.0
      %5029 = vmatpush1.xpose.msra.mxu0 0.0
      %5030 = vmatprep.subr.mxu0 0.0
      %5031 = vmatpush1.xpose.msra.mxu0 0.0
      %5032 = vmatprep.subr.mxu0 0.0
      %5033 = vmatpush1.xpose.msra.mxu0 0.0
      %5034 = vmatprep.subr.mxu0 0.0
      %5035 = vmatpush1.xpose.msra.mxu0 0.0
      %5036 = vmatprep.subr.mxu0 0.0
      %5037 = vmatpush1.xpose.msra.mxu0 0.0
      %5038 = vmatprep.subr.mxu0 0.0
      %5039 = vmatpush1.xpose.msra.mxu0 0.0
      %5040 = vmatprep.subr.mxu0 0.0
      %5041 = vmatpush1.xpose.msra.mxu0 0.0
      %5042 = vmatprep.subr.mxu0 0.0
      %5043 = vmatpush1.xpose.msra.mxu0 0.0
      %5044 = vmatprep.subr.mxu0 0.0
      %5045 = vmatpush1.xpose.msra.mxu0 0.0
      %5046 = vmatprep.subr.mxu0 0.0
      %5047 = vmatpush1.xpose.msra.mxu0 0.0
      %5048 = vmatprep.subr.mxu0 0.0
      %5049 = vmatpush1.xpose.msra.mxu0 0.0
      %5050 = vmatprep.subr.mxu0 0.0
      %5051 = vmatpush1.xpose.msra.mxu0 0.0
      %5052 = vmatprep.subr.mxu0 0.0
      %5053 = vmatpush1.xpose.msra.mxu0 0.0
      %5054 = vmatprep.subr.mxu0 0.0
      %5055 = vmatpush1.xpose.msra.mxu0 0.0
      %5056 = vmatprep.subr.mxu0 0.0
      %5057 = vmatpush1.xpose.msra.mxu0 0.0
      %5058 = vmatprep.subr.mxu0 0.0
      %5059 = vmatpush1.xpose.msra.mxu0 0.0
      %5060 = vmatprep.subr.mxu0 0.0
      %5061 = vmatpush1.xpose.msra.mxu0 0.0
      %5062 = vmatprep.subr.mxu0 0.0
      %5063 = vmatpush1.xpose.msra.mxu0 0.0
      %5064 = vmatprep.subr.mxu0 0.0
      %5065 = vmatpush1.xpose.msra.mxu0 0.0
      %5066 = vmatprep.subr.mxu0 0.0
      %5067 = vmatpush1.xpose.msra.mxu0 0.0
      %5068 = vmatprep.subr.mxu0 0.0
      %5069 = vmatpush1.xpose.msra.mxu0 0.0
      %5070 = vmatprep.subr.mxu0 0.0
      %5071 = vmatpush1.xpose.msra.mxu0 0.0
      %5072 = vmatprep.subr.mxu0 0.0
      %5073 = vmatpush1.xpose.msra.mxu0 0.0
      %5074 = vmatprep.subr.mxu0 0.0
      %5075 = vmatpush1.xpose.msra.mxu0 0.0
      %5076 = vmatprep.subr.mxu0 0.0
      %5077 = vmatpush1.xpose.msra.mxu0 0.0
      %5078 = vmatprep.subr.mxu0 0.0
      %5079 = vmatpush1.xpose.msra.mxu0 0.0
      %5080 = vmatprep.subr.mxu0 0.0
      %5081 = vmatpush1.xpose.msra.mxu0 0.0
      %5082 = vmatprep.subr.mxu0 0.0
      %5083 = vmatpush1.xpose.msra.mxu0 0.0
      %5084 = vmatprep.subr.mxu0 0.0
      %5085 = vmatpush1.xpose.msra.mxu0 0.0
      %5086 = vmatprep.mubr.f32.mxu0 0.0
      %5087 = vmatmul.mubr.f32.gmra.mrb[0].mxu0 %v5016
      %v5088 = vpop.f32.mrb[0].mxu0
      %v5089 = vadd.f32 0.0, %v5088
      %v5090 = vpop.f32.mrb[0].mxu0
      %5091 = vdwg.mxu0
      %v5092 = vsel %vm1184, %v5089, -inf
      %5093 = vmax.xlane.f32.xlu0 %v5092
      %v5094 = vpop.xlane.xlu0 %5093
      %v5095 = vsub.f32 %v5089, %v5094
      %v5096 = vmul.f32 %v5095, 1.442695
      %v5097 = vpow.pop %v5096
      %v5098 = vsel %vm1184, %v5097, 0.0
      %5099 = vadd.xlane.f32.xlu0 %v5098
      %v5100 = vpop.xlane.xlu0 %5099
      %v5101 = vrcp.pop %v5100
      %v5102 = vmul.f32 %v5097, %v5101
      %5103 = vrot.lane.b32.xlu0 %v3577, 80
      %v5104 = vpop.permute.xlu0 %5103
      %5105 = vrot.lane.b32.xlu0 %v3580, 80
      %v5106 = vpop.permute.xlu0 %5105
      %v5110 = vsel %vm1184, %v5102, 0
      %5112 = vmatprep.subr.mxu0 0.0
      %5113 = vmatpush1.msra.mxu0 %v5104
      %5114 = vmatprep.subr.mxu0 0.0
      %5115 = vmatpush1.msra.mxu0 %v5106
      %5116 = vmatprep.subr.mxu0 0.0
      %5117 = vmatpush1.msra.mxu0 0.0
      %5118 = vmatprep.subr.mxu0 0.0
      %5119 = vmatpush1.msra.mxu0 0.0
      %5120 = vmatprep.subr.mxu0 0.0
      %5121 = vmatpush1.msra.mxu0 0.0
      %5122 = vmatprep.subr.mxu0 0.0
      %5123 = vmatpush1.msra.mxu0 0.0
      %5124 = vmatprep.subr.mxu0 0.0
      %5125 = vmatpush1.msra.mxu0 0.0
      %5126 = vmatprep.subr.mxu0 0.0
      %5127 = vmatpush1.msra.mxu0 0.0
      %5128 = vmatprep.subr.mxu0 0.0
      %5129 = vmatpush1.msra.mxu0 0.0
      %5130 = vmatprep.subr.mxu0 0.0
      %5131 = vmatpush1.msra.mxu0 0.0
      %5132 = vmatprep.subr.mxu0 0.0
      %5133 = vmatpush1.msra.mxu0 0.0
      %5134 = vmatprep.subr.mxu0 0.0
      %5135 = vmatpush1.msra.mxu0 0.0
      %5136 = vmatprep.subr.mxu0 0.0
      %5137 = vmatpush1.msra.mxu0 0.0
      %5138 = vmatprep.subr.mxu0 0.0
      %5139 = vmatpush1.msra.mxu0 0.0
      %5140 = vmatprep.subr.mxu0 0.0
      %5141 = vmatpush1.msra.mxu0 0.0
      %5142 = vmatprep.subr.mxu0 0.0
      %5143 = vmatpush1.msra.mxu0 0.0
      %5144 = vmatprep.subr.mxu0 0.0
      %5145 = vmatpush1.msra.mxu0 0.0
      %5146 = vmatprep.subr.mxu0 0.0
      %5147 = vmatpush1.msra.mxu0 0.0
      %5148 = vmatprep.subr.mxu0 0.0
      %5149 = vmatpush1.msra.mxu0 0.0
      %5150 = vmatprep.subr.mxu0 0.0
      %5151 = vmatpush1.msra.mxu0 0.0
      %5152 = vmatprep.subr.mxu0 0.0
      %5153 = vmatpush1.msra.mxu0 0.0
      %5154 = vmatprep.subr.mxu0 0.0
      %5155 = vmatpush1.msra.mxu0 0.0
      %5156 = vmatprep.subr.mxu0 0.0
      %5157 = vmatpush1.msra.mxu0 0.0
      %5158 = vmatprep.subr.mxu0 0.0
      %5159 = vmatpush1.msra.mxu0 0.0
      %5160 = vmatprep.subr.mxu0 0.0
      %5161 = vmatpush1.msra.mxu0 0.0
      %5162 = vmatprep.subr.mxu0 0.0
      %5163 = vmatpush1.msra.mxu0 0.0
      %5164 = vmatprep.subr.mxu0 0.0
      %5165 = vmatpush1.msra.mxu0 0.0
      %5166 = vmatprep.subr.mxu0 0.0
      %5167 = vmatpush1.msra.mxu0 0.0
      %5168 = vmatprep.subr.mxu0 0.0
      %5169 = vmatpush1.msra.mxu0 0.0
      %5170 = vmatprep.subr.mxu0 0.0
      %5171 = vmatpush1.msra.mxu0 0.0
      %5172 = vmatprep.subr.mxu0 0.0
      %5173 = vmatpush1.msra.mxu0 0.0
      %5174 = vmatprep.subr.mxu0 0.0
      %5175 = vmatpush1.msra.mxu0 0.0
      %5176 = vmatprep.mubr.f32.mxu0 0.0
      %5177 = vmatmul.mubr.f32.gmra.mrb[0].mxu0 %v5110
      %v5178 = vpop.f32.mrb[0].mxu0
      %v5179 = vadd.f32 0.0, %v5178
      %v5180 = vpop.f32.mrb[0].mxu0
      %5181 = vdwg.mxu0
      %v5182 = vpack.c.bf16 %v5179, %v5179
      %v5184 = vsel %vm1100, %v5182, 0
      %v5187 = vsel %vm1499, %v1007, 0
      %5189 = vmatprep.subr.bf16.mxu0 0
      %5190 = vmatpush1.bf16.msra.mxu0 %v5187
      %5191 = vmatprep.subr.bf16.mxu0 0
      %5192 = vmatpush1.bf16.msra.mxu0 0
      %5193 = vmatprep.subr.bf16.mxu0 0
      %5194 = vmatpush1.bf16.msra.mxu0 0
      %5195 = vmatprep.subr.bf16.mxu0 0
      %5196 = vmatpush1.bf16.msra.mxu0 0
      %5197 = vmatprep.subr.bf16.mxu0 0
      %5198 = vmatpush1.bf16.msra.mxu0 0
      %5199 = vmatprep.subr.bf16.mxu0 0
      %5200 = vmatpush1.bf16.msra.mxu0 0
      %5201 = vmatprep.subr.bf16.mxu0 0
      %5202 = vmatpush1.bf16.msra.mxu0 0
      %5203 = vmatprep.subr.bf16.mxu0 0
      %5204 = vmatpush1.bf16.msra.mxu0 0
      %5205 = vmatprep.subr.bf16.mxu0 0
      %5206 = vmatpush1.bf16.msra.mxu0 0
      %5207 = vmatprep.subr.bf16.mxu0 0
      %5208 = vmatpush1.bf16.msra.mxu0 0
      %5209 = vmatprep.subr.bf16.mxu0 0
      %5210 = vmatpush1.bf16.msra.mxu0 0
      %5211 = vmatprep.subr.bf16.mxu0 0
      %5212 = vmatpush1.bf16.msra.mxu0 0
      %5213 = vmatprep.subr.bf16.mxu0 0
      %5214 = vmatpush1.bf16.msra.mxu0 0
      %5215 = vmatprep.subr.bf16.mxu0 0
      %5216 = vmatpush1.bf16.msra.mxu0 0
      %5217 = vmatprep.subr.bf16.mxu0 0
      %5218 = vmatpush1.bf16.msra.mxu0 0
      %5219 = vmatprep.subr.bf16.mxu0 0
      %5220 = vmatpush1.bf16.msra.mxu0 0
      %5221 = vmatprep.mubr.bf16.mxu0 0
      %5222 = vmatmul.mubr.bf16.gmra.mrb[0].mxu0 %v5184
      %v5223 = vpop.f32.mrb[0].mxu0
      %v5224 = vadd.f32 0.0, %v5223
      %v5225 = vpop.f32.mrb[0].mxu0
      %v5226 = vpop.f32.mrb[0].mxu0
      %v5227 = vpop.f32.mrb[0].mxu0
      %5228 = vdwg.mxu0
      %v5229 = vadd.f32 %v5005, %v5224
      %5230 = vrot.lane.b32.xlu0 %v4570, 104
      %v5231 = vpop.permute.xlu0 %5230
      %5232 = vrot.lane.b32.xlu0 %v3577, 104
      %v5233 = vpop.permute.xlu0 %5232
      %5234 = vrot.lane.b32.xlu0 %v3580, 104
      %v5235 = vpop.permute.xlu0 %5234
      %v5236 = vsel %vm1100, %v5231, 0
      %v5238 = vsel %vm1100, %v5233, 0
      %v5240 = vsel %vm1100, %v5235, 0
      %5242 = vmatprep.subr.mxu0 0.0
      %5243 = vmatpush1.xpose.msra.mxu0 %v5238
      %5244 = vmatprep.subr.mxu0 0.0
      %5245 = vmatpush1.xpose.msra.mxu0 %v5240
      %5246 = vmatprep.subr.mxu0 0.0
      %5247 = vmatpush1.xpose.msra.mxu0 0.0
      %5248 = vmatprep.subr.mxu0 0.0
      %5249 = vmatpush1.xpose.msra.mxu0 0.0
      %5250 = vmatprep.subr.mxu0 0.0
      %5251 = vmatpush1.xpose.msra.mxu0 0.0
      %5252 = vmatprep.subr.mxu0 0.0
      %5253 = vmatpush1.xpose.msra.mxu0 0.0
      %5254 = vmatprep.subr.mxu0 0.0
      %5255 = vmatpush1.xpose.msra.mxu0 0.0
      %5256 = vmatprep.subr.mxu0 0.0
      %5257 = vmatpush1.xpose.msra.mxu0 0.0
      %5258 = vmatprep.subr.mxu0 0.0
      %5259 = vmatpush1.xpose.msra.mxu0 0.0
      %5260 = vmatprep.subr.mxu0 0.0
      %5261 = vmatpush1.xpose.msra.mxu0 0.0
      %5262 = vmatprep.subr.mxu0 0.0
      %5263 = vmatpush1.xpose.msra.mxu0 0.0
      %5264 = vmatprep.subr.mxu0 0.0
      %5265 = vmatpush1.xpose.msra.mxu0 0.0
      %5266 = vmatprep.subr.mxu0 0.0
      %5267 = vmatpush1.xpose.msra.mxu0 0.0
      %5268 = vmatprep.subr.mxu0 0.0
      %5269 = vmatpush1.xpose.msra.mxu0 0.0
      %5270 = vmatprep.subr.mxu0 0.0
      %5271 = vmatpush1.xpose.msra.mxu0 0.0
      %5272 = vmatprep.subr.mxu0 0.0
      %5273 = vmatpush1.xpose.msra.mxu0 0.0
      %5274 = vmatprep.subr.mxu0 0.0
      %5275 = vmatpush1.xpose.msra.mxu0 0.0
      %5276 = vmatprep.subr.mxu0 0.0
      %5277 = vmatpush1.xpose.msra.mxu0 0.0
      %5278 = vmatprep.subr.mxu0 0.0
      %5279 = vmatpush1.xpose.msra.mxu0 0.0
      %5280 = vmatprep.subr.mxu0 0.0
      %5281 = vmatpush1.xpose.msra.mxu0 0.0
      %5282 = vmatprep.subr.mxu0 0.0
      %5283 = vmatpush1.xpose.msra.mxu0 0.0
      %5284 = vmatprep.subr.mxu0 0.0
      %5285 = vmatpush1.xpose.msra.mxu0 0.0
      %5286 = vmatprep.subr.mxu0 0.0
      %5287 = vmatpush1.xpose.msra.mxu0 0.0
      %5288 = vmatprep.subr.mxu0 0.0
      %5289 = vmatpush1.xpose.msra.mxu0 0.0
      %5290 = vmatprep.subr.mxu0 0.0
      %5291 = vmatpush1.xpose.msra.mxu0 0.0
      %5292 = vmatprep.subr.mxu0 0.0
      %5293 = vmatpush1.xpose.msra.mxu0 0.0
      %5294 = vmatprep.subr.mxu0 0.0
      %5295 = vmatpush1.xpose.msra.mxu0 0.0
      %5296 = vmatprep.subr.mxu0 0.0
      %5297 = vmatpush1.xpose.msra.mxu0 0.0
      %5298 = vmatprep.subr.mxu0 0.0
      %5299 = vmatpush1.xpose.msra.mxu0 0.0
      %5300 = vmatprep.subr.mxu0 0.0
      %5301 = vmatpush1.xpose.msra.mxu0 0.0
      %5302 = vmatprep.subr.mxu0 0.0
      %5303 = vmatpush1.xpose.msra.mxu0 0.0
      %5304 = vmatprep.subr.mxu0 0.0
      %5305 = vmatpush1.xpose.msra.mxu0 0.0
      %5306 = vmatprep.mubr.f32.mxu0 0.0
      %5307 = vmatmul.mubr.f32.gmra.mrb[0].mxu0 %v5236
      %v5308 = vpop.f32.mrb[0].mxu0
      %v5309 = vadd.f32 0.0, %v5308
      %v5310 = vpop.f32.mrb[0].mxu0
      %5311 = vdwg.mxu0
      %v5312 = vsel %vm1184, %v5309, -inf
      %5313 = vmax.xlane.f32.xlu0 %v5312
      %v5314 = vpop.xlane.xlu0 %5313
      %v5315 = vsub.f32 %v5309, %v5314
      %v5316 = vmul.f32 %v5315, 1.442695
      %v5317 = vpow.pop %v5316
      %v5318 = vsel %vm1184, %v5317, 0.0
      %5319 = vadd.xlane.f32.xlu0 %v5318
      %v5320 = vpop.xlane.xlu0 %5319
      %v5321 = vrcp.pop %v5320
      %v5322 = vmul.f32 %v5317, %v5321
      %5323 = vrot.lane.b32.xlu0 %v3577, 72
      %v5324 = vpop.permute.xlu0 %5323
      %5325 = vrot.lane.b32.xlu0 %v3580, 72
      %v5326 = vpop.permute.xlu0 %5325
      %v5330 = vsel %vm1184, %v5322, 0
      %5332 = vmatprep.subr.mxu0 0.0
      %5333 = vmatpush1.msra.mxu0 %v5324
      %5334 = vmatprep.subr.mxu0 0.0
      %5335 = vmatpush1.msra.mxu0 %v5326
      %5336 = vmatprep.subr.mxu0 0.0
      %5337 = vmatpush1.msra.mxu0 0.0
      %5338 = vmatprep.subr.mxu0 0.0
      %5339 = vmatpush1.msra.mxu0 0.0
      %5340 = vmatprep.subr.mxu0 0.0
      %5341 = vmatpush1.msra.mxu0 0.0
      %5342 = vmatprep.subr.mxu0 0.0
      %5343 = vmatpush1.msra.mxu0 0.0
      %5344 = vmatprep.subr.mxu0 0.0
      %5345 = vmatpush1.msra.mxu0 0.0
      %5346 = vmatprep.subr.mxu0 0.0
      %5347 = vmatpush1.msra.mxu0 0.0
      %5348 = vmatprep.subr.mxu0 0.0
      %5349 = vmatpush1.msra.mxu0 0.0
      %5350 = vmatprep.subr.mxu0 0.0
      %5351 = vmatpush1.msra.mxu0 0.0
      %5352 = vmatprep.subr.mxu0 0.0
      %5353 = vmatpush1.msra.mxu0 0.0
      %5354 = vmatprep.subr.mxu0 0.0
      %5355 = vmatpush1.msra.mxu0 0.0
      %5356 = vmatprep.subr.mxu0 0.0
      %5357 = vmatpush1.msra.mxu0 0.0
      %5358 = vmatprep.subr.mxu0 0.0
      %5359 = vmatpush1.msra.mxu0 0.0
      %5360 = vmatprep.subr.mxu0 0.0
      %5361 = vmatpush1.msra.mxu0 0.0
      %5362 = vmatprep.subr.mxu0 0.0
      %5363 = vmatpush1.msra.mxu0 0.0
      %5364 = vmatprep.subr.mxu0 0.0
      %5365 = vmatpush1.msra.mxu0 0.0
      %5366 = vmatprep.subr.mxu0 0.0
      %5367 = vmatpush1.msra.mxu0 0.0
      %5368 = vmatprep.subr.mxu0 0.0
      %5369 = vmatpush1.msra.mxu0 0.0
      %5370 = vmatprep.subr.mxu0 0.0
      %5371 = vmatpush1.msra.mxu0 0.0
      %5372 = vmatprep.subr.mxu0 0.0
      %5373 = vmatpush1.msra.mxu0 0.0
      %5374 = vmatprep.subr.mxu0 0.0
      %5375 = vmatpush1.msra.mxu0 0.0
      %5376 = vmatprep.subr.mxu0 0.0
      %5377 = vmatpush1.msra.mxu0 0.0
      %5378 = vmatprep.subr.mxu0 0.0
      %5379 = vmatpush1.msra.mxu0 0.0
      %5380 = vmatprep.subr.mxu0 0.0
      %5381 = vmatpush1.msra.mxu0 0.0
      %5382 = vmatprep.subr.mxu0 0.0
      %5383 = vmatpush1.msra.mxu0 0.0
      %5384 = vmatprep.subr.mxu0 0.0
      %5385 = vmatpush1.msra.mxu0 0.0
      %5386 = vmatprep.subr.mxu0 0.0
      %5387 = vmatpush1.msra.mxu0 0.0
      %5388 = vmatprep.subr.mxu0 0.0
      %5389 = vmatpush1.msra.mxu0 0.0
      %5390 = vmatprep.subr.mxu0 0.0
      %5391 = vmatpush1.msra.mxu0 0.0
      %5392 = vmatprep.subr.mxu0 0.0
      %5393 = vmatpush1.msra.mxu0 0.0
      %5394 = vmatprep.subr.mxu0 0.0
      %5395 = vmatpush1.msra.mxu0 0.0
      %5396 = vmatprep.mubr.f32.mxu0 0.0
      %5397 = vmatmul.mubr.f32.gmra.mrb[0].mxu0 %v5330
      %v5398 = vpop.f32.mrb[0].mxu0
      %v5399 = vadd.f32 0.0, %v5398
      %v5400 = vpop.f32.mrb[0].mxu0
      %5401 = vdwg.mxu0
      %v5402 = vpack.c.bf16 %v5399, %v5399
      %v5404 = vsel %vm1100, %v5402, 0
      %v5407 = vsel %vm1499, %v1008, 0
      %5409 = vmatprep.subr.bf16.mxu0 0
      %5410 = vmatpush1.bf16.msra.mxu0 %v5407
      %5411 = vmatprep.subr.bf16.mxu0 0
      %5412 = vmatpush1.bf16.msra.mxu0 0
      %5413 = vmatprep.subr.bf16.mxu0 0
      %5414 = vmatpush1.bf16.msra.mxu0 0
      %5415 = vmatprep.subr.bf16.mxu0 0
      %5416 = vmatpush1.bf16.msra.mxu0 0
      %5417 = vmatprep.subr.bf16.mxu0 0
      %5418 = vmatpush1.bf16.msra.mxu0 0
      %5419 = vmatprep.subr.bf16.mxu0 0
      %5420 = vmatpush1.bf16.msra.mxu0 0
      %5421 = vmatprep.subr.bf16.mxu0 0
      %5422 = vmatpush1.bf16.msra.mxu0 0
      %5423 = vmatprep.subr.bf16.mxu0 0
      %5424 = vmatpush1.bf16.msra.mxu0 0
      %5425 = vmatprep.subr.bf16.mxu0 0
      %5426 = vmatpush1.bf16.msra.mxu0 0
      %5427 = vmatprep.subr.bf16.mxu0 0
      %5428 = vmatpush1.bf16.msra.mxu0 0
      %5429 = vmatprep.subr.bf16.mxu0 0
      %5430 = vmatpush1.bf16.msra.mxu0 0
      %5431 = vmatprep.subr.bf16.mxu0 0
      %5432 = vmatpush1.bf16.msra.mxu0 0
      %5433 = vmatprep.subr.bf16.mxu0 0
      %5434 = vmatpush1.bf16.msra.mxu0 0
      %5435 = vmatprep.subr.bf16.mxu0 0
      %5436 = vmatpush1.bf16.msra.mxu0 0
      %5437 = vmatprep.subr.bf16.mxu0 0
      %5438 = vmatpush1.bf16.msra.mxu0 0
      %5439 = vmatprep.subr.bf16.mxu0 0
      %5440 = vmatpush1.bf16.msra.mxu0 0
      %5441 = vmatprep.mubr.bf16.mxu0 0
      %5442 = vmatmul.mubr.bf16.gmra.mrb[0].mxu0 %v5404
      %v5443 = vpop.f32.mrb[0].mxu0
      %v5444 = vadd.f32 0.0, %v5443
      %v5445 = vpop.f32.mrb[0].mxu0
      %v5446 = vpop.f32.mrb[0].mxu0
      %v5447 = vpop.f32.mrb[0].mxu0
      %5448 = vdwg.mxu0
      %v5449 = vadd.f32 %v5229, %v5444
      %v5450 = vadd.f32 %v4527, %v5449
      %v5452 = vlaneseq
      %v5453 = vshrl.u32 %v5452, 7
      %v5454 = vsub.s32 0, %v5453
      %v5455 = vrot.slane %v1009, %v5454
      %v5457 = vadd.f32 %v5450, %v5455
      %v5458 = vsel %vm1049, %v5457, 0.0
      %5459 = vadd.xlane.f32.xlu0 %v5458
      %v5460 = vpop.xlane.xlu0 %5459
      %v5461 = vmul.f32 %v5460, %v2107
      %v5462 = vsub.f32 %v5457, %v5461
      %v5463 = vmul.f32 %v5462, %v5462
      %v5464 = vsel %vm1049, %v5463, 0.0
      %5465 = vadd.xlane.f32.xlu0 %v5464
      %v5466 = vpop.xlane.xlu0 %5465
      %v5467 = vmul.f32 %v5466, %v2107
      %v5468 = vadd.f32 %v5467, 1e-05
      %v5469 = vrsqrt.pop %v5468
      %v5470 = vmul.f32 %v5462, %v5469
      %v5472 = vlaneseq
      %v5473 = vshrl.u32 %v5472, 7
      %v5474 = vsub.s32 0, %v5473
      %v5475 = vrot.slane %v1010, %v5474
      %v5477 = vmul.f32 %v5470, %v5475
      %v5479 = vlaneseq
      %v5480 = vshrl.u32 %v5479, 7
      %v5481 = vsub.s32 0, %v5480
      %v5482 = vrot.slane %v1011, %v5481
      %v5484 = vadd.f32 %v5477, %v5482
      %v5485 = vpack.c.bf16 %v5484, %v5484
      %v5487 = vlaneseq
      %v5488 = vshrl.u32 %v5487, 7
      %v5489 = vsub.s32 0, %v5488
      %v5490 = vrot.slane %v1016, %v5489
      %v5496 = vunpack.c.l.b16 %v1012
      %v5497 = vunpack.c.l.b16 %v1013
      %v5498 = vunpack.c.l.b16 %v1014
      %v5499 = vunpack.c.l.b16 %v1015
      %v5500 = vpack.c.b16 %v5497, %v5496
      %v5501 = vpack.c.b16 %v5499, %v5498
      %v5505 = vsel %vm1049, %v5485, 0
      %5507 = vmatprep.subr.bf16.mxu0 0
      %5508 = vmatpush1.bf16.msra.mxu0 %v5500
      %5509 = vmatprep.subr.bf16.mxu0 0
      %5510 = vmatpush1.bf16.msra.mxu0 %v5501
      %5511 = vmatprep.subr.bf16.mxu0 0
      %5512 = vmatpush1.bf16.msra.mxu0 0
      %5513 = vmatprep.subr.bf16.mxu0 0
      %5514 = vmatpush1.bf16.msra.mxu0 0
      %5515 = vmatprep.subr.bf16.mxu0 0
      %5516 = vmatpush1.bf16.msra.mxu0 0
      %5517 = vmatprep.subr.bf16.mxu0 0
      %5518 = vmatpush1.bf16.msra.mxu0 0
      %5519 = vmatprep.subr.bf16.mxu0 0
      %5520 = vmatpush1.bf16.msra.mxu0 0
      %5521 = vmatprep.subr.bf16.mxu0 0
      %5522 = vmatpush1.bf16.msra.mxu0 0
      %5523 = vmatprep.subr.bf16.mxu0 0
      %5524 = vmatpush1.bf16.msra.mxu0 0
      %5525 = vmatprep.subr.bf16.mxu0 0
      %5526 = vmatpush1.bf16.msra.mxu0 0
      %5527 = vmatprep.subr.bf16.mxu0 0
      %5528 = vmatpush1.bf16.msra.mxu0 0
      %5529 = vmatprep.subr.bf16.mxu0 0
      %5530 = vmatpush1.bf16.msra.mxu0 0
      %5531 = vmatprep.subr.bf16.mxu0 0
      %5532 = vmatpush1.bf16.msra.mxu0 0
      %5533 = vmatprep.subr.bf16.mxu0 0
      %5534 = vmatpush1.bf16.msra.mxu0 0
      %5535 = vmatprep.subr.bf16.mxu0 0
      %5536 = vmatpush1.bf16.msra.mxu0 0
      %5537 = vmatprep.subr.bf16.mxu0 0
      %5538 = vmatpush1.bf16.msra.mxu0 0
      %5539 = vmatprep.mubr.bf16.mxu0 0
      %5540 = vmatmul.mubr.bf16.gmra.mrb[0].mxu0 %v5505
      %v5541 = vpop.f32.mrb[0].mxu0
      %v5542 = vadd.f32 %v5490, %v5541
      %v5543 = vpop.f32.mrb[0].mxu0
      %v5544 = vpop.f32.mrb[0].mxu0
      %v5545 = vpop.f32.mrb[0].mxu0
      %5546 = vdwg.mxu0
      %v5547 = vmax.f32 %v5542, 0.0
      %v5548 = vpack.c.bf16 %v5547, %v5547
      %v5550 = vlaneseq
      %v5551 = vshrl.u32 %v5550, 7
      %v5552 = vsub.s32 0, %v5551
      %v5553 = vrot.slane %v1025, %v5552
      %v5563 = vunpack.c.l.b16 %v1017
      %v5564 = vunpack.c.l.b16 %v1018
      %v5565 = vunpack.c.l.b16 %v1019
      %v5566 = vunpack.c.l.b16 %v1020
      %v5567 = vunpack.c.l.b16 %v1021
      %v5568 = vunpack.c.l.b16 %v1022
      %v5569 = vunpack.c.l.b16 %v1023
      %v5570 = vunpack.c.l.b16 %v1024
      %v5571 = vpack.c.b16 %v5564, %v5563
      %v5572 = vpack.c.b16 %v5566, %v5565
      %v5573 = vpack.c.b16 %v5568, %v5567
      %v5574 = vpack.c.b16 %v5570, %v5569
      %v5580 = vsel %vm2240, %v5548, 0
      %5582 = vmatprep.subr.bf16.mxu0 0
      %5583 = vmatpush1.bf16.msra.mxu0 %v5571
      %5584 = vmatprep.subr.bf16.mxu0 0
      %5585 = vmatpush1.bf16.msra.mxu0 %v5572
      %5586 = vmatprep.subr.bf16.mxu0 0
      %5587 = vmatpush1.bf16.msra.mxu0 %v5573
      %5588 = vmatprep.subr.bf16.mxu0 0
      %5589 = vmatpush1.bf16.msra.mxu0 %v5574
      %5590 = vmatprep.subr.bf16.mxu0 0
      %5591 = vmatpush1.bf16.msra.mxu0 0
      %5592 = vmatprep.subr.bf16.mxu0 0
      %5593 = vmatpush1.bf16.msra.mxu0 0
      %5594 = vmatprep.subr.bf16.mxu0 0
      %5595 = vmatpush1.bf16.msra.mxu0 0
      %5596 = vmatprep.subr.bf16.mxu0 0
      %5597 = vmatpush1.bf16.msra.mxu0 0
      %5598 = vmatprep.subr.bf16.mxu0 0
      %5599 = vmatpush1.bf16.msra.mxu0 0
      %5600 = vmatprep.subr.bf16.mxu0 0
      %5601 = vmatpush1.bf16.msra.mxu0 0
      %5602 = vmatprep.subr.bf16.mxu0 0
      %5603 = vmatpush1.bf16.msra.mxu0 0
      %5604 = vmatprep.subr.bf16.mxu0 0
      %5605 = vmatpush1.bf16.msra.mxu0 0
      %5606 = vmatprep.subr.bf16.mxu0 0
      %5607 = vmatpush1.bf16.msra.mxu0 0
      %5608 = vmatprep.subr.bf16.mxu0 0
      %5609 = vmatpush1.bf16.msra.mxu0 0
      %5610 = vmatprep.subr.bf16.mxu0 0
      %5611 = vmatpush1.bf16.msra.mxu0 0
      %5612 = vmatprep.subr.bf16.mxu0 0
      %5613 = vmatpush1.bf16.msra.mxu0 0
      %5614 = vmatprep.mubr.bf16.mxu0 0
      %5615 = vmatmul.mubr.bf16.gmra.mrb[0].mxu0 %v5580
      %v5616 = vpop.f32.mrb[0].mxu0
      %v5617 = vadd.f32 %v5553, %v5616
      %v5618 = vpop.f32.mrb[0].mxu0
      %v5619 = vpop.f32.mrb[0].mxu0
      %v5620 = vpop.f32.mrb[0].mxu0
      %5621 = vdwg.mxu0
      %v5622 = vadd.f32 %v5484, %v5617
      %v5623 = vsel %vm1049, %v5622, 0.0
      %5624 = vadd.xlane.f32.xlu0 %v5623
      %v5625 = vpop.xlane.xlu0 %5624
      %v5626 = vmul.f32 %v5625, %v2107
      %v5627 = vsub.f32 %v5622, %v5626
      %v5628 = vmul.f32 %v5627, %v5627
      %v5629 = vsel %vm1049, %v5628, 0.0
      %5630 = vadd.xlane.f32.xlu0 %v5629
      %v5631 = vpop.xlane.xlu0 %5630
      %v5632 = vmul.f32 %v5631, %v2107
      %v5633 = vadd.f32 %v5632, 1e-05
      %v5634 = vrsqrt.pop %v5633
      %v5635 = vmul.f32 %v5627, %v5634
      %v5637 = vlaneseq
      %v5638 = vshrl.u32 %v5637, 7
      %v5639 = vsub.s32 0, %v5638
      %v5640 = vrot.slane %v1026, %v5639
      %v5642 = vmul.f32 %v5635, %v5640
      %v5644 = vlaneseq
      %v5645 = vshrl.u32 %v5644, 7
      %v5646 = vsub.s32 0, %v5645
      %v5647 = vrot.slane %v1027, %v5646
      %v5649 = vadd.f32 %v5642, %v5647
      %5650 = vst.msk [vmem:[%s958] sm:$0xff] %vm1049, %v5649
      %v5651 = vpack.c.bf16 %v5649, %v5649
      %v5653 = vsel %vm1049, %v5651, 0
      %5655 = vmatprep.subr.bf16.mxu0 0
      %5656 = vmatpush1.bf16.msra.mxu0 %v3597
      %5657 = vmatprep.subr.bf16.mxu0 0
      %5658 = vmatpush1.bf16.msra.mxu0 %v3598
      %5659 = vmatprep.subr.bf16.mxu0 0
      %5660 = vmatpush1.bf16.msra.mxu0 0
      %5661 = vmatprep.subr.bf16.mxu0 0
      %5662 = vmatpush1.bf16.msra.mxu0 0
      %5663 = vmatprep.subr.bf16.mxu0 0
      %5664 = vmatpush1.bf16.msra.mxu0 0
      %5665 = vmatprep.subr.bf16.mxu0 0
      %5666 = vmatpush1.bf16.msra.mxu0 0
      %5667 = vmatprep.subr.bf16.mxu0 0
      %5668 = vmatpush1.bf16.msra.mxu0 0
      %5669 = vmatprep.subr.bf16.mxu0 0
      %5670 = vmatpush1.bf16.msra.mxu0 0
      %5671 = vmatprep.subr.bf16.mxu0 0
      %5672 = vmatpush1.bf16.msra.mxu0 0
      %5673 = vmatprep.subr.bf16.mxu0 0
      %5674 = vmatpush1.bf16.msra.mxu0 0
      %5675 = vmatprep.subr.bf16.mxu0 0
      %5676 = vmatpush1.bf16.msra.mxu0 0
      %5677 = vmatprep.subr.bf16.mxu0 0
      %5678 = vmatpush1.bf16.msra.mxu0 0
      %5679 = vmatprep.subr.bf16.mxu0 0
      %5680 = vmatpush1.bf16.msra.mxu0 0
      %5681 = vmatprep.subr.bf16.mxu0 0
      %5682 = vmatpush1.bf16.msra.mxu0 0
      %5683 = vmatprep.subr.bf16.mxu0 0
      %5684 = vmatpush1.bf16.msra.mxu0 0
      %5685 = vmatprep.subr.bf16.mxu0 0
      %5686 = vmatpush1.bf16.msra.mxu0 0
      %5687 = vmatprep.mubr.bf16.mxu0 0
      %5688 = vmatmul.mubr.bf16.gmra.mrb[0].mxu0 %v5653
      %v5689 = vpop.f32.mrb[0].mxu0
      %v5690 = vadd.f32 %v3587, %v5689
      %v5691 = vpop.f32.mrb[0].mxu0
      %v5692 = vpop.f32.mrb[0].mxu0
      %v5693 = vpop.f32.mrb[0].mxu0
      %5694 = vdwg.mxu0
      %5696 = vrot.lane.b32.xlu0 %v5690, 96
      %v5697 = vpop.permute.xlu0 %5696
      %v5698 = vsel %vm1100, %v5690, 0
      %v5700 = vsel %vm1100, %v5697, 0
      %5702 = vmatprep.subr.mxu0 0.0
      %5703 = vmatpush1.xpose.msra.mxu0 %v5700
      %5704 = vmatprep.subr.mxu0 0.0
      %5705 = vmatpush1.xpose.msra.mxu0 0.0
      %5706 = vmatprep.subr.mxu0 0.0
      %5707 = vmatpush1.xpose.msra.mxu0 0.0
      %5708 = vmatprep.subr.mxu0 0.0
      %5709 = vmatpush1.xpose.msra.mxu0 0.0
      %5710 = vmatprep.subr.mxu0 0.0
      %5711 = vmatpush1.xpose.msra.mxu0 0.0
      %5712 = vmatprep.subr.mxu0 0.0
      %5713 = vmatpush1.xpose.msra.mxu0 0.0
      %5714 = vmatprep.subr.mxu0 0.0
      %5715 = vmatpush1.xpose.msra.mxu0 0.0
      %5716 = vmatprep.subr.mxu0 0.0
      %5717 = vmatpush1.xpose.msra.mxu0 0.0
      %5718 = vmatprep.subr.mxu0 0.0
      %5719 = vmatpush1.xpose.msra.mxu0 0.0
      %5720 = vmatprep.subr.mxu0 0.0
      %5721 = vmatpush1.xpose.msra.mxu0 0.0
      %5722 = vmatprep.subr.mxu0 0.0
      %5723 = vmatpush1.xpose.msra.mxu0 0.0
      %5724 = vmatprep.subr.mxu0 0.0
      %5725 = vmatpush1.xpose.msra.mxu0 0.0
      %5726 = vmatprep.subr.mxu0 0.0
      %5727 = vmatpush1.xpose.msra.mxu0 0.0
      %5728 = vmatprep.subr.mxu0 0.0
      %5729 = vmatpush1.xpose.msra.mxu0 0.0
      %5730 = vmatprep.subr.mxu0 0.0
      %5731 = vmatpush1.xpose.msra.mxu0 0.0
      %5732 = vmatprep.subr.mxu0 0.0
      %5733 = vmatpush1.xpose.msra.mxu0 0.0
      %5734 = vmatprep.subr.mxu0 0.0
      %5735 = vmatpush1.xpose.msra.mxu0 0.0
      %5736 = vmatprep.subr.mxu0 0.0
      %5737 = vmatpush1.xpose.msra.mxu0 0.0
      %5738 = vmatprep.subr.mxu0 0.0
      %5739 = vmatpush1.xpose.msra.mxu0 0.0
      %5740 = vmatprep.subr.mxu0 0.0
      %5741 = vmatpush1.xpose.msra.mxu0 0.0
      %5742 = vmatprep.subr.mxu0 0.0
      %5743 = vmatpush1.xpose.msra.mxu0 0.0
      %5744 = vmatprep.subr.mxu0 0.0
      %5745 = vmatpush1.xpose.msra.mxu0 0.0
      %5746 = vmatprep.subr.mxu0 0.0
      %5747 = vmatpush1.xpose.msra.mxu0 0.0
      %5748 = vmatprep.subr.mxu0 0.0
      %5749 = vmatpush1.xpose.msra.mxu0 0.0
      %5750 = vmatprep.subr.mxu0 0.0
      %5751 = vmatpush1.xpose.msra.mxu0 0.0
      %5752 = vmatprep.subr.mxu0 0.0
      %5753 = vmatpush1.xpose.msra.mxu0 0.0
      %5754 = vmatprep.subr.mxu0 0.0
      %5755 = vmatpush1.xpose.msra.mxu0 0.0
      %5756 = vmatprep.subr.mxu0 0.0
      %5757 = vmatpush1.xpose.msra.mxu0 0.0
      %5758 = vmatprep.subr.mxu0 0.0
      %5759 = vmatpush1.xpose.msra.mxu0 0.0
      %5760 = vmatprep.subr.mxu0 0.0
      %5761 = vmatpush1.xpose.msra.mxu0 0.0
      %5762 = vmatprep.subr.mxu0 0.0
      %5763 = vmatpush1.xpose.msra.mxu0 0.0
      %5764 = vmatprep.subr.mxu0 0.0
      %5765 = vmatpush1.xpose.msra.mxu0 0.0
      %5766 = vmatprep.mubr.f32.mxu0 0.0
      %5767 = vmatmul.mubr.f32.gmra.mrb[0].mxu0 %v5698
      %v5768 = vpop.f32.mrb[0].mxu0
      %v5769 = vadd.f32 0.0, %v5768
      %v5770 = vpop.f32.mrb[0].mxu0
      %5771 = vdwg.mxu0
      %v5772 = vsel %vm1100, %v5769, -inf
      %5773 = vmax.xlane.f32.xlu0 %v5772
      %v5774 = vpop.xlane.xlu0 %5773
      %v5775 = vsub.f32 %v5769, %v5774
      %v5776 = vmul.f32 %v5775, 1.442695
      %v5777 = vpow.pop %v5776
      %v5778 = vsel %vm1100, %v5777, 0.0
      %5779 = vadd.xlane.f32.xlu0 %v5778
      %v5780 = vpop.xlane.xlu0 %5779
      %v5781 = vrcp.pop %v5780
      %v5782 = vmul.f32 %v5777, %v5781
      %5783 = vrot.lane.b32.xlu0 %v5690, 64
      %v5784 = vpop.permute.xlu0 %5783
      %v5787 = vsel %vm1100, %v5782, 0
      %5789 = vmatprep.subr.mxu0 0.0
      %5790 = vmatpush1.msra.mxu0 %v5784
      %5791 = vmatprep.subr.mxu0 0.0
      %5792 = vmatpush1.msra.mxu0 0.0
      %5793 = vmatprep.subr.mxu0 0.0
      %5794 = vmatpush1.msra.mxu0 0.0
      %5795 = vmatprep.subr.mxu0 0.0
      %5796 = vmatpush1.msra.mxu0 0.0
      %5797 = vmatprep.subr.mxu0 0.0
      %5798 = vmatpush1.msra.mxu0 0.0
      %5799 = vmatprep.subr.mxu0 0.0
      %5800 = vmatpush1.msra.mxu0 0.0
      %5801 = vmatprep.subr.mxu0 0.0
      %5802 = vmatpush1.msra.mxu0 0.0
      %5803 = vmatprep.subr.mxu0 0.0
      %5804 = vmatpush1.msra.mxu0 0.0
      %5805 = vmatprep.subr.mxu0 0.0
      %5806 = vmatpush1.msra.mxu0 0.0
      %5807 = vmatprep.subr.mxu0 0.0
      %5808 = vmatpush1.msra.mxu0 0.0
      %5809 = vmatprep.subr.mxu0 0.0
      %5810 = vmatpush1.msra.mxu0 0.0
      %5811 = vmatprep.subr.mxu0 0.0
      %5812 = vmatpush1.msra.mxu0 0.0
      %5813 = vmatprep.subr.mxu0 0.0
      %5814 = vmatpush1.msra.mxu0 0.0
      %5815 = vmatprep.subr.mxu0 0.0
      %5816 = vmatpush1.msra.mxu0 0.0
      %5817 = vmatprep.subr.mxu0 0.0
      %5818 = vmatpush1.msra.mxu0 0.0
      %5819 = vmatprep.subr.mxu0 0.0
      %5820 = vmatpush1.msra.mxu0 0.0
      %5821 = vmatprep.subr.mxu0 0.0
      %5822 = vmatpush1.msra.mxu0 0.0
      %5823 = vmatprep.subr.mxu0 0.0
      %5824 = vmatpush1.msra.mxu0 0.0
      %5825 = vmatprep.subr.mxu0 0.0
      %5826 = vmatpush1.msra.mxu0 0.0
      %5827 = vmatprep.subr.mxu0 0.0
      %5828 = vmatpush1.msra.mxu0 0.0
      %5829 = vmatprep.subr.mxu0 0.0
      %5830 = vmatpush1.msra.mxu0 0.0
      %5831 = vmatprep.subr.mxu0 0.0
      %5832 = vmatpush1.msra.mxu0 0.0
      %5833 = vmatprep.subr.mxu0 0.0
      %5834 = vmatpush1.msra.mxu0 0.0
      %5835 = vmatprep.subr.mxu0 0.0
      %5836 = vmatpush1.msra.mxu0 0.0
      %5837 = vmatprep.subr.mxu0 0.0
      %5838 = vmatpush1.msra.mxu0 0.0
      %5839 = vmatprep.subr.mxu0 0.0
      %5840 = vmatpush1.msra.mxu0 0.0
      %5841 = vmatprep.subr.mxu0 0.0
      %5842 = vmatpush1.msra.mxu0 0.0
      %5843 = vmatprep.subr.mxu0 0.0
      %5844 = vmatpush1.msra.mxu0 0.0
      %5845 = vmatprep.subr.mxu0 0.0
      %5846 = vmatpush1.msra.mxu0 0.0
      %5847 = vmatprep.subr.mxu0 0.0
      %5848 = vmatpush1.msra.mxu0 0.0
      %5849 = vmatprep.subr.mxu0 0.0
      %5850 = vmatpush1.msra.mxu0 0.0
      %5851 = vmatprep.subr.mxu0 0.0
      %5852 = vmatpush1.msra.mxu0 0.0
      %5853 = vmatprep.mubr.f32.mxu0 0.0
      %5854 = vmatmul.mubr.f32.gmra.mrb[0].mxu0 %v5787
      %v5855 = vpop.f32.mrb[0].mxu0
      %v5856 = vadd.f32 0.0, %v5855
      %v5857 = vpop.f32.mrb[0].mxu0
      %5858 = vdwg.mxu0
      %v5859 = vpack.c.bf16 %v5856, %v5856
      %5860 = vrot.lane.b32.xlu0 %v5690, 120
      %v5861 = vpop.permute.xlu0 %5860
      %5862 = vrot.lane.b32.xlu0 %v5690, 88
      %v5863 = vpop.permute.xlu0 %5862
      %v5864 = vsel %vm1100, %v5861, 0
      %v5866 = vsel %vm1100, %v5863, 0
      %5868 = vmatprep.subr.mxu0 0.0
      %5869 = vmatpush1.xpose.msra.mxu0 %v5866
      %5870 = vmatprep.subr.mxu0 0.0
      %5871 = vmatpush1.xpose.msra.mxu0 0.0
      %5872 = vmatprep.subr.mxu0 0.0
      %5873 = vmatpush1.xpose.msra.mxu0 0.0
      %5874 = vmatprep.subr.mxu0 0.0
      %5875 = vmatpush1.xpose.msra.mxu0 0.0
      %5876 = vmatprep.subr.mxu0 0.0
      %5877 = vmatpush1.xpose.msra.mxu0 0.0
      %5878 = vmatprep.subr.mxu0 0.0
      %5879 = vmatpush1.xpose.msra.mxu0 0.0
      %5880 = vmatprep.subr.mxu0 0.0
      %5881 = vmatpush1.xpose.msra.mxu0 0.0
      %5882 = vmatprep.subr.mxu0 0.0
      %5883 = vmatpush1.xpose.msra.mxu0 0.0
      %5884 = vmatprep.subr.mxu0 0.0
      %5885 = vmatpush1.xpose.msra.mxu0 0.0
      %5886 = vmatprep.subr.mxu0 0.0
      %5887 = vmatpush1.xpose.msra.mxu0 0.0
      %5888 = vmatprep.subr.mxu0 0.0
      %5889 = vmatpush1.xpose.msra.mxu0 0.0
      %5890 = vmatprep.subr.mxu0 0.0
      %5891 = vmatpush1.xpose.msra.mxu0 0.0
      %5892 = vmatprep.subr.mxu0 0.0
      %5893 = vmatpush1.xpose.msra.mxu0 0.0
      %5894 = vmatprep.subr.mxu0 0.0
      %5895 = vmatpush1.xpose.msra.mxu0 0.0
      %5896 = vmatprep.subr.mxu0 0.0
      %5897 = vmatpush1.xpose.msra.mxu0 0.0
      %5898 = vmatprep.subr.mxu0 0.0
      %5899 = vmatpush1.xpose.msra.mxu0 0.0
      %5900 = vmatprep.subr.mxu0 0.0
      %5901 = vmatpush1.xpose.msra.mxu0 0.0
      %5902 = vmatprep.subr.mxu0 0.0
      %5903 = vmatpush1.xpose.msra.mxu0 0.0
      %5904 = vmatprep.subr.mxu0 0.0
      %5905 = vmatpush1.xpose.msra.mxu0 0.0
      %5906 = vmatprep.subr.mxu0 0.0
      %5907 = vmatpush1.xpose.msra.mxu0 0.0
      %5908 = vmatprep.subr.mxu0 0.0
      %5909 = vmatpush1.xpose.msra.mxu0 0.0
      %5910 = vmatprep.subr.mxu0 0.0
      %5911 = vmatpush1.xpose.msra.mxu0 0.0
      %5912 = vmatprep.subr.mxu0 0.0
      %5913 = vmatpush1.xpose.msra.mxu0 0.0
      %5914 = vmatprep.subr.mxu0 0.0
      %5915 = vmatpush1.xpose.msra.mxu0 0.0
      %5916 = vmatprep.subr.mxu0 0.0
      %5917 = vmatpush1.xpose.msra.mxu0 0.0
      %5918 = vmatprep.subr.mxu0 0.0
      %5919 = vmatpush1.xpose.msra.mxu0 0.0
      %5920 = vmatprep.subr.mxu0 0.0
      %5921 = vmatpush1.xpose.msra.mxu0 0.0
      %5922 = vmatprep.subr.mxu0 0.0
      %5923 = vmatpush1.xpose.msra.mxu0 0.0
      %5924 = vmatprep.subr.mxu0 0.0
      %5925 = vmatpush1.xpose.msra.mxu0 0.0
      %5926 = vmatprep.subr.mxu0 0.0
      %5927 = vmatpush1.xpose.msra.mxu0 0.0
      %5928 = vmatprep.subr.mxu0 0.0
      %5929 = vmatpush1.xpose.msra.mxu0 0.0
      %5930 = vmatprep.subr.mxu0 0.0
      %5931 = vmatpush1.xpose.msra.mxu0 0.0
      %5932 = vmatprep.mubr.f32.mxu0 0.0
      %5933 = vmatmul.mubr.f32.gmra.mrb[0].mxu0 %v5864
      %v5934 = vpop.f32.mrb[0].mxu0
      %v5935 = vadd.f32 0.0, %v5934
      %v5936 = vpop.f32.mrb[0].mxu0
      %5937 = vdwg.mxu0
      %v5938 = vsel %vm1100, %v5935, -inf
      %5939 = vmax.xlane.f32.xlu0 %v5938
      %v5940 = vpop.xlane.xlu0 %5939
      %v5941 = vsub.f32 %v5935, %v5940
      %v5942 = vmul.f32 %v5941, 1.442695
      %v5943 = vpow.pop %v5942
      %v5944 = vsel %vm1100, %v5943, 0.0
      %5945 = vadd.xlane.f32.xlu0 %v5944
      %v5946 = vpop.xlane.xlu0 %5945
      %v5947 = vrcp.pop %v5946
      %v5948 = vmul.f32 %v5943, %v5947
      %5949 = vrot.lane.b32.xlu0 %v5690, 56
      %v5950 = vpop.permute.xlu0 %5949
      %v5953 = vsel %vm1100, %v5948, 0
      %5955 = vmatprep.subr.mxu0 0.0
      %5956 = vmatpush1.msra.mxu0 %v5950
      %5957 = vmatprep.subr.mxu0 0.0
      %5958 = vmatpush1.msra.mxu0 0.0
      %5959 = vmatprep.subr.mxu0 0.0
      %5960 = vmatpush1.msra.mxu0 0.0
      %5961 = vmatprep.subr.mxu0 0.0
      %5962 = vmatpush1.msra.mxu0 0.0
      %5963 = vmatprep.subr.mxu0 0.0
      %5964 = vmatpush1.msra.mxu0 0.0
      %5965 = vmatprep.subr.mxu0 0.0
      %5966 = vmatpush1.msra.mxu0 0.0
      %5967 = vmatprep.subr.mxu0 0.0
      %5968 = vmatpush1.msra.mxu0 0.0
      %5969 = vmatprep.subr.mxu0 0.0
      %5970 = vmatpush1.msra.mxu0 0.0
      %5971 = vmatprep.subr.mxu0 0.0
      %5972 = vmatpush1.msra.mxu0 0.0
      %5973 = vmatprep.subr.mxu0 0.0
      %5974 = vmatpush1.msra.mxu0 0.0
      %5975 = vmatprep.subr.mxu0 0.0
      %5976 = vmatpush1.msra.mxu0 0.0
      %5977 = vmatprep.subr.mxu0 0.0
      %5978 = vmatpush1.msra.mxu0 0.0
      %5979 = vmatprep.subr.mxu0 0.0
      %5980 = vmatpush1.msra.mxu0 0.0
      %5981 = vmatprep.subr.mxu0 0.0
      %5982 = vmatpush1.msra.mxu0 0.0
      %5983 = vmatprep.subr.mxu0 0.0
      %5984 = vmatpush1.msra.mxu0 0.0
      %5985 = vmatprep.subr.mxu0 0.0
      %5986 = vmatpush1.msra.mxu0 0.0
      %5987 = vmatprep.subr.mxu0 0.0
      %5988 = vmatpush1.msra.mxu0 0.0
      %5989 = vmatprep.subr.mxu0 0.0
      %5990 = vmatpush1.msra.mxu0 0.0
      %5991 = vmatprep.subr.mxu0 0.0
      %5992 = vmatpush1.msra.mxu0 0.0
      %5993 = vmatprep.subr.mxu0 0.0
      %5994 = vmatpush1.msra.mxu0 0.0
      %5995 = vmatprep.subr.mxu0 0.0
      %5996 = vmatpush1.msra.mxu0 0.0
      %5997 = vmatprep.subr.mxu0 0.0
      %5998 = vmatpush1.msra.mxu0 0.0
      %5999 = vmatprep.subr.mxu0 0.0
      %6000 = vmatpush1.msra.mxu0 0.0
      %6001 = vmatprep.subr.mxu0 0.0
      %6002 = vmatpush1.msra.mxu0 0.0
      %6003 = vmatprep.subr.mxu0 0.0
      %6004 = vmatpush1.msra.mxu0 0.0
      %6005 = vmatprep.subr.mxu0 0.0
      %6006 = vmatpush1.msra.mxu0 0.0
      %6007 = vmatprep.subr.mxu0 0.0
      %6008 = vmatpush1.msra.mxu0 0.0
      %6009 = vmatprep.subr.mxu0 0.0
      %6010 = vmatpush1.msra.mxu0 0.0
      %6011 = vmatprep.subr.mxu0 0.0
      %6012 = vmatpush1.msra.mxu0 0.0
      %6013 = vmatprep.subr.mxu0 0.0
      %6014 = vmatpush1.msra.mxu0 0.0
      %6015 = vmatprep.subr.mxu0 0.0
      %6016 = vmatpush1.msra.mxu0 0.0
      %6017 = vmatprep.subr.mxu0 0.0
      %6018 = vmatpush1.msra.mxu0 0.0
      %6019 = vmatprep.mubr.f32.mxu0 0.0
      %6020 = vmatmul.mubr.f32.gmra.mrb[0].mxu0 %v5953
      %v6021 = vpop.f32.mrb[0].mxu0
      %v6022 = vadd.f32 0.0, %v6021
      %v6023 = vpop.f32.mrb[0].mxu0
      %6024 = vdwg.mxu0
      %v6025 = vpack.c.bf16 %v6022, %v6022
      %v6027 = vsel %vm1100, %v6025, 0
      %6029 = vmatprep.subr.bf16.mxu0 0
      %6030 = vmatpush1.bf16.msra.mxu0 %v3979
      %6031 = vmatprep.subr.bf16.mxu0 0
      %6032 = vmatpush1.bf16.msra.mxu0 0
      %6033 = vmatprep.subr.bf16.mxu0 0
      %6034 = vmatpush1.bf16.msra.mxu0 0
      %6035 = vmatprep.subr.bf16.mxu0 0
      %6036 = vmatpush1.bf16.msra.mxu0 0
      %6037 = vmatprep.subr.bf16.mxu0 0
      %6038 = vmatpush1.bf16.msra.mxu0 0
      %6039 = vmatprep.subr.bf16.mxu0 0
      %6040 = vmatpush1.bf16.msra.mxu0 0
      %6041 = vmatprep.subr.bf16.mxu0 0
      %6042 = vmatpush1.bf16.msra.mxu0 0
      %6043 = vmatprep.subr.bf16.mxu0 0
      %6044 = vmatpush1.bf16.msra.mxu0 0
      %6045 = vmatprep.subr.bf16.mxu0 0
      %6046 = vmatpush1.bf16.msra.mxu0 0
      %6047 = vmatprep.subr.bf16.mxu0 0
      %6048 = vmatpush1.bf16.msra.mxu0 0
      %6049 = vmatprep.subr.bf16.mxu0 0
      %6050 = vmatpush1.bf16.msra.mxu0 0
      %6051 = vmatprep.subr.bf16.mxu0 0
      %6052 = vmatpush1.bf16.msra.mxu0 0
      %6053 = vmatprep.subr.bf16.mxu0 0
      %6054 = vmatpush1.bf16.msra.mxu0 0
      %6055 = vmatprep.subr.bf16.mxu0 0
      %6056 = vmatpush1.bf16.msra.mxu0 0
      %6057 = vmatprep.subr.bf16.mxu0 0
      %6058 = vmatpush1.bf16.msra.mxu0 0
      %6059 = vmatprep.subr.bf16.mxu0 0
      %6060 = vmatpush1.bf16.msra.mxu0 0
      %6061 = vmatprep.mubr.bf16.mxu0 0
      %6062 = vmatmul.mubr.bf16.gmra.mrb[0].mxu0 %v6027
      %v6063 = vpop.f32.mrb[0].mxu0
      %v6064 = vadd.f32 0.0, %v6063
      %v6065 = vpop.f32.mrb[0].mxu0
      %v6066 = vpop.f32.mrb[0].mxu0
      %v6067 = vpop.f32.mrb[0].mxu0
      %6068 = vdwg.mxu0
      %v6070 = vsel %vm1100, %v5859, 0
      %6072 = vmatprep.subr.bf16.mxu0 0
      %6073 = vmatpush1.bf16.msra.mxu0 %v4025
      %6074 = vmatprep.subr.bf16.mxu0 0
      %6075 = vmatpush1.bf16.msra.mxu0 0
      %6076 = vmatprep.subr.bf16.mxu0 0
      %6077 = vmatpush1.bf16.msra.mxu0 0
      %6078 = vmatprep.subr.bf16.mxu0 0
      %6079 = vmatpush1.bf16.msra.mxu0 0
      %6080 = vmatprep.subr.bf16.mxu0 0
      %6081 = vmatpush1.bf16.msra.mxu0 0
      %6082 = vmatprep.subr.bf16.mxu0 0
      %6083 = vmatpush1.bf16.msra.mxu0 0
      %6084 = vmatprep.subr.bf16.mxu0 0
      %6085 = vmatpush1.bf16.msra.mxu0 0
      %6086 = vmatprep.subr.bf16.mxu0 0
      %6087 = vmatpush1.bf16.msra.mxu0 0
      %6088 = vmatprep.subr.bf16.mxu0 0
      %6089 = vmatpush1.bf16.msra.mxu0 0
      %6090 = vmatprep.subr.bf16.mxu0 0
      %6091 = vmatpush1.bf16.msra.mxu0 0
      %6092 = vmatprep.subr.bf16.mxu0 0
      %6093 = vmatpush1.bf16.msra.mxu0 0
      %6094 = vmatprep.subr.bf16.mxu0 0
      %6095 = vmatpush1.bf16.msra.mxu0 0
      %6096 = vmatprep.subr.bf16.mxu0 0
      %6097 = vmatpush1.bf16.msra.mxu0 0
      %6098 = vmatprep.subr.bf16.mxu0 0
      %6099 = vmatpush1.bf16.msra.mxu0 0
      %6100 = vmatprep.subr.bf16.mxu0 0
      %6101 = vmatpush1.bf16.msra.mxu0 0
      %6102 = vmatprep.subr.bf16.mxu0 0
      %6103 = vmatpush1.bf16.msra.mxu0 0
      %6104 = vmatprep.mubr.bf16.mxu0 0
      %6105 = vmatmul.mubr.bf16.gmra.mrb[0].mxu0 %v6070
      %v6106 = vpop.f32.mrb[0].mxu0
      %v6107 = vadd.f32 %v6064, %v6106
      %v6108 = vpop.f32.mrb[0].mxu0
      %v6109 = vpop.f32.mrb[0].mxu0
      %v6110 = vpop.f32.mrb[0].mxu0
      %6111 = vdwg.mxu0
      %6112 = vrot.lane.b32.xlu0 %v5690, 112
      %v6113 = vpop.permute.xlu0 %6112
      %6114 = vrot.lane.b32.xlu0 %v5690, 80
      %v6115 = vpop.permute.xlu0 %6114
      %v6116 = vsel %vm1100, %v6113, 0
      %v6118 = vsel %vm1100, %v6115, 0
      %6120 = vmatprep.subr.mxu0 0.0
      %6121 = vmatpush1.xpose.msra.mxu0 %v6118
      %6122 = vmatprep.subr.mxu0 0.0
      %6123 = vmatpush1.xpose.msra.mxu0 0.0
      %6124 = vmatprep.subr.mxu0 0.0
      %6125 = vmatpush1.xpose.msra.mxu0 0.0
      %6126 = vmatprep.subr.mxu0 0.0
      %6127 = vmatpush1.xpose.msra.mxu0 0.0
      %6128 = vmatprep.subr.mxu0 0.0
      %6129 = vmatpush1.xpose.msra.mxu0 0.0
      %6130 = vmatprep.subr.mxu0 0.0
      %6131 = vmatpush1.xpose.msra.mxu0 0.0
      %6132 = vmatprep.subr.mxu0 0.0
      %6133 = vmatpush1.xpose.msra.mxu0 0.0
      %6134 = vmatprep.subr.mxu0 0.0
      %6135 = vmatpush1.xpose.msra.mxu0 0.0
      %6136 = vmatprep.subr.mxu0 0.0
      %6137 = vmatpush1.xpose.msra.mxu0 0.0
      %6138 = vmatprep.subr.mxu0 0.0
      %6139 = vmatpush1.xpose.msra.mxu0 0.0
      %6140 = vmatprep.subr.mxu0 0.0
      %6141 = vmatpush1.xpose.msra.mxu0 0.0
      %6142 = vmatprep.subr.mxu0 0.0
      %6143 = vmatpush1.xpose.msra.mxu0 0.0
      %6144 = vmatprep.subr.mxu0 0.0
      %6145 = vmatpush1.xpose.msra.mxu0 0.0
      %6146 = vmatprep.subr.mxu0 0.0
      %6147 = vmatpush1.xpose.msra.mxu0 0.0
      %6148 = vmatprep.subr.mxu0 0.0
      %6149 = vmatpush1.xpose.msra.mxu0 0.0
      %6150 = vmatprep.subr.mxu0 0.0
      %6151 = vmatpush1.xpose.msra.mxu0 0.0
      %6152 = vmatprep.subr.mxu0 0.0
      %6153 = vmatpush1.xpose.msra.mxu0 0.0
      %6154 = vmatprep.subr.mxu0 0.0
      %6155 = vmatpush1.xpose.msra.mxu0 0.0
      %6156 = vmatprep.subr.mxu0 0.0
      %6157 = vmatpush1.xpose.msra.mxu0 0.0
      %6158 = vmatprep.subr.mxu0 0.0
      %6159 = vmatpush1.xpose.msra.mxu0 0.0
      %6160 = vmatprep.subr.mxu0 0.0
      %6161 = vmatpush1.xpose.msra.mxu0 0.0
      %6162 = vmatprep.subr.mxu0 0.0
      %6163 = vmatpush1.xpose.msra.mxu0 0.0
      %6164 = vmatprep.subr.mxu0 0.0
      %6165 = vmatpush1.xpose.msra.mxu0 0.0
      %6166 = vmatprep.subr.mxu0 0.0
      %6167 = vmatpush1.xpose.msra.mxu0 0.0
      %6168 = vmatprep.subr.mxu0 0.0
      %6169 = vmatpush1.xpose.msra.mxu0 0.0
      %6170 = vmatprep.subr.mxu0 0.0
      %6171 = vmatpush1.xpose.msra.mxu0 0.0
      %6172 = vmatprep.subr.mxu0 0.0
      %6173 = vmatpush1.xpose.msra.mxu0 0.0
      %6174 = vmatprep.subr.mxu0 0.0
      %6175 = vmatpush1.xpose.msra.mxu0 0.0
      %6176 = vmatprep.subr.mxu0 0.0
      %6177 = vmatpush1.xpose.msra.mxu0 0.0
      %6178 = vmatprep.subr.mxu0 0.0
      %6179 = vmatpush1.xpose.msra.mxu0 0.0
      %6180 = vmatprep.subr.mxu0 0.0
      %6181 = vmatpush1.xpose.msra.mxu0 0.0
      %6182 = vmatprep.subr.mxu0 0.0
      %6183 = vmatpush1.xpose.msra.mxu0 0.0
      %6184 = vmatprep.mubr.f32.mxu0 0.0
      %6185 = vmatmul.mubr.f32.gmra.mrb[0].mxu0 %v6116
      %v6186 = vpop.f32.mrb[0].mxu0
      %v6187 = vadd.f32 0.0, %v6186
      %v6188 = vpop.f32.mrb[0].mxu0
      %6189 = vdwg.mxu0
      %v6190 = vsel %vm1100, %v6187, -inf
      %6191 = vmax.xlane.f32.xlu0 %v6190
      %v6192 = vpop.xlane.xlu0 %6191
      %v6193 = vsub.f32 %v6187, %v6192
      %v6194 = vmul.f32 %v6193, 1.442695
      %v6195 = vpow.pop %v6194
      %v6196 = vsel %vm1100, %v6195, 0.0
      %6197 = vadd.xlane.f32.xlu0 %v6196
      %v6198 = vpop.xlane.xlu0 %6197
      %v6199 = vrcp.pop %v6198
      %v6200 = vmul.f32 %v6195, %v6199
      %6201 = vrot.lane.b32.xlu0 %v5690, 48
      %v6202 = vpop.permute.xlu0 %6201
      %v6205 = vsel %vm1100, %v6200, 0
      %6207 = vmatprep.subr.mxu0 0.0
      %6208 = vmatpush1.msra.mxu0 %v6202
      %6209 = vmatprep.subr.mxu0 0.0
      %6210 = vmatpush1.msra.mxu0 0.0
      %6211 = vmatprep.subr.mxu0 0.0
      %6212 = vmatpush1.msra.mxu0 0.0
      %6213 = vmatprep.subr.mxu0 0.0
      %6214 = vmatpush1.msra.mxu0 0.0
      %6215 = vmatprep.subr.mxu0 0.0
      %6216 = vmatpush1.msra.mxu0 0.0
      %6217 = vmatprep.subr.mxu0 0.0
      %6218 = vmatpush1.msra.mxu0 0.0
      %6219 = vmatprep.subr.mxu0 0.0
      %6220 = vmatpush1.msra.mxu0 0.0
      %6221 = vmatprep.subr.mxu0 0.0
      %6222 = vmatpush1.msra.mxu0 0.0
      %6223 = vmatprep.subr.mxu0 0.0
      %6224 = vmatpush1.msra.mxu0 0.0
      %6225 = vmatprep.subr.mxu0 0.0
      %6226 = vmatpush1.msra.mxu0 0.0
      %6227 = vmatprep.subr.mxu0 0.0
      %6228 = vmatpush1.msra.mxu0 0.0
      %6229 = vmatprep.subr.mxu0 0.0
      %6230 = vmatpush1.msra.mxu0 0.0
      %6231 = vmatprep.subr.mxu0 0.0
      %6232 = vmatpush1.msra.mxu0 0.0
      %6233 = vmatprep.subr.mxu0 0.0
      %6234 = vmatpush1.msra.mxu0 0.0
      %6235 = vmatprep.subr.mxu0 0.0
      %6236 = vmatpush1.msra.mxu0 0.0
      %6237 = vmatprep.subr.mxu0 0.0
      %6238 = vmatpush1.msra.mxu0 0.0
      %6239 = vmatprep.subr.mxu0 0.0
      %6240 = vmatpush1.msra.mxu0 0.0
      %6241 = vmatprep.subr.mxu0 0.0
      %6242 = vmatpush1.msra.mxu0 0.0
      %6243 = vmatprep.subr.mxu0 0.0
      %6244 = vmatpush1.msra.mxu0 0.0
      %6245 = vmatprep.subr.mxu0 0.0
      %6246 = vmatpush1.msra.mxu0 0.0
      %6247 = vmatprep.subr.mxu0 0.0
      %6248 = vmatpush1.msra.mxu0 0.0
      %6249 = vmatprep.subr.mxu0 0.0
      %6250 = vmatpush1.msra.mxu0 0.0
      %6251 = vmatprep.subr.mxu0 0.0
      %6252 = vmatpush1.msra.mxu0 0.0
      %6253 = vmatprep.subr.mxu0 0.0
      %6254 = vmatpush1.msra.mxu0 0.0
      %6255 = vmatprep.subr.mxu0 0.0
      %6256 = vmatpush1.msra.mxu0 0.0
      %6257 = vmatprep.subr.mxu0 0.0
      %6258 = vmatpush1.msra.mxu0 0.0
      %6259 = vmatprep.subr.mxu0 0.0
      %6260 = vmatpush1.msra.mxu0 0.0
      %6261 = vmatprep.subr.mxu0 0.0
      %6262 = vmatpush1.msra.mxu0 0.0
      %6263 = vmatprep.subr.mxu0 0.0
      %6264 = vmatpush1.msra.mxu0 0.0
      %6265 = vmatprep.subr.mxu0 0.0
      %6266 = vmatpush1.msra.mxu0 0.0
      %6267 = vmatprep.subr.mxu0 0.0
      %6268 = vmatpush1.msra.mxu0 0.0
      %6269 = vmatprep.subr.mxu0 0.0
      %6270 = vmatpush1.msra.mxu0 0.0
      %6271 = vmatprep.mubr.f32.mxu0 0.0
      %6272 = vmatmul.mubr.f32.gmra.mrb[0].mxu0 %v6205
      %v6273 = vpop.f32.mrb[0].mxu0
      %v6274 = vadd.f32 0.0, %v6273
      %v6275 = vpop.f32.mrb[0].mxu0
      %6276 = vdwg.mxu0
      %v6277 = vpack.c.bf16 %v6274, %v6274
      %v6279 = vsel %vm1100, %v6277, 0
      %6281 = vmatprep.subr.bf16.mxu0 0
      %6282 = vmatpush1.bf16.msra.mxu0 %v4237
      %6283 = vmatprep.subr.bf16.mxu0 0
      %6284 = vmatpush1.bf16.msra.mxu0 0
      %6285 = vmatprep.subr.bf16.mxu0 0
      %6286 = vmatpush1.bf16.msra.mxu0 0
      %6287 = vmatprep.subr.bf16.mxu0 0
      %6288 = vmatpush1.bf16.msra.mxu0 0
      %6289 = vmatprep.subr.bf16.mxu0 0
      %6290 = vmatpush1.bf16.msra.mxu0 0
      %6291 = vmatprep.subr.bf16.mxu0 0
      %6292 = vmatpush1.bf16.msra.mxu0 0
      %6293 = vmatprep.subr.bf16.mxu0 0
      %6294 = vmatpush1.bf16.msra.mxu0 0
      %6295 = vmatprep.subr.bf16.mxu0 0
      %6296 = vmatpush1.bf16.msra.mxu0 0
      %6297 = vmatprep.subr.bf16.mxu0 0
      %6298 = vmatpush1.bf16.msra.mxu0 0
      %6299 = vmatprep.subr.bf16.mxu0 0
      %6300 = vmatpush1.bf16.msra.mxu0 0
      %6301 = vmatprep.subr.bf16.mxu0 0
      %6302 = vmatpush1.bf16.msra.mxu0 0
      %6303 = vmatprep.subr.bf16.mxu0 0
      %6304 = vmatpush1.bf16.msra.mxu0 0
      %6305 = vmatprep.subr.bf16.mxu0 0
      %6306 = vmatpush1.bf16.msra.mxu0 0
      %6307 = vmatprep.subr.bf16.mxu0 0
      %6308 = vmatpush1.bf16.msra.mxu0 0
      %6309 = vmatprep.subr.bf16.mxu0 0
      %6310 = vmatpush1.bf16.msra.mxu0 0
      %6311 = vmatprep.subr.bf16.mxu0 0
      %6312 = vmatpush1.bf16.msra.mxu0 0
      %6313 = vmatprep.mubr.bf16.mxu0 0
      %6314 = vmatmul.mubr.bf16.gmra.mrb[0].mxu0 %v6279
      %v6315 = vpop.f32.mrb[0].mxu0
      %v6316 = vadd.f32 0.0, %v6315
      %v6317 = vpop.f32.mrb[0].mxu0
      %v6318 = vpop.f32.mrb[0].mxu0
      %v6319 = vpop.f32.mrb[0].mxu0
      %6320 = vdwg.mxu0
      %v6321 = vadd.f32 %v6107, %v6316
      %6322 = vrot.lane.b32.xlu0 %v5690, 104
      %v6323 = vpop.permute.xlu0 %6322
      %6324 = vrot.lane.b32.xlu0 %v5690, 72
      %v6325 = vpop.permute.xlu0 %6324
      %v6326 = vsel %vm1100, %v6323, 0
      %v6328 = vsel %vm1100, %v6325, 0
      %6330 = vmatprep.subr.mxu0 0.0
      %6331 = vmatpush1.xpose.msra.mxu0 %v6328
      %6332 = vmatprep.subr.mxu0 0.0
      %6333 = vmatpush1.xpose.msra.mxu0 0.0
      %6334 = vmatprep.subr.mxu0 0.0
      %6335 = vmatpush1.xpose.msra.mxu0 0.0
      %6336 = vmatprep.subr.mxu0 0.0
      %6337 = vmatpush1.xpose.msra.mxu0 0.0
      %6338 = vmatprep.subr.mxu0 0.0
      %6339 = vmatpush1.xpose.msra.mxu0 0.0
      %6340 = vmatprep.subr.mxu0 0.0
      %6341 = vmatpush1.xpose.msra.mxu0 0.0
      %6342 = vmatprep.subr.mxu0 0.0
      %6343 = vmatpush1.xpose.msra.mxu0 0.0
      %6344 = vmatprep.subr.mxu0 0.0
      %6345 = vmatpush1.xpose.msra.mxu0 0.0
      %6346 = vmatprep.subr.mxu0 0.0
      %6347 = vmatpush1.xpose.msra.mxu0 0.0
      %6348 = vmatprep.subr.mxu0 0.0
      %6349 = vmatpush1.xpose.msra.mxu0 0.0
      %6350 = vmatprep.subr.mxu0 0.0
      %6351 = vmatpush1.xpose.msra.mxu0 0.0
      %6352 = vmatprep.subr.mxu0 0.0
      %6353 = vmatpush1.xpose.msra.mxu0 0.0
      %6354 = vmatprep.subr.mxu0 0.0
      %6355 = vmatpush1.xpose.msra.mxu0 0.0
      %6356 = vmatprep.subr.mxu0 0.0
      %6357 = vmatpush1.xpose.msra.mxu0 0.0
      %6358 = vmatprep.subr.mxu0 0.0
      %6359 = vmatpush1.xpose.msra.mxu0 0.0
      %6360 = vmatprep.subr.mxu0 0.0
      %6361 = vmatpush1.xpose.msra.mxu0 0.0
      %6362 = vmatprep.subr.mxu0 0.0
      %6363 = vmatpush1.xpose.msra.mxu0 0.0
      %6364 = vmatprep.subr.mxu0 0.0
      %6365 = vmatpush1.xpose.msra.mxu0 0.0
      %6366 = vmatprep.subr.mxu0 0.0
      %6367 = vmatpush1.xpose.msra.mxu0 0.0
      %6368 = vmatprep.subr.mxu0 0.0
      %6369 = vmatpush1.xpose.msra.mxu0 0.0
      %6370 = vmatprep.subr.mxu0 0.0
      %6371 = vmatpush1.xpose.msra.mxu0 0.0
      %6372 = vmatprep.subr.mxu0 0.0
      %6373 = vmatpush1.xpose.msra.mxu0 0.0
      %6374 = vmatprep.subr.mxu0 0.0
      %6375 = vmatpush1.xpose.msra.mxu0 0.0
      %6376 = vmatprep.subr.mxu0 0.0
      %6377 = vmatpush1.xpose.msra.mxu0 0.0
      %6378 = vmatprep.subr.mxu0 0.0
      %6379 = vmatpush1.xpose.msra.mxu0 0.0
      %6380 = vmatprep.subr.mxu0 0.0
      %6381 = vmatpush1.xpose.msra.mxu0 0.0
      %6382 = vmatprep.subr.mxu0 0.0
      %6383 = vmatpush1.xpose.msra.mxu0 0.0
      %6384 = vmatprep.subr.mxu0 0.0
      %6385 = vmatpush1.xpose.msra.mxu0 0.0
      %6386 = vmatprep.subr.mxu0 0.0
      %6387 = vmatpush1.xpose.msra.mxu0 0.0
      %6388 = vmatprep.subr.mxu0 0.0
      %6389 = vmatpush1.xpose.msra.mxu0 0.0
      %6390 = vmatprep.subr.mxu0 0.0
      %6391 = vmatpush1.xpose.msra.mxu0 0.0
      %6392 = vmatprep.subr.mxu0 0.0
      %6393 = vmatpush1.xpose.msra.mxu0 0.0
      %6394 = vmatprep.mubr.f32.mxu0 0.0
      %6395 = vmatmul.mubr.f32.gmra.mrb[0].mxu0 %v6326
      %v6396 = vpop.f32.mrb[0].mxu0
      %v6397 = vadd.f32 0.0, %v6396
      %v6398 = vpop.f32.mrb[0].mxu0
      %6399 = vdwg.mxu0
      %v6400 = vsel %vm1100, %v6397, -inf
      %6401 = vmax.xlane.f32.xlu0 %v6400
      %v6402 = vpop.xlane.xlu0 %6401
      %v6403 = vsub.f32 %v6397, %v6402
      %v6404 = vmul.f32 %v6403, 1.442695
      %v6405 = vpow.pop %v6404
      %v6406 = vsel %vm1100, %v6405, 0.0
      %6407 = vadd.xlane.f32.xlu0 %v6406
      %v6408 = vpop.xlane.xlu0 %6407
      %v6409 = vrcp.pop %v6408
      %v6410 = vmul.f32 %v6405, %v6409
      %6411 = vrot.lane.b32.xlu0 %v5690, 40
      %v6412 = vpop.permute.xlu0 %6411
      %v6415 = vsel %vm1100, %v6410, 0
      %6417 = vmatprep.subr.mxu0 0.0
      %6418 = vmatpush1.msra.mxu0 %v6412
      %6419 = vmatprep.subr.mxu0 0.0
      %6420 = vmatpush1.msra.mxu0 0.0
      %6421 = vmatprep.subr.mxu0 0.0
      %6422 = vmatpush1.msra.mxu0 0.0
      %6423 = vmatprep.subr.mxu0 0.0
      %6424 = vmatpush1.msra.mxu0 0.0
      %6425 = vmatprep.subr.mxu0 0.0
      %6426 = vmatpush1.msra.mxu0 0.0
      %6427 = vmatprep.subr.mxu0 0.0
      %6428 = vmatpush1.msra.mxu0 0.0
      %6429 = vmatprep.subr.mxu0 0.0
      %6430 = vmatpush1.msra.mxu0 0.0
      %6431 = vmatprep.subr.mxu0 0.0
      %6432 = vmatpush1.msra.mxu0 0.0
      %6433 = vmatprep.subr.mxu0 0.0
      %6434 = vmatpush1.msra.mxu0 0.0
      %6435 = vmatprep.subr.mxu0 0.0
      %6436 = vmatpush1.msra.mxu0 0.0
      %6437 = vmatprep.subr.mxu0 0.0
      %6438 = vmatpush1.msra.mxu0 0.0
      %6439 = vmatprep.subr.mxu0 0.0
      %6440 = vmatpush1.msra.mxu0 0.0
      %6441 = vmatprep.subr.mxu0 0.0
      %6442 = vmatpush1.msra.mxu0 0.0
      %6443 = vmatprep.subr.mxu0 0.0
      %6444 = vmatpush1.msra.mxu0 0.0
      %6445 = vmatprep.subr.mxu0 0.0
      %6446 = vmatpush1.msra.mxu0 0.0
      %6447 = vmatprep.subr.mxu0 0.0
      %6448 = vmatpush1.msra.mxu0 0.0
      %6449 = vmatprep.subr.mxu0 0.0
      %6450 = vmatpush1.msra.mxu0 0.0
      %6451 = vmatprep.subr.mxu0 0.0
      %6452 = vmatpush1.msra.mxu0 0.0
      %6453 = vmatprep.subr.mxu0 0.0
      %6454 = vmatpush1.msra.mxu0 0.0
      %6455 = vmatprep.subr.mxu0 0.0
      %6456 = vmatpush1.msra.mxu0 0.0
      %6457 = vmatprep.subr.mxu0 0.0
      %6458 = vmatpush1.msra.mxu0 0.0
      %6459 = vmatprep.subr.mxu0 0.0
      %6460 = vmatpush1.msra.mxu0 0.0
      %6461 = vmatprep.subr.mxu0 0.0
      %6462 = vmatpush1.msra.mxu0 0.0
      %6463 = vmatprep.subr.mxu0 0.0
      %6464 = vmatpush1.msra.mxu0 0.0
      %6465 = vmatprep.subr.mxu0 0.0
      %6466 = vmatpush1.msra.mxu0 0.0
      %6467 = vmatprep.subr.mxu0 0.0
      %6468 = vmatpush1.msra.mxu0 0.0
      %6469 = vmatprep.subr.mxu0 0.0
      %6470 = vmatpush1.msra.mxu0 0.0
      %6471 = vmatprep.subr.mxu0 0.0
      %6472 = vmatpush1.msra.mxu0 0.0
      %6473 = vmatprep.subr.mxu0 0.0
      %6474 = vmatpush1.msra.mxu0 0.0
      %6475 = vmatprep.subr.mxu0 0.0
      %6476 = vmatpush1.msra.mxu0 0.0
      %6477 = vmatprep.subr.mxu0 0.0
      %6478 = vmatpush1.msra.mxu0 0.0
      %6479 = vmatprep.subr.mxu0 0.0
      %6480 = vmatpush1.msra.mxu0 0.0
      %6481 = vmatprep.mubr.f32.mxu0 0.0
      %6482 = vmatmul.mubr.f32.gmra.mrb[0].mxu0 %v6415
      %v6483 = vpop.f32.mrb[0].mxu0
      %v6484 = vadd.f32 0.0, %v6483
      %v6485 = vpop.f32.mrb[0].mxu0
      %6486 = vdwg.mxu0
      %v6487 = vpack.c.bf16 %v6484, %v6484
      %v6489 = vsel %vm1100, %v6487, 0
      %6491 = vmatprep.subr.bf16.mxu0 0
      %6492 = vmatpush1.bf16.msra.mxu0 %v4450
      %6493 = vmatprep.subr.bf16.mxu0 0
      %6494 = vmatpush1.bf16.msra.mxu0 0
      %6495 = vmatprep.subr.bf16.mxu0 0
      %6496 = vmatpush1.bf16.msra.mxu0 0
      %6497 = vmatprep.subr.bf16.mxu0 0
      %6498 = vmatpush1.bf16.msra.mxu0 0
      %6499 = vmatprep.subr.bf16.mxu0 0
      %6500 = vmatpush1.bf16.msra.mxu0 0
      %6501 = vmatprep.subr.bf16.mxu0 0
      %6502 = vmatpush1.bf16.msra.mxu0 0
      %6503 = vmatprep.subr.bf16.mxu0 0
      %6504 = vmatpush1.bf16.msra.mxu0 0
      %6505 = vmatprep.subr.bf16.mxu0 0
      %6506 = vmatpush1.bf16.msra.mxu0 0
      %6507 = vmatprep.subr.bf16.mxu0 0
      %6508 = vmatpush1.bf16.msra.mxu0 0
      %6509 = vmatprep.subr.bf16.mxu0 0
      %6510 = vmatpush1.bf16.msra.mxu0 0
      %6511 = vmatprep.subr.bf16.mxu0 0
      %6512 = vmatpush1.bf16.msra.mxu0 0
      %6513 = vmatprep.subr.bf16.mxu0 0
      %6514 = vmatpush1.bf16.msra.mxu0 0
      %6515 = vmatprep.subr.bf16.mxu0 0
      %6516 = vmatpush1.bf16.msra.mxu0 0
      %6517 = vmatprep.subr.bf16.mxu0 0
      %6518 = vmatpush1.bf16.msra.mxu0 0
      %6519 = vmatprep.subr.bf16.mxu0 0
      %6520 = vmatpush1.bf16.msra.mxu0 0
      %6521 = vmatprep.subr.bf16.mxu0 0
      %6522 = vmatpush1.bf16.msra.mxu0 0
      %6523 = vmatprep.mubr.bf16.mxu0 0
      %6524 = vmatmul.mubr.bf16.gmra.mrb[0].mxu0 %v6489
      %v6525 = vpop.f32.mrb[0].mxu0
      %v6526 = vadd.f32 0.0, %v6525
      %v6527 = vpop.f32.mrb[0].mxu0
      %v6528 = vpop.f32.mrb[0].mxu0
      %v6529 = vpop.f32.mrb[0].mxu0
      %6530 = vdwg.mxu0
      %v6531 = vadd.f32 %v6321, %v6526
      %v6532 = vadd.f32 %v5649, %v6531
      %v6533 = vadd.f32 %v6532, %v4498
      %v6534 = vsel %vm1049, %v6533, 0.0
      %6535 = vadd.xlane.f32.xlu0 %v6534
      %v6536 = vpop.xlane.xlu0 %6535
      %v6537 = vmul.f32 %v6536, %v2107
      %v6538 = vsub.f32 %v6533, %v6537
      %v6539 = vmul.f32 %v6538, %v6538
      %v6540 = vsel %vm1049, %v6539, 0.0
      %6541 = vadd.xlane.f32.xlu0 %v6540
      %v6542 = vpop.xlane.xlu0 %6541
      %v6543 = vmul.f32 %v6542, %v2107
      %v6544 = vadd.f32 %v6543, 1e-05
      %v6545 = vrsqrt.pop %v6544
      %v6546 = vmul.f32 %v6538, %v6545
      %v6547 = vmul.f32 %v6546, %v4518
      %v6548 = vadd.f32 %v6547, %v4525
      %v6549 = vpack.c.bf16 %v6548, %v6548
      %v6551 = vsel %vm1049, %v6549, 0
      %6553 = vmatprep.subr.bf16.mxu0 0
      %6554 = vmatpush1.bf16.msra.mxu0 %v3528
      %6555 = vmatprep.subr.bf16.mxu0 0
      %6556 = vmatpush1.bf16.msra.mxu0 %v3529
      %6557 = vmatprep.subr.bf16.mxu0 0
      %6558 = vmatpush1.bf16.msra.mxu0 0
      %6559 = vmatprep.subr.bf16.mxu0 0
      %6560 = vmatpush1.bf16.msra.mxu0 0
      %6561 = vmatprep.subr.bf16.mxu0 0
      %6562 = vmatpush1.bf16.msra.mxu0 0
      %6563 = vmatprep.subr.bf16.mxu0 0
      %6564 = vmatpush1.bf16.msra.mxu0 0
      %6565 = vmatprep.subr.bf16.mxu0 0
      %6566 = vmatpush1.bf16.msra.mxu0 0
      %6567 = vmatprep.subr.bf16.mxu0 0
      %6568 = vmatpush1.bf16.msra.mxu0 0
      %6569 = vmatprep.subr.bf16.mxu0 0
      %6570 = vmatpush1.bf16.msra.mxu0 0
      %6571 = vmatprep.subr.bf16.mxu0 0
      %6572 = vmatpush1.bf16.msra.mxu0 0
      %6573 = vmatprep.subr.bf16.mxu0 0
      %6574 = vmatpush1.bf16.msra.mxu0 0
      %6575 = vmatprep.subr.bf16.mxu0 0
      %6576 = vmatpush1.bf16.msra.mxu0 0
      %6577 = vmatprep.subr.bf16.mxu0 0
      %6578 = vmatpush1.bf16.msra.mxu0 0
      %6579 = vmatprep.subr.bf16.mxu0 0
      %6580 = vmatpush1.bf16.msra.mxu0 0
      %6581 = vmatprep.subr.bf16.mxu0 0
      %6582 = vmatpush1.bf16.msra.mxu0 0
      %6583 = vmatprep.subr.bf16.mxu0 0
      %6584 = vmatpush1.bf16.msra.mxu0 0
      %6585 = vmatprep.mubr.bf16.mxu0 0
      %6586 = vmatmul.mubr.bf16.gmra.mrb[0].mxu0 %v6551
      %v6587 = vpop.f32.mrb[0].mxu0
      %v6588 = vadd.f32 %v3519, %v6587
      %v6589 = vpop.f32.mrb[0].mxu0
      %v6590 = vpop.f32.mrb[0].mxu0
      %v6591 = vpop.f32.mrb[0].mxu0
      %6592 = vdwg.mxu0
      %v6594 = vsel %vm1100, %v6588, 0
      %6596 = vmatprep.subr.mxu0 0.0
      %6597 = vmatpush1.xpose.msra.mxu0 %v4579
      %6598 = vmatprep.subr.mxu0 0.0
      %6599 = vmatpush1.xpose.msra.mxu0 %v4582
      %6600 = vmatprep.subr.mxu0 0.0
      %6601 = vmatpush1.xpose.msra.mxu0 0.0
      %6602 = vmatprep.subr.mxu0 0.0
      %6603 = vmatpush1.xpose.msra.mxu0 0.0
      %6604 = vmatprep.subr.mxu0 0.0
      %6605 = vmatpush1.xpose.msra.mxu0 0.0
      %6606 = vmatprep.subr.mxu0 0.0
      %6607 = vmatpush1.xpose.msra.mxu0 0.0
      %6608 = vmatprep.subr.mxu0 0.0
      %6609 = vmatpush1.xpose.msra.mxu0 0.0
      %6610 = vmatprep.subr.mxu0 0.0
      %6611 = vmatpush1.xpose.msra.mxu0 0.0
      %6612 = vmatprep.subr.mxu0 0.0
      %6613 = vmatpush1.xpose.msra.mxu0 0.0
      %6614 = vmatprep.subr.mxu0 0.0
      %6615 = vmatpush1.xpose.msra.mxu0 0.0
      %6616 = vmatprep.subr.mxu0 0.0
      %6617 = vmatpush1.xpose.msra.mxu0 0.0
      %6618 = vmatprep.subr.mxu0 0.0
      %6619 = vmatpush1.xpose.msra.mxu0 0.0
      %6620 = vmatprep.subr.mxu0 0.0
      %6621 = vmatpush1.xpose.msra.mxu0 0.0
      %6622 = vmatprep.subr.mxu0 0.0
      %6623 = vmatpush1.xpose.msra.mxu0 0.0
      %6624 = vmatprep.subr.mxu0 0.0
      %6625 = vmatpush1.xpose.msra.mxu0 0.0
      %6626 = vmatprep.subr.mxu0 0.0
      %6627 = vmatpush1.xpose.msra.mxu0 0.0
      %6628 = vmatprep.subr.mxu0 0.0
      %6629 = vmatpush1.xpose.msra.mxu0 0.0
      %6630 = vmatprep.subr.mxu0 0.0
      %6631 = vmatpush1.xpose.msra.mxu0 0.0
      %6632 = vmatprep.subr.mxu0 0.0
      %6633 = vmatpush1.xpose.msra.mxu0 0.0
      %6634 = vmatprep.subr.mxu0 0.0
      %6635 = vmatpush1.xpose.msra.mxu0 0.0
      %6636 = vmatprep.subr.mxu0 0.0
      %6637 = vmatpush1.xpose.msra.mxu0 0.0
      %6638 = vmatprep.subr.mxu0 0.0
      %6639 = vmatpush1.xpose.msra.mxu0 0.0
      %6640 = vmatprep.subr.mxu0 0.0
      %6641 = vmatpush1.xpose.msra.mxu0 0.0
      %6642 = vmatprep.subr.mxu0 0.0
      %6643 = vmatpush1.xpose.msra.mxu0 0.0
      %6644 = vmatprep.subr.mxu0 0.0
      %6645 = vmatpush1.xpose.msra.mxu0 0.0
      %6646 = vmatprep.subr.mxu0 0.0
      %6647 = vmatpush1.xpose.msra.mxu0 0.0
      %6648 = vmatprep.subr.mxu0 0.0
      %6649 = vmatpush1.xpose.msra.mxu0 0.0
      %6650 = vmatprep.subr.mxu0 0.0
      %6651 = vmatpush1.xpose.msra.mxu0 0.0
      %6652 = vmatprep.subr.mxu0 0.0
      %6653 = vmatpush1.xpose.msra.mxu0 0.0
      %6654 = vmatprep.subr.mxu0 0.0
      %6655 = vmatpush1.xpose.msra.mxu0 0.0
      %6656 = vmatprep.subr.mxu0 0.0
      %6657 = vmatpush1.xpose.msra.mxu0 0.0
      %6658 = vmatprep.subr.mxu0 0.0
      %6659 = vmatpush1.xpose.msra.mxu0 0.0
      %6660 = vmatprep.mubr.f32.mxu0 0.0
      %6661 = vmatmul.mubr.f32.gmra.mrb[0].mxu0 %v6594
      %v6662 = vpop.f32.mrb[0].mxu0
      %v6663 = vadd.f32 0.0, %v6662
      %v6664 = vpop.f32.mrb[0].mxu0
      %6665 = vdwg.mxu0
      %v6666 = vsel %vm1184, %v6663, -inf
      %6667 = vmax.xlane.f32.xlu0 %v6666
      %v6668 = vpop.xlane.xlu0 %6667
      %v6669 = vsub.f32 %v6663, %v6668
      %v6670 = vmul.f32 %v6669, 1.442695
      %v6671 = vpow.pop %v6670
      %v6672 = vsel %vm1184, %v6671, 0.0
      %6673 = vadd.xlane.f32.xlu0 %v6672
      %v6674 = vpop.xlane.xlu0 %6673
      %v6675 = vrcp.pop %v6674
      %v6676 = vmul.f32 %v6671, %v6675
      %v6678 = vsel %vm1184, %v6676, 0
      %6680 = vmatprep.subr.mxu0 0.0
      %6681 = vmatpush1.msra.mxu0 %v4666
      %6682 = vmatprep.subr.mxu0 0.0
      %6683 = vmatpush1.msra.mxu0 %v4668
      %6684 = vmatprep.subr.mxu0 0.0
      %6685 = vmatpush1.msra.mxu0 0.0
      %6686 = vmatprep.subr.mxu0 0.0
      %6687 = vmatpush1.msra.mxu0 0.0
      %6688 = vmatprep.subr.mxu0 0.0
      %6689 = vmatpush1.msra.mxu0 0.0
      %6690 = vmatprep.subr.mxu0 0.0
      %6691 = vmatpush1.msra.mxu0 0.0
      %6692 = vmatprep.subr.mxu0 0.0
      %6693 = vmatpush1.msra.mxu0 0.0
      %6694 = vmatprep.subr.mxu0 0.0
      %6695 = vmatpush1.msra.mxu0 0.0
      %6696 = vmatprep.subr.mxu0 0.0
      %6697 = vmatpush1.msra.mxu0 0.0
      %6698 = vmatprep.subr.mxu0 0.0
      %6699 = vmatpush1.msra.mxu0 0.0
      %6700 = vmatprep.subr.mxu0 0.0
      %6701 = vmatpush1.msra.mxu0 0.0
      %6702 = vmatprep.subr.mxu0 0.0
      %6703 = vmatpush1.msra.mxu0 0.0
      %6704 = vmatprep.subr.mxu0 0.0
      %6705 = vmatpush1.msra.mxu0 0.0
      %6706 = vmatprep.subr.mxu0 0.0
      %6707 = vmatpush1.msra.mxu0 0.0
      %6708 = vmatprep.subr.mxu0 0.0
      %6709 = vmatpush1.msra.mxu0 0.0
      %6710 = vmatprep.subr.mxu0 0.0
      %6711 = vmatpush1.msra.mxu0 0.0
      %6712 = vmatprep.subr.mxu0 0.0
      %6713 = vmatpush1.msra.mxu0 0.0
      %6714 = vmatprep.subr.mxu0 0.0
      %6715 = vmatpush1.msra.mxu0 0.0
      %6716 = vmatprep.subr.mxu0 0.0
      %6717 = vmatpush1.msra.mxu0 0.0
      %6718 = vmatprep.subr.mxu0 0.0
      %6719 = vmatpush1.msra.mxu0 0.0
      %6720 = vmatprep.subr.mxu0 0.0
      %6721 = vmatpush1.msra.mxu0 0.0
      %6722 = vmatprep.subr.mxu0 0.0
      %6723 = vmatpush1.msra.mxu0 0.0
      %6724 = vmatprep.subr.mxu0 0.0
      %6725 = vmatpush1.msra.mxu0 0.0
      %6726 = vmatprep.subr.mxu0 0.0
      %6727 = vmatpush1.msra.mxu0 0.0
      %6728 = vmatprep.subr.mxu0 0.0
      %6729 = vmatpush1.msra.mxu0 0.0
      %6730 = vmatprep.subr.mxu0 0.0
      %6731 = vmatpush1.msra.mxu0 0.0
      %6732 = vmatprep.subr.mxu0 0.0
      %6733 = vmatpush1.msra.mxu0 0.0
      %6734 = vmatprep.subr.mxu0 0.0
      %6735 = vmatpush1.msra.mxu0 0.0
      %6736 = vmatprep.subr.mxu0 0.0
      %6737 = vmatpush1.msra.mxu0 0.0
      %6738 = vmatprep.subr.mxu0 0.0
      %6739 = vmatpush1.msra.mxu0 0.0
      %6740 = vmatprep.subr.mxu0 0.0
      %6741 = vmatpush1.msra.mxu0 0.0
      %6742 = vmatprep.subr.mxu0 0.0
      %6743 = vmatpush1.msra.mxu0 0.0
      %6744 = vmatprep.mubr.f32.mxu0 0.0
      %6745 = vmatmul.mubr.f32.gmra.mrb[0].mxu0 %v6678
      %v6746 = vpop.f32.mrb[0].mxu0
      %v6747 = vadd.f32 0.0, %v6746
      %v6748 = vpop.f32.mrb[0].mxu0
      %6749 = vdwg.mxu0
      %v6750 = vpack.c.bf16 %v6747, %v6747
      %6751 = vrot.lane.b32.xlu0 %v6588, 120
      %v6752 = vpop.permute.xlu0 %6751
      %v6753 = vsel %vm1100, %v6752, 0
      %6755 = vmatprep.subr.mxu0 0.0
      %6756 = vmatpush1.xpose.msra.mxu0 %v4753
      %6757 = vmatprep.subr.mxu0 0.0
      %6758 = vmatpush1.xpose.msra.mxu0 %v4755
      %6759 = vmatprep.subr.mxu0 0.0
      %6760 = vmatpush1.xpose.msra.mxu0 0.0
      %6761 = vmatprep.subr.mxu0 0.0
      %6762 = vmatpush1.xpose.msra.mxu0 0.0
      %6763 = vmatprep.subr.mxu0 0.0
      %6764 = vmatpush1.xpose.msra.mxu0 0.0
      %6765 = vmatprep.subr.mxu0 0.0
      %6766 = vmatpush1.xpose.msra.mxu0 0.0
      %6767 = vmatprep.subr.mxu0 0.0
      %6768 = vmatpush1.xpose.msra.mxu0 0.0
      %6769 = vmatprep.subr.mxu0 0.0
      %6770 = vmatpush1.xpose.msra.mxu0 0.0
      %6771 = vmatprep.subr.mxu0 0.0
      %6772 = vmatpush1.xpose.msra.mxu0 0.0
      %6773 = vmatprep.subr.mxu0 0.0
      %6774 = vmatpush1.xpose.msra.mxu0 0.0
      %6775 = vmatprep.subr.mxu0 0.0
      %6776 = vmatpush1.xpose.msra.mxu0 0.0
      %6777 = vmatprep.subr.mxu0 0.0
      %6778 = vmatpush1.xpose.msra.mxu0 0.0
      %6779 = vmatprep.subr.mxu0 0.0
      %6780 = vmatpush1.xpose.msra.mxu0 0.0
      %6781 = vmatprep.subr.mxu0 0.0
      %6782 = vmatpush1.xpose.msra.mxu0 0.0
      %6783 = vmatprep.subr.mxu0 0.0
      %6784 = vmatpush1.xpose.msra.mxu0 0.0
      %6785 = vmatprep.subr.mxu0 0.0
      %6786 = vmatpush1.xpose.msra.mxu0 0.0
      %6787 = vmatprep.subr.mxu0 0.0
      %6788 = vmatpush1.xpose.msra.mxu0 0.0
      %6789 = vmatprep.subr.mxu0 0.0
      %6790 = vmatpush1.xpose.msra.mxu0 0.0
      %6791 = vmatprep.subr.mxu0 0.0
      %6792 = vmatpush1.xpose.msra.mxu0 0.0
      %6793 = vmatprep.subr.mxu0 0.0
      %6794 = vmatpush1.xpose.msra.mxu0 0.0
      %6795 = vmatprep.subr.mxu0 0.0
      %6796 = vmatpush1.xpose.msra.mxu0 0.0
      %6797 = vmatprep.subr.mxu0 0.0
      %6798 = vmatpush1.xpose.msra.mxu0 0.0
      %6799 = vmatprep.subr.mxu0 0.0
      %6800 = vmatpush1.xpose.msra.mxu0 0.0
      %6801 = vmatprep.subr.mxu0 0.0
      %6802 = vmatpush1.xpose.msra.mxu0 0.0
      %6803 = vmatprep.subr.mxu0 0.0
      %6804 = vmatpush1.xpose.msra.mxu0 0.0
      %6805 = vmatprep.subr.mxu0 0.0
      %6806 = vmatpush1.xpose.msra.mxu0 0.0
      %6807 = vmatprep.subr.mxu0 0.0
      %6808 = vmatpush1.xpose.msra.mxu0 0.0
      %6809 = vmatprep.subr.mxu0 0.0
      %6810 = vmatpush1.xpose.msra.mxu0 0.0
      %6811 = vmatprep.subr.mxu0 0.0
      %6812 = vmatpush1.xpose.msra.mxu0 0.0
      %6813 = vmatprep.subr.mxu0 0.0
      %6814 = vmatpush1.xpose.msra.mxu0 0.0
      %6815 = vmatprep.subr.mxu0 0.0
      %6816 = vmatpush1.xpose.msra.mxu0 0.0
      %6817 = vmatprep.subr.mxu0 0.0
      %6818 = vmatpush1.xpose.msra.mxu0 0.0
      %6819 = vmatprep.mubr.f32.mxu0 0.0
      %6820 = vmatmul.mubr.f32.gmra.mrb[0].mxu0 %v6753
      %v6821 = vpop.f32.mrb[0].mxu0
      %v6822 = vadd.f32 0.0, %v6821
      %v6823 = vpop.f32.mrb[0].mxu0
      %6824 = vdwg.mxu0
      %v6825 = vsel %vm1184, %v6822, -inf
      %6826 = vmax.xlane.f32.xlu0 %v6825
      %v6827 = vpop.xlane.xlu0 %6826
      %v6828 = vsub.f32 %v6822, %v6827
      %v6829 = vmul.f32 %v6828, 1.442695
      %v6830 = vpow.pop %v6829
      %v6831 = vsel %vm1184, %v6830, 0.0
      %6832 = vadd.xlane.f32.xlu0 %v6831
      %v6833 = vpop.xlane.xlu0 %6832
      %v6834 = vrcp.pop %v6833
      %v6835 = vmul.f32 %v6830, %v6834
      %v6837 = vsel %vm1184, %v6835, 0
      %6839 = vmatprep.subr.mxu0 0.0
      %6840 = vmatpush1.msra.mxu0 %v4839
      %6841 = vmatprep.subr.mxu0 0.0
      %6842 = vmatpush1.msra.mxu0 %v4841
      %6843 = vmatprep.subr.mxu0 0.0
      %6844 = vmatpush1.msra.mxu0 0.0
      %6845 = vmatprep.subr.mxu0 0.0
      %6846 = vmatpush1.msra.mxu0 0.0
      %6847 = vmatprep.subr.mxu0 0.0
      %6848 = vmatpush1.msra.mxu0 0.0
      %6849 = vmatprep.subr.mxu0 0.0
      %6850 = vmatpush1.msra.mxu0 0.0
      %6851 = vmatprep.subr.mxu0 0.0
      %6852 = vmatpush1.msra.mxu0 0.0
      %6853 = vmatprep.subr.mxu0 0.0
      %6854 = vmatpush1.msra.mxu0 0.0
      %6855 = vmatprep.subr.mxu0 0.0
      %6856 = vmatpush1.msra.mxu0 0.0
      %6857 = vmatprep.subr.mxu0 0.0
      %6858 = vmatpush1.msra.mxu0 0.0
      %6859 = vmatprep.subr.mxu0 0.0
      %6860 = vmatpush1.msra.mxu0 0.0
      %6861 = vmatprep.subr.mxu0 0.0
      %6862 = vmatpush1.msra.mxu0 0.0
      %6863 = vmatprep.subr.mxu0 0.0
      %6864 = vmatpush1.msra.mxu0 0.0
      %6865 = vmatprep.subr.mxu0 0.0
      %6866 = vmatpush1.msra.mxu0 0.0
      %6867 = vmatprep.subr.mxu0 0.0
      %6868 = vmatpush1.msra.mxu0 0.0
      %6869 = vmatprep.subr.mxu0 0.0
      %6870 = vmatpush1.msra.mxu0 0.0
      %6871 = vmatprep.subr.mxu0 0.0
      %6872 = vmatpush1.msra.mxu0 0.0
      %6873 = vmatprep.subr.mxu0 0.0
      %6874 = vmatpush1.msra.mxu0 0.0
      %6875 = vmatprep.subr.mxu0 0.0
      %6876 = vmatpush1.msra.mxu0 0.0
      %6877 = vmatprep.subr.mxu0 0.0
      %6878 = vmatpush1.msra.mxu0 0.0
      %6879 = vmatprep.subr.mxu0 0.0
      %6880 = vmatpush1.msra.mxu0 0.0
      %6881 = vmatprep.subr.mxu0 0.0
      %6882 = vmatpush1.msra.mxu0 0.0
      %6883 = vmatprep.subr.mxu0 0.0
      %6884 = vmatpush1.msra.mxu0 0.0
      %6885 = vmatprep.subr.mxu0 0.0
      %6886 = vmatpush1.msra.mxu0 0.0
      %6887 = vmatprep.subr.mxu0 0.0
      %6888 = vmatpush1.msra.mxu0 0.0
      %6889 = vmatprep.subr.mxu0 0.0
      %6890 = vmatpush1.msra.mxu0 0.0
      %6891 = vmatprep.subr.mxu0 0.0
      %6892 = vmatpush1.msra.mxu0 0.0
      %6893 = vmatprep.subr.mxu0 0.0
      %6894 = vmatpush1.msra.mxu0 0.0
      %6895 = vmatprep.subr.mxu0 0.0
      %6896 = vmatpush1.msra.mxu0 0.0
      %6897 = vmatprep.subr.mxu0 0.0
      %6898 = vmatpush1.msra.mxu0 0.0
      %6899 = vmatprep.subr.mxu0 0.0
      %6900 = vmatpush1.msra.mxu0 0.0
      %6901 = vmatprep.subr.mxu0 0.0
      %6902 = vmatpush1.msra.mxu0 0.0
      %6903 = vmatprep.mubr.f32.mxu0 0.0
      %6904 = vmatmul.mubr.f32.gmra.mrb[0].mxu0 %v6837
      %v6905 = vpop.f32.mrb[0].mxu0
      %v6906 = vadd.f32 0.0, %v6905
      %v6907 = vpop.f32.mrb[0].mxu0
      %6908 = vdwg.mxu0
      %v6909 = vpack.c.bf16 %v6906, %v6906
      %v6911 = vsel %vm1100, %v6909, 0
      %6913 = vmatprep.subr.bf16.mxu0 0
      %6914 = vmatpush1.bf16.msra.mxu0 %v4922
      %6915 = vmatprep.subr.bf16.mxu0 0
      %6916 = vmatpush1.bf16.msra.mxu0 0
      %6917 = vmatprep.subr.bf16.mxu0 0
      %6918 = vmatpush1.bf16.msra.mxu0 0
      %6919 = vmatprep.subr.bf16.mxu0 0
      %6920 = vmatpush1.bf16.msra.mxu0 0
      %6921 = vmatprep.subr.bf16.mxu0 0
      %6922 = vmatpush1.bf16.msra.mxu0 0
      %6923 = vmatprep.subr.bf16.mxu0 0
      %6924 = vmatpush1.bf16.msra.mxu0 0
      %6925 = vmatprep.subr.bf16.mxu0 0
      %6926 = vmatpush1.bf16.msra.mxu0 0
      %6927 = vmatprep.subr.bf16.mxu0 0
      %6928 = vmatpush1.bf16.msra.mxu0 0
      %6929 = vmatprep.subr.bf16.mxu0 0
      %6930 = vmatpush1.bf16.msra.mxu0 0
      %6931 = vmatprep.subr.bf16.mxu0 0
      %6932 = vmatpush1.bf16.msra.mxu0 0
      %6933 = vmatprep.subr.bf16.mxu0 0
      %6934 = vmatpush1.bf16.msra.mxu0 0
      %6935 = vmatprep.subr.bf16.mxu0 0
      %6936 = vmatpush1.bf16.msra.mxu0 0
      %6937 = vmatprep.subr.bf16.mxu0 0
      %6938 = vmatpush1.bf16.msra.mxu0 0
      %6939 = vmatprep.subr.bf16.mxu0 0
      %6940 = vmatpush1.bf16.msra.mxu0 0
      %6941 = vmatprep.subr.bf16.mxu0 0
      %6942 = vmatpush1.bf16.msra.mxu0 0
      %6943 = vmatprep.subr.bf16.mxu0 0
      %6944 = vmatpush1.bf16.msra.mxu0 0
      %6945 = vmatprep.mubr.bf16.mxu0 0
      %6946 = vmatmul.mubr.bf16.gmra.mrb[0].mxu0 %v6911
      %v6947 = vpop.f32.mrb[0].mxu0
      %v6948 = vadd.f32 0.0, %v6947
      %v6949 = vpop.f32.mrb[0].mxu0
      %v6950 = vpop.f32.mrb[0].mxu0
      %v6951 = vpop.f32.mrb[0].mxu0
      %6952 = vdwg.mxu0
      %v6954 = vsel %vm1100, %v6750, 0
      %6956 = vmatprep.subr.bf16.mxu0 0
      %6957 = vmatpush1.bf16.msra.mxu0 %v4968
      %6958 = vmatprep.subr.bf16.mxu0 0
      %6959 = vmatpush1.bf16.msra.mxu0 0
      %6960 = vmatprep.subr.bf16.mxu0 0
      %6961 = vmatpush1.bf16.msra.mxu0 0
      %6962 = vmatprep.subr.bf16.mxu0 0
      %6963 = vmatpush1.bf16.msra.mxu0 0
      %6964 = vmatprep.subr.bf16.mxu0 0
      %6965 = vmatpush1.bf16.msra.mxu0 0
      %6966 = vmatprep.subr.bf16.mxu0 0
      %6967 = vmatpush1.bf16.msra.mxu0 0
      %6968 = vmatprep.subr.bf16.mxu0 0
      %6969 = vmatpush1.bf16.msra.mxu0 0
      %6970 = vmatprep.subr.bf16.mxu0 0
      %6971 = vmatpush1.bf16.msra.mxu0 0
      %6972 = vmatprep.subr.bf16.mxu0 0
      %6973 = vmatpush1.bf16.msra.mxu0 0
      %6974 = vmatprep.subr.bf16.mxu0 0
      %6975 = vmatpush1.bf16.msra.mxu0 0
      %6976 = vmatprep.subr.bf16.mxu0 0
      %6977 = vmatpush1.bf16.msra.mxu0 0
      %6978 = vmatprep.subr.bf16.mxu0 0
      %6979 = vmatpush1.bf16.msra.mxu0 0
      %6980 = vmatprep.subr.bf16.mxu0 0
      %6981 = vmatpush1.bf16.msra.mxu0 0
      %6982 = vmatprep.subr.bf16.mxu0 0
      %6983 = vmatpush1.bf16.msra.mxu0 0
      %6984 = vmatprep.subr.bf16.mxu0 0
      %6985 = vmatpush1.bf16.msra.mxu0 0
      %6986 = vmatprep.subr.bf16.mxu0 0
      %6987 = vmatpush1.bf16.msra.mxu0 0
      %6988 = vmatprep.mubr.bf16.mxu0 0
      %6989 = vmatmul.mubr.bf16.gmra.mrb[0].mxu0 %v6954
      %v6990 = vpop.f32.mrb[0].mxu0
      %v6991 = vadd.f32 %v6948, %v6990
      %v6992 = vpop.f32.mrb[0].mxu0
      %v6993 = vpop.f32.mrb[0].mxu0
      %v6994 = vpop.f32.mrb[0].mxu0
      %6995 = vdwg.mxu0
      %6996 = vrot.lane.b32.xlu0 %v6588, 112
      %v6997 = vpop.permute.xlu0 %6996
      %v6998 = vsel %vm1100, %v6997, 0
      %7000 = vmatprep.subr.mxu0 0.0
      %7001 = vmatpush1.xpose.msra.mxu0 %v5018
      %7002 = vmatprep.subr.mxu0 0.0
      %7003 = vmatpush1.xpose.msra.mxu0 %v5020
      %7004 = vmatprep.subr.mxu0 0.0
      %7005 = vmatpush1.xpose.msra.mxu0 0.0
      %7006 = vmatprep.subr.mxu0 0.0
      %7007 = vmatpush1.xpose.msra.mxu0 0.0
      %7008 = vmatprep.subr.mxu0 0.0
      %7009 = vmatpush1.xpose.msra.mxu0 0.0
      %7010 = vmatprep.subr.mxu0 0.0
      %7011 = vmatpush1.xpose.msra.mxu0 0.0
      %7012 = vmatprep.subr.mxu0 0.0
      %7013 = vmatpush1.xpose.msra.mxu0 0.0
      %7014 = vmatprep.subr.mxu0 0.0
      %7015 = vmatpush1.xpose.msra.mxu0 0.0
      %7016 = vmatprep.subr.mxu0 0.0
      %7017 = vmatpush1.xpose.msra.mxu0 0.0
      %7018 = vmatprep.subr.mxu0 0.0
      %7019 = vmatpush1.xpose.msra.mxu0 0.0
      %7020 = vmatprep.subr.mxu0 0.0
      %7021 = vmatpush1.xpose.msra.mxu0 0.0
      %7022 = vmatprep.subr.mxu0 0.0
      %7023 = vmatpush1.xpose.msra.mxu0 0.0
      %7024 = vmatprep.subr.mxu0 0.0
      %7025 = vmatpush1.xpose.msra.mxu0 0.0
      %7026 = vmatprep.subr.mxu0 0.0
      %7027 = vmatpush1.xpose.msra.mxu0 0.0
      %7028 = vmatprep.subr.mxu0 0.0
      %7029 = vmatpush1.xpose.msra.mxu0 0.0
      %7030 = vmatprep.subr.mxu0 0.0
      %7031 = vmatpush1.xpose.msra.mxu0 0.0
      %7032 = vmatprep.subr.mxu0 0.0
      %7033 = vmatpush1.xpose.msra.mxu0 0.0
      %7034 = vmatprep.subr.mxu0 0.0
      %7035 = vmatpush1.xpose.msra.mxu0 0.0
      %7036 = vmatprep.subr.mxu0 0.0
      %7037 = vmatpush1.xpose.msra.mxu0 0.0
      %7038 = vmatprep.subr.mxu0 0.0
      %7039 = vmatpush1.xpose.msra.mxu0 0.0
      %7040 = vmatprep.subr.mxu0 0.0
      %7041 = vmatpush1.xpose.msra.mxu0 0.0
      %7042 = vmatprep.subr.mxu0 0.0
      %7043 = vmatpush1.xpose.msra.mxu0 0.0
      %7044 = vmatprep.subr.mxu0 0.0
      %7045 = vmatpush1.xpose.msra.mxu0 0.0
      %7046 = vmatprep.subr.mxu0 0.0
      %7047 = vmatpush1.xpose.msra.mxu0 0.0
      %7048 = vmatprep.subr.mxu0 0.0
      %7049 = vmatpush1.xpose.msra.mxu0 0.0
      %7050 = vmatprep.subr.mxu0 0.0
      %7051 = vmatpush1.xpose.msra.mxu0 0.0
      %7052 = vmatprep.subr.mxu0 0.0
      %7053 = vmatpush1.xpose.msra.mxu0 0.0
      %7054 = vmatprep.subr.mxu0 0.0
      %7055 = vmatpush1.xpose.msra.mxu0 0.0
      %7056 = vmatprep.subr.mxu0 0.0
      %7057 = vmatpush1.xpose.msra.mxu0 0.0
      %7058 = vmatprep.subr.mxu0 0.0
      %7059 = vmatpush1.xpose.msra.mxu0 0.0
      %7060 = vmatprep.subr.mxu0 0.0
      %7061 = vmatpush1.xpose.msra.mxu0 0.0
      %7062 = vmatprep.subr.mxu0 0.0
      %7063 = vmatpush1.xpose.msra.mxu0 0.0
      %7064 = vmatprep.mubr.f32.mxu0 0.0
      %7065 = vmatmul.mubr.f32.gmra.mrb[0].mxu0 %v6998
      %v7066 = vpop.f32.mrb[0].mxu0
      %v7067 = vadd.f32 0.0, %v7066
      %v7068 = vpop.f32.mrb[0].mxu0
      %7069 = vdwg.mxu0
      %v7070 = vsel %vm1184, %v7067, -inf
      %7071 = vmax.xlane.f32.xlu0 %v7070
      %v7072 = vpop.xlane.xlu0 %7071
      %v7073 = vsub.f32 %v7067, %v7072
      %v7074 = vmul.f32 %v7073, 1.442695
      %v7075 = vpow.pop %v7074
      %v7076 = vsel %vm1184, %v7075, 0.0
      %7077 = vadd.xlane.f32.xlu0 %v7076
      %v7078 = vpop.xlane.xlu0 %7077
      %v7079 = vrcp.pop %v7078
      %v7080 = vmul.f32 %v7075, %v7079
      %v7082 = vsel %vm1184, %v7080, 0
      %7084 = vmatprep.subr.mxu0 0.0
      %7085 = vmatpush1.msra.mxu0 %v5104
      %7086 = vmatprep.subr.mxu0 0.0
      %7087 = vmatpush1.msra.mxu0 %v5106
      %7088 = vmatprep.subr.mxu0 0.0
      %7089 = vmatpush1.msra.mxu0 0.0
      %7090 = vmatprep.subr.mxu0 0.0
      %7091 = vmatpush1.msra.mxu0 0.0
      %7092 = vmatprep.subr.mxu0 0.0
      %7093 = vmatpush1.msra.mxu0 0.0
      %7094 = vmatprep.subr.mxu0 0.0
      %7095 = vmatpush1.msra.mxu0 0.0
      %7096 = vmatprep.subr.mxu0 0.0
      %7097 = vmatpush1.msra.mxu0 0.0
      %7098 = vmatprep.subr.mxu0 0.0
      %7099 = vmatpush1.msra.mxu0 0.0
      %7100 = vmatprep.subr.mxu0 0.0
      %7101 = vmatpush1.msra.mxu0 0.0
      %7102 = vmatprep.subr.mxu0 0.0
      %7103 = vmatpush1.msra.mxu0 0.0
      %7104 = vmatprep.subr.mxu0 0.0
      %7105 = vmatpush1.msra.mxu0 0.0
      %7106 = vmatprep.subr.mxu0 0.0
      %7107 = vmatpush1.msra.mxu0 0.0
      %7108 = vmatprep.subr.mxu0 0.0
      %7109 = vmatpush1.msra.mxu0 0.0
      %7110 = vmatprep.subr.mxu0 0.0
      %7111 = vmatpush1.msra.mxu0 0.0
      %7112 = vmatprep.subr.mxu0 0.0
      %7113 = vmatpush1.msra.mxu0 0.0
      %7114 = vmatprep.subr.mxu0 0.0
      %7115 = vmatpush1.msra.mxu0 0.0
      %7116 = vmatprep.subr.mxu0 0.0
      %7117 = vmatpush1.msra.mxu0 0.0
      %7118 = vmatprep.subr.mxu0 0.0
      %7119 = vmatpush1.msra.mxu0 0.0
      %7120 = vmatprep.subr.mxu0 0.0
      %7121 = vmatpush1.msra.mxu0 0.0
      %7122 = vmatprep.subr.mxu0 0.0
      %7123 = vmatpush1.msra.mxu0 0.0
      %7124 = vmatprep.subr.mxu0 0.0
      %7125 = vmatpush1.msra.mxu0 0.0
      %7126 = vmatprep.subr.mxu0 0.0
      %7127 = vmatpush1.msra.mxu0 0.0
      %7128 = vmatprep.subr.mxu0 0.0
      %7129 = vmatpush1.msra.mxu0 0.0
      %7130 = vmatprep.subr.mxu0 0.0
      %7131 = vmatpush1.msra.mxu0 0.0
      %7132 = vmatprep.subr.mxu0 0.0
      %7133 = vmatpush1.msra.mxu0 0.0
      %7134 = vmatprep.subr.mxu0 0.0
      %7135 = vmatpush1.msra.mxu0 0.0
      %7136 = vmatprep.subr.mxu0 0.0
      %7137 = vmatpush1.msra.mxu0 0.0
      %7138 = vmatprep.subr.mxu0 0.0
      %7139 = vmatpush1.msra.mxu0 0.0
      %7140 = vmatprep.subr.mxu0 0.0
      %7141 = vmatpush1.msra.mxu0 0.0
      %7142 = vmatprep.subr.mxu0 0.0
      %7143 = vmatpush1.msra.mxu0 0.0
      %7144 = vmatprep.subr.mxu0 0.0
      %7145 = vmatpush1.msra.mxu0 0.0
      %7146 = vmatprep.subr.mxu0 0.0
      %7147 = vmatpush1.msra.mxu0 0.0
      %7148 = vmatprep.mubr.f32.mxu0 0.0
      %7149 = vmatmul.mubr.f32.gmra.mrb[0].mxu0 %v7082
      %v7150 = vpop.f32.mrb[0].mxu0
      %v7151 = vadd.f32 0.0, %v7150
      %v7152 = vpop.f32.mrb[0].mxu0
      %7153 = vdwg.mxu0
      %v7154 = vpack.c.bf16 %v7151, %v7151
      %v7156 = vsel %vm1100, %v7154, 0
      %7158 = vmatprep.subr.bf16.mxu0 0
      %7159 = vmatpush1.bf16.msra.mxu0 %v5187
      %7160 = vmatprep.subr.bf16.mxu0 0
      %7161 = vmatpush1.bf16.msra.mxu0 0
      %7162 = vmatprep.subr.bf16.mxu0 0
      %7163 = vmatpush1.bf16.msra.mxu0 0
      %7164 = vmatprep.subr.bf16.mxu0 0
      %7165 = vmatpush1.bf16.msra.mxu0 0
      %7166 = vmatprep.subr.bf16.mxu0 0
      %7167 = vmatpush1.bf16.msra.mxu0 0
      %7168 = vmatprep.subr.bf16.mxu0 0
      %7169 = vmatpush1.bf16.msra.mxu0 0
      %7170 = vmatprep.subr.bf16.mxu0 0
      %7171 = vmatpush1.bf16.msra.mxu0 0
      %7172 = vmatprep.subr.bf16.mxu0 0
      %7173 = vmatpush1.bf16.msra.mxu0 0
      %7174 = vmatprep.subr.bf16.mxu0 0
      %7175 = vmatpush1.bf16.msra.mxu0 0
      %7176 = vmatprep.subr.bf16.mxu0 0
      %7177 = vmatpush1.bf16.msra.mxu0 0
      %7178 = vmatprep.subr.bf16.mxu0 0
      %7179 = vmatpush1.bf16.msra.mxu0 0
      %7180 = vmatprep.subr.bf16.mxu0 0
      %7181 = vmatpush1.bf16.msra.mxu0 0
      %7182 = vmatprep.subr.bf16.mxu0 0
      %7183 = vmatpush1.bf16.msra.mxu0 0
      %7184 = vmatprep.subr.bf16.mxu0 0
      %7185 = vmatpush1.bf16.msra.mxu0 0
      %7186 = vmatprep.subr.bf16.mxu0 0
      %7187 = vmatpush1.bf16.msra.mxu0 0
      %7188 = vmatprep.subr.bf16.mxu0 0
      %7189 = vmatpush1.bf16.msra.mxu0 0
      %7190 = vmatprep.mubr.bf16.mxu0 0
      %7191 = vmatmul.mubr.bf16.gmra.mrb[0].mxu0 %v7156
      %v7192 = vpop.f32.mrb[0].mxu0
      %v7193 = vadd.f32 0.0, %v7192
      %v7194 = vpop.f32.mrb[0].mxu0
      %v7195 = vpop.f32.mrb[0].mxu0
      %v7196 = vpop.f32.mrb[0].mxu0
      %7197 = vdwg.mxu0
      %v7198 = vadd.f32 %v6991, %v7193
      %7199 = vrot.lane.b32.xlu0 %v6588, 104
      %v7200 = vpop.permute.xlu0 %7199
      %v7201 = vsel %vm1100, %v7200, 0
      %7203 = vmatprep.subr.mxu0 0.0
      %7204 = vmatpush1.xpose.msra.mxu0 %v5238
      %7205 = vmatprep.subr.mxu0 0.0
      %7206 = vmatpush1.xpose.msra.mxu0 %v5240
      %7207 = vmatprep.subr.mxu0 0.0
      %7208 = vmatpush1.xpose.msra.mxu0 0.0
      %7209 = vmatprep.subr.mxu0 0.0
      %7210 = vmatpush1.xpose.msra.mxu0 0.0
      %7211 = vmatprep.subr.mxu0 0.0
      %7212 = vmatpush1.xpose.msra.mxu0 0.0
      %7213 = vmatprep.subr.mxu0 0.0
      %7214 = vmatpush1.xpose.msra.mxu0 0.0
      %7215 = vmatprep.subr.mxu0 0.0
      %7216 = vmatpush1.xpose.msra.mxu0 0.0
      %7217 = vmatprep.subr.mxu0 0.0
      %7218 = vmatpush1.xpose.msra.mxu0 0.0
      %7219 = vmatprep.subr.mxu0 0.0
      %7220 = vmatpush1.xpose.msra.mxu0 0.0
      %7221 = vmatprep.subr.mxu0 0.0
      %7222 = vmatpush1.xpose.msra.mxu0 0.0
      %7223 = vmatprep.subr.mxu0 0.0
      %7224 = vmatpush1.xpose.msra.mxu0 0.0
      %7225 = vmatprep.subr.mxu0 0.0
      %7226 = vmatpush1.xpose.msra.mxu0 0.0
      %7227 = vmatprep.subr.mxu0 0.0
      %7228 = vmatpush1.xpose.msra.mxu0 0.0
      %7229 = vmatprep.subr.mxu0 0.0
      %7230 = vmatpush1.xpose.msra.mxu0 0.0
      %7231 = vmatprep.subr.mxu0 0.0
      %7232 = vmatpush1.xpose.msra.mxu0 0.0
      %7233 = vmatprep.subr.mxu0 0.0
      %7234 = vmatpush1.xpose.msra.mxu0 0.0
      %7235 = vmatprep.subr.mxu0 0.0
      %7236 = vmatpush1.xpose.msra.mxu0 0.0
      %7237 = vmatprep.subr.mxu0 0.0
      %7238 = vmatpush1.xpose.msra.mxu0 0.0
      %7239 = vmatprep.subr.mxu0 0.0
      %7240 = vmatpush1.xpose.msra.mxu0 0.0
      %7241 = vmatprep.subr.mxu0 0.0
      %7242 = vmatpush1.xpose.msra.mxu0 0.0
      %7243 = vmatprep.subr.mxu0 0.0
      %7244 = vmatpush1.xpose.msra.mxu0 0.0
      %7245 = vmatprep.subr.mxu0 0.0
      %7246 = vmatpush1.xpose.msra.mxu0 0.0
      %7247 = vmatprep.subr.mxu0 0.0
      %7248 = vmatpush1.xpose.msra.mxu0 0.0
      %7249 = vmatprep.subr.mxu0 0.0
      %7250 = vmatpush1.xpose.msra.mxu0 0.0
      %7251 = vmatprep.subr.mxu0 0.0
      %7252 = vmatpush1.xpose.msra.mxu0 0.0
      %7253 = vmatprep.subr.mxu0 0.0
      %7254 = vmatpush1.xpose.msra.mxu0 0.0
      %7255 = vmatprep.subr.mxu0 0.0
      %7256 = vmatpush1.xpose.msra.mxu0 0.0
      %7257 = vmatprep.subr.mxu0 0.0
      %7258 = vmatpush1.xpose.msra.mxu0 0.0
      %7259 = vmatprep.subr.mxu0 0.0
      %7260 = vmatpush1.xpose.msra.mxu0 0.0
      %7261 = vmatprep.subr.mxu0 0.0
      %7262 = vmatpush1.xpose.msra.mxu0 0.0
      %7263 = vmatprep.subr.mxu0 0.0
      %7264 = vmatpush1.xpose.msra.mxu0 0.0
      %7265 = vmatprep.subr.mxu0 0.0
      %7266 = vmatpush1.xpose.msra.mxu0 0.0
      %7267 = vmatprep.mubr.f32.mxu0 0.0
      %7268 = vmatmul.mubr.f32.gmra.mrb[0].mxu0 %v7201
      %v7269 = vpop.f32.mrb[0].mxu0
      %v7270 = vadd.f32 0.0, %v7269
      %v7271 = vpop.f32.mrb[0].mxu0
      %7272 = vdwg.mxu0
      %v7273 = vsel %vm1184, %v7270, -inf
      %7274 = vmax.xlane.f32.xlu0 %v7273
      %v7275 = vpop.xlane.xlu0 %7274
      %v7276 = vsub.f32 %v7270, %v7275
      %v7277 = vmul.f32 %v7276, 1.442695
      %v7278 = vpow.pop %v7277
      %v7279 = vsel %vm1184, %v7278, 0.0
      %7280 = vadd.xlane.f32.xlu0 %v7279
      %v7281 = vpop.xlane.xlu0 %7280
      %v7282 = vrcp.pop %v7281
      %v7283 = vmul.f32 %v7278, %v7282
      %v7285 = vsel %vm1184, %v7283, 0
      %7287 = vmatprep.subr.mxu0 0.0
      %7288 = vmatpush1.msra.mxu0 %v5324
      %7289 = vmatprep.subr.mxu0 0.0
      %7290 = vmatpush1.msra.mxu0 %v5326
      %7291 = vmatprep.subr.mxu0 0.0
      %7292 = vmatpush1.msra.mxu0 0.0
      %7293 = vmatprep.subr.mxu0 0.0
      %7294 = vmatpush1.msra.mxu0 0.0
      %7295 = vmatprep.subr.mxu0 0.0
      %7296 = vmatpush1.msra.mxu0 0.0
      %7297 = vmatprep.subr.mxu0 0.0
      %7298 = vmatpush1.msra.mxu0 0.0
      %7299 = vmatprep.subr.mxu0 0.0
      %7300 = vmatpush1.msra.mxu0 0.0
      %7301 = vmatprep.subr.mxu0 0.0
      %7302 = vmatpush1.msra.mxu0 0.0
      %7303 = vmatprep.subr.mxu0 0.0
      %7304 = vmatpush1.msra.mxu0 0.0
      %7305 = vmatprep.subr.mxu0 0.0
      %7306 = vmatpush1.msra.mxu0 0.0
      %7307 = vmatprep.subr.mxu0 0.0
      %7308 = vmatpush1.msra.mxu0 0.0
      %7309 = vmatprep.subr.mxu0 0.0
      %7310 = vmatpush1.msra.mxu0 0.0
      %7311 = vmatprep.subr.mxu0 0.0
      %7312 = vmatpush1.msra.mxu0 0.0
      %7313 = vmatprep.subr.mxu0 0.0
      %7314 = vmatpush1.msra.mxu0 0.0
      %7315 = vmatprep.subr.mxu0 0.0
      %7316 = vmatpush1.msra.mxu0 0.0
      %7317 = vmatprep.subr.mxu0 0.0
      %7318 = vmatpush1.msra.mxu0 0.0
      %7319 = vmatprep.subr.mxu0 0.0
      %7320 = vmatpush1.msra.mxu0 0.0
      %7321 = vmatprep.subr.mxu0 0.0
      %7322 = vmatpush1.msra.mxu0 0.0
      %7323 = vmatprep.subr.mxu0 0.0
      %7324 = vmatpush1.msra.mxu0 0.0
      %7325 = vmatprep.subr.mxu0 0.0
      %7326 = vmatpush1.msra.mxu0 0.0
      %7327 = vmatprep.subr.mxu0 0.0
      %7328 = vmatpush1.msra.mxu0 0.0
      %7329 = vmatprep.subr.mxu0 0.0
      %7330 = vmatpush1.msra.mxu0 0.0
      %7331 = vmatprep.subr.mxu0 0.0
      %7332 = vmatpush1.msra.mxu0 0.0
      %7333 = vmatprep.subr.mxu0 0.0
      %7334 = vmatpush1.msra.mxu0 0.0
      %7335 = vmatprep.subr.mxu0 0.0
      %7336 = vmatpush1.msra.mxu0 0.0
      %7337 = vmatprep.subr.mxu0 0.0
      %7338 = vmatpush1.msra.mxu0 0.0
      %7339 = vmatprep.subr.mxu0 0.0
      %7340 = vmatpush1.msra.mxu0 0.0
      %7341 = vmatprep.subr.mxu0 0.0
      %7342 = vmatpush1.msra.mxu0 0.0
      %7343 = vmatprep.subr.mxu0 0.0
      %7344 = vmatpush1.msra.mxu0 0.0
      %7345 = vmatprep.subr.mxu0 0.0
      %7346 = vmatpush1.msra.mxu0 0.0
      %7347 = vmatprep.subr.mxu0 0.0
      %7348 = vmatpush1.msra.mxu0 0.0
      %7349 = vmatprep.subr.mxu0 0.0
      %7350 = vmatpush1.msra.mxu0 0.0
      %7351 = vmatprep.mubr.f32.mxu0 0.0
      %7352 = vmatmul.mubr.f32.gmra.mrb[0].mxu0 %v7285
      %v7353 = vpop.f32.mrb[0].mxu0
      %v7354 = vadd.f32 0.0, %v7353
      %v7355 = vpop.f32.mrb[0].mxu0
      %7356 = vdwg.mxu0
      %v7357 = vpack.c.bf16 %v7354, %v7354
      %v7359 = vsel %vm1100, %v7357, 0
      %7361 = vmatprep.subr.bf16.mxu0 0
      %7362 = vmatpush1.bf16.msra.mxu0 %v5407
      %7363 = vmatprep.subr.bf16.mxu0 0
      %7364 = vmatpush1.bf16.msra.mxu0 0
      %7365 = vmatprep.subr.bf16.mxu0 0
      %7366 = vmatpush1.bf16.msra.mxu0 0
      %7367 = vmatprep.subr.bf16.mxu0 0
      %7368 = vmatpush1.bf16.msra.mxu0 0
      %7369 = vmatprep.subr.bf16.mxu0 0
      %7370 = vmatpush1.bf16.msra.mxu0 0
      %7371 = vmatprep.subr.bf16.mxu0 0
      %7372 = vmatpush1.bf16.msra.mxu0 0
      %7373 = vmatprep.subr.bf16.mxu0 0
      %7374 = vmatpush1.bf16.msra.mxu0 0
      %7375 = vmatprep.subr.bf16.mxu0 0
      %7376 = vmatpush1.bf16.msra.mxu0 0
      %7377 = vmatprep.subr.bf16.mxu0 0
      %7378 = vmatpush1.bf16.msra.mxu0 0
      %7379 = vmatprep.subr.bf16.mxu0 0
      %7380 = vmatpush1.bf16.msra.mxu0 0
      %7381 = vmatprep.subr.bf16.mxu0 0
      %7382 = vmatpush1.bf16.msra.mxu0 0
      %7383 = vmatprep.subr.bf16.mxu0 0
      %7384 = vmatpush1.bf16.msra.mxu0 0
      %7385 = vmatprep.subr.bf16.mxu0 0
      %7386 = vmatpush1.bf16.msra.mxu0 0
      %7387 = vmatprep.subr.bf16.mxu0 0
      %7388 = vmatpush1.bf16.msra.mxu0 0
      %7389 = vmatprep.subr.bf16.mxu0 0
      %7390 = vmatpush1.bf16.msra.mxu0 0
      %7391 = vmatprep.subr.bf16.mxu0 0
      %7392 = vmatpush1.bf16.msra.mxu0 0
      %7393 = vmatprep.mubr.bf16.mxu0 0
      %7394 = vmatmul.mubr.bf16.gmra.mrb[0].mxu0 %v7359
      %v7395 = vpop.f32.mrb[0].mxu0
      %v7396 = vadd.f32 0.0, %v7395
      %v7397 = vpop.f32.mrb[0].mxu0
      %v7398 = vpop.f32.mrb[0].mxu0
      %v7399 = vpop.f32.mrb[0].mxu0
      %7400 = vdwg.mxu0
      %v7401 = vadd.f32 %v7198, %v7396
      %v7402 = vadd.f32 %v6548, %v7401
      %v7403 = vadd.f32 %v7402, %v5455
      %v7404 = vsel %vm1049, %v7403, 0.0
      %7405 = vadd.xlane.f32.xlu0 %v7404
      %v7406 = vpop.xlane.xlu0 %7405
      %v7407 = vmul.f32 %v7406, %v2107
      %v7408 = vsub.f32 %v7403, %v7407
      %v7409 = vmul.f32 %v7408, %v7408
      %v7410 = vsel %vm1049, %v7409, 0.0
      %7411 = vadd.xlane.f32.xlu0 %v7410
      %v7412 = vpop.xlane.xlu0 %7411
      %v7413 = vmul.f32 %v7412, %v2107
      %v7414 = vadd.f32 %v7413, 1e-05
      %v7415 = vrsqrt.pop %v7414
      %v7416 = vmul.f32 %v7408, %v7415
      %v7417 = vmul.f32 %v7416, %v5475
      %v7418 = vadd.f32 %v7417, %v5482
      %v7419 = vpack.c.bf16 %v7418, %v7418
      %v7421 = vsel %vm1049, %v7419, 0
      %7423 = vmatprep.subr.bf16.mxu0 0
      %7424 = vmatpush1.bf16.msra.mxu0 %v5500
      %7425 = vmatprep.subr.bf16.mxu0 0
      %7426 = vmatpush1.bf16.msra.mxu0 %v5501
      %7427 = vmatprep.subr.bf16.mxu0 0
      %7428 = vmatpush1.bf16.msra.mxu0 0
      %7429 = vmatprep.subr.bf16.mxu0 0
      %7430 = vmatpush1.bf16.msra.mxu0 0
      %7431 = vmatprep.subr.bf16.mxu0 0
      %7432 = vmatpush1.bf16.msra.mxu0 0
      %7433 = vmatprep.subr.bf16.mxu0 0
      %7434 = vmatpush1.bf16.msra.mxu0 0
      %7435 = vmatprep.subr.bf16.mxu0 0
      %7436 = vmatpush1.bf16.msra.mxu0 0
      %7437 = vmatprep.subr.bf16.mxu0 0
      %7438 = vmatpush1.bf16.msra.mxu0 0
      %7439 = vmatprep.subr.bf16.mxu0 0
      %7440 = vmatpush1.bf16.msra.mxu0 0
      %7441 = vmatprep.subr.bf16.mxu0 0
      %7442 = vmatpush1.bf16.msra.mxu0 0
      %7443 = vmatprep.subr.bf16.mxu0 0
      %7444 = vmatpush1.bf16.msra.mxu0 0
      %7445 = vmatprep.subr.bf16.mxu0 0
      %7446 = vmatpush1.bf16.msra.mxu0 0
      %7447 = vmatprep.subr.bf16.mxu0 0
      %7448 = vmatpush1.bf16.msra.mxu0 0
      %7449 = vmatprep.subr.bf16.mxu0 0
      %7450 = vmatpush1.bf16.msra.mxu0 0
      %7451 = vmatprep.subr.bf16.mxu0 0
      %7452 = vmatpush1.bf16.msra.mxu0 0
      %7453 = vmatprep.subr.bf16.mxu0 0
      %7454 = vmatpush1.bf16.msra.mxu0 0
      %7455 = vmatprep.mubr.bf16.mxu0 0
      %7456 = vmatmul.mubr.bf16.gmra.mrb[0].mxu0 %v7421
      %v7457 = vpop.f32.mrb[0].mxu0
      %v7458 = vadd.f32 %v5490, %v7457
      %v7459 = vpop.f32.mrb[0].mxu0
      %v7460 = vpop.f32.mrb[0].mxu0
      %v7461 = vpop.f32.mrb[0].mxu0
      %7462 = vdwg.mxu0
      %v7463 = vmax.f32 %v7458, 0.0
      %v7464 = vpack.c.bf16 %v7463, %v7463
      %v7466 = vsel %vm2240, %v7464, 0
      %7468 = vmatprep.subr.bf16.mxu0 0
      %7469 = vmatpush1.bf16.msra.mxu0 %v5571
      %7470 = vmatprep.subr.bf16.mxu0 0
      %7471 = vmatpush1.bf16.msra.mxu0 %v5572
      %7472 = vmatprep.subr.bf16.mxu0 0
      %7473 = vmatpush1.bf16.msra.mxu0 %v5573
      %7474 = vmatprep.subr.bf16.mxu0 0
      %7475 = vmatpush1.bf16.msra.mxu0 %v5574
      %7476 = vmatprep.subr.bf16.mxu0 0
      %7477 = vmatpush1.bf16.msra.mxu0 0
      %7478 = vmatprep.subr.bf16.mxu0 0
      %7479 = vmatpush1.bf16.msra.mxu0 0
      %7480 = vmatprep.subr.bf16.mxu0 0
      %7481 = vmatpush1.bf16.msra.mxu0 0
      %7482 = vmatprep.subr.bf16.mxu0 0
      %7483 = vmatpush1.bf16.msra.mxu0 0
      %7484 = vmatprep.subr.bf16.mxu0 0
      %7485 = vmatpush1.bf16.msra.mxu0 0
      %7486 = vmatprep.subr.bf16.mxu0 0
      %7487 = vmatpush1.bf16.msra.mxu0 0
      %7488 = vmatprep.subr.bf16.mxu0 0
      %7489 = vmatpush1.bf16.msra.mxu0 0
      %7490 = vmatprep.subr.bf16.mxu0 0
      %7491 = vmatpush1.bf16.msra.mxu0 0
      %7492 = vmatprep.subr.bf16.mxu0 0
      %7493 = vmatpush1.bf16.msra.mxu0 0
      %7494 = vmatprep.subr.bf16.mxu0 0
      %7495 = vmatpush1.bf16.msra.mxu0 0
      %7496 = vmatprep.subr.bf16.mxu0 0
      %7497 = vmatpush1.bf16.msra.mxu0 0
      %7498 = vmatprep.subr.bf16.mxu0 0
      %7499 = vmatpush1.bf16.msra.mxu0 0
      %7500 = vmatprep.mubr.bf16.mxu0 0
      %7501 = vmatmul.mubr.bf16.gmra.mrb[0].mxu0 %v7466
      %v7502 = vpop.f32.mrb[0].mxu0
      %v7503 = vadd.f32 %v5553, %v7502
      %v7504 = vpop.f32.mrb[0].mxu0
      %v7505 = vpop.f32.mrb[0].mxu0
      %v7506 = vpop.f32.mrb[0].mxu0
      %7507 = vdwg.mxu0
      %v7508 = vadd.f32 %v7418, %v7503
      %v7509 = vsel %vm1049, %v7508, 0.0
      %7510 = vadd.xlane.f32.xlu0 %v7509
      %v7511 = vpop.xlane.xlu0 %7510
      %v7512 = vmul.f32 %v7511, %v2107
      %v7513 = vsub.f32 %v7508, %v7512
      %v7514 = vmul.f32 %v7513, %v7513
      %v7515 = vsel %vm1049, %v7514, 0.0
      %7516 = vadd.xlane.f32.xlu0 %v7515
      %v7517 = vpop.xlane.xlu0 %7516
      %v7518 = vmul.f32 %v7517, %v2107
      %v7519 = vadd.f32 %v7518, 1e-05
      %v7520 = vrsqrt.pop %v7519
      %v7521 = vmul.f32 %v7513, %v7520
      %v7522 = vmul.f32 %v7521, %v5640
      %v7523 = vadd.f32 %v7522, %v5647
      %s7524 = scalar_lea.vmem %s958, 8
      %7525 = vst.msk [vmem:[%s7524] sm:$0xff] %vm1049, %v7523
      %p7526 = scmp.lt.s32.totalorder %s74, 1
      %s7527 = scalar_select %p7526, %s74, 1
      %s7528 = smul.addr %s7527, 2
      %s7529 = smul.addr %s7528, 8
      %s7530 = scalar_lea.vmem %s63, %s7529
      // Predicated region
      $region145: #{transformer_forward.1} parent=143 // pred_check
        %p7531 = pneg %p748
      $region146: #{transformer_forward.1} parent=143 // pred_check_branch
        %7533 = sbr.rel (%p7531) target = $region148
      $region147: #{transformer_forward.1} parent=143 // pred_region
        _
      $region148: #{transformer_forward.1} parent=143 // pred_fallthru
        _
    $region144: #{transformer_forward.1} parent=5 // pred_fallthru
      _
    %p7534 = scmp.le.s32.totalorder 2, %s69
    // Predicated region
    $region149: #{transformer_forward.1} parent=5 // pred_check
      %p7535 = pneg %p7534
    $region150: #{transformer_forward.1} parent=5 // pred_check_branch
      %7537 = sbr.rel (%p7535) target = $region152
    $region151: #{transformer_forward.1} parent=5 // pred_region
      %s7538 = ssub.s32 %s69, 2
      // Predicated region
      $region153: #{transformer_forward.1} parent=151 // pred_check
        %p7539 = pneg %p754
      $region154: #{transformer_forward.1} parent=151 // pred_check_branch
        %7541 = sbr.rel (%p7539) target = $region156
      $region155: #{transformer_forward.1} parent=151 // pred_region
        %p7542 = scmp.lt.s32.totalorder %s75, 1
        %s7543 = scalar_select %p7542, %s75, 1
        %s7544 = smul.addr %s7543, 2
        %s7545 = smul.addr %s7544, 8
        %s7546 = scalar_lea.vmem %s63, %s7545
      $region156: #{transformer_forward.1} parent=151 // pred_fallthru
        _
    $region152: #{transformer_forward.1} parent=5 // pred_fallthru
      _
  $region6: #{transformer_forward.1} parent=0 // loop_footer
    %s73 = sadd.s32 1, %s69
  $region7: #{transformer_forward.1} parent=0 // loop_footer_branch
    %68 = sbr.rel target = $region3
  $region8: #{transformer_forward.1} parent=0 // loop_exit
    _

</llo_original>
